<compile_context>
chip_gen: v7x
topology: tpu7x:2x2x1
jax: 0.10.0
libtpu: 0.0.40
codegen_flags: <defaults>
</compile_context>

<pallas_src>
import functools

import jax
import jax.numpy as jnp
import numpy as np
from jax.experimental import pallas as pl
from jax.experimental.pallas import tpu as pltpu

_LN_EPS = 1e-5


def _sent_attn_kernel(x_ref, wi_ref, bi_ref, wh_ref, bhn_ref,
                      gamma_ref, beta_ref, waT_ref, ba_ref, wc_ref, bc_ref,
                      out_ref, score_ref, xp_ref, g_ref):
    """Fused forward for one block of documents: bi-GRU -> LayerNorm -> attention."""
    f32, bf16 = jnp.float32, jnp.bfloat16
    L, R, I = x_ref.shape              # R = docs_per_block * B rows (sublane axis)
    _, DPB, D2 = out_ref.shape         # D2 = 2 * sent_dims
    H = D2 // 2
    B = R // DPB                       # module batch per document
    G6 = wi_ref.shape[1]               # 6 * H gate columns
    S = waT_ref.shape[1]

    # --- Hoisted input projection: one bf16 MXU matmul covering every doc, timestep,
    # gate and direction.  r/z input+hidden biases are pre-folded into bi.
    x2 = x_ref[...].reshape(L * R, I)                                   # bf16, R % 8 == 0
    xp_ref[...] = (jnp.dot(x2, wi_ref[...], preferred_element_type=f32)
                   + bi_ref[...])                                       # (L*R, 6H) f32

    wh = wh_ref[...]                                                    # (2H, 6H) bf16, block-diag by dir
    bhn = bhn_ref[...]                                                  # (1, 6H) f32, n-gate hidden bias only

    # Lane mask selecting forward-direction columns of the gate-major / direction-minor
    # layout [r_f r_b z_f z_b n_f n_b].
    col = jax.lax.broadcasted_iota(jnp.int32, (R, G6), 1)
    fwd_mask = ((col < H) | ((col >= 2 * H) & (col < 3 * H))
                | ((col >= 4 * H) & (col < 5 * H)))

    # --- Serial bi-GRU recurrence.  Both directions advance together (fwd state in
    # lanes [0,H), bwd in [H,2H)); all docs in the block share one MXU matmul per step.
    h = jnp.zeros((R, D2), f32)
    for t in range(L):                  # L is small & static -> unrolled
        # fwd gates read x[t], bwd gates read x[L-1-t]: one per-lane select.
        xs = jnp.where(fwd_mask,
                       xp_ref[t * R:(t + 1) * R, :],
                       xp_ref[(L - 1 - t) * R:(L - t) * R, :])          # (R, 6H) f32
        gh = jnp.dot(h.astype(bf16), wh, preferred_element_type=f32) + bhn
        rz = jax.nn.sigmoid(xs[:, :2 * D2] + gh[:, :2 * D2])            # (R, 4H) = [r_f r_b z_f z_b]
        r = rz[:, :D2]
        z = rz[:, D2:]
        n = jnp.tanh(xs[:, 2 * D2:] + r * gh[:, 2 * D2:])               # (R, 2H) = [n_f n_b]
        h = (1.0 - z) * n + z * h
        # Re-pair directions time-wise while storing (the bwd state of loop step t
        # belongs to original time L-1-t); also bounds vreg live ranges.
        g_ref[t, :, :H] = h[:, :H]
        g_ref[L - 1 - t, :, H:] = h[:, H:]

    g = g_ref[...]                                                      # (L, R, 2H)

    # --- LayerNorm over features (eps=1e-5, biased variance).
    mean = jnp.mean(g, axis=-1, keepdims=True)
    var = jnp.mean(jnp.square(g - mean), axis=-1, keepdims=True)
    gn = (g - mean) * jax.lax.rsqrt(var + _LN_EPS)
    gn = gn * gamma_ref[...] + beta_ref[...]                            # (L, R, 2H)

    # --- Attention: tanh(Linear) -> context logits -> per-doc softmax over B ->
    # per-doc weighted sum.  Doc-group reductions are matmuls against a 0/1 pooling
    # matrix (lane-dense, MXU-friendly, no lane/sublane relayouts).
    a2 = jnp.tanh(jnp.dot(gn.reshape(L * R, D2).astype(bf16), waT_ref[...],
                          preferred_element_type=f32) + ba_ref[...])    # (L*R, S)
    a3 = a2.reshape(L, R, S)
    logits = jnp.sum(a3 * wc_ref[...], axis=-1) + bc_ref[...]           # (L, R)

    d_row = jax.lax.broadcasted_iota(jnp.int32, (R, DPB), 1)
    r_row = jax.lax.broadcasted_iota(jnp.int32, (R, DPB), 0)
    P = ((r_row >= d_row * B) & (r_row < d_row * B + B)).astype(f32)    # (R, DPB)
    d_col = jax.lax.broadcasted_iota(jnp.int32, (DPB, R), 0)
    r_col = jax.lax.broadcasted_iota(jnp.int32, (DPB, R), 1)
    PT = ((r_col >= d_col * B) & (r_col < d_col * B + B)).astype(f32)   # (DPB, R)

    m = jnp.max(logits, axis=1, keepdims=True)      # per-row stabiliser (softmax is shift-invariant)
    e = jnp.exp(logits - m)                                             # (L, R)
    denom = jnp.dot(e, P, preferred_element_type=f32)                   # (L, DPB) per-doc sums
    denom_full = jnp.dot(denom, PT, preferred_element_type=f32)         # (L, R) broadcast back
    score = e * pl.reciprocal(denom_full, approx=False)                 # per-doc softmax over B
    score_ref[...] = score.T                                            # (R, L): lane dim = full array dim

    # out[l, d, :] = sum_b score[l, d*B+b] * gn[l, d*B+b, :]   (batched matmul over l)
    w_pool = PT[None, :, :] * score[:, None, :]                         # (L, DPB, R)
    out_ref[...] = jax.lax.dot_general(
        w_pool, gn, (((2,), (1,)), ((0,), (0,))),
        preferred_element_type=f32)                                     # (L, DPB, 2H)


def pack_params(params):
    """One-time packing of module weights into the kernel layout (bf16 MXU operands)."""
    f32, bf16 = jnp.float32, jnp.bfloat16
    H = params["wh_f"].shape[-1]
    zh = jnp.zeros((H, H), f32)
    fwd_h = lambda w: jnp.concatenate([w.T.astype(f32), zh], axis=0)    # (2H, H)
    bwd_h = lambda w: jnp.concatenate([zh, w.T.astype(f32)], axis=0)

    wi_f, wh_f = params["wi_f"], params["wh_f"]
    wi_b, wh_b = params["wi_b"], params["wh_b"]
    # Gate-major / direction-minor column order: [r_f r_b z_f z_b n_f n_b].
    wi = jnp.concatenate([wi_f[0].T, wi_b[0].T, wi_f[1].T, wi_b[1].T,
                          wi_f[2].T, wi_b[2].T], axis=1).astype(bf16)               # (I, 6H)
    wh = jnp.concatenate([fwd_h(wh_f[0]), bwd_h(wh_b[0]), fwd_h(wh_f[1]),
                          bwd_h(wh_b[1]), fwd_h(wh_f[2]), bwd_h(wh_b[2])],
                         axis=1).astype(bf16)                                       # (2H, 6H)

    bif, bhf = params["bi_f"], params["bh_f"]
    bib, bhb = params["bi_b"], params["bh_b"]
    # r/z: fold input + hidden biases into the hoisted projection.  n: only the input
    # bias folds; the hidden bias stays inside r * (Wh_n h + bhn).
    bias_i = jnp.concatenate([bif[0] + bhf[0], bib[0] + bhb[0],
                              bif[1] + bhf[1], bib[1] + bhb[1],
                              bif[2], bib[2]], axis=0)[None, :].astype(f32)          # (1, 6H)
    bias_hn = jnp.concatenate([jnp.zeros((4 * H,), f32), bhf[2], bhb[2]],
                              axis=0)[None, :].astype(f32)                           # (1, 6H)
    S = params["wa"].shape[0]
    return {
        "wi": wi, "bias_i": bias_i, "wh": wh, "bias_hn": bias_hn,
        "gamma": params["ln_gamma"].reshape(1, 2 * H).astype(f32),
        "beta": params["ln_beta"].reshape(1, 2 * H).astype(f32),
        "waT": params["wa"].T.astype(bf16),
        "ba": params["ba"].reshape(1, S).astype(f32),
        "wc": params["wc"].reshape(1, S).astype(f32),
        "bc": params["bc"].reshape(1, 1).astype(f32),
    }


def _docs_per_block(batch_per_doc, target_rows=32):
    """Docs per grid block.  Multiple of 8 so every trailing block dim stays
    (8,128)-friendly; raise target_rows (-> MiB-scale blocks) for real workloads."""
    dpb = 8
    while (dpb + 8) * batch_per_doc <= target_rows:
        dpb += 8
    return dpb


@functools.partial(jax.jit, static_argnames=("docs_per_block",))
def sent_attn_net_forward_batched(docs, packed, docs_per_block=None):
    """Batched forward over independent documents.

    docs: (N, L, B, 2*word_dims) -> (sents_embed (N, L, 2*sent_dims), score (N, L, B))
    """
    bf16 = jnp.bfloat16
    N, L, B, I = docs.shape
    D2 = packed["wh"].shape[0]
    G6 = packed["wi"].shape[1]
    dpb = docs_per_block if docs_per_block is not None else _docs_per_block(B)
    n_pad = -N % dpb
    NP = N + n_pad
    R = dpb * B

    x = docs.astype(bf16)                      # bf16 activations: halves input HBM bytes
    if n_pad:
        x = jnp.concatenate([x, jnp.zeros((n_pad, L, B, I), bf16)], axis=0)
    # Time-major with doc*batch stacked on the recurrence row (sublane) axis.
    x = x.transpose(1, 0, 2, 3).reshape(L, NP * B, I)

    def full(a):
        nd = a.ndim
        return pl.BlockSpec(a.shape, lambda i, _nd=nd: (0,) * _nd)

    out_t, score_t = pl.pallas_call(
        _sent_attn_kernel,
        grid=(NP // dpb,),
        in_specs=[pl.BlockSpec((L, R, I), lambda i: (0, i, 0)),
                  full(packed["wi"]), full(packed["bias_i"]),
                  full(packed["wh"]), full(packed["bias_hn"]),
                  full(packed["gamma"]), full(packed["beta"]),
                  full(packed["waT"]), full(packed["ba"]),
                  full(packed["wc"]), full(packed["bc"])],
        out_specs=[pl.BlockSpec((L, dpb, D2), lambda i: (0, i, 0)),
                   pl.BlockSpec((R, L), lambda i: (i, 0))],
        out_shape=(jax.ShapeDtypeStruct((L, NP, D2), jnp.float32),
                   jax.ShapeDtypeStruct((NP * B, L), jnp.float32)),
        scratch_shapes=[pltpu.VMEM((L * R, G6), jnp.float32),   # hoisted input projection
                        pltpu.VMEM((L, R, D2), jnp.float32)],   # re-paired GRU outputs
        compiler_params=pltpu.CompilerParams(dimension_semantics=("parallel",)),
    )(x, packed["wi"], packed["bias_i"], packed["wh"], packed["bias_hn"],
      packed["gamma"], packed["beta"], packed["waT"], packed["ba"],
      packed["wc"], packed["bc"])

    # Cheap layout plumbing outside the kernel.
    out = out_t.transpose(1, 0, 2)[:N]                          # (N, L, 2H)
    score = score_t.reshape(NP, B, L).transpose(0, 2, 1)[:N]    # (N, L, B)
    return out, score


@jax.jit
def sent_attn_net_forward(words_embed, packed):
    """Module-equivalent forward for one document:
    (L, B, 2*word_dims) -> (sents_embed (L, 2*sent_dims), attn_score (L, B))."""
    out, score = sent_attn_net_forward_batched(words_embed[None], packed)
    return out[0], score[0]


def reference_forward(x, params):
    """Pure-JAX reference mirroring the PyTorch module semantics (single doc)."""
    def gru_dir(wi, wh, bi, bh, reverse):
        Lr, Br, _ = x.shape
        Hh = wh.shape[-1]
        h = jnp.zeros((Br, Hh), jnp.float32)
        outs = [None] * Lr
        steps = range(Lr - 1, -1, -1) if reverse else range(Lr)
        for t in steps:
            xt = x[t]
            r = jax.nn.sigmoid(xt @ wi[0].T + bi[0] + h @ wh[0].T + bh[0])
            z = jax.nn.sigmoid(xt @ wi[1].T + bi[1] + h @ wh[1].T + bh[1])
            n = jnp.tanh(xt @ wi[2].T + bi[2] + r * (h @ wh[2].T + bh[2]))
            h = (1.0 - z) * n + z * h
            outs[t] = h
        return jnp.stack(outs, axis=0)

    hf = gru_dir(params["wi_f"], params["wh_f"], params["bi_f"], params["bh_f"], False)
    hb = gru_dir(params["wi_b"], params["wh_b"], params["bi_b"], params["bh_b"], True)
    g = jnp.concatenate([hf, hb], axis=-1)
    mean = g.mean(-1, keepdims=True)
    var = ((g - mean) ** 2).mean(-1, keepdims=True)
    gn = (g - mean) / jnp.sqrt(var + _LN_EPS) * params["ln_gamma"] + params["ln_beta"]
    a = jnp.tanh(gn @ params["wa"].T + params["ba"])
    logits = (a @ params["wc"].T)[..., 0] + params["bc"][0]
    score = jax.nn.softmax(logits, axis=1)
    out = jnp.einsum("lbd,lb->ld", gn, score)
    return out, score


def init_params(key, word_dims, sent_dims):
    I = 2 * word_dims
    H = sent_dims
    k = 1.0 / np.sqrt(H)
    keys = jax.random.split(key, 12)
    u = lambda kk, shape: jax.random.uniform(kk, shape, jnp.float32, -k, k)
    return {
        # GRU weights stacked per gate in PyTorch order [r, z, n], each (out, in).
        "wi_f": u(keys[0], (3, H, I)),  "wh_f": u(keys[1], (3, H, H)),
        "bi_f": u(keys[2], (3, H)),     "bh_f": u(keys[3], (3, H)),
        "wi_b": u(keys[4], (3, H, I)),  "wh_b": u(keys[5], (3, H, H)),
        "bi_b": u(keys[6], (3, H)),     "bh_b": u(keys[7], (3, H)),
        "ln_gamma": jnp.ones((2 * H,), jnp.float32),
        "ln_beta": jnp.zeros((2 * H,), jnp.float32),
        "wa": u(keys[8], (H, 2 * H)),   "ba": u(keys[9], (H,)),
        "wc": u(keys[10], (1, H)),      "bc": u(keys[11], (1,)),
    }


if __name__ == "__main__":
    word_dims, sent_dims = 16, 32
    L, B = 8, 4          # sentences per doc, batch (softmax axis of the module)
    N = 16               # documents batched through the parallel doc grid

    key = jax.random.PRNGKey(0)
    k_x, k_p = jax.random.split(key)
    docs = jax.random.normal(k_x, (N, L, B, 2 * word_dims), jnp.float32)
    params = init_params(k_p, word_dims, sent_dims)
    packed = pack_params(params)          # one-time weight packing (outside per-call path)

    out_b, score_b = sent_attn_net_forward_batched(docs, packed)
    jax.block_until_ready((out_b, score_b))

    out1, score1 = sent_attn_net_forward(docs[0], packed)   # module-equivalent single doc
    jax.block_until_ready((out1, score1))

    ref_out, ref_score = jax.vmap(reference_forward, in_axes=(0, None))(docs, params)
    np.testing.assert_allclose(np.asarray(out_b), np.asarray(ref_out), atol=3e-2, rtol=3e-2)
    np.testing.assert_allclose(np.asarray(score_b), np.asarray(ref_score), atol=3e-2, rtol=3e-2)
    np.testing.assert_allclose(np.asarray(out1), np.asarray(ref_out[0]), atol=3e-2, rtol=3e-2)
    np.testing.assert_allclose(np.asarray(score1), np.asarray(ref_score[0]), atol=3e-2, rtol=3e-2)
    assert out_b.shape == (N, L, 2 * sent_dims) and score_b.shape == (N, L, B)
    assert out1.shape == (L, 2 * sent_dims) and score1.shape == (L, B)
    print("KERNEL_OK")
</pallas_src>

<mosaic_0001>
module attributes {stable_mosaic.version = 11 : i64} {
  func.func @_sent_attn_kernel(%arg0: i32, %arg1: memref<8x32x32xbf16, #tpu.memory_space<vmem>>, %arg2: memref<32x192xbf16, #tpu.memory_space<vmem>>, %arg3: memref<1x192xf32, #tpu.memory_space<vmem>>, %arg4: memref<64x192xbf16, #tpu.memory_space<vmem>>, %arg5: memref<1x192xf32, #tpu.memory_space<vmem>>, %arg6: memref<1x64xf32, #tpu.memory_space<vmem>>, %arg7: memref<1x64xf32, #tpu.memory_space<vmem>>, %arg8: memref<64x32xbf16, #tpu.memory_space<vmem>>, %arg9: memref<1x32xf32, #tpu.memory_space<vmem>>, %arg10: memref<1x32xf32, #tpu.memory_space<vmem>>, %arg11: memref<1x1xf32, #tpu.memory_space<vmem>>, %arg12: memref<8x8x64xf32, #tpu.memory_space<vmem>>, %arg13: memref<32x8xf32, #tpu.memory_space<vmem>>, %arg14: memref<256x192xf32, #tpu.memory_space<vmem>>, %arg15: memref<8x32x64xf32, #tpu.memory_space<vmem>>) attributes {dimension_semantics = [#tpu.dimension_semantics<parallel>], iteration_bounds = array<i64: 2>, scalar_prefetch = 0 : i64, scratch_operands = 2 : i64, tpu.core_type = #tpu.core_type<tc>, window_params = [{transform_indices = @transform_0, window_bounds = array<i64: 8, 32, 32>}, {pipeline_mode = #tpu.pipeline_mode<synchronous>, transform_indices = @transform_1, window_bounds = array<i64: 32, 192>}, {pipeline_mode = #tpu.pipeline_mode<synchronous>, transform_indices = @transform_2, window_bounds = array<i64: 1, 192>}, {pipeline_mode = #tpu.pipeline_mode<synchronous>, transform_indices = @transform_3, window_bounds = array<i64: 64, 192>}, {pipeline_mode = #tpu.pipeline_mode<synchronous>, transform_indices = @transform_4, window_bounds = array<i64: 1, 192>}, {pipeline_mode = #tpu.pipeline_mode<synchronous>, transform_indices = @transform_5, window_bounds = array<i64: 1, 64>}, {pipeline_mode = #tpu.pipeline_mode<synchronous>, transform_indices = @transform_6, window_bounds = array<i64: 1, 64>}, {pipeline_mode = #tpu.pipeline_mode<synchronous>, transform_indices = @transform_7, window_bounds = array<i64: 64, 32>}, {pipeline_mode = #tpu.pipeline_mode<synchronous>, transform_indices = @transform_8, window_bounds = array<i64: 1, 32>}, {pipeline_mode = #tpu.pipeline_mode<synchronous>, transform_indices = @transform_9, window_bounds = array<i64: 1, 32>}, {pipeline_mode = #tpu.pipeline_mode<synchronous>, transform_indices = @transform_10, window_bounds = array<i64: 1, 1>}, {transform_indices = @transform_11, window_bounds = array<i64: 8, 8, 64>}, {transform_indices = @transform_12, window_bounds = array<i64: 32, 8>}]} {
    %c0 = arith.constant 0 : index
    %c0_0 = arith.constant 0 : index
    %c0_1 = arith.constant 0 : index
    %0 = vector.load %arg1[%c0, %c0_0, %c0_1] : memref<8x32x32xbf16, #tpu.memory_space<vmem>>, vector<8x32x32xbf16>
    %1 = vector.shape_cast %0 : vector<8x32x32xbf16> to vector<256x32xbf16>
    %c0_2 = arith.constant 0 : index
    %c0_3 = arith.constant 0 : index
    %2 = vector.load %arg2[%c0_2, %c0_3] : memref<32x192xbf16, #tpu.memory_space<vmem>>, vector<32x192xbf16>
    %cst = arith.constant dense<0.000000e+00> : vector<256x192xf32>
    %3 = tpu.matmul %1, %2, %cst {dimension_numbers = #tpu.dot_dimension_numbers<[1], [0], [0], [1], [0, 0, 1, 1], [], []>} : vector<256x32xbf16>, vector<32x192xbf16>, vector<256x192xf32> -> vector<256x192xf32>
    %c0_4 = arith.constant 0 : index
    %c0_5 = arith.constant 0 : index
    %4 = vector.load %arg3[%c0_4, %c0_5] : memref<1x192xf32, #tpu.memory_space<vmem>>, vector<1x192xf32>
    %5 = vector.broadcast %4 : vector<1x192xf32> to vector<256x192xf32>
    %6 = arith.addf %3, %5 : vector<256x192xf32>
    %c0_6 = arith.constant 0 : index
    %c0_7 = arith.constant 0 : index
    %7 = vector.load %arg14[%c0_6, %c0_7] : memref<256x192xf32, #tpu.memory_space<vmem>>, vector<256x192xf32>
    tpu.vector_store %arg14[%c0_6, %c0_7], %6 {strides = array<i32>} : memref<256x192xf32, #tpu.memory_space<vmem>>, vector<256x192xf32>,
    %c0_8 = arith.constant 0 : index
    %c0_9 = arith.constant 0 : index
    %8 = vector.load %arg4[%c0_8, %c0_9] : memref<64x192xbf16, #tpu.memory_space<vmem>>, vector<64x192xbf16>
    %c0_10 = arith.constant 0 : index
    %c0_11 = arith.constant 0 : index
    %9 = vector.load %arg5[%c0_10, %c0_11] : memref<1x192xf32, #tpu.memory_space<vmem>>, vector<1x192xf32>
    %10 = tpu.iota {dimensions = array<i32: 1>} : vector<32x192xi32>
    %c32_i32 = arith.constant 32 : i32
    %11 = vector.broadcast %c32_i32 : i32 to vector<32x192xi32>
    %12 = arith.cmpi slt, %10, %11 : vector<32x192xi32>
    %c64_i32 = arith.constant 64 : i32
    %13 = vector.broadcast %c64_i32 : i32 to vector<32x192xi32>
    %14 = arith.cmpi sge, %10, %13 : vector<32x192xi32>
    %c96_i32 = arith.constant 96 : i32
    %15 = vector.broadcast %c96_i32 : i32 to vector<32x192xi32>
    %16 = arith.cmpi slt, %10, %15 : vector<32x192xi32>
    %17 = arith.andi %14, %16 : vector<32x192xi1>
    %18 = arith.ori %12, %17 : vector<32x192xi1>
    %c128_i32 = arith.constant 128 : i32
    %19 = vector.broadcast %c128_i32 : i32 to vector<32x192xi32>
    %20 = arith.cmpi sge, %10, %19 : vector<32x192xi32>
    %c160_i32 = arith.constant 160 : i32
    %21 = vector.broadcast %c160_i32 : i32 to vector<32x192xi32>
    %22 = arith.cmpi slt, %10, %21 : vector<32x192xi32>
    %23 = arith.andi %20, %22 : vector<32x192xi1>
    %24 = arith.ori %18, %23 : vector<32x192xi1>
    %cst_12 = arith.constant 0.000000e+00 : f32
    %25 = vector.broadcast %cst_12 : f32 to vector<32x64xf32>
    %c0_13 = arith.constant 0 : index
    %c0_14 = arith.constant 0 : index
    %26 = vector.load %arg14[%c0_13, %c0_14] : memref<256x192xf32, #tpu.memory_space<vmem>>, vector<32x192xf32>
    %c224 = arith.constant 224 : index
    %c0_15 = arith.constant 0 : index
    %27 = vector.load %arg14[%c224, %c0_15] : memref<256x192xf32, #tpu.memory_space<vmem>>, vector<32x192xf32>
    %28 = arith.select %24, %26, %27 : vector<32x192xi1>, vector<32x192xf32>
    %29 = arith.truncf %25 : vector<32x64xf32> to vector<32x64xbf16>
    %cst_16 = arith.constant dense<0.000000e+00> : vector<32x192xf32>
    %30 = tpu.matmul %29, %8, %cst_16 {dimension_numbers = #tpu.dot_dimension_numbers<[1], [0], [0], [1], [0, 0, 1, 1], [], []>} : vector<32x64xbf16>, vector<64x192xbf16>, vector<32x192xf32> -> vector<32x192xf32>
    %31 = vector.broadcast %9 : vector<1x192xf32> to vector<32x192xf32>
    %32 = arith.addf %30, %31 : vector<32x192xf32>
    %33 = vector.extract_strided_slice %28 {offsets = [0, 0], sizes = [32, 128], strides = [1, 1]} : vector<32x192xf32> to vector<32x128xf32>
    %34 = vector.extract_strided_slice %32 {offsets = [0, 0], sizes = [32, 128], strides = [1, 1]} : vector<32x192xf32> to vector<32x128xf32>
    %35 = arith.addf %33, %34 : vector<32x128xf32>
    %36 = arith.negf %35 : vector<32x128xf32>
    %37 = math.exp %36 : vector<32x128xf32>
    %cst_17 = arith.constant 1.000000e+00 : f32
    %38 = vector.broadcast %cst_17 : f32 to vector<32x128xf32>
    %39 = arith.addf %38, %37 : vector<32x128xf32>
    %40 = arith.divf %38, %39 : vector<32x128xf32>
    %41 = vector.extract_strided_slice %40 {offsets = [0, 0], sizes = [32, 64], strides = [1, 1]} : vector<32x128xf32> to vector<32x64xf32>
    %42 = vector.extract_strided_slice %40 {offsets = [0, 64], sizes = [32, 64], strides = [1, 1]} : vector<32x128xf32> to vector<32x64xf32>
    %43 = vector.extract_strided_slice %28 {offsets = [0, 128], sizes = [32, 64], strides = [1, 1]} : vector<32x192xf32> to vector<32x64xf32>
    %44 = vector.extract_strided_slice %32 {offsets = [0, 128], sizes = [32, 64], strides = [1, 1]} : vector<32x192xf32> to vector<32x64xf32>
    %45 = arith.mulf %41, %44 : vector<32x64xf32>
    %46 = arith.addf %43, %45 : vector<32x64xf32>
    %47 = math.tanh %46 : vector<32x64xf32>
    %cst_18 = arith.constant 1.000000e+00 : f32
    %48 = vector.broadcast %cst_18 : f32 to vector<32x64xf32>
    %49 = arith.subf %48, %42 : vector<32x64xf32>
    %50 = arith.mulf %49, %47 : vector<32x64xf32>
    %51 = arith.mulf %42, %25 : vector<32x64xf32>
    %52 = arith.addf %50, %51 : vector<32x64xf32>
    %53 = vector.extract_strided_slice %52 {offsets = [0, 0], sizes = [32, 32], strides = [1, 1]} : vector<32x64xf32> to vector<32x32xf32>
    %c0_19 = arith.constant 0 : index
    %c0_20 = arith.constant 0 : index
    %c0_21 = arith.constant 0 : index
    %54 = vector.load %arg15[%c0_19, %c0_20, %c0_21] : memref<8x32x64xf32, #tpu.memory_space<vmem>>, vector<1x32x32xf32>
    %55 = vector.shape_cast %54 : vector<1x32x32xf32> to vector<32x32xf32>
    %56 = vector.shape_cast %53 : vector<32x32xf32> to vector<1x32x32xf32>
    tpu.vector_store %arg15[%c0_19, %c0_20, %c0_21], %56 {strides = array<i32>} : memref<8x32x64xf32, #tpu.memory_space<vmem>>, vector<1x32x32xf32>,
    %57 = vector.extract_strided_slice %52 {offsets = [0, 32], sizes = [32, 32], strides = [1, 1]} : vector<32x64xf32> to vector<32x32xf32>
    %c7 = arith.constant 7 : index
    %c0_22 = arith.constant 0 : index
    %c32 = arith.constant 32 : index
    %58 = vector.load %arg15[%c7, %c0_22, %c32] : memref<8x32x64xf32, #tpu.memory_space<vmem>>, vector<1x32x32xf32>
    %59 = vector.shape_cast %58 : vector<1x32x32xf32> to vector<32x32xf32>
    %60 = vector.shape_cast %57 : vector<32x32xf32> to vector<1x32x32xf32>
    tpu.vector_store %arg15[%c7, %c0_22, %c32], %60 {strides = array<i32>} : memref<8x32x64xf32, #tpu.memory_space<vmem>>, vector<1x32x32xf32>,
    %c32_23 = arith.constant 32 : index
    %c0_24 = arith.constant 0 : index
    %61 = vector.load %arg14[%c32_23, %c0_24] : memref<256x192xf32, #tpu.memory_space<vmem>>, vector<32x192xf32>
    %c192 = arith.constant 192 : index
    %c0_25 = arith.constant 0 : index
    %62 = vector.load %arg14[%c192, %c0_25] : memref<256x192xf32, #tpu.memory_space<vmem>>, vector<32x192xf32>
    %63 = arith.select %24, %61, %62 : vector<32x192xi1>, vector<32x192xf32>
    %64 = arith.truncf %52 : vector<32x64xf32> to vector<32x64xbf16>
    %cst_26 = arith.constant dense<0.000000e+00> : vector<32x192xf32>
    %65 = tpu.matmul %64, %8, %cst_26 {dimension_numbers = #tpu.dot_dimension_numbers<[1], [0], [0], [1], [0, 0, 1, 1], [], []>} : vector<32x64xbf16>, vector<64x192xbf16>, vector<32x192xf32> -> vector<32x192xf32>
    %66 = vector.broadcast %9 : vector<1x192xf32> to vector<32x192xf32>
    %67 = arith.addf %65, %66 : vector<32x192xf32>
    %68 = vector.extract_strided_slice %63 {offsets = [0, 0], sizes = [32, 128], strides = [1, 1]} : vector<32x192xf32> to vector<32x128xf32>
    %69 = vector.extract_strided_slice %67 {offsets = [0, 0], sizes = [32, 128], strides = [1, 1]} : vector<32x192xf32> to vector<32x128xf32>
    %70 = arith.addf %68, %69 : vector<32x128xf32>
    %71 = arith.negf %70 : vector<32x128xf32>
    %72 = math.exp %71 : vector<32x128xf32>
    %cst_27 = arith.constant 1.000000e+00 : f32
    %73 = vector.broadcast %cst_27 : f32 to vector<32x128xf32>
    %74 = arith.addf %73, %72 : vector<32x128xf32>
    %75 = arith.divf %73, %74 : vector<32x128xf32>
    %76 = vector.extract_strided_slice %75 {offsets = [0, 0], sizes = [32, 64], strides = [1, 1]} : vector<32x128xf32> to vector<32x64xf32>
    %77 = vector.extract_strided_slice %75 {offsets = [0, 64], sizes = [32, 64], strides = [1, 1]} : vector<32x128xf32> to vector<32x64xf32>
    %78 = vector.extract_strided_slice %63 {offsets = [0, 128], sizes = [32, 64], strides = [1, 1]} : vector<32x192xf32> to vector<32x64xf32>
    %79 = vector.extract_strided_slice %67 {offsets = [0, 128], sizes = [32, 64], strides = [1, 1]} : vector<32x192xf32> to vector<32x64xf32>
    %80 = arith.mulf %76, %79 : vector<32x64xf32>
    %81 = arith.addf %78, %80 : vector<32x64xf32>
    %82 = math.tanh %81 : vector<32x64xf32>
    %cst_28 = arith.constant 1.000000e+00 : f32
    %83 = vector.broadcast %cst_28 : f32 to vector<32x64xf32>
    %84 = arith.subf %83, %77 : vector<32x64xf32>
    %85 = arith.mulf %84, %82 : vector<32x64xf32>
    %86 = arith.mulf %77, %52 : vector<32x64xf32>
    %87 = arith.addf %85, %86 : vector<32x64xf32>
    %88 = vector.extract_strided_slice %87 {offsets = [0, 0], sizes = [32, 32], strides = [1, 1]} : vector<32x64xf32> to vector<32x32xf32>
    %c1 = arith.constant 1 : index
    %c0_29 = arith.constant 0 : index
    %c0_30 = arith.constant 0 : index
    %89 = vector.load %arg15[%c1, %c0_29, %c0_30] : memref<8x32x64xf32, #tpu.memory_space<vmem>>, vector<1x32x32xf32>
    %90 = vector.shape_cast %89 : vector<1x32x32xf32> to vector<32x32xf32>
    %91 = vector.shape_cast %88 : vector<32x32xf32> to vector<1x32x32xf32>
    tpu.vector_store %arg15[%c1, %c0_29, %c0_30], %91 {strides = array<i32>} : memref<8x32x64xf32, #tpu.memory_space<vmem>>, vector<1x32x32xf32>,
    %92 = vector.extract_strided_slice %87 {offsets = [0, 32], sizes = [32, 32], strides = [1, 1]} : vector<32x64xf32> to vector<32x32xf32>
    %c6 = arith.constant 6 : index
    %c0_31 = arith.constant 0 : index
    %c32_32 = arith.constant 32 : index
    %93 = vector.load %arg15[%c6, %c0_31, %c32_32] : memref<8x32x64xf32, #tpu.memory_space<vmem>>, vector<1x32x32xf32>
    %94 = vector.shape_cast %93 : vector<1x32x32xf32> to vector<32x32xf32>
    %95 = vector.shape_cast %92 : vector<32x32xf32> to vector<1x32x32xf32>
    tpu.vector_store %arg15[%c6, %c0_31, %c32_32], %95 {strides = array<i32>} : memref<8x32x64xf32, #tpu.memory_space<vmem>>, vector<1x32x32xf32>,
    %c64 = arith.constant 64 : index
    %c0_33 = arith.constant 0 : index
    %96 = vector.load %arg14[%c64, %c0_33] : memref<256x192xf32, #tpu.memory_space<vmem>>, vector<32x192xf32>
    %c160 = arith.constant 160 : index
    %c0_34 = arith.constant 0 : index
    %97 = vector.load %arg14[%c160, %c0_34] : memref<256x192xf32, #tpu.memory_space<vmem>>, vector<32x192xf32>
    %98 = arith.select %24, %96, %97 : vector<32x192xi1>, vector<32x192xf32>
    %99 = arith.truncf %87 : vector<32x64xf32> to vector<32x64xbf16>
    %cst_35 = arith.constant dense<0.000000e+00> : vector<32x192xf32>
    %100 = tpu.matmul %99, %8, %cst_35 {dimension_numbers = #tpu.dot_dimension_numbers<[1], [0], [0], [1], [0, 0, 1, 1], [], []>} : vector<32x64xbf16>, vector<64x192xbf16>, vector<32x192xf32> -> vector<32x192xf32>
    %101 = vector.broadcast %9 : vector<1x192xf32> to vector<32x192xf32>
    %102 = arith.addf %100, %101 : vector<32x192xf32>
    %103 = vector.extract_strided_slice %98 {offsets = [0, 0], sizes = [32, 128], strides = [1, 1]} : vector<32x192xf32> to vector<32x128xf32>
    %104 = vector.extract_strided_slice %102 {offsets = [0, 0], sizes = [32, 128], strides = [1, 1]} : vector<32x192xf32> to vector<32x128xf32>
    %105 = arith.addf %103, %104 : vector<32x128xf32>
    %106 = arith.negf %105 : vector<32x128xf32>
    %107 = math.exp %106 : vector<32x128xf32>
    %cst_36 = arith.constant 1.000000e+00 : f32
    %108 = vector.broadcast %cst_36 : f32 to vector<32x128xf32>
    %109 = arith.addf %108, %107 : vector<32x128xf32>
    %110 = arith.divf %108, %109 : vector<32x128xf32>
    %111 = vector.extract_strided_slice %110 {offsets = [0, 0], sizes = [32, 64], strides = [1, 1]} : vector<32x128xf32> to vector<32x64xf32>
    %112 = vector.extract_strided_slice %110 {offsets = [0, 64], sizes = [32, 64], strides = [1, 1]} : vector<32x128xf32> to vector<32x64xf32>
    %113 = vector.extract_strided_slice %98 {offsets = [0, 128], sizes = [32, 64], strides = [1, 1]} : vector<32x192xf32> to vector<32x64xf32>
    %114 = vector.extract_strided_slice %102 {offsets = [0, 128], sizes = [32, 64], strides = [1, 1]} : vector<32x192xf32> to vector<32x64xf32>
    %115 = arith.mulf %111, %114 : vector<32x64xf32>
    %116 = arith.addf %113, %115 : vector<32x64xf32>
    %117 = math.tanh %116 : vector<32x64xf32>
    %cst_37 = arith.constant 1.000000e+00 : f32
    %118 = vector.broadcast %cst_37 : f32 to vector<32x64xf32>
    %119 = arith.subf %118, %112 : vector<32x64xf32>
    %120 = arith.mulf %119, %117 : vector<32x64xf32>
    %121 = arith.mulf %112, %87 : vector<32x64xf32>
    %122 = arith.addf %120, %121 : vector<32x64xf32>
    %123 = vector.extract_strided_slice %122 {offsets = [0, 0], sizes = [32, 32], strides = [1, 1]} : vector<32x64xf32> to vector<32x32xf32>
    %c2 = arith.constant 2 : index
    %c0_38 = arith.constant 0 : index
    %c0_39 = arith.constant 0 : index
    %124 = vector.load %arg15[%c2, %c0_38, %c0_39] : memref<8x32x64xf32, #tpu.memory_space<vmem>>, vector<1x32x32xf32>
    %125 = vector.shape_cast %124 : vector<1x32x32xf32> to vector<32x32xf32>
    %126 = vector.shape_cast %123 : vector<32x32xf32> to vector<1x32x32xf32>
    tpu.vector_store %arg15[%c2, %c0_38, %c0_39], %126 {strides = array<i32>} : memref<8x32x64xf32, #tpu.memory_space<vmem>>, vector<1x32x32xf32>,
    %127 = vector.extract_strided_slice %122 {offsets = [0, 32], sizes = [32, 32], strides = [1, 1]} : vector<32x64xf32> to vector<32x32xf32>
    %c5 = arith.constant 5 : index
    %c0_40 = arith.constant 0 : index
    %c32_41 = arith.constant 32 : index
    %128 = vector.load %arg15[%c5, %c0_40, %c32_41] : memref<8x32x64xf32, #tpu.memory_space<vmem>>, vector<1x32x32xf32>
    %129 = vector.shape_cast %128 : vector<1x32x32xf32> to vector<32x32xf32>
    %130 = vector.shape_cast %127 : vector<32x32xf32> to vector<1x32x32xf32>
    tpu.vector_store %arg15[%c5, %c0_40, %c32_41], %130 {strides = array<i32>} : memref<8x32x64xf32, #tpu.memory_space<vmem>>, vector<1x32x32xf32>,
    %c96 = arith.constant 96 : index
    %c0_42 = arith.constant 0 : index
    %131 = vector.load %arg14[%c96, %c0_42] : memref<256x192xf32, #tpu.memory_space<vmem>>, vector<32x192xf32>
    %c128 = arith.constant 128 : index
    %c0_43 = arith.constant 0 : index
    %132 = vector.load %arg14[%c128, %c0_43] : memref<256x192xf32, #tpu.memory_space<vmem>>, vector<32x192xf32>
    %133 = arith.select %24, %131, %132 : vector<32x192xi1>, vector<32x192xf32>
    %134 = arith.truncf %122 : vector<32x64xf32> to vector<32x64xbf16>
    %cst_44 = arith.constant dense<0.000000e+00> : vector<32x192xf32>
    %135 = tpu.matmul %134, %8, %cst_44 {dimension_numbers = #tpu.dot_dimension_numbers<[1], [0], [0], [1], [0, 0, 1, 1], [], []>} : vector<32x64xbf16>, vector<64x192xbf16>, vector<32x192xf32> -> vector<32x192xf32>
    %136 = vector.broadcast %9 : vector<1x192xf32> to vector<32x192xf32>
    %137 = arith.addf %135, %136 : vector<32x192xf32>
    %138 = vector.extract_strided_slice %133 {offsets = [0, 0], sizes = [32, 128], strides = [1, 1]} : vector<32x192xf32> to vector<32x128xf32>
    %139 = vector.extract_strided_slice %137 {offsets = [0, 0], sizes = [32, 128], strides = [1, 1]} : vector<32x192xf32> to vector<32x128xf32>
    %140 = arith.addf %138, %139 : vector<32x128xf32>
    %141 = arith.negf %140 : vector<32x128xf32>
    %142 = math.exp %141 : vector<32x128xf32>
    %cst_45 = arith.constant 1.000000e+00 : f32
    %143 = vector.broadcast %cst_45 : f32 to vector<32x128xf32>
    %144 = arith.addf %143, %142 : vector<32x128xf32>
    %145 = arith.divf %143, %144 : vector<32x128xf32>
    %146 = vector.extract_strided_slice %145 {offsets = [0, 0], sizes = [32, 64], strides = [1, 1]} : vector<32x128xf32> to vector<32x64xf32>
    %147 = vector.extract_strided_slice %145 {offsets = [0, 64], sizes = [32, 64], strides = [1, 1]} : vector<32x128xf32> to vector<32x64xf32>
    %148 = vector.extract_strided_slice %133 {offsets = [0, 128], sizes = [32, 64], strides = [1, 1]} : vector<32x192xf32> to vector<32x64xf32>
    %149 = vector.extract_strided_slice %137 {offsets = [0, 128], sizes = [32, 64], strides = [1, 1]} : vector<32x192xf32> to vector<32x64xf32>
    %150 = arith.mulf %146, %149 : vector<32x64xf32>
    %151 = arith.addf %148, %150 : vector<32x64xf32>
    %152 = math.tanh %151 : vector<32x64xf32>
    %cst_46 = arith.constant 1.000000e+00 : f32
    %153 = vector.broadcast %cst_46 : f32 to vector<32x64xf32>
    %154 = arith.subf %153, %147 : vector<32x64xf32>
    %155 = arith.mulf %154, %152 : vector<32x64xf32>
    %156 = arith.mulf %147, %122 : vector<32x64xf32>
    %157 = arith.addf %155, %156 : vector<32x64xf32>
    %158 = vector.extract_strided_slice %157 {offsets = [0, 0], sizes = [32, 32], strides = [1, 1]} : vector<32x64xf32> to vector<32x32xf32>
    %c3 = arith.constant 3 : index
    %c0_47 = arith.constant 0 : index
    %c0_48 = arith.constant 0 : index
    %159 = vector.load %arg15[%c3, %c0_47, %c0_48] : memref<8x32x64xf32, #tpu.memory_space<vmem>>, vector<1x32x32xf32>
    %160 = vector.shape_cast %159 : vector<1x32x32xf32> to vector<32x32xf32>
    %161 = vector.shape_cast %158 : vector<32x32xf32> to vector<1x32x32xf32>
    tpu.vector_store %arg15[%c3, %c0_47, %c0_48], %161 {strides = array<i32>} : memref<8x32x64xf32, #tpu.memory_space<vmem>>, vector<1x32x32xf32>,
    %162 = vector.extract_strided_slice %157 {offsets = [0, 32], sizes = [32, 32], strides = [1, 1]} : vector<32x64xf32> to vector<32x32xf32>
    %c4 = arith.constant 4 : index
    %c0_49 = arith.constant 0 : index
    %c32_50 = arith.constant 32 : index
    %163 = vector.load %arg15[%c4, %c0_49, %c32_50] : memref<8x32x64xf32, #tpu.memory_space<vmem>>, vector<1x32x32xf32>
    %164 = vector.shape_cast %163 : vector<1x32x32xf32> to vector<32x32xf32>
    %165 = vector.shape_cast %162 : vector<32x32xf32> to vector<1x32x32xf32>
    tpu.vector_store %arg15[%c4, %c0_49, %c32_50], %165 {strides = array<i32>} : memref<8x32x64xf32, #tpu.memory_space<vmem>>, vector<1x32x32xf32>,
    %c128_51 = arith.constant 128 : index
    %c0_52 = arith.constant 0 : index
    %166 = vector.load %arg14[%c128_51, %c0_52] : memref<256x192xf32, #tpu.memory_space<vmem>>, vector<32x192xf32>
    %c96_53 = arith.constant 96 : index
    %c0_54 = arith.constant 0 : index
    %167 = vector.load %arg14[%c96_53, %c0_54] : memref<256x192xf32, #tpu.memory_space<vmem>>, vector<32x192xf32>
    %168 = arith.select %24, %166, %167 : vector<32x192xi1>, vector<32x192xf32>
    %169 = arith.truncf %157 : vector<32x64xf32> to vector<32x64xbf16>
    %cst_55 = arith.constant dense<0.000000e+00> : vector<32x192xf32>
    %170 = tpu.matmul %169, %8, %cst_55 {dimension_numbers = #tpu.dot_dimension_numbers<[1], [0], [0], [1], [0, 0, 1, 1], [], []>} : vector<32x64xbf16>, vector<64x192xbf16>, vector<32x192xf32> -> vector<32x192xf32>
    %171 = vector.broadcast %9 : vector<1x192xf32> to vector<32x192xf32>
    %172 = arith.addf %170, %171 : vector<32x192xf32>
    %173 = vector.extract_strided_slice %168 {offsets = [0, 0], sizes = [32, 128], strides = [1, 1]} : vector<32x192xf32> to vector<32x128xf32>
    %174 = vector.extract_strided_slice %172 {offsets = [0, 0], sizes = [32, 128], strides = [1, 1]} : vector<32x192xf32> to vector<32x128xf32>
    %175 = arith.addf %173, %174 : vector<32x128xf32>
    %176 = arith.negf %175 : vector<32x128xf32>
    %177 = math.exp %176 : vector<32x128xf32>
    %cst_56 = arith.constant 1.000000e+00 : f32
    %178 = vector.broadcast %cst_56 : f32 to vector<32x128xf32>
    %179 = arith.addf %178, %177 : vector<32x128xf32>
    %180 = arith.divf %178, %179 : vector<32x128xf32>
    %181 = vector.extract_strided_slice %180 {offsets = [0, 0], sizes = [32, 64], strides = [1, 1]} : vector<32x128xf32> to vector<32x64xf32>
    %182 = vector.extract_strided_slice %180 {offsets = [0, 64], sizes = [32, 64], strides = [1, 1]} : vector<32x128xf32> to vector<32x64xf32>
    %183 = vector.extract_strided_slice %168 {offsets = [0, 128], sizes = [32, 64], strides = [1, 1]} : vector<32x192xf32> to vector<32x64xf32>
    %184 = vector.extract_strided_slice %172 {offsets = [0, 128], sizes = [32, 64], strides = [1, 1]} : vector<32x192xf32> to vector<32x64xf32>
    %185 = arith.mulf %181, %184 : vector<32x64xf32>
    %186 = arith.addf %183, %185 : vector<32x64xf32>
    %187 = math.tanh %186 : vector<32x64xf32>
    %cst_57 = arith.constant 1.000000e+00 : f32
    %188 = vector.broadcast %cst_57 : f32 to vector<32x64xf32>
    %189 = arith.subf %188, %182 : vector<32x64xf32>
    %190 = arith.mulf %189, %187 : vector<32x64xf32>
    %191 = arith.mulf %182, %157 : vector<32x64xf32>
    %192 = arith.addf %190, %191 : vector<32x64xf32>
    %193 = vector.extract_strided_slice %192 {offsets = [0, 0], sizes = [32, 32], strides = [1, 1]} : vector<32x64xf32> to vector<32x32xf32>
    %c4_58 = arith.constant 4 : index
    %c0_59 = arith.constant 0 : index
    %c0_60 = arith.constant 0 : index
    %194 = vector.load %arg15[%c4_58, %c0_59, %c0_60] : memref<8x32x64xf32, #tpu.memory_space<vmem>>, vector<1x32x32xf32>
    %195 = vector.shape_cast %194 : vector<1x32x32xf32> to vector<32x32xf32>
    %196 = vector.shape_cast %193 : vector<32x32xf32> to vector<1x32x32xf32>
    tpu.vector_store %arg15[%c4_58, %c0_59, %c0_60], %196 {strides = array<i32>} : memref<8x32x64xf32, #tpu.memory_space<vmem>>, vector<1x32x32xf32>,
    %197 = vector.extract_strided_slice %192 {offsets = [0, 32], sizes = [32, 32], strides = [1, 1]} : vector<32x64xf32> to vector<32x32xf32>
    %c3_61 = arith.constant 3 : index
    %c0_62 = arith.constant 0 : index
    %c32_63 = arith.constant 32 : index
    %198 = vector.load %arg15[%c3_61, %c0_62, %c32_63] : memref<8x32x64xf32, #tpu.memory_space<vmem>>, vector<1x32x32xf32>
    %199 = vector.shape_cast %198 : vector<1x32x32xf32> to vector<32x32xf32>
    %200 = vector.shape_cast %197 : vector<32x32xf32> to vector<1x32x32xf32>
    tpu.vector_store %arg15[%c3_61, %c0_62, %c32_63], %200 {strides = array<i32>} : memref<8x32x64xf32, #tpu.memory_space<vmem>>, vector<1x32x32xf32>,
    %c160_64 = arith.constant 160 : index
    %c0_65 = arith.constant 0 : index
    %201 = vector.load %arg14[%c160_64, %c0_65] : memref<256x192xf32, #tpu.memory_space<vmem>>, vector<32x192xf32>
    %c64_66 = arith.constant 64 : index
    %c0_67 = arith.constant 0 : index
    %202 = vector.load %arg14[%c64_66, %c0_67] : memref<256x192xf32, #tpu.memory_space<vmem>>, vector<32x192xf32>
    %203 = arith.select %24, %201, %202 : vector<32x192xi1>, vector<32x192xf32>
    %204 = arith.truncf %192 : vector<32x64xf32> to vector<32x64xbf16>
    %cst_68 = arith.constant dense<0.000000e+00> : vector<32x192xf32>
    %205 = tpu.matmul %204, %8, %cst_68 {dimension_numbers = #tpu.dot_dimension_numbers<[1], [0], [0], [1], [0, 0, 1, 1], [], []>} : vector<32x64xbf16>, vector<64x192xbf16>, vector<32x192xf32> -> vector<32x192xf32>
    %206 = vector.broadcast %9 : vector<1x192xf32> to vector<32x192xf32>
    %207 = arith.addf %205, %206 : vector<32x192xf32>
    %208 = vector.extract_strided_slice %203 {offsets = [0, 0], sizes = [32, 128], strides = [1, 1]} : vector<32x192xf32> to vector<32x128xf32>
    %209 = vector.extract_strided_slice %207 {offsets = [0, 0], sizes = [32, 128], strides = [1, 1]} : vector<32x192xf32> to vector<32x128xf32>
    %210 = arith.addf %208, %209 : vector<32x128xf32>
    %211 = arith.negf %210 : vector<32x128xf32>
    %212 = math.exp %211 : vector<32x128xf32>
    %cst_69 = arith.constant 1.000000e+00 : f32
    %213 = vector.broadcast %cst_69 : f32 to vector<32x128xf32>
    %214 = arith.addf %213, %212 : vector<32x128xf32>
    %215 = arith.divf %213, %214 : vector<32x128xf32>
    %216 = vector.extract_strided_slice %215 {offsets = [0, 0], sizes = [32, 64], strides = [1, 1]} : vector<32x128xf32> to vector<32x64xf32>
    %217 = vector.extract_strided_slice %215 {offsets = [0, 64], sizes = [32, 64], strides = [1, 1]} : vector<32x128xf32> to vector<32x64xf32>
    %218 = vector.extract_strided_slice %203 {offsets = [0, 128], sizes = [32, 64], strides = [1, 1]} : vector<32x192xf32> to vector<32x64xf32>
    %219 = vector.extract_strided_slice %207 {offsets = [0, 128], sizes = [32, 64], strides = [1, 1]} : vector<32x192xf32> to vector<32x64xf32>
    %220 = arith.mulf %216, %219 : vector<32x64xf32>
    %221 = arith.addf %218, %220 : vector<32x64xf32>
    %222 = math.tanh %221 : vector<32x64xf32>
    %cst_70 = arith.constant 1.000000e+00 : f32
    %223 = vector.broadcast %cst_70 : f32 to vector<32x64xf32>
    %224 = arith.subf %223, %217 : vector<32x64xf32>
    %225 = arith.mulf %224, %222 : vector<32x64xf32>
    %226 = arith.mulf %217, %192 : vector<32x64xf32>
    %227 = arith.addf %225, %226 : vector<32x64xf32>
    %228 = vector.extract_strided_slice %227 {offsets = [0, 0], sizes = [32, 32], strides = [1, 1]} : vector<32x64xf32> to vector<32x32xf32>
    %c5_71 = arith.constant 5 : index
    %c0_72 = arith.constant 0 : index
    %c0_73 = arith.constant 0 : index
    %229 = vector.load %arg15[%c5_71, %c0_72, %c0_73] : memref<8x32x64xf32, #tpu.memory_space<vmem>>, vector<1x32x32xf32>
    %230 = vector.shape_cast %229 : vector<1x32x32xf32> to vector<32x32xf32>
    %231 = vector.shape_cast %228 : vector<32x32xf32> to vector<1x32x32xf32>
    tpu.vector_store %arg15[%c5_71, %c0_72, %c0_73], %231 {strides = array<i32>} : memref<8x32x64xf32, #tpu.memory_space<vmem>>, vector<1x32x32xf32>,
    %232 = vector.extract_strided_slice %227 {offsets = [0, 32], sizes = [32, 32], strides = [1, 1]} : vector<32x64xf32> to vector<32x32xf32>
    %c2_74 = arith.constant 2 : index
    %c0_75 = arith.constant 0 : index
    %c32_76 = arith.constant 32 : index
    %233 = vector.load %arg15[%c2_74, %c0_75, %c32_76] : memref<8x32x64xf32, #tpu.memory_space<vmem>>, vector<1x32x32xf32>
    %234 = vector.shape_cast %233 : vector<1x32x32xf32> to vector<32x32xf32>
    %235 = vector.shape_cast %232 : vector<32x32xf32> to vector<1x32x32xf32>
    tpu.vector_store %arg15[%c2_74, %c0_75, %c32_76], %235 {strides = array<i32>} : memref<8x32x64xf32, #tpu.memory_space<vmem>>, vector<1x32x32xf32>,
    %c192_77 = arith.constant 192 : index
    %c0_78 = arith.constant 0 : index
    %236 = vector.load %arg14[%c192_77, %c0_78] : memref<256x192xf32, #tpu.memory_space<vmem>>, vector<32x192xf32>
    %c32_79 = arith.constant 32 : index
    %c0_80 = arith.constant 0 : index
    %237 = vector.load %arg14[%c32_79, %c0_80] : memref<256x192xf32, #tpu.memory_space<vmem>>, vector<32x192xf32>
    %238 = arith.select %24, %236, %237 : vector<32x192xi1>, vector<32x192xf32>
    %239 = arith.truncf %227 : vector<32x64xf32> to vector<32x64xbf16>
    %cst_81 = arith.constant dense<0.000000e+00> : vector<32x192xf32>
    %240 = tpu.matmul %239, %8, %cst_81 {dimension_numbers = #tpu.dot_dimension_numbers<[1], [0], [0], [1], [0, 0, 1, 1], [], []>} : vector<32x64xbf16>, vector<64x192xbf16>, vector<32x192xf32> -> vector<32x192xf32>
    %241 = vector.broadcast %9 : vector<1x192xf32> to vector<32x192xf32>
    %242 = arith.addf %240, %241 : vector<32x192xf32>
    %243 = vector.extract_strided_slice %238 {offsets = [0, 0], sizes = [32, 128], strides = [1, 1]} : vector<32x192xf32> to vector<32x128xf32>
    %244 = vector.extract_strided_slice %242 {offsets = [0, 0], sizes = [32, 128], strides = [1, 1]} : vector<32x192xf32> to vector<32x128xf32>
    %245 = arith.addf %243, %244 : vector<32x128xf32>
    %246 = arith.negf %245 : vector<32x128xf32>
    %247 = math.exp %246 : vector<32x128xf32>
    %cst_82 = arith.constant 1.000000e+00 : f32
    %248 = vector.broadcast %cst_82 : f32 to vector<32x128xf32>
    %249 = arith.addf %248, %247 : vector<32x128xf32>
    %250 = arith.divf %248, %249 : vector<32x128xf32>
    %251 = vector.extract_strided_slice %250 {offsets = [0, 0], sizes = [32, 64], strides = [1, 1]} : vector<32x128xf32> to vector<32x64xf32>
    %252 = vector.extract_strided_slice %250 {offsets = [0, 64], sizes = [32, 64], strides = [1, 1]} : vector<32x128xf32> to vector<32x64xf32>
    %253 = vector.extract_strided_slice %238 {offsets = [0, 128], sizes = [32, 64], strides = [1, 1]} : vector<32x192xf32> to vector<32x64xf32>
    %254 = vector.extract_strided_slice %242 {offsets = [0, 128], sizes = [32, 64], strides = [1, 1]} : vector<32x192xf32> to vector<32x64xf32>
    %255 = arith.mulf %251, %254 : vector<32x64xf32>
    %256 = arith.addf %253, %255 : vector<32x64xf32>
    %257 = math.tanh %256 : vector<32x64xf32>
    %cst_83 = arith.constant 1.000000e+00 : f32
    %258 = vector.broadcast %cst_83 : f32 to vector<32x64xf32>
    %259 = arith.subf %258, %252 : vector<32x64xf32>
    %260 = arith.mulf %259, %257 : vector<32x64xf32>
    %261 = arith.mulf %252, %227 : vector<32x64xf32>
    %262 = arith.addf %260, %261 : vector<32x64xf32>
    %263 = vector.extract_strided_slice %262 {offsets = [0, 0], sizes = [32, 32], strides = [1, 1]} : vector<32x64xf32> to vector<32x32xf32>
    %c6_84 = arith.constant 6 : index
    %c0_85 = arith.constant 0 : index
    %c0_86 = arith.constant 0 : index
    %264 = vector.load %arg15[%c6_84, %c0_85, %c0_86] : memref<8x32x64xf32, #tpu.memory_space<vmem>>, vector<1x32x32xf32>
    %265 = vector.shape_cast %264 : vector<1x32x32xf32> to vector<32x32xf32>
    %266 = vector.shape_cast %263 : vector<32x32xf32> to vector<1x32x32xf32>
    tpu.vector_store %arg15[%c6_84, %c0_85, %c0_86], %266 {strides = array<i32>} : memref<8x32x64xf32, #tpu.memory_space<vmem>>, vector<1x32x32xf32>,
    %267 = vector.extract_strided_slice %262 {offsets = [0, 32], sizes = [32, 32], strides = [1, 1]} : vector<32x64xf32> to vector<32x32xf32>
    %c1_87 = arith.constant 1 : index
    %c0_88 = arith.constant 0 : index
    %c32_89 = arith.constant 32 : index
    %268 = vector.load %arg15[%c1_87, %c0_88, %c32_89] : memref<8x32x64xf32, #tpu.memory_space<vmem>>, vector<1x32x32xf32>
    %269 = vector.shape_cast %268 : vector<1x32x32xf32> to vector<32x32xf32>
    %270 = vector.shape_cast %267 : vector<32x32xf32> to vector<1x32x32xf32>
    tpu.vector_store %arg15[%c1_87, %c0_88, %c32_89], %270 {strides = array<i32>} : memref<8x32x64xf32, #tpu.memory_space<vmem>>, vector<1x32x32xf32>,
    %c224_90 = arith.constant 224 : index
    %c0_91 = arith.constant 0 : index
    %271 = vector.load %arg14[%c224_90, %c0_91] : memref<256x192xf32, #tpu.memory_space<vmem>>, vector<32x192xf32>
    %c0_92 = arith.constant 0 : index
    %c0_93 = arith.constant 0 : index
    %272 = vector.load %arg14[%c0_92, %c0_93] : memref<256x192xf32, #tpu.memory_space<vmem>>, vector<32x192xf32>
    %273 = arith.select %24, %271, %272 : vector<32x192xi1>, vector<32x192xf32>
    %274 = arith.truncf %262 : vector<32x64xf32> to vector<32x64xbf16>
    %cst_94 = arith.constant dense<0.000000e+00> : vector<32x192xf32>
    %275 = tpu.matmul %274, %8, %cst_94 {dimension_numbers = #tpu.dot_dimension_numbers<[1], [0], [0], [1], [0, 0, 1, 1], [], []>} : vector<32x64xbf16>, vector<64x192xbf16>, vector<32x192xf32> -> vector<32x192xf32>
    %276 = vector.broadcast %9 : vector<1x192xf32> to vector<32x192xf32>
    %277 = arith.addf %275, %276 : vector<32x192xf32>
    %278 = vector.extract_strided_slice %273 {offsets = [0, 0], sizes = [32, 128], strides = [1, 1]} : vector<32x192xf32> to vector<32x128xf32>
    %279 = vector.extract_strided_slice %277 {offsets = [0, 0], sizes = [32, 128], strides = [1, 1]} : vector<32x192xf32> to vector<32x128xf32>
    %280 = arith.addf %278, %279 : vector<32x128xf32>
    %281 = arith.negf %280 : vector<32x128xf32>
    %282 = math.exp %281 : vector<32x128xf32>
    %cst_95 = arith.constant 1.000000e+00 : f32
    %283 = vector.broadcast %cst_95 : f32 to vector<32x128xf32>
    %284 = arith.addf %283, %282 : vector<32x128xf32>
    %285 = arith.divf %283, %284 : vector<32x128xf32>
    %286 = vector.extract_strided_slice %285 {offsets = [0, 0], sizes = [32, 64], strides = [1, 1]} : vector<32x128xf32> to vector<32x64xf32>
    %287 = vector.extract_strided_slice %285 {offsets = [0, 64], sizes = [32, 64], strides = [1, 1]} : vector<32x128xf32> to vector<32x64xf32>
    %288 = vector.extract_strided_slice %273 {offsets = [0, 128], sizes = [32, 64], strides = [1, 1]} : vector<32x192xf32> to vector<32x64xf32>
    %289 = vector.extract_strided_slice %277 {offsets = [0, 128], sizes = [32, 64], strides = [1, 1]} : vector<32x192xf32> to vector<32x64xf32>
    %290 = arith.mulf %286, %289 : vector<32x64xf32>
    %291 = arith.addf %288, %290 : vector<32x64xf32>
    %292 = math.tanh %291 : vector<32x64xf32>
    %cst_96 = arith.constant 1.000000e+00 : f32
    %293 = vector.broadcast %cst_96 : f32 to vector<32x64xf32>
    %294 = arith.subf %293, %287 : vector<32x64xf32>
    %295 = arith.mulf %294, %292 : vector<32x64xf32>
    %296 = arith.mulf %287, %262 : vector<32x64xf32>
    %297 = arith.addf %295, %296 : vector<32x64xf32>
    %298 = vector.extract_strided_slice %297 {offsets = [0, 0], sizes = [32, 32], strides = [1, 1]} : vector<32x64xf32> to vector<32x32xf32>
    %c7_97 = arith.constant 7 : index
    %c0_98 = arith.constant 0 : index
    %c0_99 = arith.constant 0 : index
    %299 = vector.load %arg15[%c7_97, %c0_98, %c0_99] : memref<8x32x64xf32, #tpu.memory_space<vmem>>, vector<1x32x32xf32>
    %300 = vector.shape_cast %299 : vector<1x32x32xf32> to vector<32x32xf32>
    %301 = vector.shape_cast %298 : vector<32x32xf32> to vector<1x32x32xf32>
    tpu.vector_store %arg15[%c7_97, %c0_98, %c0_99], %301 {strides = array<i32>} : memref<8x32x64xf32, #tpu.memory_space<vmem>>, vector<1x32x32xf32>,
    %302 = vector.extract_strided_slice %297 {offsets = [0, 32], sizes = [32, 32], strides = [1, 1]} : vector<32x64xf32> to vector<32x32xf32>
    %c0_100 = arith.constant 0 : index
    %c0_101 = arith.constant 0 : index
    %c32_102 = arith.constant 32 : index
    %303 = vector.load %arg15[%c0_100, %c0_101, %c32_102] : memref<8x32x64xf32, #tpu.memory_space<vmem>>, vector<1x32x32xf32>
    %304 = vector.shape_cast %303 : vector<1x32x32xf32> to vector<32x32xf32>
    %305 = vector.shape_cast %302 : vector<32x32xf32> to vector<1x32x32xf32>
    tpu.vector_store %arg15[%c0_100, %c0_101, %c32_102], %305 {strides = array<i32>} : memref<8x32x64xf32, #tpu.memory_space<vmem>>, vector<1x32x32xf32>,
    %c0_103 = arith.constant 0 : index
    %c0_104 = arith.constant 0 : index
    %c0_105 = arith.constant 0 : index
    %306 = vector.load %arg15[%c0_103, %c0_104, %c0_105] : memref<8x32x64xf32, #tpu.memory_space<vmem>>, vector<8x32x64xf32>
    %cst_106 = arith.constant dense<0.000000e+00> : vector<8x32xf32>
    %307 = vector.multi_reduction <add>, %306, %cst_106 [2] : vector<8x32x64xf32> to vector<8x32xf32>
    %308 = vector.shape_cast %307 : vector<8x32xf32> to vector<8x32x1xf32>
    %cst_107 = arith.constant 6.400000e+01 : f32
    %309 = vector.broadcast %cst_107 : f32 to vector<8x32x1xf32>
    %310 = arith.divf %308, %309 : vector<8x32x1xf32>
    %311 = vector.broadcast %310 : vector<8x32x1xf32> to vector<8x32x64xf32>
    %312 = arith.subf %306, %311 : vector<8x32x64xf32>
    %313 = arith.mulf %312, %312 : vector<8x32x64xf32>
    %cst_108 = arith.constant dense<0.000000e+00> : vector<8x32xf32>
    %314 = vector.multi_reduction <add>, %313, %cst_108 [2] : vector<8x32x64xf32> to vector<8x32xf32>
    %315 = vector.shape_cast %314 : vector<8x32xf32> to vector<8x32x1xf32>
    %cst_109 = arith.constant 6.400000e+01 : f32
    %316 = vector.broadcast %cst_109 : f32 to vector<8x32x1xf32>
    %317 = arith.divf %315, %316 : vector<8x32x1xf32>
    %318 = vector.broadcast %310 : vector<8x32x1xf32> to vector<8x32x64xf32>
    %319 = arith.subf %306, %318 : vector<8x32x64xf32>
    %cst_110 = arith.constant 9.99999974E-6 : f32
    %320 = vector.broadcast %cst_110 : f32 to vector<8x32x1xf32>
    %321 = arith.addf %317, %320 : vector<8x32x1xf32>
    %322 = math.rsqrt %321 : vector<8x32x1xf32>
    %323 = vector.broadcast %322 : vector<8x32x1xf32> to vector<8x32x64xf32>
    %324 = arith.mulf %319, %323 : vector<8x32x64xf32>
    %c0_111 = arith.constant 0 : index
    %c0_112 = arith.constant 0 : index
    %325 = vector.load %arg6[%c0_111, %c0_112] : memref<1x64xf32, #tpu.memory_space<vmem>>, vector<1x64xf32>
    %326 = vector.shape_cast %325 : vector<1x64xf32> to vector<1x1x64xf32>
    %327 = vector.broadcast %326 : vector<1x1x64xf32> to vector<8x32x64xf32>
    %328 = arith.mulf %324, %327 : vector<8x32x64xf32>
    %c0_113 = arith.constant 0 : index
    %c0_114 = arith.constant 0 : index
    %329 = vector.load %arg7[%c0_113, %c0_114] : memref<1x64xf32, #tpu.memory_space<vmem>>, vector<1x64xf32>
    %330 = vector.shape_cast %329 : vector<1x64xf32> to vector<1x1x64xf32>
    %331 = vector.broadcast %330 : vector<1x1x64xf32> to vector<8x32x64xf32>
    %332 = arith.addf %328, %331 : vector<8x32x64xf32>
    %333 = vector.shape_cast %332 : vector<8x32x64xf32> to vector<256x64xf32>
    %334 = arith.truncf %333 : vector<256x64xf32> to vector<256x64xbf16>
    %c0_115 = arith.constant 0 : index
    %c0_116 = arith.constant 0 : index
    %335 = vector.load %arg8[%c0_115, %c0_116] : memref<64x32xbf16, #tpu.memory_space<vmem>>, vector<64x32xbf16>
    %cst_117 = arith.constant dense<0.000000e+00> : vector<256x32xf32>
    %336 = tpu.matmul %334, %335, %cst_117 {dimension_numbers = #tpu.dot_dimension_numbers<[1], [0], [0], [1], [0, 0, 1, 1], [], []>} : vector<256x64xbf16>, vector<64x32xbf16>, vector<256x32xf32> -> vector<256x32xf32>
    %c0_118 = arith.constant 0 : index
    %c0_119 = arith.constant 0 : index
    %337 = vector.load %arg9[%c0_118, %c0_119] : memref<1x32xf32, #tpu.memory_space<vmem>>, vector<1x32xf32>
    %338 = vector.broadcast %337 : vector<1x32xf32> to vector<256x32xf32>
    %339 = arith.addf %336, %338 : vector<256x32xf32>
    %340 = math.tanh %339 : vector<256x32xf32>
    %341 = vector.shape_cast %340 : vector<256x32xf32> to vector<8x32x32xf32>
    %c0_120 = arith.constant 0 : index
    %c0_121 = arith.constant 0 : index
    %342 = vector.load %arg10[%c0_120, %c0_121] : memref<1x32xf32, #tpu.memory_space<vmem>>, vector<1x32xf32>
    %343 = vector.shape_cast %342 : vector<1x32xf32> to vector<1x1x32xf32>
    %344 = vector.broadcast %343 : vector<1x1x32xf32> to vector<8x32x32xf32>
    %345 = arith.mulf %341, %344 : vector<8x32x32xf32>
    %cst_122 = arith.constant dense<0.000000e+00> : vector<8x32xf32>
    %346 = vector.multi_reduction <add>, %345, %cst_122 [2] : vector<8x32x32xf32> to vector<8x32xf32>
    %c0_123 = arith.constant 0 : index
    %c0_124 = arith.constant 0 : index
    %347 = vector.load %arg11[%c0_123, %c0_124] : memref<1x1xf32, #tpu.memory_space<vmem>>, vector<1x1xf32>
    %348 = vector.broadcast %347 : vector<1x1xf32> to vector<8x32xf32>
    %349 = arith.addf %346, %348 : vector<8x32xf32>
    %350 = tpu.iota {dimensions = array<i32: 1>} : vector<32x8xi32>
    %351 = tpu.iota {dimensions = array<i32: 0>} : vector<32x8xi32>
    %c4_i32 = arith.constant 4 : i32
    %352 = vector.broadcast %c4_i32 : i32 to vector<32x8xi32>
    %353 = arith.muli %350, %352 : vector<32x8xi32>
    %354 = arith.cmpi sge, %351, %353 : vector<32x8xi32>
    %c4_i32_125 = arith.constant 4 : i32
    %355 = vector.broadcast %c4_i32_125 : i32 to vector<32x8xi32>
    %356 = arith.muli %350, %355 : vector<32x8xi32>
    %c4_i32_126 = arith.constant 4 : i32
    %357 = vector.broadcast %c4_i32_126 : i32 to vector<32x8xi32>
    %358 = arith.addi %356, %357 : vector<32x8xi32>
    %359 = arith.cmpi slt, %351, %358 : vector<32x8xi32>
    %360 = arith.andi %354, %359 : vector<32x8xi1>
    %361 = arith.extui %360 : vector<32x8xi1> to vector<32x8xi32>
    %362 = arith.sitofp %361 : vector<32x8xi32> to vector<32x8xf32>
    %363 = tpu.iota {dimensions = array<i32: 0>} : vector<8x32xi32>
    %364 = tpu.iota {dimensions = array<i32: 1>} : vector<8x32xi32>
    %c4_i32_127 = arith.constant 4 : i32
    %365 = vector.broadcast %c4_i32_127 : i32 to vector<8x32xi32>
    %366 = arith.muli %363, %365 : vector<8x32xi32>
    %367 = arith.cmpi sge, %364, %366 : vector<8x32xi32>
    %c4_i32_128 = arith.constant 4 : i32
    %368 = vector.broadcast %c4_i32_128 : i32 to vector<8x32xi32>
    %369 = arith.muli %363, %368 : vector<8x32xi32>
    %c4_i32_129 = arith.constant 4 : i32
    %370 = vector.broadcast %c4_i32_129 : i32 to vector<8x32xi32>
    %371 = arith.addi %369, %370 : vector<8x32xi32>
    %372 = arith.cmpi slt, %364, %371 : vector<8x32xi32>
    %373 = arith.andi %367, %372 : vector<8x32xi1>
    %374 = arith.extui %373 : vector<8x32xi1> to vector<8x32xi32>
    %375 = arith.sitofp %374 : vector<8x32xi32> to vector<8x32xf32>
    %cst_130 = arith.constant dense<0xFF800000> : vector<8xf32>
    %376 = vector.multi_reduction <maximumf>, %349, %cst_130 [1] : vector<8x32xf32> to vector<8xf32>
    %377 = vector.shape_cast %376 : vector<8xf32> to vector<8x1xf32>
    %378 = vector.broadcast %377 : vector<8x1xf32> to vector<8x32xf32>
    %379 = arith.subf %349, %378 : vector<8x32xf32>
    %380 = math.exp %379 : vector<8x32xf32>
    %cst_131 = arith.constant dense<0.000000e+00> : vector<8x8xf32>
    %381 = tpu.matmul %380, %362, %cst_131 {dimension_numbers = #tpu.dot_dimension_numbers<[1], [0], [0], [1], [0, 0, 1, 1], [], []>} : vector<8x32xf32>, vector<32x8xf32>, vector<8x8xf32> -> vector<8x8xf32>
    %cst_132 = arith.constant dense<0.000000e+00> : vector<8x32xf32>
    %382 = tpu.matmul %381, %375, %cst_132 {dimension_numbers = #tpu.dot_dimension_numbers<[1], [0], [0], [1], [0, 0, 1, 1], [], []>} : vector<8x8xf32>, vector<8x32xf32>, vector<8x32xf32> -> vector<8x32xf32>
    %383 = tpu.reciprocal %382 : vector<8x32xf32> -> vector<8x32xf32>
    %384 = arith.mulf %380, %383 : vector<8x32xf32>
    %385 = tpu.transpose %384, [1, 0] : vector<8x32xf32> -> vector<32x8xf32>
    %c0_133 = arith.constant 0 : index
    %c0_134 = arith.constant 0 : index
    %386 = vector.load %arg13[%c0_133, %c0_134] : memref<32x8xf32, #tpu.memory_space<vmem>>, vector<32x8xf32>
    tpu.vector_store %arg13[%c0_133, %c0_134], %385 {strides = array<i32>} : memref<32x8xf32, #tpu.memory_space<vmem>>, vector<32x8xf32>,
    %387 = vector.shape_cast %375 : vector<8x32xf32> to vector<1x8x32xf32>
    %388 = vector.shape_cast %384 : vector<8x32xf32> to vector<8x1x32xf32>
    %389 = vector.broadcast %387 : vector<1x8x32xf32> to vector<8x8x32xf32>
    %390 = vector.broadcast %388 : vector<8x1x32xf32> to vector<8x8x32xf32>
    %391 = arith.mulf %389, %390 : vector<8x8x32xf32>
    %cst_135 = arith.constant dense<0.000000e+00> : vector<8x8x64xf32>
    %392 = tpu.matmul %391, %332, %cst_135 {dimension_numbers = #tpu.dot_dimension_numbers<[2], [1], [1], [2], [0, 0, 0, 1, 1, 2], [0], [0]>} : vector<8x8x32xf32>, vector<8x32x64xf32>, vector<8x8x64xf32> -> vector<8x8x64xf32>
    %c0_136 = arith.constant 0 : index
    %c0_137 = arith.constant 0 : index
    %c0_138 = arith.constant 0 : index
    %393 = vector.load %arg12[%c0_136, %c0_137, %c0_138] : memref<8x8x64xf32, #tpu.memory_space<vmem>>, vector<8x8x64xf32>
    tpu.vector_store %arg12[%c0_136, %c0_137, %c0_138], %392 {strides = array<i32>} : memref<8x8x64xf32, #tpu.memory_space<vmem>>, vector<8x8x64xf32>,
    return
  }
  func.func @transform_0(%arg0: i32) -> (i32, i32, i32) {
    %c0_i32 = arith.constant 0 : i32
    %c0_i32_0 = arith.constant 0 : i32
    %c0_i32_1 = arith.constant 0 : i32
    return %c0_i32, %arg0, %c0_i32_0 : i32, i32, i32
  }
  func.func @transform_1(%arg0: i32) -> (i32, i32) {
    %c0_i32 = arith.constant 0 : i32
    %c0_i32_0 = arith.constant 0 : i32
    %c0_i32_1 = arith.constant 0 : i32
    return %c0_i32, %c0_i32_0 : i32, i32
  }
  func.func @transform_2(%arg0: i32) -> (i32, i32) {
    %c0_i32 = arith.constant 0 : i32
    %c0_i32_0 = arith.constant 0 : i32
    %c0_i32_1 = arith.constant 0 : i32
    return %c0_i32, %c0_i32_0 : i32, i32
  }
  func.func @transform_3(%arg0: i32) -> (i32, i32) {
    %c0_i32 = arith.constant 0 : i32
    %c0_i32_0 = arith.constant 0 : i32
    %c0_i32_1 = arith.constant 0 : i32
    return %c0_i32, %c0_i32_0 : i32, i32
  }
  func.func @transform_4(%arg0: i32) -> (i32, i32) {
    %c0_i32 = arith.constant 0 : i32
    %c0_i32_0 = arith.constant 0 : i32
    %c0_i32_1 = arith.constant 0 : i32
    return %c0_i32, %c0_i32_0 : i32, i32
  }
  func.func @transform_5(%arg0: i32) -> (i32, i32) {
    %c0_i32 = arith.constant 0 : i32
    %c0_i32_0 = arith.constant 0 : i32
    %c0_i32_1 = arith.constant 0 : i32
    return %c0_i32, %c0_i32_0 : i32, i32
  }
  func.func @transform_6(%arg0: i32) -> (i32, i32) {
    %c0_i32 = arith.constant 0 : i32
    %c0_i32_0 = arith.constant 0 : i32
    %c0_i32_1 = arith.constant 0 : i32
    return %c0_i32, %c0_i32_0 : i32, i32
  }
  func.func @transform_7(%arg0: i32) -> (i32, i32) {
    %c0_i32 = arith.constant 0 : i32
    %c0_i32_0 = arith.constant 0 : i32
    %c0_i32_1 = arith.constant 0 : i32
    return %c0_i32, %c0_i32_0 : i32, i32
  }
  func.func @transform_8(%arg0: i32) -> (i32, i32) {
    %c0_i32 = arith.constant 0 : i32
    %c0_i32_0 = arith.constant 0 : i32
    %c0_i32_1 = arith.constant 0 : i32
    return %c0_i32, %c0_i32_0 : i32, i32
  }
  func.func @transform_9(%arg0: i32) -> (i32, i32) {
    %c0_i32 = arith.constant 0 : i32
    %c0_i32_0 = arith.constant 0 : i32
    %c0_i32_1 = arith.constant 0 : i32
    return %c0_i32, %c0_i32_0 : i32, i32
  }
  func.func @transform_10(%arg0: i32) -> (i32, i32) {
    %c0_i32 = arith.constant 0 : i32
    %c0_i32_0 = arith.constant 0 : i32
    %c0_i32_1 = arith.constant 0 : i32
    return %c0_i32, %c0_i32_0 : i32, i32
  }
  func.func @transform_11(%arg0: i32) -> (i32, i32, i32) {
    %c0_i32 = arith.constant 0 : i32
    %c0_i32_0 = arith.constant 0 : i32
    %c0_i32_1 = arith.constant 0 : i32
    return %c0_i32, %arg0, %c0_i32_0 : i32, i32, i32
  }
  func.func @transform_12(%arg0: i32) -> (i32, i32) {
    %c0_i32 = arith.constant 0 : i32
    %c0_i32_0 = arith.constant 0 : i32
    return %arg0, %c0_i32 : i32, i32
  }
}

</mosaic_0001>

<llo_original>
// kernel: sent_attn_net_forward_batched.1
$region0: #{sent_attn_net_forward_batched.1}
  #allocation0 [shape = 'u32[]', space=smem, size = 0x4, offset = 0x4, fixed_abs, tag = 'smem constant byte address 0x4 - core index']
  #allocation1 [shape = 'u32[144,128]{1,0:T(1,128)}', space=vmem, size = 0x12000, scoped, tag = 'internal scratch']
  #allocation2 [shape = 'f32[256,192]{1,0:T(8,128)}', space=vmem, size = 0x40000, scoped, tag = 'scratch operand']
  #allocation3 [shape = 'f32[8,32,64]{2,1,0:T(8,128)}', space=vmem, size = 0x20000, scoped, tag = 'scratch operand']
  #allocation4 [shape = 'f32[1,1]{1,0:T(1,128)S(1)}', space=vmem, size = 0x200, scoped, tag = 'scoped memory for sent_attn_net_forward_batched.1']
  %s0 = inlined_call_operand.vmem [shape: bf16[8,64,32], index: 0, kind: input, shape index: {}]
  %s1 = inlined_call_operand.vmem [shape: bf16[32,192], index: 1, kind: input, shape index: {}]
  %s2 = inlined_call_operand.vmem [shape: f32[1,192], index: 2, kind: input, shape index: {}]
  %s3 = inlined_call_operand.vmem [shape: bf16[64,192], index: 3, kind: input, shape index: {}]
  %s4 = inlined_call_operand.vmem [shape: f32[1,192], index: 4, kind: input, shape index: {}]
  %s5 = inlined_call_operand.vmem [shape: f32[1,64], index: 5, kind: input, shape index: {}]
  %s6 = inlined_call_operand.vmem [shape: f32[1,64], index: 6, kind: input, shape index: {}]
  %s7 = inlined_call_operand.vmem [shape: bf16[64,32], index: 7, kind: input, shape index: {}]
  %s8 = inlined_call_operand.vmem [shape: f32[1,32], index: 8, kind: input, shape index: {}]
  %s9 = inlined_call_operand.vmem [shape: f32[1,32], index: 9, kind: input, shape index: {}]
  %s10 = inlined_call_operand.<no memory space> [shape: f32[1,1], index: 10, kind: input, shape index: {}]
  %s11 = inlined_call_operand.vmem [shape: f32[8,16,64], index: 11, kind: output, shape index: {0}]
  %s12 = inlined_call_operand.vmem [shape: f32[64,8], index: 12, kind: output, shape index: {1}]
  %13 = xla_tuple %s11, %s12
  %s14 = sld [smem:[#allocation0]]
  $region160: #{sent_attn_net_forward_batched.1} parent=0
    _
  %s16 = ssub.s32 1, %s14
  %s17 = scalar_select 0, %s16, %s14
  %v18 = vstv %s10
  %19 = vst [vmem:[#allocation4] sm:$0x1] %v18
  $region1: #{sent_attn_net_forward_batched.1} parent=0
    #allocation5 [shape = 'u8[131072]{0}', space=vmem, size = 0x20000, scoped, tag = 'input window, operand 0']
    #allocation6 [shape = 'u8[65536]{0}', space=vmem, size = 0x10000, scoped, tag = 'output window, operand 0']
    loop: start=0, step=1, limit=4
    $region2: #{sent_attn_net_forward_batched.1} parent=1 // loop_pre_header
      _
    $region3: #{sent_attn_net_forward_batched.1} parent=1 // loop_header
      %s21 = sphi 0, %s25
      %p22 = scmp.ge.s32.totalorder %s21, 4
      %s31 = sphi 0, %s33
      %s34 = sphi 0, %s31
      %s35 = sphi 0, %s34
      %s51 = sphi 0, %s35
      %s55 = sphi 0, %s55
      %s57 = sphi 0, %s55
      %s58 = sphi 0, %s57
      %s72 = sphi 0, %s58
      %s76 = sphi 0, %s76
      %s78 = sphi 0, %s76
      %s79 = sphi 0, %s78
      %s93 = sphi 0, %s79
      %s97 = sphi 0, %s97
      %s99 = sphi 0, %s97
      %s100 = sphi 0, %s99
      %s114 = sphi 0, %s100
      %s118 = sphi 0, %s118
      %s120 = sphi 0, %s118
      %s121 = sphi 0, %s120
      %s135 = sphi 0, %s121
      %s139 = sphi 0, %s139
      %s141 = sphi 0, %s139
      %s142 = sphi 0, %s141
      %s156 = sphi 0, %s142
      %s160 = sphi 0, %s160
      %s162 = sphi 0, %s160
      %s163 = sphi 0, %s162
      %s177 = sphi 0, %s163
      %s181 = sphi 0, %s181
      %s183 = sphi 0, %s181
      %s184 = sphi 0, %s183
      %s198 = sphi 0, %s184
      %s202 = sphi 0, %s202
      %s204 = sphi 0, %s202
      %s205 = sphi 0, %s204
      %s219 = sphi 0, %s205
      %s223 = sphi 0, %s223
      %s225 = sphi 0, %s223
      %s226 = sphi 0, %s225
      %s240 = sphi 0, %s226
      %s244 = sphi 0, %s244
      %s246 = sphi 0, %s244
      %s247 = sphi 0, %s246
      %s261 = sphi 0, %s247
      %s267 = sphi 0, %s269
      %s270 = sphi 0, %s267
      %s271 = sphi 0, %s270
      %s287 = sphi 0, %s271
      %s293 = sphi 0, %s295
      %s296 = sphi 0, %s293
      %s297 = sphi 0, %s296
      %s313 = sphi 0, %s297
    $region4: #{sent_attn_net_forward_batched.1} parent=1 // loop_header_branch
      %24 = sbr.rel (%p22) target = $region8
    $region5: #{sent_attn_net_forward_batched.1} parent=1 // loop_body
      %s26 = ssub.s32 %s21, 1
      %s27 = ssub.s32 %s21, 2
      %s28 = sadd.s32 %s21, 1
      %s29 = ssub.s32 %s21, %s28
      %p30 = scmp.eq.s32.totalorder %s29, 0
      %s32 = sadd.s32 %s31, 1
      %s33 = scalar_select %p30, %s31, %s32
      %p36 = pneg %p30
      %p37 = scmp.eq.s32.totalorder %s21, 1
      %p38 = por %p36, %p37
      %p39 = scmp.ne.s32.totalorder %s31, %s34
      %p40 = scmp.eq.s32.totalorder %s21, 0
      %p41 = por %p39, %p40
      %p42 = scmp.ne.s32.totalorder %s31, %s34
      %p43 = scmp.eq.s32.totalorder %s26, 1
      %p44 = por %p42, %p43
      %p45 = scmp.ne.s32.totalorder %s34, %s35
      %p46 = scmp.eq.s32.totalorder %s26, 0
      %p47 = por %p45, %p46
      %p48 = scmp.ne.s32.totalorder %s34, %s35
      %p49 = scmp.eq.s32.totalorder %s27, 1
      %p50 = por %p48, %p49
      %p52 = scmp.ne.s32.totalorder %s35, %s51
      %p53 = scmp.eq.s32.totalorder %s27, 0
      %p54 = por %p52, %p53
      %s56 = sadd.s32 %s55, 1
      %p59 = scmp.eq.s32.totalorder %s21, 1
      %p60 = scmp.ne.s32.totalorder %s55, %s57
      %p61 = scmp.eq.s32.totalorder %s21, 0
      %p62 = por %p60, %p61
      %p63 = scmp.ne.s32.totalorder %s55, %s57
      %p64 = scmp.eq.s32.totalorder %s26, 1
      %p65 = por %p63, %p64
      %p66 = scmp.ne.s32.totalorder %s57, %s58
      %p67 = scmp.eq.s32.totalorder %s26, 0
      %p68 = por %p66, %p67
      %p69 = scmp.ne.s32.totalorder %s57, %s58
      %p70 = scmp.eq.s32.totalorder %s27, 1
      %p71 = por %p69, %p70
      %p73 = scmp.ne.s32.totalorder %s58, %s72
      %p74 = scmp.eq.s32.totalorder %s27, 0
      %p75 = por %p73, %p74
      %s77 = sadd.s32 %s76, 1
      %p80 = scmp.eq.s32.totalorder %s21, 1
      %p81 = scmp.ne.s32.totalorder %s76, %s78
      %p82 = scmp.eq.s32.totalorder %s21, 0
      %p83 = por %p81, %p82
      %p84 = scmp.ne.s32.totalorder %s76, %s78
      %p85 = scmp.eq.s32.totalorder %s26, 1
      %p86 = por %p84, %p85
      %p87 = scmp.ne.s32.totalorder %s78, %s79
      %p88 = scmp.eq.s32.totalorder %s26, 0
      %p89 = por %p87, %p88
      %p90 = scmp.ne.s32.totalorder %s78, %s79
      %p91 = scmp.eq.s32.totalorder %s27, 1
      %p92 = por %p90, %p91
      %p94 = scmp.ne.s32.totalorder %s79, %s93
      %p95 = scmp.eq.s32.totalorder %s27, 0
      %p96 = por %p94, %p95
      %s98 = sadd.s32 %s97, 1
      %p101 = scmp.eq.s32.totalorder %s21, 1
      %p102 = scmp.ne.s32.totalorder %s97, %s99
      %p103 = scmp.eq.s32.totalorder %s21, 0
      %p104 = por %p102, %p103
      %p105 = scmp.ne.s32.totalorder %s97, %s99
      %p106 = scmp.eq.s32.totalorder %s26, 1
      %p107 = por %p105, %p106
      %p108 = scmp.ne.s32.totalorder %s99, %s100
      %p109 = scmp.eq.s32.totalorder %s26, 0
      %p110 = por %p108, %p109
      %p111 = scmp.ne.s32.totalorder %s99, %s100
      %p112 = scmp.eq.s32.totalorder %s27, 1
      %p113 = por %p111, %p112
      %p115 = scmp.ne.s32.totalorder %s100, %s114
      %p116 = scmp.eq.s32.totalorder %s27, 0
      %p117 = por %p115, %p116
      %s119 = sadd.s32 %s118, 1
      %p122 = scmp.eq.s32.totalorder %s21, 1
      %p123 = scmp.ne.s32.totalorder %s118, %s120
      %p124 = scmp.eq.s32.totalorder %s21, 0
      %p125 = por %p123, %p124
      %p126 = scmp.ne.s32.totalorder %s118, %s120
      %p127 = scmp.eq.s32.totalorder %s26, 1
      %p128 = por %p126, %p127
      %p129 = scmp.ne.s32.totalorder %s120, %s121
      %p130 = scmp.eq.s32.totalorder %s26, 0
      %p131 = por %p129, %p130
      %p132 = scmp.ne.s32.totalorder %s120, %s121
      %p133 = scmp.eq.s32.totalorder %s27, 1
      %p134 = por %p132, %p133
      %p136 = scmp.ne.s32.totalorder %s121, %s135
      %p137 = scmp.eq.s32.totalorder %s27, 0
      %p138 = por %p136, %p137
      %s140 = sadd.s32 %s139, 1
      %p143 = scmp.eq.s32.totalorder %s21, 1
      %p144 = scmp.ne.s32.totalorder %s139, %s141
      %p145 = scmp.eq.s32.totalorder %s21, 0
      %p146 = por %p144, %p145
      %p147 = scmp.ne.s32.totalorder %s139, %s141
      %p148 = scmp.eq.s32.totalorder %s26, 1
      %p149 = por %p147, %p148
      %p150 = scmp.ne.s32.totalorder %s141, %s142
      %p151 = scmp.eq.s32.totalorder %s26, 0
      %p152 = por %p150, %p151
      %p153 = scmp.ne.s32.totalorder %s141, %s142
      %p154 = scmp.eq.s32.totalorder %s27, 1
      %p155 = por %p153, %p154
      %p157 = scmp.ne.s32.totalorder %s142, %s156
      %p158 = scmp.eq.s32.totalorder %s27, 0
      %p159 = por %p157, %p158
      %s161 = sadd.s32 %s160, 1
      %p164 = scmp.eq.s32.totalorder %s21, 1
      %p165 = scmp.ne.s32.totalorder %s160, %s162
      %p166 = scmp.eq.s32.totalorder %s21, 0
      %p167 = por %p165, %p166
      %p168 = scmp.ne.s32.totalorder %s160, %s162
      %p169 = scmp.eq.s32.totalorder %s26, 1
      %p170 = por %p168, %p169
      %p171 = scmp.ne.s32.totalorder %s162, %s163
      %p172 = scmp.eq.s32.totalorder %s26, 0
      %p173 = por %p171, %p172
      %p174 = scmp.ne.s32.totalorder %s162, %s163
      %p175 = scmp.eq.s32.totalorder %s27, 1
      %p176 = por %p174, %p175
      %p178 = scmp.ne.s32.totalorder %s163, %s177
      %p179 = scmp.eq.s32.totalorder %s27, 0
      %p180 = por %p178, %p179
      %s182 = sadd.s32 %s181, 1
      %p185 = scmp.eq.s32.totalorder %s21, 1
      %p186 = scmp.ne.s32.totalorder %s181, %s183
      %p187 = scmp.eq.s32.totalorder %s21, 0
      %p188 = por %p186, %p187
      %p189 = scmp.ne.s32.totalorder %s181, %s183
      %p190 = scmp.eq.s32.totalorder %s26, 1
      %p191 = por %p189, %p190
      %p192 = scmp.ne.s32.totalorder %s183, %s184
      %p193 = scmp.eq.s32.totalorder %s26, 0
      %p194 = por %p192, %p193
      %p195 = scmp.ne.s32.totalorder %s183, %s184
      %p196 = scmp.eq.s32.totalorder %s27, 1
      %p197 = por %p195, %p196
      %p199 = scmp.ne.s32.totalorder %s184, %s198
      %p200 = scmp.eq.s32.totalorder %s27, 0
      %p201 = por %p199, %p200
      %s203 = sadd.s32 %s202, 1
      %p206 = scmp.eq.s32.totalorder %s21, 1
      %p207 = scmp.ne.s32.totalorder %s202, %s204
      %p208 = scmp.eq.s32.totalorder %s21, 0
      %p209 = por %p207, %p208
      %p210 = scmp.ne.s32.totalorder %s202, %s204
      %p211 = scmp.eq.s32.totalorder %s26, 1
      %p212 = por %p210, %p211
      %p213 = scmp.ne.s32.totalorder %s204, %s205
      %p214 = scmp.eq.s32.totalorder %s26, 0
      %p215 = por %p213, %p214
      %p216 = scmp.ne.s32.totalorder %s204, %s205
      %p217 = scmp.eq.s32.totalorder %s27, 1
      %p218 = por %p216, %p217
      %p220 = scmp.ne.s32.totalorder %s205, %s219
      %p221 = scmp.eq.s32.totalorder %s27, 0
      %p222 = por %p220, %p221
      %s224 = sadd.s32 %s223, 1
      %p227 = scmp.eq.s32.totalorder %s21, 1
      %p228 = scmp.ne.s32.totalorder %s223, %s225
      %p229 = scmp.eq.s32.totalorder %s21, 0
      %p230 = por %p228, %p229
      %p231 = scmp.ne.s32.totalorder %s223, %s225
      %p232 = scmp.eq.s32.totalorder %s26, 1
      %p233 = por %p231, %p232
      %p234 = scmp.ne.s32.totalorder %s225, %s226
      %p235 = scmp.eq.s32.totalorder %s26, 0
      %p236 = por %p234, %p235
      %p237 = scmp.ne.s32.totalorder %s225, %s226
      %p238 = scmp.eq.s32.totalorder %s27, 1
      %p239 = por %p237, %p238
      %p241 = scmp.ne.s32.totalorder %s226, %s240
      %p242 = scmp.eq.s32.totalorder %s27, 0
      %p243 = por %p241, %p242
      %s245 = sadd.s32 %s244, 1
      %p248 = scmp.eq.s32.totalorder %s21, 1
      %p249 = scmp.ne.s32.totalorder %s244, %s246
      %p250 = scmp.eq.s32.totalorder %s21, 0
      %p251 = por %p249, %p250
      %p252 = scmp.ne.s32.totalorder %s244, %s246
      %p253 = scmp.eq.s32.totalorder %s26, 1
      %p254 = por %p252, %p253
      %p255 = scmp.ne.s32.totalorder %s246, %s247
      %p256 = scmp.eq.s32.totalorder %s26, 0
      %p257 = por %p255, %p256
      %p258 = scmp.ne.s32.totalorder %s246, %s247
      %p259 = scmp.eq.s32.totalorder %s27, 1
      %p260 = por %p258, %p259
      %p262 = scmp.ne.s32.totalorder %s247, %s261
      %p263 = scmp.eq.s32.totalorder %s27, 0
      %p264 = por %p262, %p263
      %s265 = ssub.s32 %s21, %s28
      %p266 = scmp.eq.s32.totalorder %s265, 0
      %s268 = sadd.s32 %s267, 1
      %s269 = scalar_select %p266, %s267, %s268
      %p272 = pneg %p266
      %p273 = scmp.eq.s32.totalorder %s21, 1
      %p274 = por %p272, %p273
      %p275 = scmp.ne.s32.totalorder %s267, %s270
      %p276 = scmp.eq.s32.totalorder %s21, 0
      %p277 = por %p275, %p276
      %p278 = scmp.ne.s32.totalorder %s267, %s270
      %p279 = scmp.eq.s32.totalorder %s26, 1
      %p280 = por %p278, %p279
      %p281 = scmp.ne.s32.totalorder %s270, %s271
      %p282 = scmp.eq.s32.totalorder %s26, 0
      %p283 = por %p281, %p282
      %p284 = scmp.ne.s32.totalorder %s270, %s271
      %p285 = scmp.eq.s32.totalorder %s27, 1
      %p286 = por %p284, %p285
      %p288 = scmp.ne.s32.totalorder %s271, %s287
      %p289 = scmp.eq.s32.totalorder %s27, 0
      %p290 = por %p288, %p289
      %s291 = ssub.s32 %s21, %s28
      %p292 = scmp.eq.s32.totalorder %s291, 0
      %s294 = sadd.s32 %s293, 1
      %s295 = scalar_select %p292, %s293, %s294
      %p298 = pneg %p292
      %p299 = scmp.eq.s32.totalorder %s21, 1
      %p300 = por %p298, %p299
      %p301 = scmp.ne.s32.totalorder %s293, %s296
      %p302 = scmp.eq.s32.totalorder %s21, 0
      %p303 = por %p301, %p302
      %p304 = scmp.ne.s32.totalorder %s293, %s296
      %p305 = scmp.eq.s32.totalorder %s26, 1
      %p306 = por %p304, %p305
      %p307 = scmp.ne.s32.totalorder %s296, %s297
      %p308 = scmp.eq.s32.totalorder %s26, 0
      %p309 = por %p307, %p308
      %p310 = scmp.ne.s32.totalorder %s296, %s297
      %p311 = scmp.eq.s32.totalorder %s27, 1
      %p312 = por %p310, %p311
      %p314 = scmp.ne.s32.totalorder %s297, %s313
      %p315 = scmp.eq.s32.totalorder %s27, 0
      %p316 = por %p314, %p315
      %p317 = scmp.le.s32.totalorder 1, %s21
      %p318 = scmp.lt.s32.totalorder %s21, 3
      %p319 = pnand %p317, %p318
      %p320 = pneg %p319
      // Predicated region
      $region9: #{sent_attn_net_forward_batched.1} parent=5 // pred_check
        _
      $region10: #{sent_attn_net_forward_batched.1} parent=5 // pred_check_branch
        %322 = sbr.rel (%p319) target = $region12
      $region11: #{sent_attn_net_forward_batched.1} parent=5 // pred_region
        %s323 = ssub.s32 %s21, 1
        // Predicated region
        $region13: #{sent_attn_net_forward_batched.1} parent=11 // pred_check
          %p324 = pneg %p68
        $region14: #{sent_attn_net_forward_batched.1} parent=11 // pred_check_branch
          %326 = sbr.rel (%p324) target = $region16
        $region15: #{sent_attn_net_forward_batched.1} parent=11 // pred_region
          _
        $region16: #{sent_attn_net_forward_batched.1} parent=11 // pred_fallthru
          _
        // Predicated region
        $region17: #{sent_attn_net_forward_batched.1} parent=11 // pred_check
          %p327 = pneg %p89
        $region18: #{sent_attn_net_forward_batched.1} parent=11 // pred_check_branch
          %329 = sbr.rel (%p327) target = $region20
        $region19: #{sent_attn_net_forward_batched.1} parent=11 // pred_region
          _
        $region20: #{sent_attn_net_forward_batched.1} parent=11 // pred_fallthru
          _
        // Predicated region
        $region21: #{sent_attn_net_forward_batched.1} parent=11 // pred_check
          %p330 = pneg %p110
        $region22: #{sent_attn_net_forward_batched.1} parent=11 // pred_check_branch
          %332 = sbr.rel (%p330) target = $region24
        $region23: #{sent_attn_net_forward_batched.1} parent=11 // pred_region
          _
        $region24: #{sent_attn_net_forward_batched.1} parent=11 // pred_fallthru
          _
        // Predicated region
        $region25: #{sent_attn_net_forward_batched.1} parent=11 // pred_check
          %p333 = pneg %p131
        $region26: #{sent_attn_net_forward_batched.1} parent=11 // pred_check_branch
          %335 = sbr.rel (%p333) target = $region28
        $region27: #{sent_attn_net_forward_batched.1} parent=11 // pred_region
          _
        $region28: #{sent_attn_net_forward_batched.1} parent=11 // pred_fallthru
          _
        // Predicated region
        $region29: #{sent_attn_net_forward_batched.1} parent=11 // pred_check
          %p336 = pneg %p152
        $region30: #{sent_attn_net_forward_batched.1} parent=11 // pred_check_branch
          %338 = sbr.rel (%p336) target = $region32
        $region31: #{sent_attn_net_forward_batched.1} parent=11 // pred_region
          _
        $region32: #{sent_attn_net_forward_batched.1} parent=11 // pred_fallthru
          _
        // Predicated region
        $region33: #{sent_attn_net_forward_batched.1} parent=11 // pred_check
          %p339 = pneg %p173
        $region34: #{sent_attn_net_forward_batched.1} parent=11 // pred_check_branch
          %341 = sbr.rel (%p339) target = $region36
        $region35: #{sent_attn_net_forward_batched.1} parent=11 // pred_region
          _
        $region36: #{sent_attn_net_forward_batched.1} parent=11 // pred_fallthru
          _
        // Predicated region
        $region37: #{sent_attn_net_forward_batched.1} parent=11 // pred_check
          %p342 = pneg %p194
        $region38: #{sent_attn_net_forward_batched.1} parent=11 // pred_check_branch
          %344 = sbr.rel (%p342) target = $region40
        $region39: #{sent_attn_net_forward_batched.1} parent=11 // pred_region
          _
        $region40: #{sent_attn_net_forward_batched.1} parent=11 // pred_fallthru
          _
        // Predicated region
        $region41: #{sent_attn_net_forward_batched.1} parent=11 // pred_check
          %p345 = pneg %p215
        $region42: #{sent_attn_net_forward_batched.1} parent=11 // pred_check_branch
          %347 = sbr.rel (%p345) target = $region44
        $region43: #{sent_attn_net_forward_batched.1} parent=11 // pred_region
          _
        $region44: #{sent_attn_net_forward_batched.1} parent=11 // pred_fallthru
          _
        // Predicated region
        $region45: #{sent_attn_net_forward_batched.1} parent=11 // pred_check
          %p348 = pneg %p236
        $region46: #{sent_attn_net_forward_batched.1} parent=11 // pred_check_branch
          %350 = sbr.rel (%p348) target = $region48
        $region47: #{sent_attn_net_forward_batched.1} parent=11 // pred_region
          _
        $region48: #{sent_attn_net_forward_batched.1} parent=11 // pred_fallthru
          _
        // Predicated region
        $region49: #{sent_attn_net_forward_batched.1} parent=11 // pred_check
          %p351 = pneg %p257
        $region50: #{sent_attn_net_forward_batched.1} parent=11 // pred_check_branch
          %353 = sbr.rel (%p351) target = $region52
        $region51: #{sent_attn_net_forward_batched.1} parent=11 // pred_region
          _
        $region52: #{sent_attn_net_forward_batched.1} parent=11 // pred_fallthru
          _
      $region12: #{sent_attn_net_forward_batched.1} parent=5 // pred_fallthru
        _
      %p354 = scmp.lt.s32.totalorder %s21, 2
      // Predicated region
      $region53: #{sent_attn_net_forward_batched.1} parent=5 // pred_check
        %p355 = pneg %p354
      $region54: #{sent_attn_net_forward_batched.1} parent=5 // pred_check_branch
        %357 = sbr.rel (%p355) target = $region56
      $region55: #{sent_attn_net_forward_batched.1} parent=5 // pred_region
        // Predicated region
        $region57: #{sent_attn_net_forward_batched.1} parent=55 // pred_check
          %p358 = pneg %p41
        $region58: #{sent_attn_net_forward_batched.1} parent=55 // pred_check_branch
          %360 = sbr.rel (%p358) target = $region60
        $region59: #{sent_attn_net_forward_batched.1} parent=55 // pred_region
          %s361 = sand.u32 %s31, 1
          %s362 = sand.u32 %s31, 1
          %s363 = smul.addr %s362, 128
          %s364 = scalar_lea.vmem [#allocation5], %s363
          %s365 = smul.u32 4, %s21
          %s366 = smul.addr %s365, 4
          %s367 = scalar_lea.vmem %s0, %s366
          // Predicated region
          $region61: #{sent_attn_net_forward_batched.1} parent=59 // pred_check
            _
          $region62: #{sent_attn_net_forward_batched.1} parent=59 // pred_check_branch
            %369 = sbr.rel (0) target = $region64
          $region63: #{sent_attn_net_forward_batched.1} parent=59 // pred_region
            // Predicated region
            $region65: #{sent_attn_net_forward_batched.1} parent=63 // pred_check
              _
            $region66: #{sent_attn_net_forward_batched.1} parent=63 // pred_check_branch
              %371 = sbr.rel target = $region68
            $region67: #{sent_attn_net_forward_batched.1} parent=63 // pred_region
              // Predicated region
              $region80: #{sent_attn_net_forward_batched.1} parent=67 // pred_check
                _
              $region81: #{sent_attn_net_forward_batched.1} parent=67 // pred_check_branch
                %448 = sbr.rel (0) target = $region83
              $region82: #{sent_attn_net_forward_batched.1} parent=67 // pred_region
                loop: start=0, step=1, limit=1
                $region84: #{sent_attn_net_forward_batched.1} parent=82 // loop_pre_header
                  _
                $region85: #{sent_attn_net_forward_batched.1} parent=82 // loop_header
                  %s450 = sphi 0, %s454
                  %p451 = scmp.ge.s32.totalorder %s450, 1
                  %s455 = sphi %s367, %s367
                  %s456 = sphi %s364, %s364
                $region86: #{sent_attn_net_forward_batched.1} parent=82 // loop_header_branch
                  %453 = sbr.rel (%p451) target = $region90
                $region87: #{sent_attn_net_forward_batched.1} parent=82 // loop_body
                  _
                $region88: #{sent_attn_net_forward_batched.1} parent=82 // loop_footer
                  %s454 = sadd.s32 1, %s450
                $region89: #{sent_attn_net_forward_batched.1} parent=82 // loop_footer_branch
                  %449 = sbr.rel target = $region85
                $region90: #{sent_attn_net_forward_batched.1} parent=82 // loop_exit
                  _
                loop: start=0, step=1, limit=1
                $region91: #{sent_attn_net_forward_batched.1} parent=82 // loop_pre_header
                  _
                $region92: #{sent_attn_net_forward_batched.1} parent=82 // loop_header
                  %s459 = sphi 0, %s463
                  %p460 = scmp.ge.s32.totalorder %s459, 1
                  %s464 = sphi %s367, %s367
                  %s465 = sphi %s364, %s364
                $region93: #{sent_attn_net_forward_batched.1} parent=82 // loop_header_branch
                  %462 = sbr.rel (%p460) target = $region97
                $region94: #{sent_attn_net_forward_batched.1} parent=82 // loop_body
                  %v466 = vld [vmem:[%s464] sm:$0xf]
                  %467 = vst [vmem:[%s465] sm:$0xf] %v466
                  %v468 = vld [vmem:[%s464 + $0x4] sm:$0xf]
                  %469 = vst [vmem:[%s465 + $0x4] sm:$0xf] %v468
                  %v470 = vld [vmem:[%s464 + $0x8] sm:$0xf]
                  %471 = vst [vmem:[%s465 + $0x8] sm:$0xf] %v470
                  %v472 = vld [vmem:[%s464 + $0xc] sm:$0xf]
                  %473 = vst [vmem:[%s465 + $0xc] sm:$0xf] %v472
                  %v474 = vld [vmem:[%s464 + $0x20] sm:$0xf]
                  %475 = vst [vmem:[%s465 + $0x10] sm:$0xf] %v474
                  %v476 = vld [vmem:[%s464 + $0x24] sm:$0xf]
                  %477 = vst [vmem:[%s465 + $0x14] sm:$0xf] %v476
                  %v478 = vld [vmem:[%s464 + $0x28] sm:$0xf]
                  %479 = vst [vmem:[%s465 + $0x18] sm:$0xf] %v478
                  %v480 = vld [vmem:[%s464 + $0x2c] sm:$0xf]
                  %481 = vst [vmem:[%s465 + $0x1c] sm:$0xf] %v480
                  %v482 = vld [vmem:[%s464 + $0x40] sm:$0xf]
                  %483 = vst [vmem:[%s465 + $0x20] sm:$0xf] %v482
                  %v484 = vld [vmem:[%s464 + $0x44] sm:$0xf]
                  %485 = vst [vmem:[%s465 + $0x24] sm:$0xf] %v484
                  %v486 = vld [vmem:[%s464 + $0x48] sm:$0xf]
                  %487 = vst [vmem:[%s465 + $0x28] sm:$0xf] %v486
                  %v488 = vld [vmem:[%s464 + $0x4c] sm:$0xf]
                  %489 = vst [vmem:[%s465 + $0x2c] sm:$0xf] %v488
                  %v490 = vld [vmem:[%s464 + $0x60] sm:$0xf]
                  %491 = vst [vmem:[%s465 + $0x30] sm:$0xf] %v490
                  %v492 = vld [vmem:[%s464 + $0x64] sm:$0xf]
                  %493 = vst [vmem:[%s465 + $0x34] sm:$0xf] %v492
                  %v494 = vld [vmem:[%s464 + $0x68] sm:$0xf]
                  %495 = vst [vmem:[%s465 + $0x38] sm:$0xf] %v494
                  %v496 = vld [vmem:[%s464 + $0x6c] sm:$0xf]
                  %497 = vst [vmem:[%s465 + $0x3c] sm:$0xf] %v496
                  %v498 = vld [vmem:[%s464 + $0x80] sm:$0xf]
                  %499 = vst [vmem:[%s465 + $0x40] sm:$0xf] %v498
                  %v500 = vld [vmem:[%s464 + $0x84] sm:$0xf]
                  %501 = vst [vmem:[%s465 + $0x44] sm:$0xf] %v500
                  %v502 = vld [vmem:[%s464 + $0x88] sm:$0xf]
                  %503 = vst [vmem:[%s465 + $0x48] sm:$0xf] %v502
                  %v504 = vld [vmem:[%s464 + $0x8c] sm:$0xf]
                  %505 = vst [vmem:[%s465 + $0x4c] sm:$0xf] %v504
                  %v506 = vld [vmem:[%s464 + $0xa0] sm:$0xf]
                  %507 = vst [vmem:[%s465 + $0x50] sm:$0xf] %v506
                  %v508 = vld [vmem:[%s464 + $0xa4] sm:$0xf]
                  %509 = vst [vmem:[%s465 + $0x54] sm:$0xf] %v508
                  %v510 = vld [vmem:[%s464 + $0xa8] sm:$0xf]
                  %511 = vst [vmem:[%s465 + $0x58] sm:$0xf] %v510
                  %v512 = vld [vmem:[%s464 + $0xac] sm:$0xf]
                  %513 = vst [vmem:[%s465 + $0x5c] sm:$0xf] %v512
                  %v514 = vld [vmem:[%s464 + $0xc0] sm:$0xf]
                  %515 = vst [vmem:[%s465 + $0x60] sm:$0xf] %v514
                  %v516 = vld [vmem:[%s464 + $0xc4] sm:$0xf]
                  %517 = vst [vmem:[%s465 + $0x64] sm:$0xf] %v516
                  %v518 = vld [vmem:[%s464 + $0xc8] sm:$0xf]
                  %519 = vst [vmem:[%s465 + $0x68] sm:$0xf] %v518
                  %v520 = vld [vmem:[%s464 + $0xcc] sm:$0xf]
                  %521 = vst [vmem:[%s465 + $0x6c] sm:$0xf] %v520
                  %v522 = vld [vmem:[%s464 + $0xe0] sm:$0xf]
                  %523 = vst [vmem:[%s465 + $0x70] sm:$0xf] %v522
                  %v524 = vld [vmem:[%s464 + $0xe4] sm:$0xf]
                  %525 = vst [vmem:[%s465 + $0x74] sm:$0xf] %v524
                  %v526 = vld [vmem:[%s464 + $0xe8] sm:$0xf]
                  %527 = vst [vmem:[%s465 + $0x78] sm:$0xf] %v526
                  %v528 = vld [vmem:[%s464 + $0xec] sm:$0xf]
                  %529 = vst [vmem:[%s465 + $0x7c] sm:$0xf] %v528
                $region95: #{sent_attn_net_forward_batched.1} parent=82 // loop_footer
                  %s463 = sadd.s32 1, %s459
                $region96: #{sent_attn_net_forward_batched.1} parent=82 // loop_footer_branch
                  %458 = sbr.rel target = $region92
                $region97: #{sent_attn_net_forward_batched.1} parent=82 // loop_exit
                  _
              $region83: #{sent_attn_net_forward_batched.1} parent=67 // pred_fallthru
                _
            $region68: #{sent_attn_net_forward_batched.1} parent=63 // pred_fallthru
              _
            // Predicated region
            $region69: #{sent_attn_net_forward_batched.1} parent=63 // pred_check
              _
            $region70: #{sent_attn_net_forward_batched.1} parent=63 // pred_check_branch
              %373 = sbr.rel (0) target = $region72
            $region71: #{sent_attn_net_forward_batched.1} parent=63 // pred_region
              loop: start=0, step=1, limit=1
              $region73: #{sent_attn_net_forward_batched.1} parent=71 // loop_pre_header
                _
              $region74: #{sent_attn_net_forward_batched.1} parent=71 // loop_header
                %s376 = sphi 0, %s380
                %p377 = scmp.ge.s32.totalorder %s376, 1
                %s381 = sphi %s367, %s367
                %s382 = sphi %s364, %s364
              $region75: #{sent_attn_net_forward_batched.1} parent=71 // loop_header_branch
                %379 = sbr.rel (%p377) target = $region79
              $region76: #{sent_attn_net_forward_batched.1} parent=71 // loop_body
                %v383 = vld [vmem:[%s381] sm:$0xf]
                %384 = vst [vmem:[%s382] sm:$0xf] %v383
                %v385 = vld [vmem:[%s381 + $0x4] sm:$0xf]
                %386 = vst [vmem:[%s382 + $0x4] sm:$0xf] %v385
                %v387 = vld [vmem:[%s381 + $0x8] sm:$0xf]
                %388 = vst [vmem:[%s382 + $0x8] sm:$0xf] %v387
                %v389 = vld [vmem:[%s381 + $0xc] sm:$0xf]
                %390 = vst [vmem:[%s382 + $0xc] sm:$0xf] %v389
                %v391 = vld [vmem:[%s381 + $0x20] sm:$0xf]
                %392 = vst [vmem:[%s382 + $0x10] sm:$0xf] %v391
                %v393 = vld [vmem:[%s381 + $0x24] sm:$0xf]
                %394 = vst [vmem:[%s382 + $0x14] sm:$0xf] %v393
                %v395 = vld [vmem:[%s381 + $0x28] sm:$0xf]
                %396 = vst [vmem:[%s382 + $0x18] sm:$0xf] %v395
                %v397 = vld [vmem:[%s381 + $0x2c] sm:$0xf]
                %398 = vst [vmem:[%s382 + $0x1c] sm:$0xf] %v397
                %v399 = vld [vmem:[%s381 + $0x40] sm:$0xf]
                %400 = vst [vmem:[%s382 + $0x20] sm:$0xf] %v399
                %v401 = vld [vmem:[%s381 + $0x44] sm:$0xf]
                %402 = vst [vmem:[%s382 + $0x24] sm:$0xf] %v401
                %v403 = vld [vmem:[%s381 + $0x48] sm:$0xf]
                %404 = vst [vmem:[%s382 + $0x28] sm:$0xf] %v403
                %v405 = vld [vmem:[%s381 + $0x4c] sm:$0xf]
                %406 = vst [vmem:[%s382 + $0x2c] sm:$0xf] %v405
                %v407 = vld [vmem:[%s381 + $0x60] sm:$0xf]
                %408 = vst [vmem:[%s382 + $0x30] sm:$0xf] %v407
                %v409 = vld [vmem:[%s381 + $0x64] sm:$0xf]
                %410 = vst [vmem:[%s382 + $0x34] sm:$0xf] %v409
                %v411 = vld [vmem:[%s381 + $0x68] sm:$0xf]
                %412 = vst [vmem:[%s382 + $0x38] sm:$0xf] %v411
                %v413 = vld [vmem:[%s381 + $0x6c] sm:$0xf]
                %414 = vst [vmem:[%s382 + $0x3c] sm:$0xf] %v413
                %v415 = vld [vmem:[%s381 + $0x80] sm:$0xf]
                %416 = vst [vmem:[%s382 + $0x40] sm:$0xf] %v415
                %v417 = vld [vmem:[%s381 + $0x84] sm:$0xf]
                %418 = vst [vmem:[%s382 + $0x44] sm:$0xf] %v417
                %v419 = vld [vmem:[%s381 + $0x88] sm:$0xf]
                %420 = vst [vmem:[%s382 + $0x48] sm:$0xf] %v419
                %v421 = vld [vmem:[%s381 + $0x8c] sm:$0xf]
                %422 = vst [vmem:[%s382 + $0x4c] sm:$0xf] %v421
                %v423 = vld [vmem:[%s381 + $0xa0] sm:$0xf]
                %424 = vst [vmem:[%s382 + $0x50] sm:$0xf] %v423
                %v425 = vld [vmem:[%s381 + $0xa4] sm:$0xf]
                %426 = vst [vmem:[%s382 + $0x54] sm:$0xf] %v425
                %v427 = vld [vmem:[%s381 + $0xa8] sm:$0xf]
                %428 = vst [vmem:[%s382 + $0x58] sm:$0xf] %v427
                %v429 = vld [vmem:[%s381 + $0xac] sm:$0xf]
                %430 = vst [vmem:[%s382 + $0x5c] sm:$0xf] %v429
                %v431 = vld [vmem:[%s381 + $0xc0] sm:$0xf]
                %432 = vst [vmem:[%s382 + $0x60] sm:$0xf] %v431
                %v433 = vld [vmem:[%s381 + $0xc4] sm:$0xf]
                %434 = vst [vmem:[%s382 + $0x64] sm:$0xf] %v433
                %v435 = vld [vmem:[%s381 + $0xc8] sm:$0xf]
                %436 = vst [vmem:[%s382 + $0x68] sm:$0xf] %v435
                %v437 = vld [vmem:[%s381 + $0xcc] sm:$0xf]
                %438 = vst [vmem:[%s382 + $0x6c] sm:$0xf] %v437
                %v439 = vld [vmem:[%s381 + $0xe0] sm:$0xf]
                %440 = vst [vmem:[%s382 + $0x70] sm:$0xf] %v439
                %v441 = vld [vmem:[%s381 + $0xe4] sm:$0xf]
                %442 = vst [vmem:[%s382 + $0x74] sm:$0xf] %v441
                %v443 = vld [vmem:[%s381 + $0xe8] sm:$0xf]
                %444 = vst [vmem:[%s382 + $0x78] sm:$0xf] %v443
                %v445 = vld [vmem:[%s381 + $0xec] sm:$0xf]
                %446 = vst [vmem:[%s382 + $0x7c] sm:$0xf] %v445
              $region77: #{sent_attn_net_forward_batched.1} parent=71 // loop_footer
                %s380 = sadd.s32 1, %s376
              $region78: #{sent_attn_net_forward_batched.1} parent=71 // loop_footer_branch
                %375 = sbr.rel target = $region74
              $region79: #{sent_attn_net_forward_batched.1} parent=71 // loop_exit
                _
            $region72: #{sent_attn_net_forward_batched.1} parent=63 // pred_fallthru
              _
          $region64: #{sent_attn_net_forward_batched.1} parent=59 // pred_fallthru
            _
          %530 = vnop
        $region60: #{sent_attn_net_forward_batched.1} parent=55 // pred_fallthru
          _
      $region56: #{sent_attn_net_forward_batched.1} parent=5 // pred_fallthru
        _
      %p531 = scmp.le.s32.totalorder 1, %s21
      %p532 = scmp.lt.s32.totalorder %s21, 3
      %p533 = pnand %p531, %p532
      %p534 = pneg %p533
      // Predicated region
      $region98: #{sent_attn_net_forward_batched.1} parent=5 // pred_check
        _
      $region99: #{sent_attn_net_forward_batched.1} parent=5 // pred_check_branch
        %536 = sbr.rel (%p533) target = $region101
      $region100: #{sent_attn_net_forward_batched.1} parent=5 // pred_region
        %s537 = ssub.s32 %s21, 1
        %s538 = sand.u32 %s34, 1
        %s539 = sand.u32 %s34, 1
        %s540 = smul.addr %s539, 128
        %s541 = scalar_lea.vmem [#allocation5], %s540
        // Predicated region
        $region102: #{sent_attn_net_forward_batched.1} parent=100 // pred_check
          %p542 = pneg %p47
        $region103: #{sent_attn_net_forward_batched.1} parent=100 // pred_check_branch
          %544 = sbr.rel (%p542) target = $region105
        $region104: #{sent_attn_net_forward_batched.1} parent=100 // pred_region
          _
        $region105: #{sent_attn_net_forward_batched.1} parent=100 // pred_fallthru
          _
        %s545 = sand.u32 %s34, 1
        %s546 = sand.u32 %s34, 1
        %s547 = smul.addr %s546, 128
        %s548 = scalar_lea.vmem [#allocation5], %s547
        %p549 = pneg %p47
        %p550 = pneg %p44
        %p551 = pneg %p68
        %p552 = pneg %p65
        %p553 = pneg %p89
        %p554 = pneg %p86
        %p555 = pneg %p110
        %p556 = pneg %p107
        %p557 = pneg %p131
        %p558 = pneg %p128
        %p559 = pneg %p152
        %p560 = pneg %p149
        %p561 = pneg %p173
        %p562 = pneg %p170
        %p563 = pneg %p194
        %p564 = pneg %p191
        %p565 = pneg %p215
        %p566 = pneg %p212
        %p567 = pneg %p236
        %p568 = pneg %p233
        %p569 = pneg %p257
        %p570 = pneg %p254
        %p571 = pneg %p283
        %p572 = pneg %p280
        %s573 = sand.u32 %s270, 1
        %s574 = sand.u32 %s270, 1
        %s575 = smul.addr %s574, 64
        %s576 = scalar_lea.vmem [#allocation6], %s575
        %p577 = pneg %p309
        %p578 = pneg %p306
        %s579 = smul.u32 4, %s26
        %p580 = scmp.lt.s32.totalorder %s579, 7
        %s581 = scalar_select %p580, %s579, 7
        %s582 = smul.addr %s581, 8
        %s583 = scalar_lea.vmem %s12, %s582
        %s584 = smul.u32 4, %s26
        %s585 = smul.u32 4, %s26
        %p586 = scmp.lt.s32.totalorder %s585, 7
        %s587 = scalar_select %p586, %s585, 7
        %s588 = smul.addr %s587, 8
        %s589 = scalar_lea.vmem %s12, %s588
        %s590 = smul.u32 4, %s26
        %v592 = vld [vmem:[%s541] sm:$0xf]
        %v593 = vld [vmem:[%s541 + $0x4] sm:$0xf]
        %v594 = vld [vmem:[%s541 + $0x8] sm:$0xf]
        %v595 = vld [vmem:[%s541 + $0xc] sm:$0xf]
        %v596 = vld [vmem:[%s541 + $0x10] sm:$0xf]
        %v597 = vld [vmem:[%s541 + $0x14] sm:$0xf]
        %v598 = vld [vmem:[%s541 + $0x18] sm:$0xf]
        %v599 = vld [vmem:[%s541 + $0x1c] sm:$0xf]
        %v600 = vld [vmem:[%s541 + $0x20] sm:$0xf]
        %v601 = vld [vmem:[%s541 + $0x24] sm:$0xf]
        %v602 = vld [vmem:[%s541 + $0x28] sm:$0xf]
        %v603 = vld [vmem:[%s541 + $0x2c] sm:$0xf]
        %v604 = vld [vmem:[%s541 + $0x30] sm:$0xf]
        %v605 = vld [vmem:[%s541 + $0x34] sm:$0xf]
        %v606 = vld [vmem:[%s541 + $0x38] sm:$0xf]
        %v607 = vld [vmem:[%s541 + $0x3c] sm:$0xf]
        %v608 = vld [vmem:[%s541 + $0x40] sm:$0xf]
        %v609 = vld [vmem:[%s541 + $0x44] sm:$0xf]
        %v610 = vld [vmem:[%s541 + $0x48] sm:$0xf]
        %v611 = vld [vmem:[%s541 + $0x4c] sm:$0xf]
        %v612 = vld [vmem:[%s541 + $0x50] sm:$0xf]
        %v613 = vld [vmem:[%s541 + $0x54] sm:$0xf]
        %v614 = vld [vmem:[%s541 + $0x58] sm:$0xf]
        %v615 = vld [vmem:[%s541 + $0x5c] sm:$0xf]
        %v616 = vld [vmem:[%s541 + $0x60] sm:$0xf]
        %v617 = vld [vmem:[%s541 + $0x64] sm:$0xf]
        %v618 = vld [vmem:[%s541 + $0x68] sm:$0xf]
        %v619 = vld [vmem:[%s541 + $0x6c] sm:$0xf]
        %v620 = vld [vmem:[%s541 + $0x70] sm:$0xf]
        %v621 = vld [vmem:[%s541 + $0x74] sm:$0xf]
        %v622 = vld [vmem:[%s541 + $0x78] sm:$0xf]
        %v623 = vld [vmem:[%s541 + $0x7c] sm:$0xf]
        %v624 = vld [vmem:[%s1] sm:$0xff]
        %v625 = vld [vmem:[%s1 + $0x8] sm:$0xff]
        %v626 = vld [vmem:[%s1 + $0x10] sm:$0xff]
        %v627 = vld [vmem:[%s1 + $0x18] sm:$0xff]
        %v628 = vld [vmem:[%s2] sm:$0x3]
        %v630 = vlaneseq
        %v631 = vshrl.u32 %v630, 7
        %v632 = vsub.s32 0, %v631
        %v633 = vrot.slane %v628, %v632
        %v634 = vlaneseq
        %v635 = vshrl.u32 %v634, 7
        %v636 = vsub.s32 1, %v635
        %v637 = vrot.slane %v628, %v636
        %v672 = vunpack.c.l.b16 %v592
        %v673 = vunpack.c.l.b16 %v593
        %v674 = vunpack.c.l.b16 %v594
        %v675 = vunpack.c.l.b16 %v595
        %v676 = vunpack.c.l.b16 %v596
        %v677 = vunpack.c.l.b16 %v597
        %v678 = vunpack.c.l.b16 %v598
        %v679 = vunpack.c.l.b16 %v599
        %v680 = vunpack.c.l.b16 %v600
        %v681 = vunpack.c.l.b16 %v601
        %v682 = vunpack.c.l.b16 %v602
        %v683 = vunpack.c.l.b16 %v603
        %v684 = vunpack.c.l.b16 %v604
        %v685 = vunpack.c.l.b16 %v605
        %v686 = vunpack.c.l.b16 %v606
        %v687 = vunpack.c.l.b16 %v607
        %v688 = vunpack.c.l.b16 %v608
        %v689 = vunpack.c.l.b16 %v609
        %v690 = vunpack.c.l.b16 %v610
        %v691 = vunpack.c.l.b16 %v611
        %v692 = vunpack.c.l.b16 %v612
        %v693 = vunpack.c.l.b16 %v613
        %v694 = vunpack.c.l.b16 %v614
        %v695 = vunpack.c.l.b16 %v615
        %v696 = vunpack.c.l.b16 %v616
        %v697 = vunpack.c.l.b16 %v617
        %v698 = vunpack.c.l.b16 %v618
        %v699 = vunpack.c.l.b16 %v619
        %v700 = vunpack.c.l.b16 %v620
        %v701 = vunpack.c.l.b16 %v621
        %v702 = vunpack.c.l.b16 %v622
        %v703 = vunpack.c.l.b16 %v623
        %v704 = vpack.c.b16 %v673, %v672
        %v705 = vpack.c.b16 %v675, %v674
        %v706 = vpack.c.b16 %v677, %v676
        %v707 = vpack.c.b16 %v679, %v678
        %v708 = vpack.c.b16 %v681, %v680
        %v709 = vpack.c.b16 %v683, %v682
        %v710 = vpack.c.b16 %v685, %v684
        %v711 = vpack.c.b16 %v687, %v686
        %v712 = vpack.c.b16 %v689, %v688
        %v713 = vpack.c.b16 %v691, %v690
        %v714 = vpack.c.b16 %v693, %v692
        %v715 = vpack.c.b16 %v695, %v694
        %v716 = vpack.c.b16 %v697, %v696
        %v717 = vpack.c.b16 %v699, %v698
        %v718 = vpack.c.b16 %v701, %v700
        %v719 = vpack.c.b16 %v703, %v702
        %v724 = vunpack.c.l.b16 %v624
        %v725 = vunpack.c.h.b16 %v624
        %v726 = vunpack.c.l.b16 %v625
        %v727 = vunpack.c.h.b16 %v625
        %v728 = vunpack.c.l.b16 %v626
        %v729 = vunpack.c.h.b16 %v626
        %v730 = vunpack.c.l.b16 %v627
        %v731 = vunpack.c.h.b16 %v627
        %v732 = vpack.c.b16 %v726, %v724
        %v733 = vpack.c.b16 %v727, %v725
        %v734 = vpack.c.b16 %v730, %v728
        %v735 = vpack.c.b16 %v731, %v729
        %vm740 = vcmask 261120
        %v742 = vsel %vm740, %v704, 0
        %v745 = vsel %vm740, %v705, 0
        %v748 = vsel %vm740, %v706, 0
        %v751 = vsel %vm740, %v707, 0
        %v754 = vsel %vm740, %v708, 0
        %v757 = vsel %vm740, %v709, 0
        %v760 = vsel %vm740, %v710, 0
        %v763 = vsel %vm740, %v711, 0
        %v766 = vsel %vm740, %v712, 0
        %v769 = vsel %vm740, %v713, 0
        %v772 = vsel %vm740, %v714, 0
        %v775 = vsel %vm740, %v715, 0
        %v778 = vsel %vm740, %v716, 0
        %v781 = vsel %vm740, %v717, 0
        %v784 = vsel %vm740, %v718, 0
        %v787 = vsel %vm740, %v719, 0
        %789 = vmatprep.subr.bf16.mxu0 %v733
        %790 = vmatpush1.bf16.msra.mxu0 %v732
        %791 = vmatprep.subr.bf16.mxu0 %v735
        %792 = vmatpush1.bf16.msra.mxu0 %v734
        %793 = vmatprep.subr.bf16.mxu0 0
        %794 = vmatpush1.bf16.msra.mxu0 0
        %795 = vmatprep.subr.bf16.mxu0 0
        %796 = vmatpush1.bf16.msra.mxu0 0
        %797 = vmatprep.subr.bf16.mxu0 0
        %798 = vmatpush1.bf16.msra.mxu0 0
        %799 = vmatprep.subr.bf16.mxu0 0
        %800 = vmatpush1.bf16.msra.mxu0 0
        %801 = vmatprep.subr.bf16.mxu0 0
        %802 = vmatpush1.bf16.msra.mxu0 0
        %803 = vmatprep.subr.bf16.mxu0 0
        %804 = vmatpush1.bf16.msra.mxu0 0
        %805 = vmatprep.subr.bf16.mxu0 0
        %806 = vmatpush1.bf16.msra.mxu0 0
        %807 = vmatprep.subr.bf16.mxu0 0
        %808 = vmatpush1.bf16.msra.mxu0 0
        %809 = vmatprep.subr.bf16.mxu0 0
        %810 = vmatpush1.bf16.msra.mxu0 0
        %811 = vmatprep.subr.bf16.mxu0 0
        %812 = vmatpush1.bf16.msra.mxu0 0
        %813 = vmatprep.subr.bf16.mxu0 0
        %814 = vmatpush1.bf16.msra.mxu0 0
        %815 = vmatprep.subr.bf16.mxu0 0
        %816 = vmatpush1.bf16.msra.mxu0 0
        %817 = vmatprep.subr.bf16.mxu0 0
        %818 = vmatpush1.bf16.msra.mxu0 0
        %819 = vmatprep.subr.bf16.mxu0 0
        %820 = vmatpush1.bf16.msra.mxu0 0
        %821 = vmatprep.mubr.bf16.mxu0 0
        %822 = vmatmul.mubr.bf16.gmra.mrb[0].mxu0 %v742
        %v823 = vpop.f32.mrb[0].mxu0
        %v824 = vadd.f32 %v633, %v823
        %v825 = vpop.f32.mrb[0].mxu0
        %v826 = vadd.f32 %v637, %v825
        %v827 = vpop.f32.mrb[0].mxu0
        %v828 = vadd.f32 %v633, %v827
        %v829 = vpop.f32.mrb[0].mxu0
        %v830 = vadd.f32 %v637, %v829
        %831 = vmatprep.mubr.bf16.mxu0 0
        %832 = vmatmul.mubr.bf16.gmra.mrb[0].mxu0 %v745
        %v833 = vpop.f32.mrb[0].mxu0
        %v834 = vadd.f32 %v633, %v833
        %v835 = vpop.f32.mrb[0].mxu0
        %v836 = vadd.f32 %v637, %v835
        %v837 = vpop.f32.mrb[0].mxu0
        %v838 = vadd.f32 %v633, %v837
        %v839 = vpop.f32.mrb[0].mxu0
        %v840 = vadd.f32 %v637, %v839
        %841 = vmatprep.mubr.bf16.mxu0 0
        %842 = vmatmul.mubr.bf16.gmra.mrb[0].mxu0 %v748
        %v843 = vpop.f32.mrb[0].mxu0
        %v844 = vadd.f32 %v633, %v843
        %v845 = vpop.f32.mrb[0].mxu0
        %v846 = vadd.f32 %v637, %v845
        %v847 = vpop.f32.mrb[0].mxu0
        %v848 = vadd.f32 %v633, %v847
        %v849 = vpop.f32.mrb[0].mxu0
        %v850 = vadd.f32 %v637, %v849
        %851 = vmatprep.mubr.bf16.mxu0 0
        %852 = vmatmul.mubr.bf16.gmra.mrb[0].mxu0 %v751
        %v853 = vpop.f32.mrb[0].mxu0
        %v854 = vadd.f32 %v633, %v853
        %v855 = vpop.f32.mrb[0].mxu0
        %v856 = vadd.f32 %v637, %v855
        %v857 = vpop.f32.mrb[0].mxu0
        %v858 = vadd.f32 %v633, %v857
        %v859 = vpop.f32.mrb[0].mxu0
        %v860 = vadd.f32 %v637, %v859
        %861 = vmatprep.mubr.bf16.mxu0 0
        %862 = vmatmul.mubr.bf16.gmra.mrb[0].mxu0 %v754
        %v863 = vpop.f32.mrb[0].mxu0
        %v864 = vadd.f32 %v633, %v863
        %v865 = vpop.f32.mrb[0].mxu0
        %v866 = vadd.f32 %v637, %v865
        %v867 = vpop.f32.mrb[0].mxu0
        %v868 = vadd.f32 %v633, %v867
        %v869 = vpop.f32.mrb[0].mxu0
        %v870 = vadd.f32 %v637, %v869
        %871 = vmatprep.mubr.bf16.mxu0 0
        %872 = vmatmul.mubr.bf16.gmra.mrb[0].mxu0 %v757
        %v873 = vpop.f32.mrb[0].mxu0
        %v874 = vadd.f32 %v633, %v873
        %v875 = vpop.f32.mrb[0].mxu0
        %v876 = vadd.f32 %v637, %v875
        %v877 = vpop.f32.mrb[0].mxu0
        %v878 = vadd.f32 %v633, %v877
        %v879 = vpop.f32.mrb[0].mxu0
        %v880 = vadd.f32 %v637, %v879
        %881 = vmatprep.mubr.bf16.mxu0 0
        %882 = vmatmul.mubr.bf16.gmra.mrb[0].mxu0 %v760
        %v883 = vpop.f32.mrb[0].mxu0
        %v884 = vadd.f32 %v633, %v883
        %v885 = vpop.f32.mrb[0].mxu0
        %v886 = vadd.f32 %v637, %v885
        %v887 = vpop.f32.mrb[0].mxu0
        %v888 = vadd.f32 %v633, %v887
        %v889 = vpop.f32.mrb[0].mxu0
        %v890 = vadd.f32 %v637, %v889
        %891 = vmatprep.mubr.bf16.mxu0 0
        %892 = vmatmul.mubr.bf16.gmra.mrb[0].mxu0 %v763
        %v893 = vpop.f32.mrb[0].mxu0
        %v894 = vadd.f32 %v633, %v893
        %v895 = vpop.f32.mrb[0].mxu0
        %v896 = vadd.f32 %v637, %v895
        %v897 = vpop.f32.mrb[0].mxu0
        %v898 = vadd.f32 %v633, %v897
        %v899 = vpop.f32.mrb[0].mxu0
        %v900 = vadd.f32 %v637, %v899
        %901 = vmatprep.mubr.bf16.mxu0 0
        %902 = vmatmul.mubr.bf16.gmra.mrb[0].mxu0 %v766
        %v903 = vpop.f32.mrb[0].mxu0
        %v904 = vadd.f32 %v633, %v903
        %v905 = vpop.f32.mrb[0].mxu0
        %v906 = vadd.f32 %v637, %v905
        %v907 = vpop.f32.mrb[0].mxu0
        %v908 = vadd.f32 %v633, %v907
        %v909 = vpop.f32.mrb[0].mxu0
        %v910 = vadd.f32 %v637, %v909
        %911 = vmatprep.mubr.bf16.mxu0 0
        %912 = vmatmul.mubr.bf16.gmra.mrb[0].mxu0 %v769
        %v913 = vpop.f32.mrb[0].mxu0
        %v914 = vadd.f32 %v633, %v913
        %v915 = vpop.f32.mrb[0].mxu0
        %v916 = vadd.f32 %v637, %v915
        %v917 = vpop.f32.mrb[0].mxu0
        %v918 = vadd.f32 %v633, %v917
        %v919 = vpop.f32.mrb[0].mxu0
        %v920 = vadd.f32 %v637, %v919
        %921 = vmatprep.mubr.bf16.mxu0 0
        %922 = vmatmul.mubr.bf16.gmra.mrb[0].mxu0 %v772
        %v923 = vpop.f32.mrb[0].mxu0
        %v924 = vadd.f32 %v633, %v923
        %v925 = vpop.f32.mrb[0].mxu0
        %v926 = vadd.f32 %v637, %v925
        %v927 = vpop.f32.mrb[0].mxu0
        %v928 = vadd.f32 %v633, %v927
        %v929 = vpop.f32.mrb[0].mxu0
        %v930 = vadd.f32 %v637, %v929
        %931 = vmatprep.mubr.bf16.mxu0 0
        %932 = vmatmul.mubr.bf16.gmra.mrb[0].mxu0 %v775
        %v933 = vpop.f32.mrb[0].mxu0
        %v934 = vadd.f32 %v633, %v933
        %v935 = vpop.f32.mrb[0].mxu0
        %v936 = vadd.f32 %v637, %v935
        %v937 = vpop.f32.mrb[0].mxu0
        %v938 = vadd.f32 %v633, %v937
        %v939 = vpop.f32.mrb[0].mxu0
        %v940 = vadd.f32 %v637, %v939
        %941 = vmatprep.mubr.bf16.mxu0 0
        %942 = vmatmul.mubr.bf16.gmra.mrb[0].mxu0 %v778
        %v943 = vpop.f32.mrb[0].mxu0
        %v944 = vadd.f32 %v633, %v943
        %v945 = vpop.f32.mrb[0].mxu0
        %v946 = vadd.f32 %v637, %v945
        %v947 = vpop.f32.mrb[0].mxu0
        %v948 = vadd.f32 %v633, %v947
        %v949 = vpop.f32.mrb[0].mxu0
        %v950 = vadd.f32 %v637, %v949
        %951 = vmatprep.mubr.bf16.mxu0 0
        %952 = vmatmul.mubr.bf16.gmra.mrb[0].mxu0 %v781
        %v953 = vpop.f32.mrb[0].mxu0
        %v954 = vadd.f32 %v633, %v953
        %v955 = vpop.f32.mrb[0].mxu0
        %v956 = vadd.f32 %v637, %v955
        %v957 = vpop.f32.mrb[0].mxu0
        %v958 = vadd.f32 %v633, %v957
        %v959 = vpop.f32.mrb[0].mxu0
        %v960 = vadd.f32 %v637, %v959
        %961 = vmatprep.mubr.bf16.mxu0 0
        %962 = vmatmul.mubr.bf16.gmra.mrb[0].mxu0 %v784
        %v963 = vpop.f32.mrb[0].mxu0
        %v964 = vadd.f32 %v633, %v963
        %v965 = vpop.f32.mrb[0].mxu0
        %v966 = vadd.f32 %v637, %v965
        %v967 = vpop.f32.mrb[0].mxu0
        %v968 = vadd.f32 %v633, %v967
        %v969 = vpop.f32.mrb[0].mxu0
        %v970 = vadd.f32 %v637, %v969
        %971 = vmatprep.mubr.bf16.mxu0 0
        %972 = vmatmul.mubr.bf16.gmra.mrb[0].mxu0 %v787
        %v973 = vpop.f32.mrb[0].mxu0
        %v974 = vadd.f32 %v633, %v973
        %v975 = vpop.f32.mrb[0].mxu0
        %v976 = vadd.f32 %v637, %v975
        %v977 = vpop.f32.mrb[0].mxu0
        %v978 = vadd.f32 %v633, %v977
        %v979 = vpop.f32.mrb[0].mxu0
        %v980 = vadd.f32 %v637, %v979
        %981 = vdwg.mxu0
        %982 = vst [vmem:[#allocation2] sm:$0xff] %v824
        %vm983 = vcmask 523264
        %984 = vst.msk [vmem:[#allocation2 + $0x8] sm:$0xff] %vm983, %v826
        %985 = vst [vmem:[#allocation2 + $0x10] sm:$0xff] %v828
        %986 = vst.msk [vmem:[#allocation2 + $0x18] sm:$0xff] %vm983, %v830
        %987 = vst [vmem:[#allocation2 + $0x20] sm:$0xff] %v834
        %988 = vst.msk [vmem:[#allocation2 + $0x28] sm:$0xff] %vm983, %v836
        %989 = vst [vmem:[#allocation2 + $0x30] sm:$0xff] %v838
        %990 = vst.msk [vmem:[#allocation2 + $0x38] sm:$0xff] %vm983, %v840
        %991 = vst [vmem:[#allocation2 + $0x40] sm:$0xff] %v844
        %992 = vst.msk [vmem:[#allocation2 + $0x48] sm:$0xff] %vm983, %v846
        %993 = vst [vmem:[#allocation2 + $0x50] sm:$0xff] %v848
        %994 = vst.msk [vmem:[#allocation2 + $0x58] sm:$0xff] %vm983, %v850
        %995 = vst [vmem:[#allocation2 + $0x60] sm:$0xff] %v854
        %996 = vst.msk [vmem:[#allocation2 + $0x68] sm:$0xff] %vm983, %v856
        %997 = vst [vmem:[#allocation2 + $0x70] sm:$0xff] %v858
        %998 = vst.msk [vmem:[#allocation2 + $0x78] sm:$0xff] %vm983, %v860
        %999 = vst [vmem:[#allocation2 + $0x80] sm:$0xff] %v864
        %1000 = vst.msk [vmem:[#allocation2 + $0x88] sm:$0xff] %vm983, %v866
        %1001 = vst [vmem:[#allocation2 + $0x90] sm:$0xff] %v868
        %1002 = vst.msk [vmem:[#allocation2 + $0x98] sm:$0xff] %vm983, %v870
        %1003 = vst [vmem:[#allocation2 + $0xa0] sm:$0xff] %v874
        %1004 = vst.msk [vmem:[#allocation2 + $0xa8] sm:$0xff] %vm983, %v876
        %1005 = vst [vmem:[#allocation2 + $0xb0] sm:$0xff] %v878
        %1006 = vst.msk [vmem:[#allocation2 + $0xb8] sm:$0xff] %vm983, %v880
        %1007 = vst [vmem:[#allocation2 + $0xc0] sm:$0xff] %v884
        %1008 = vst.msk [vmem:[#allocation2 + $0xc8] sm:$0xff] %vm983, %v886
        %1009 = vst [vmem:[#allocation2 + $0xd0] sm:$0xff] %v888
        %1010 = vst.msk [vmem:[#allocation2 + $0xd8] sm:$0xff] %vm983, %v890
        %1011 = vst [vmem:[#allocation2 + $0xe0] sm:$0xff] %v894
        %1012 = vst.msk [vmem:[#allocation2 + $0xe8] sm:$0xff] %vm983, %v896
        %1013 = vst [vmem:[#allocation2 + $0xf0] sm:$0xff] %v898
        %1014 = vst.msk [vmem:[#allocation2 + $0xf8] sm:$0xff] %vm983, %v900
        %1015 = vst [vmem:[#allocation2 + $0x100] sm:$0xff] %v904
        %1016 = vst.msk [vmem:[#allocation2 + $0x108] sm:$0xff] %vm983, %v906
        %1017 = vst [vmem:[#allocation2 + $0x110] sm:$0xff] %v908
        %1018 = vst.msk [vmem:[#allocation2 + $0x118] sm:$0xff] %vm983, %v910
        %1019 = vst [vmem:[#allocation2 + $0x120] sm:$0xff] %v914
        %1020 = vst.msk [vmem:[#allocation2 + $0x128] sm:$0xff] %vm983, %v916
        %1021 = vst [vmem:[#allocation2 + $0x130] sm:$0xff] %v918
        %1022 = vst.msk [vmem:[#allocation2 + $0x138] sm:$0xff] %vm983, %v920
        %1023 = vst [vmem:[#allocation2 + $0x140] sm:$0xff] %v924
        %1024 = vst.msk [vmem:[#allocation2 + $0x148] sm:$0xff] %vm983, %v926
        %1025 = vst [vmem:[#allocation2 + $0x150] sm:$0xff] %v928
        %1026 = vst.msk [vmem:[#allocation2 + $0x158] sm:$0xff] %vm983, %v930
        %1027 = vst [vmem:[#allocation2 + $0x160] sm:$0xff] %v934
        %1028 = vst.msk [vmem:[#allocation2 + $0x168] sm:$0xff] %vm983, %v936
        %1029 = vst [vmem:[#allocation2 + $0x170] sm:$0xff] %v938
        %1030 = vst.msk [vmem:[#allocation2 + $0x178] sm:$0xff] %vm983, %v940
        %1031 = vst [vmem:[#allocation2 + $0x180] sm:$0xff] %v944
        %1032 = vst.msk [vmem:[#allocation2 + $0x188] sm:$0xff] %vm983, %v946
        %1033 = vst [vmem:[#allocation2 + $0x190] sm:$0xff] %v948
        %1034 = vst.msk [vmem:[#allocation2 + $0x198] sm:$0xff] %vm983, %v950
        %1035 = vst [vmem:[#allocation2 + $0x1a0] sm:$0xff] %v954
        %1036 = vst.msk [vmem:[#allocation2 + $0x1a8] sm:$0xff] %vm983, %v956
        %1037 = vst [vmem:[#allocation2 + $0x1b0] sm:$0xff] %v958
        %1038 = vst.msk [vmem:[#allocation2 + $0x1b8] sm:$0xff] %vm983, %v960
        %1039 = vst [vmem:[#allocation2 + $0x1c0] sm:$0xff] %v964
        %1040 = vst.msk [vmem:[#allocation2 + $0x1c8] sm:$0xff] %vm983, %v966
        %1041 = vst [vmem:[#allocation2 + $0x1d0] sm:$0xff] %v968
        %1042 = vst.msk [vmem:[#allocation2 + $0x1d8] sm:$0xff] %vm983, %v970
        %1043 = vst [vmem:[#allocation2 + $0x1e0] sm:$0xff] %v974
        %1044 = vst.msk [vmem:[#allocation2 + $0x1e8] sm:$0xff] %vm983, %v976
        %1045 = vst [vmem:[#allocation2 + $0x1f0] sm:$0xff] %v978
        %1046 = vst.msk [vmem:[#allocation2 + $0x1f8] sm:$0xff] %vm983, %v980
        %v1047 = vld [vmem:[%s3] sm:$0xff]
        %v1048 = vld [vmem:[%s3 + $0x8] sm:$0xff]
        %v1049 = vld [vmem:[%s3 + $0x10] sm:$0xff]
        %v1050 = vld [vmem:[%s3 + $0x18] sm:$0xff]
        %v1051 = vld [vmem:[%s3 + $0x20] sm:$0xff]
        %v1052 = vld [vmem:[%s3 + $0x28] sm:$0xff]
        %v1053 = vld [vmem:[%s3 + $0x30] sm:$0xff]
        %v1054 = vld [vmem:[%s3 + $0x38] sm:$0xff]
        %v1055 = vld [vmem:[%s4] sm:$0x3]
        %v1056 = vlaneseq
        %v1057 = vand.u32 %v1056, 127
        %v1058 = vadd.s32 %v1057, 128
        %vm1059 = vcmp.lt.s32.totalorder %v1057, 32
        %vm1060 = vcmp.lt.s32.totalorder %v1058, 32
        %vm1061 = vcmp.ge.s32.totalorder %v1057, 64
        %vm1062 = vcmp.ge.s32.totalorder %v1058, 64
        %vm1063 = vcmp.lt.s32.totalorder %v1057, 96
        %vm1064 = vcmp.lt.s32.totalorder %v1058, 96
        %vm1065 = vmand %vm1061, %vm1063
        %vm1066 = vmand %vm1062, %vm1064
        %vm1067 = vmor %vm1059, %vm1065
        %vm1068 = vmor %vm1060, %vm1066
        %vm1069 = vcmp.ge.s32.totalorder %v1057, 128
        %vm1070 = vcmp.ge.s32.totalorder %v1058, 128
        %vm1071 = vcmp.lt.s32.totalorder %v1057, 160
        %vm1072 = vcmp.lt.s32.totalorder %v1058, 160
        %vm1073 = vmand %vm1069, %vm1071
        %vm1074 = vmand %vm1070, %vm1072
        %vm1075 = vmor %vm1067, %vm1073
        %vm1076 = vmor %vm1068, %vm1074
        %v1077 = vld [vmem:[#allocation2] sm:$0xff]
        %v1078 = vld [vmem:[#allocation2 + $0x8] sm:$0xff]
        %v1079 = vld [vmem:[#allocation2 + $0x10] sm:$0xff]
        %v1080 = vld [vmem:[#allocation2 + $0x18] sm:$0xff]
        %v1081 = vld [vmem:[#allocation2 + $0x20] sm:$0xff]
        %v1082 = vld [vmem:[#allocation2 + $0x28] sm:$0xff]
        %v1083 = vld [vmem:[#allocation2 + $0x30] sm:$0xff]
        %v1084 = vld [vmem:[#allocation2 + $0x38] sm:$0xff]
        %v1085 = vld [vmem:[#allocation2 + $0x1c0] sm:$0xff]
        %v1086 = vld [vmem:[#allocation2 + $0x1c8] sm:$0xff]
        %v1087 = vld [vmem:[#allocation2 + $0x1d0] sm:$0xff]
        %v1088 = vld [vmem:[#allocation2 + $0x1d8] sm:$0xff]
        %v1089 = vld [vmem:[#allocation2 + $0x1e0] sm:$0xff]
        %v1090 = vld [vmem:[#allocation2 + $0x1e8] sm:$0xff]
        %v1091 = vld [vmem:[#allocation2 + $0x1f0] sm:$0xff]
        %v1092 = vld [vmem:[#allocation2 + $0x1f8] sm:$0xff]
        %v1093 = vsel %vm1075, %v1077, %v1085
        %v1094 = vsel %vm1076, %v1078, %v1086
        %v1095 = vsel %vm1075, %v1079, %v1087
        %v1096 = vsel %vm1076, %v1080, %v1088
        %v1097 = vsel %vm1075, %v1081, %v1089
        %v1098 = vsel %vm1076, %v1082, %v1090
        %v1099 = vsel %vm1075, %v1083, %v1091
        %v1100 = vsel %vm1076, %v1084, %v1092
        %v1102 = vlaneseq
        %v1103 = vshrl.u32 %v1102, 7
        %v1104 = vsub.s32 0, %v1103
        %v1105 = vrot.slane %v1055, %v1104
        %v1106 = vlaneseq
        %v1107 = vshrl.u32 %v1106, 7
        %v1108 = vsub.s32 1, %v1107
        %v1109 = vrot.slane %v1055, %v1108
        %v1120 = vunpack.c.l.b16 %v1047
        %v1121 = vunpack.c.h.b16 %v1047
        %v1122 = vunpack.c.l.b16 %v1048
        %v1123 = vunpack.c.h.b16 %v1048
        %v1124 = vunpack.c.l.b16 %v1049
        %v1125 = vunpack.c.h.b16 %v1049
        %v1126 = vunpack.c.l.b16 %v1050
        %v1127 = vunpack.c.h.b16 %v1050
        %v1128 = vunpack.c.l.b16 %v1051
        %v1129 = vunpack.c.h.b16 %v1051
        %v1130 = vunpack.c.l.b16 %v1052
        %v1131 = vunpack.c.h.b16 %v1052
        %v1132 = vunpack.c.l.b16 %v1053
        %v1133 = vunpack.c.h.b16 %v1053
        %v1134 = vunpack.c.l.b16 %v1054
        %v1135 = vunpack.c.h.b16 %v1054
        %v1136 = vpack.c.b16 %v1122, %v1120
        %v1137 = vpack.c.b16 %v1123, %v1121
        %v1138 = vpack.c.b16 %v1126, %v1124
        %v1139 = vpack.c.b16 %v1127, %v1125
        %v1140 = vpack.c.b16 %v1130, %v1128
        %v1141 = vpack.c.b16 %v1131, %v1129
        %v1142 = vpack.c.b16 %v1134, %v1132
        %v1143 = vpack.c.b16 %v1135, %v1133
        %v1153 = vsel %vm983, 0, 0
        %1155 = vmatprep.subr.bf16.mxu0 %v1137
        %1156 = vmatpush1.bf16.msra.mxu0 %v1136
        %1157 = vmatprep.subr.bf16.mxu0 %v1139
        %1158 = vmatpush1.bf16.msra.mxu0 %v1138
        %1159 = vmatprep.subr.bf16.mxu0 %v1141
        %1160 = vmatpush1.bf16.msra.mxu0 %v1140
        %1161 = vmatprep.subr.bf16.mxu0 %v1143
        %1162 = vmatpush1.bf16.msra.mxu0 %v1142
        %1163 = vmatprep.subr.bf16.mxu0 0
        %1164 = vmatpush1.bf16.msra.mxu0 0
        %1165 = vmatprep.subr.bf16.mxu0 0
        %1166 = vmatpush1.bf16.msra.mxu0 0
        %1167 = vmatprep.subr.bf16.mxu0 0
        %1168 = vmatpush1.bf16.msra.mxu0 0
        %1169 = vmatprep.subr.bf16.mxu0 0
        %1170 = vmatpush1.bf16.msra.mxu0 0
        %1171 = vmatprep.subr.bf16.mxu0 0
        %1172 = vmatpush1.bf16.msra.mxu0 0
        %1173 = vmatprep.subr.bf16.mxu0 0
        %1174 = vmatpush1.bf16.msra.mxu0 0
        %1175 = vmatprep.subr.bf16.mxu0 0
        %1176 = vmatpush1.bf16.msra.mxu0 0
        %1177 = vmatprep.subr.bf16.mxu0 0
        %1178 = vmatpush1.bf16.msra.mxu0 0
        %1179 = vmatprep.subr.bf16.mxu0 0
        %1180 = vmatpush1.bf16.msra.mxu0 0
        %1181 = vmatprep.subr.bf16.mxu0 0
        %1182 = vmatpush1.bf16.msra.mxu0 0
        %1183 = vmatprep.subr.bf16.mxu0 0
        %1184 = vmatpush1.bf16.msra.mxu0 0
        %1185 = vmatprep.subr.bf16.mxu0 0
        %1186 = vmatpush1.bf16.msra.mxu0 0
        %1187 = vmatprep.mubr.bf16.mxu0 0
        %1188 = vmatmul.mubr.bf16.gmra.mrb[0].mxu0 %v1153
        %v1189 = vpop.f32.mrb[0].mxu0
        %v1190 = vadd.f32 %v1105, %v1189
        %v1191 = vpop.f32.mrb[0].mxu0
        %v1192 = vadd.f32 %v1109, %v1191
        %v1193 = vpop.f32.mrb[0].mxu0
        %v1194 = vadd.f32 %v1105, %v1193
        %v1195 = vpop.f32.mrb[0].mxu0
        %v1196 = vadd.f32 %v1109, %v1195
        %1197 = vmatprep.mubr.bf16.mxu0 0
        %1198 = vmatmul.mubr.bf16.gmra.mrb[0].mxu0 %v1153
        %v1199 = vpop.f32.mrb[0].mxu0
        %v1200 = vadd.f32 %v1105, %v1199
        %v1201 = vpop.f32.mrb[0].mxu0
        %v1202 = vadd.f32 %v1109, %v1201
        %v1203 = vpop.f32.mrb[0].mxu0
        %v1204 = vadd.f32 %v1105, %v1203
        %v1205 = vpop.f32.mrb[0].mxu0
        %v1206 = vadd.f32 %v1109, %v1205
        %1207 = vdwg.mxu0
        %v1208 = vadd.f32 %v1093, %v1190
        %v1209 = vadd.f32 %v1095, %v1194
        %v1210 = vadd.f32 %v1097, %v1200
        %v1211 = vadd.f32 %v1099, %v1204
        %v1212 = vxor.u32 %v1208, 2147483648
        %v1213 = vxor.u32 %v1209, 2147483648
        %v1214 = vxor.u32 %v1210, 2147483648
        %v1215 = vxor.u32 %v1211, 2147483648
        %v1216 = vmul.f32 %v1212, 1.442695
        %v1217 = vpow.pop %v1216
        %v1218 = vmul.f32 %v1213, 1.442695
        %v1219 = vpow.pop %v1218
        %v1220 = vmul.f32 %v1214, 1.442695
        %v1221 = vpow.pop %v1220
        %v1222 = vmul.f32 %v1215, 1.442695
        %v1223 = vpow.pop %v1222
        %v1224 = vadd.f32 %v1217, 1.0
        %v1225 = vadd.f32 %v1219, 1.0
        %v1226 = vadd.f32 %v1221, 1.0
        %v1227 = vadd.f32 %v1223, 1.0
        %v1228 = vrcp.pop %v1224
        %v1229 = vmul.f32 1.0, %v1228
        %v1230 = vrcp.pop %v1225
        %v1231 = vmul.f32 1.0, %v1230
        %v1232 = vrcp.pop %v1226
        %v1233 = vmul.f32 1.0, %v1232
        %v1234 = vrcp.pop %v1227
        %v1235 = vmul.f32 1.0, %v1234
        %v1236 = vmul.f32 %v1229, %v1192
        %v1237 = vmul.f32 %v1231, %v1196
        %v1238 = vmul.f32 %v1233, %v1202
        %v1239 = vmul.f32 %v1235, %v1206
        %v1240 = vadd.f32 %v1094, %v1236
        %v1241 = vadd.f32 %v1096, %v1237
        %v1242 = vadd.f32 %v1098, %v1238
        %v1243 = vadd.f32 %v1100, %v1239
        %v1244 = vtanh.pop %v1240
        %v1245 = vtanh.pop %v1241
        %v1246 = vtanh.pop %v1242
        %v1247 = vtanh.pop %v1243
        %v1248 = vsub.f32 1.0, %v1229
        %v1249 = vsub.f32 1.0, %v1231
        %v1250 = vsub.f32 1.0, %v1233
        %v1251 = vsub.f32 1.0, %v1235
        %1256 = vrot.lane.b32.xlu0 %v1244, 64
        %v1257 = vpop.permute.xlu0 %1256
        %1258 = vrot.lane.b32.xlu0 %v1245, 64
        %v1259 = vpop.permute.xlu0 %1258
        %1260 = vrot.lane.b32.xlu0 %v1246, 64
        %v1261 = vpop.permute.xlu0 %1260
        %1262 = vrot.lane.b32.xlu0 %v1247, 64
        %v1263 = vpop.permute.xlu0 %1262
        %v1268 = vmul.f32 %v1248, %v1257
        %v1269 = vmul.f32 %v1249, %v1259
        %v1270 = vmul.f32 %v1250, %v1261
        %v1271 = vmul.f32 %v1251, %v1263
        %v1272 = vmul.f32 %v1229, 0.0
        %v1273 = vmul.f32 %v1231, 0.0
        %v1274 = vmul.f32 %v1233, 0.0
        %v1275 = vmul.f32 %v1235, 0.0
        %v1276 = vadd.f32 %v1268, %v1272
        %v1277 = vadd.f32 %v1269, %v1273
        %v1278 = vadd.f32 %v1270, %v1274
        %v1279 = vadd.f32 %v1271, %v1275
        %1284 = vrot.lane.b32.xlu0 %v1276, 64
        %v1285 = vpop.permute.xlu0 %1284
        %1286 = vrot.lane.b32.xlu0 %v1277, 64
        %v1287 = vpop.permute.xlu0 %1286
        %1288 = vrot.lane.b32.xlu0 %v1278, 64
        %v1289 = vpop.permute.xlu0 %1288
        %1290 = vrot.lane.b32.xlu0 %v1279, 64
        %v1291 = vpop.permute.xlu0 %1290
        %1296 = vst.msk [vmem:[#allocation3] sm:$0xff] %vm740, %v1285
        %1297 = vst.msk [vmem:[#allocation3 + $0x8] sm:$0xff] %vm740, %v1287
        %1298 = vst.msk [vmem:[#allocation3 + $0x10] sm:$0xff] %vm740, %v1289
        %1299 = vst.msk [vmem:[#allocation3 + $0x18] sm:$0xff] %vm740, %v1291
        %s1300 = scalar_lea.vmem [#allocation3], 224
        %vm1301 = vcmask 523520
        %1302 = vst.msk [vmem:[%s1300] sm:$0xff] %vm1301, %v1285
        %1303 = vst.msk [vmem:[%s1300 + $0x8] sm:$0xff] %vm1301, %v1287
        %1304 = vst.msk [vmem:[%s1300 + $0x10] sm:$0xff] %vm1301, %v1289
        %1305 = vst.msk [vmem:[%s1300 + $0x18] sm:$0xff] %vm1301, %v1291
        %v1306 = vld [vmem:[#allocation2 + $0x40] sm:$0xff]
        %v1307 = vld [vmem:[#allocation2 + $0x48] sm:$0xff]
        %v1308 = vld [vmem:[#allocation2 + $0x50] sm:$0xff]
        %v1309 = vld [vmem:[#allocation2 + $0x58] sm:$0xff]
        %v1310 = vld [vmem:[#allocation2 + $0x60] sm:$0xff]
        %v1311 = vld [vmem:[#allocation2 + $0x68] sm:$0xff]
        %v1312 = vld [vmem:[#allocation2 + $0x70] sm:$0xff]
        %v1313 = vld [vmem:[#allocation2 + $0x78] sm:$0xff]
        %v1314 = vld [vmem:[#allocation2 + $0x180] sm:$0xff]
        %v1315 = vld [vmem:[#allocation2 + $0x188] sm:$0xff]
        %v1316 = vld [vmem:[#allocation2 + $0x190] sm:$0xff]
        %v1317 = vld [vmem:[#allocation2 + $0x198] sm:$0xff]
        %v1318 = vld [vmem:[#allocation2 + $0x1a0] sm:$0xff]
        %v1319 = vld [vmem:[#allocation2 + $0x1a8] sm:$0xff]
        %v1320 = vld [vmem:[#allocation2 + $0x1b0] sm:$0xff]
        %v1321 = vld [vmem:[#allocation2 + $0x1b8] sm:$0xff]
        %v1322 = vsel %vm1075, %v1306, %v1314
        %v1323 = vsel %vm1076, %v1307, %v1315
        %v1324 = vsel %vm1075, %v1308, %v1316
        %v1325 = vsel %vm1076, %v1309, %v1317
        %v1326 = vsel %vm1075, %v1310, %v1318
        %v1327 = vsel %vm1076, %v1311, %v1319
        %v1328 = vsel %vm1075, %v1312, %v1320
        %v1329 = vsel %vm1076, %v1313, %v1321
        %v1330 = vpack.c.bf16 %v1277, %v1276
        %v1331 = vpack.c.bf16 %v1279, %v1278
        %1334 = vrot.lane.b32.xlu0 %v1330, 64
        %v1335 = vpop.permute.xlu0 %1334
        %1336 = vrot.lane.b32.xlu0 %v1331, 64
        %v1337 = vpop.permute.xlu0 %1336
        %v1339 = vsel %vm983, %v1335, 0
        %v1342 = vsel %vm983, %v1337, 0
        %1344 = vmatprep.subr.bf16.mxu0 %v1137
        %1345 = vmatpush1.bf16.msra.mxu0 %v1136
        %1346 = vmatprep.subr.bf16.mxu0 %v1139
        %1347 = vmatpush1.bf16.msra.mxu0 %v1138
        %1348 = vmatprep.subr.bf16.mxu0 %v1141
        %1349 = vmatpush1.bf16.msra.mxu0 %v1140
        %1350 = vmatprep.subr.bf16.mxu0 %v1143
        %1351 = vmatpush1.bf16.msra.mxu0 %v1142
        %1352 = vmatprep.subr.bf16.mxu0 0
        %1353 = vmatpush1.bf16.msra.mxu0 0
        %1354 = vmatprep.subr.bf16.mxu0 0
        %1355 = vmatpush1.bf16.msra.mxu0 0
        %1356 = vmatprep.subr.bf16.mxu0 0
        %1357 = vmatpush1.bf16.msra.mxu0 0
        %1358 = vmatprep.subr.bf16.mxu0 0
        %1359 = vmatpush1.bf16.msra.mxu0 0
        %1360 = vmatprep.subr.bf16.mxu0 0
        %1361 = vmatpush1.bf16.msra.mxu0 0
        %1362 = vmatprep.subr.bf16.mxu0 0
        %1363 = vmatpush1.bf16.msra.mxu0 0
        %1364 = vmatprep.subr.bf16.mxu0 0
        %1365 = vmatpush1.bf16.msra.mxu0 0
        %1366 = vmatprep.subr.bf16.mxu0 0
        %1367 = vmatpush1.bf16.msra.mxu0 0
        %1368 = vmatprep.subr.bf16.mxu0 0
        %1369 = vmatpush1.bf16.msra.mxu0 0
        %1370 = vmatprep.subr.bf16.mxu0 0
        %1371 = vmatpush1.bf16.msra.mxu0 0
        %1372 = vmatprep.subr.bf16.mxu0 0
        %1373 = vmatpush1.bf16.msra.mxu0 0
        %1374 = vmatprep.subr.bf16.mxu0 0
        %1375 = vmatpush1.bf16.msra.mxu0 0
        %1376 = vmatprep.mubr.bf16.mxu0 0
        %1377 = vmatmul.mubr.bf16.gmra.mrb[0].mxu0 %v1339
        %v1378 = vpop.f32.mrb[0].mxu0
        %v1379 = vadd.f32 %v1105, %v1378
        %v1380 = vpop.f32.mrb[0].mxu0
        %v1381 = vadd.f32 %v1109, %v1380
        %v1382 = vpop.f32.mrb[0].mxu0
        %v1383 = vadd.f32 %v1105, %v1382
        %v1384 = vpop.f32.mrb[0].mxu0
        %v1385 = vadd.f32 %v1109, %v1384
        %1386 = vmatprep.mubr.bf16.mxu0 0
        %1387 = vmatmul.mubr.bf16.gmra.mrb[0].mxu0 %v1342
        %v1388 = vpop.f32.mrb[0].mxu0
        %v1389 = vadd.f32 %v1105, %v1388
        %v1390 = vpop.f32.mrb[0].mxu0
        %v1391 = vadd.f32 %v1109, %v1390
        %v1392 = vpop.f32.mrb[0].mxu0
        %v1393 = vadd.f32 %v1105, %v1392
        %v1394 = vpop.f32.mrb[0].mxu0
        %v1395 = vadd.f32 %v1109, %v1394
        %1396 = vdwg.mxu0
        %v1397 = vadd.f32 %v1322, %v1379
        %v1398 = vadd.f32 %v1324, %v1383
        %v1399 = vadd.f32 %v1326, %v1389
        %v1400 = vadd.f32 %v1328, %v1393
        %v1401 = vxor.u32 %v1397, 2147483648
        %v1402 = vxor.u32 %v1398, 2147483648
        %v1403 = vxor.u32 %v1399, 2147483648
        %v1404 = vxor.u32 %v1400, 2147483648
        %v1405 = vmul.f32 %v1401, 1.442695
        %v1406 = vpow.pop %v1405
        %v1407 = vmul.f32 %v1402, 1.442695
        %v1408 = vpow.pop %v1407
        %v1409 = vmul.f32 %v1403, 1.442695
        %v1410 = vpow.pop %v1409
        %v1411 = vmul.f32 %v1404, 1.442695
        %v1412 = vpow.pop %v1411
        %v1413 = vadd.f32 %v1406, 1.0
        %v1414 = vadd.f32 %v1408, 1.0
        %v1415 = vadd.f32 %v1410, 1.0
        %v1416 = vadd.f32 %v1412, 1.0
        %v1417 = vrcp.pop %v1413
        %v1418 = vmul.f32 1.0, %v1417
        %v1419 = vrcp.pop %v1414
        %v1420 = vmul.f32 1.0, %v1419
        %v1421 = vrcp.pop %v1415
        %v1422 = vmul.f32 1.0, %v1421
        %v1423 = vrcp.pop %v1416
        %v1424 = vmul.f32 1.0, %v1423
        %v1425 = vmul.f32 %v1418, %v1381
        %v1426 = vmul.f32 %v1420, %v1385
        %v1427 = vmul.f32 %v1422, %v1391
        %v1428 = vmul.f32 %v1424, %v1395
        %v1429 = vadd.f32 %v1323, %v1425
        %v1430 = vadd.f32 %v1325, %v1426
        %v1431 = vadd.f32 %v1327, %v1427
        %v1432 = vadd.f32 %v1329, %v1428
        %v1433 = vtanh.pop %v1429
        %v1434 = vtanh.pop %v1430
        %v1435 = vtanh.pop %v1431
        %v1436 = vtanh.pop %v1432
        %v1437 = vsub.f32 1.0, %v1418
        %v1438 = vsub.f32 1.0, %v1420
        %v1439 = vsub.f32 1.0, %v1422
        %v1440 = vsub.f32 1.0, %v1424
        %1445 = vrot.lane.b32.xlu0 %v1433, 64
        %v1446 = vpop.permute.xlu0 %1445
        %1447 = vrot.lane.b32.xlu0 %v1434, 64
        %v1448 = vpop.permute.xlu0 %1447
        %1449 = vrot.lane.b32.xlu0 %v1435, 64
        %v1450 = vpop.permute.xlu0 %1449
        %1451 = vrot.lane.b32.xlu0 %v1436, 64
        %v1452 = vpop.permute.xlu0 %1451
        %v1457 = vmul.f32 %v1437, %v1446
        %v1458 = vmul.f32 %v1438, %v1448
        %v1459 = vmul.f32 %v1439, %v1450
        %v1460 = vmul.f32 %v1440, %v1452
        %v1461 = vmul.f32 %v1418, %v1276
        %v1462 = vmul.f32 %v1420, %v1277
        %v1463 = vmul.f32 %v1422, %v1278
        %v1464 = vmul.f32 %v1424, %v1279
        %v1465 = vadd.f32 %v1457, %v1461
        %v1466 = vadd.f32 %v1458, %v1462
        %v1467 = vadd.f32 %v1459, %v1463
        %v1468 = vadd.f32 %v1460, %v1464
        %1473 = vrot.lane.b32.xlu0 %v1465, 64
        %v1474 = vpop.permute.xlu0 %1473
        %1475 = vrot.lane.b32.xlu0 %v1466, 64
        %v1476 = vpop.permute.xlu0 %1475
        %1477 = vrot.lane.b32.xlu0 %v1467, 64
        %v1478 = vpop.permute.xlu0 %1477
        %1479 = vrot.lane.b32.xlu0 %v1468, 64
        %v1480 = vpop.permute.xlu0 %1479
        %s1485 = scalar_lea.vmem [#allocation3], 32
        %1486 = vst.msk [vmem:[%s1485] sm:$0xff] %vm740, %v1474
        %1487 = vst.msk [vmem:[%s1485 + $0x8] sm:$0xff] %vm740, %v1476
        %1488 = vst.msk [vmem:[%s1485 + $0x10] sm:$0xff] %vm740, %v1478
        %1489 = vst.msk [vmem:[%s1485 + $0x18] sm:$0xff] %vm740, %v1480
        %s1490 = scalar_lea.vmem [#allocation3], 192
        %1491 = vst.msk [vmem:[%s1490] sm:$0xff] %vm1301, %v1474
        %1492 = vst.msk [vmem:[%s1490 + $0x8] sm:$0xff] %vm1301, %v1476
        %1493 = vst.msk [vmem:[%s1490 + $0x10] sm:$0xff] %vm1301, %v1478
        %1494 = vst.msk [vmem:[%s1490 + $0x18] sm:$0xff] %vm1301, %v1480
        %v1495 = vld [vmem:[#allocation2 + $0x80] sm:$0xff]
        %v1496 = vld [vmem:[#allocation2 + $0x88] sm:$0xff]
        %v1497 = vld [vmem:[#allocation2 + $0x90] sm:$0xff]
        %v1498 = vld [vmem:[#allocation2 + $0x98] sm:$0xff]
        %v1499 = vld [vmem:[#allocation2 + $0xa0] sm:$0xff]
        %v1500 = vld [vmem:[#allocation2 + $0xa8] sm:$0xff]
        %v1501 = vld [vmem:[#allocation2 + $0xb0] sm:$0xff]
        %v1502 = vld [vmem:[#allocation2 + $0xb8] sm:$0xff]
        %v1503 = vld [vmem:[#allocation2 + $0x140] sm:$0xff]
        %v1504 = vld [vmem:[#allocation2 + $0x148] sm:$0xff]
        %v1505 = vld [vmem:[#allocation2 + $0x150] sm:$0xff]
        %v1506 = vld [vmem:[#allocation2 + $0x158] sm:$0xff]
        %v1507 = vld [vmem:[#allocation2 + $0x160] sm:$0xff]
        %v1508 = vld [vmem:[#allocation2 + $0x168] sm:$0xff]
        %v1509 = vld [vmem:[#allocation2 + $0x170] sm:$0xff]
        %v1510 = vld [vmem:[#allocation2 + $0x178] sm:$0xff]
        %v1511 = vsel %vm1075, %v1495, %v1503
        %v1512 = vsel %vm1076, %v1496, %v1504
        %v1513 = vsel %vm1075, %v1497, %v1505
        %v1514 = vsel %vm1076, %v1498, %v1506
        %v1515 = vsel %vm1075, %v1499, %v1507
        %v1516 = vsel %vm1076, %v1500, %v1508
        %v1517 = vsel %vm1075, %v1501, %v1509
        %v1518 = vsel %vm1076, %v1502, %v1510
        %v1519 = vpack.c.bf16 %v1466, %v1465
        %v1520 = vpack.c.bf16 %v1468, %v1467
        %1523 = vrot.lane.b32.xlu0 %v1519, 64
        %v1524 = vpop.permute.xlu0 %1523
        %1525 = vrot.lane.b32.xlu0 %v1520, 64
        %v1526 = vpop.permute.xlu0 %1525
        %v1528 = vsel %vm983, %v1524, 0
        %v1531 = vsel %vm983, %v1526, 0
        %1533 = vmatprep.subr.bf16.mxu0 %v1137
        %1534 = vmatpush1.bf16.msra.mxu0 %v1136
        %1535 = vmatprep.subr.bf16.mxu0 %v1139
        %1536 = vmatpush1.bf16.msra.mxu0 %v1138
        %1537 = vmatprep.subr.bf16.mxu0 %v1141
        %1538 = vmatpush1.bf16.msra.mxu0 %v1140
        %1539 = vmatprep.subr.bf16.mxu0 %v1143
        %1540 = vmatpush1.bf16.msra.mxu0 %v1142
        %1541 = vmatprep.subr.bf16.mxu0 0
        %1542 = vmatpush1.bf16.msra.mxu0 0
        %1543 = vmatprep.subr.bf16.mxu0 0
        %1544 = vmatpush1.bf16.msra.mxu0 0
        %1545 = vmatprep.subr.bf16.mxu0 0
        %1546 = vmatpush1.bf16.msra.mxu0 0
        %1547 = vmatprep.subr.bf16.mxu0 0
        %1548 = vmatpush1.bf16.msra.mxu0 0
        %1549 = vmatprep.subr.bf16.mxu0 0
        %1550 = vmatpush1.bf16.msra.mxu0 0
        %1551 = vmatprep.subr.bf16.mxu0 0
        %1552 = vmatpush1.bf16.msra.mxu0 0
        %1553 = vmatprep.subr.bf16.mxu0 0
        %1554 = vmatpush1.bf16.msra.mxu0 0
        %1555 = vmatprep.subr.bf16.mxu0 0
        %1556 = vmatpush1.bf16.msra.mxu0 0
        %1557 = vmatprep.subr.bf16.mxu0 0
        %1558 = vmatpush1.bf16.msra.mxu0 0
        %1559 = vmatprep.subr.bf16.mxu0 0
        %1560 = vmatpush1.bf16.msra.mxu0 0
        %1561 = vmatprep.subr.bf16.mxu0 0
        %1562 = vmatpush1.bf16.msra.mxu0 0
        %1563 = vmatprep.subr.bf16.mxu0 0
        %1564 = vmatpush1.bf16.msra.mxu0 0
        %1565 = vmatprep.mubr.bf16.mxu0 0
        %1566 = vmatmul.mubr.bf16.gmra.mrb[0].mxu0 %v1528
        %v1567 = vpop.f32.mrb[0].mxu0
        %v1568 = vadd.f32 %v1105, %v1567
        %v1569 = vpop.f32.mrb[0].mxu0
        %v1570 = vadd.f32 %v1109, %v1569
        %v1571 = vpop.f32.mrb[0].mxu0
        %v1572 = vadd.f32 %v1105, %v1571
        %v1573 = vpop.f32.mrb[0].mxu0
        %v1574 = vadd.f32 %v1109, %v1573
        %1575 = vmatprep.mubr.bf16.mxu0 0
        %1576 = vmatmul.mubr.bf16.gmra.mrb[0].mxu0 %v1531
        %v1577 = vpop.f32.mrb[0].mxu0
        %v1578 = vadd.f32 %v1105, %v1577
        %v1579 = vpop.f32.mrb[0].mxu0
        %v1580 = vadd.f32 %v1109, %v1579
        %v1581 = vpop.f32.mrb[0].mxu0
        %v1582 = vadd.f32 %v1105, %v1581
        %v1583 = vpop.f32.mrb[0].mxu0
        %v1584 = vadd.f32 %v1109, %v1583
        %1585 = vdwg.mxu0
        %v1586 = vadd.f32 %v1511, %v1568
        %v1587 = vadd.f32 %v1513, %v1572
        %v1588 = vadd.f32 %v1515, %v1578
        %v1589 = vadd.f32 %v1517, %v1582
        %v1590 = vxor.u32 %v1586, 2147483648
        %v1591 = vxor.u32 %v1587, 2147483648
        %v1592 = vxor.u32 %v1588, 2147483648
        %v1593 = vxor.u32 %v1589, 2147483648
        %v1594 = vmul.f32 %v1590, 1.442695
        %v1595 = vpow.pop %v1594
        %v1596 = vmul.f32 %v1591, 1.442695
        %v1597 = vpow.pop %v1596
        %v1598 = vmul.f32 %v1592, 1.442695
        %v1599 = vpow.pop %v1598
        %v1600 = vmul.f32 %v1593, 1.442695
        %v1601 = vpow.pop %v1600
        %v1602 = vadd.f32 %v1595, 1.0
        %v1603 = vadd.f32 %v1597, 1.0
        %v1604 = vadd.f32 %v1599, 1.0
        %v1605 = vadd.f32 %v1601, 1.0
        %v1606 = vrcp.pop %v1602
        %v1607 = vmul.f32 1.0, %v1606
        %v1608 = vrcp.pop %v1603
        %v1609 = vmul.f32 1.0, %v1608
        %v1610 = vrcp.pop %v1604
        %v1611 = vmul.f32 1.0, %v1610
        %v1612 = vrcp.pop %v1605
        %v1613 = vmul.f32 1.0, %v1612
        %v1614 = vmul.f32 %v1607, %v1570
        %v1615 = vmul.f32 %v1609, %v1574
        %v1616 = vmul.f32 %v1611, %v1580
        %v1617 = vmul.f32 %v1613, %v1584
        %v1618 = vadd.f32 %v1512, %v1614
        %v1619 = vadd.f32 %v1514, %v1615
        %v1620 = vadd.f32 %v1516, %v1616
        %v1621 = vadd.f32 %v1518, %v1617
        %v1622 = vtanh.pop %v1618
        %v1623 = vtanh.pop %v1619
        %v1624 = vtanh.pop %v1620
        %v1625 = vtanh.pop %v1621
        %v1626 = vsub.f32 1.0, %v1607
        %v1627 = vsub.f32 1.0, %v1609
        %v1628 = vsub.f32 1.0, %v1611
        %v1629 = vsub.f32 1.0, %v1613
        %1634 = vrot.lane.b32.xlu0 %v1622, 64
        %v1635 = vpop.permute.xlu0 %1634
        %1636 = vrot.lane.b32.xlu0 %v1623, 64
        %v1637 = vpop.permute.xlu0 %1636
        %1638 = vrot.lane.b32.xlu0 %v1624, 64
        %v1639 = vpop.permute.xlu0 %1638
        %1640 = vrot.lane.b32.xlu0 %v1625, 64
        %v1641 = vpop.permute.xlu0 %1640
        %v1646 = vmul.f32 %v1626, %v1635
        %v1647 = vmul.f32 %v1627, %v1637
        %v1648 = vmul.f32 %v1628, %v1639
        %v1649 = vmul.f32 %v1629, %v1641
        %v1650 = vmul.f32 %v1607, %v1465
        %v1651 = vmul.f32 %v1609, %v1466
        %v1652 = vmul.f32 %v1611, %v1467
        %v1653 = vmul.f32 %v1613, %v1468
        %v1654 = vadd.f32 %v1646, %v1650
        %v1655 = vadd.f32 %v1647, %v1651
        %v1656 = vadd.f32 %v1648, %v1652
        %v1657 = vadd.f32 %v1649, %v1653
        %1662 = vrot.lane.b32.xlu0 %v1654, 64
        %v1663 = vpop.permute.xlu0 %1662
        %1664 = vrot.lane.b32.xlu0 %v1655, 64
        %v1665 = vpop.permute.xlu0 %1664
        %1666 = vrot.lane.b32.xlu0 %v1656, 64
        %v1667 = vpop.permute.xlu0 %1666
        %1668 = vrot.lane.b32.xlu0 %v1657, 64
        %v1669 = vpop.permute.xlu0 %1668
        %s1674 = scalar_lea.vmem [#allocation3], 64
        %1675 = vst.msk [vmem:[%s1674] sm:$0xff] %vm740, %v1663
        %1676 = vst.msk [vmem:[%s1674 + $0x8] sm:$0xff] %vm740, %v1665
        %1677 = vst.msk [vmem:[%s1674 + $0x10] sm:$0xff] %vm740, %v1667
        %1678 = vst.msk [vmem:[%s1674 + $0x18] sm:$0xff] %vm740, %v1669
        %s1679 = scalar_lea.vmem [#allocation3], 160
        %1680 = vst.msk [vmem:[%s1679] sm:$0xff] %vm1301, %v1663
        %1681 = vst.msk [vmem:[%s1679 + $0x8] sm:$0xff] %vm1301, %v1665
        %1682 = vst.msk [vmem:[%s1679 + $0x10] sm:$0xff] %vm1301, %v1667
        %1683 = vst.msk [vmem:[%s1679 + $0x18] sm:$0xff] %vm1301, %v1669
        %v1684 = vld [vmem:[#allocation2 + $0xc0] sm:$0xff]
        %v1685 = vld [vmem:[#allocation2 + $0xc8] sm:$0xff]
        %v1686 = vld [vmem:[#allocation2 + $0xd0] sm:$0xff]
        %v1687 = vld [vmem:[#allocation2 + $0xd8] sm:$0xff]
        %v1688 = vld [vmem:[#allocation2 + $0xe0] sm:$0xff]
        %v1689 = vld [vmem:[#allocation2 + $0xe8] sm:$0xff]
        %v1690 = vld [vmem:[#allocation2 + $0xf0] sm:$0xff]
        %v1691 = vld [vmem:[#allocation2 + $0xf8] sm:$0xff]
        %v1692 = vld [vmem:[#allocation2 + $0x100] sm:$0xff]
        %v1693 = vld [vmem:[#allocation2 + $0x108] sm:$0xff]
        %v1694 = vld [vmem:[#allocation2 + $0x110] sm:$0xff]
        %v1695 = vld [vmem:[#allocation2 + $0x118] sm:$0xff]
        %v1696 = vld [vmem:[#allocation2 + $0x120] sm:$0xff]
        %v1697 = vld [vmem:[#allocation2 + $0x128] sm:$0xff]
        %v1698 = vld [vmem:[#allocation2 + $0x130] sm:$0xff]
        %v1699 = vld [vmem:[#allocation2 + $0x138] sm:$0xff]
        %v1700 = vsel %vm1075, %v1684, %v1692
        %v1701 = vsel %vm1076, %v1685, %v1693
        %v1702 = vsel %vm1075, %v1686, %v1694
        %v1703 = vsel %vm1076, %v1687, %v1695
        %v1704 = vsel %vm1075, %v1688, %v1696
        %v1705 = vsel %vm1076, %v1689, %v1697
        %v1706 = vsel %vm1075, %v1690, %v1698
        %v1707 = vsel %vm1076, %v1691, %v1699
        %v1708 = vpack.c.bf16 %v1655, %v1654
        %v1709 = vpack.c.bf16 %v1657, %v1656
        %1712 = vrot.lane.b32.xlu0 %v1708, 64
        %v1713 = vpop.permute.xlu0 %1712
        %1714 = vrot.lane.b32.xlu0 %v1709, 64
        %v1715 = vpop.permute.xlu0 %1714
        %v1717 = vsel %vm983, %v1713, 0
        %v1720 = vsel %vm983, %v1715, 0
        %1722 = vmatprep.subr.bf16.mxu0 %v1137
        %1723 = vmatpush1.bf16.msra.mxu0 %v1136
        %1724 = vmatprep.subr.bf16.mxu0 %v1139
        %1725 = vmatpush1.bf16.msra.mxu0 %v1138
        %1726 = vmatprep.subr.bf16.mxu0 %v1141
        %1727 = vmatpush1.bf16.msra.mxu0 %v1140
        %1728 = vmatprep.subr.bf16.mxu0 %v1143
        %1729 = vmatpush1.bf16.msra.mxu0 %v1142
        %1730 = vmatprep.subr.bf16.mxu0 0
        %1731 = vmatpush1.bf16.msra.mxu0 0
        %1732 = vmatprep.subr.bf16.mxu0 0
        %1733 = vmatpush1.bf16.msra.mxu0 0
        %1734 = vmatprep.subr.bf16.mxu0 0
        %1735 = vmatpush1.bf16.msra.mxu0 0
        %1736 = vmatprep.subr.bf16.mxu0 0
        %1737 = vmatpush1.bf16.msra.mxu0 0
        %1738 = vmatprep.subr.bf16.mxu0 0
        %1739 = vmatpush1.bf16.msra.mxu0 0
        %1740 = vmatprep.subr.bf16.mxu0 0
        %1741 = vmatpush1.bf16.msra.mxu0 0
        %1742 = vmatprep.subr.bf16.mxu0 0
        %1743 = vmatpush1.bf16.msra.mxu0 0
        %1744 = vmatprep.subr.bf16.mxu0 0
        %1745 = vmatpush1.bf16.msra.mxu0 0
        %1746 = vmatprep.subr.bf16.mxu0 0
        %1747 = vmatpush1.bf16.msra.mxu0 0
        %1748 = vmatprep.subr.bf16.mxu0 0
        %1749 = vmatpush1.bf16.msra.mxu0 0
        %1750 = vmatprep.subr.bf16.mxu0 0
        %1751 = vmatpush1.bf16.msra.mxu0 0
        %1752 = vmatprep.subr.bf16.mxu0 0
        %1753 = vmatpush1.bf16.msra.mxu0 0
        %1754 = vmatprep.mubr.bf16.mxu0 0
        %1755 = vmatmul.mubr.bf16.gmra.mrb[0].mxu0 %v1717
        %v1756 = vpop.f32.mrb[0].mxu0
        %v1757 = vadd.f32 %v1105, %v1756
        %v1758 = vpop.f32.mrb[0].mxu0
        %v1759 = vadd.f32 %v1109, %v1758
        %v1760 = vpop.f32.mrb[0].mxu0
        %v1761 = vadd.f32 %v1105, %v1760
        %v1762 = vpop.f32.mrb[0].mxu0
        %v1763 = vadd.f32 %v1109, %v1762
        %1764 = vmatprep.mubr.bf16.mxu0 0
        %1765 = vmatmul.mubr.bf16.gmra.mrb[0].mxu0 %v1720
        %v1766 = vpop.f32.mrb[0].mxu0
        %v1767 = vadd.f32 %v1105, %v1766
        %v1768 = vpop.f32.mrb[0].mxu0
        %v1769 = vadd.f32 %v1109, %v1768
        %v1770 = vpop.f32.mrb[0].mxu0
        %v1771 = vadd.f32 %v1105, %v1770
        %v1772 = vpop.f32.mrb[0].mxu0
        %v1773 = vadd.f32 %v1109, %v1772
        %1774 = vdwg.mxu0
        %v1775 = vadd.f32 %v1700, %v1757
        %v1776 = vadd.f32 %v1702, %v1761
        %v1777 = vadd.f32 %v1704, %v1767
        %v1778 = vadd.f32 %v1706, %v1771
        %v1779 = vxor.u32 %v1775, 2147483648
        %v1780 = vxor.u32 %v1776, 2147483648
        %v1781 = vxor.u32 %v1777, 2147483648
        %v1782 = vxor.u32 %v1778, 2147483648
        %v1783 = vmul.f32 %v1779, 1.442695
        %v1784 = vpow.pop %v1783
        %v1785 = vmul.f32 %v1780, 1.442695
        %v1786 = vpow.pop %v1785
        %v1787 = vmul.f32 %v1781, 1.442695
        %v1788 = vpow.pop %v1787
        %v1789 = vmul.f32 %v1782, 1.442695
        %v1790 = vpow.pop %v1789
        %v1791 = vadd.f32 %v1784, 1.0
        %v1792 = vadd.f32 %v1786, 1.0
        %v1793 = vadd.f32 %v1788, 1.0
        %v1794 = vadd.f32 %v1790, 1.0
        %v1795 = vrcp.pop %v1791
        %v1796 = vmul.f32 1.0, %v1795
        %v1797 = vrcp.pop %v1792
        %v1798 = vmul.f32 1.0, %v1797
        %v1799 = vrcp.pop %v1793
        %v1800 = vmul.f32 1.0, %v1799
        %v1801 = vrcp.pop %v1794
        %v1802 = vmul.f32 1.0, %v1801
        %v1803 = vmul.f32 %v1796, %v1759
        %v1804 = vmul.f32 %v1798, %v1763
        %v1805 = vmul.f32 %v1800, %v1769
        %v1806 = vmul.f32 %v1802, %v1773
        %v1807 = vadd.f32 %v1701, %v1803
        %v1808 = vadd.f32 %v1703, %v1804
        %v1809 = vadd.f32 %v1705, %v1805
        %v1810 = vadd.f32 %v1707, %v1806
        %v1811 = vtanh.pop %v1807
        %v1812 = vtanh.pop %v1808
        %v1813 = vtanh.pop %v1809
        %v1814 = vtanh.pop %v1810
        %v1815 = vsub.f32 1.0, %v1796
        %v1816 = vsub.f32 1.0, %v1798
        %v1817 = vsub.f32 1.0, %v1800
        %v1818 = vsub.f32 1.0, %v1802
        %1823 = vrot.lane.b32.xlu0 %v1811, 64
        %v1824 = vpop.permute.xlu0 %1823
        %1825 = vrot.lane.b32.xlu0 %v1812, 64
        %v1826 = vpop.permute.xlu0 %1825
        %1827 = vrot.lane.b32.xlu0 %v1813, 64
        %v1828 = vpop.permute.xlu0 %1827
        %1829 = vrot.lane.b32.xlu0 %v1814, 64
        %v1830 = vpop.permute.xlu0 %1829
        %v1835 = vmul.f32 %v1815, %v1824
        %v1836 = vmul.f32 %v1816, %v1826
        %v1837 = vmul.f32 %v1817, %v1828
        %v1838 = vmul.f32 %v1818, %v1830
        %v1839 = vmul.f32 %v1796, %v1654
        %v1840 = vmul.f32 %v1798, %v1655
        %v1841 = vmul.f32 %v1800, %v1656
        %v1842 = vmul.f32 %v1802, %v1657
        %v1843 = vadd.f32 %v1835, %v1839
        %v1844 = vadd.f32 %v1836, %v1840
        %v1845 = vadd.f32 %v1837, %v1841
        %v1846 = vadd.f32 %v1838, %v1842
        %1851 = vrot.lane.b32.xlu0 %v1843, 64
        %v1852 = vpop.permute.xlu0 %1851
        %1853 = vrot.lane.b32.xlu0 %v1844, 64
        %v1854 = vpop.permute.xlu0 %1853
        %1855 = vrot.lane.b32.xlu0 %v1845, 64
        %v1856 = vpop.permute.xlu0 %1855
        %1857 = vrot.lane.b32.xlu0 %v1846, 64
        %v1858 = vpop.permute.xlu0 %1857
        %s1863 = scalar_lea.vmem [#allocation3], 96
        %1864 = vst.msk [vmem:[%s1863] sm:$0xff] %vm740, %v1852
        %1865 = vst.msk [vmem:[%s1863 + $0x8] sm:$0xff] %vm740, %v1854
        %1866 = vst.msk [vmem:[%s1863 + $0x10] sm:$0xff] %vm740, %v1856
        %1867 = vst.msk [vmem:[%s1863 + $0x18] sm:$0xff] %vm740, %v1858
        %s1868 = scalar_lea.vmem [#allocation3], 128
        %1869 = vst.msk [vmem:[%s1868] sm:$0xff] %vm1301, %v1852
        %1870 = vst.msk [vmem:[%s1868 + $0x8] sm:$0xff] %vm1301, %v1854
        %1871 = vst.msk [vmem:[%s1868 + $0x10] sm:$0xff] %vm1301, %v1856
        %1872 = vst.msk [vmem:[%s1868 + $0x18] sm:$0xff] %vm1301, %v1858
        %v1873 = vld [vmem:[#allocation2 + $0x100] sm:$0xff]
        %v1874 = vld [vmem:[#allocation2 + $0x108] sm:$0xff]
        %v1875 = vld [vmem:[#allocation2 + $0x110] sm:$0xff]
        %v1876 = vld [vmem:[#allocation2 + $0x118] sm:$0xff]
        %v1877 = vld [vmem:[#allocation2 + $0x120] sm:$0xff]
        %v1878 = vld [vmem:[#allocation2 + $0x128] sm:$0xff]
        %v1879 = vld [vmem:[#allocation2 + $0x130] sm:$0xff]
        %v1880 = vld [vmem:[#allocation2 + $0x138] sm:$0xff]
        %v1881 = vld [vmem:[#allocation2 + $0xc0] sm:$0xff]
        %v1882 = vld [vmem:[#allocation2 + $0xc8] sm:$0xff]
        %v1883 = vld [vmem:[#allocation2 + $0xd0] sm:$0xff]
        %v1884 = vld [vmem:[#allocation2 + $0xd8] sm:$0xff]
        %v1885 = vld [vmem:[#allocation2 + $0xe0] sm:$0xff]
        %v1886 = vld [vmem:[#allocation2 + $0xe8] sm:$0xff]
        %v1887 = vld [vmem:[#allocation2 + $0xf0] sm:$0xff]
        %v1888 = vld [vmem:[#allocation2 + $0xf8] sm:$0xff]
        %v1889 = vsel %vm1075, %v1873, %v1881
        %v1890 = vsel %vm1076, %v1874, %v1882
        %v1891 = vsel %vm1075, %v1875, %v1883
        %v1892 = vsel %vm1076, %v1876, %v1884
        %v1893 = vsel %vm1075, %v1877, %v1885
        %v1894 = vsel %vm1076, %v1878, %v1886
        %v1895 = vsel %vm1075, %v1879, %v1887
        %v1896 = vsel %vm1076, %v1880, %v1888
        %v1897 = vpack.c.bf16 %v1844, %v1843
        %v1898 = vpack.c.bf16 %v1846, %v1845
        %1901 = vrot.lane.b32.xlu0 %v1897, 64
        %v1902 = vpop.permute.xlu0 %1901
        %1903 = vrot.lane.b32.xlu0 %v1898, 64
        %v1904 = vpop.permute.xlu0 %1903
        %v1906 = vsel %vm983, %v1902, 0
        %v1909 = vsel %vm983, %v1904, 0
        %1911 = vmatprep.subr.bf16.mxu0 %v1137
        %1912 = vmatpush1.bf16.msra.mxu0 %v1136
        %1913 = vmatprep.subr.bf16.mxu0 %v1139
        %1914 = vmatpush1.bf16.msra.mxu0 %v1138
        %1915 = vmatprep.subr.bf16.mxu0 %v1141
        %1916 = vmatpush1.bf16.msra.mxu0 %v1140
        %1917 = vmatprep.subr.bf16.mxu0 %v1143
        %1918 = vmatpush1.bf16.msra.mxu0 %v1142
        %1919 = vmatprep.subr.bf16.mxu0 0
        %1920 = vmatpush1.bf16.msra.mxu0 0
        %1921 = vmatprep.subr.bf16.mxu0 0
        %1922 = vmatpush1.bf16.msra.mxu0 0
        %1923 = vmatprep.subr.bf16.mxu0 0
        %1924 = vmatpush1.bf16.msra.mxu0 0
        %1925 = vmatprep.subr.bf16.mxu0 0
        %1926 = vmatpush1.bf16.msra.mxu0 0
        %1927 = vmatprep.subr.bf16.mxu0 0
        %1928 = vmatpush1.bf16.msra.mxu0 0
        %1929 = vmatprep.subr.bf16.mxu0 0
        %1930 = vmatpush1.bf16.msra.mxu0 0
        %1931 = vmatprep.subr.bf16.mxu0 0
        %1932 = vmatpush1.bf16.msra.mxu0 0
        %1933 = vmatprep.subr.bf16.mxu0 0
        %1934 = vmatpush1.bf16.msra.mxu0 0
        %1935 = vmatprep.subr.bf16.mxu0 0
        %1936 = vmatpush1.bf16.msra.mxu0 0
        %1937 = vmatprep.subr.bf16.mxu0 0
        %1938 = vmatpush1.bf16.msra.mxu0 0
        %1939 = vmatprep.subr.bf16.mxu0 0
        %1940 = vmatpush1.bf16.msra.mxu0 0
        %1941 = vmatprep.subr.bf16.mxu0 0
        %1942 = vmatpush1.bf16.msra.mxu0 0
        %1943 = vmatprep.mubr.bf16.mxu0 0
        %1944 = vmatmul.mubr.bf16.gmra.mrb[0].mxu0 %v1906
        %v1945 = vpop.f32.mrb[0].mxu0
        %v1946 = vadd.f32 %v1105, %v1945
        %v1947 = vpop.f32.mrb[0].mxu0
        %v1948 = vadd.f32 %v1109, %v1947
        %v1949 = vpop.f32.mrb[0].mxu0
        %v1950 = vadd.f32 %v1105, %v1949
        %v1951 = vpop.f32.mrb[0].mxu0
        %v1952 = vadd.f32 %v1109, %v1951
        %1953 = vmatprep.mubr.bf16.mxu0 0
        %1954 = vmatmul.mubr.bf16.gmra.mrb[0].mxu0 %v1909
        %v1955 = vpop.f32.mrb[0].mxu0
        %v1956 = vadd.f32 %v1105, %v1955
        %v1957 = vpop.f32.mrb[0].mxu0
        %v1958 = vadd.f32 %v1109, %v1957
        %v1959 = vpop.f32.mrb[0].mxu0
        %v1960 = vadd.f32 %v1105, %v1959
        %v1961 = vpop.f32.mrb[0].mxu0
        %v1962 = vadd.f32 %v1109, %v1961
        %1963 = vdwg.mxu0
        %v1964 = vadd.f32 %v1889, %v1946
        %v1965 = vadd.f32 %v1891, %v1950
        %v1966 = vadd.f32 %v1893, %v1956
        %v1967 = vadd.f32 %v1895, %v1960
        %v1968 = vxor.u32 %v1964, 2147483648
        %v1969 = vxor.u32 %v1965, 2147483648
        %v1970 = vxor.u32 %v1966, 2147483648
        %v1971 = vxor.u32 %v1967, 2147483648
        %v1972 = vmul.f32 %v1968, 1.442695
        %v1973 = vpow.pop %v1972
        %v1974 = vmul.f32 %v1969, 1.442695
        %v1975 = vpow.pop %v1974
        %v1976 = vmul.f32 %v1970, 1.442695
        %v1977 = vpow.pop %v1976
        %v1978 = vmul.f32 %v1971, 1.442695
        %v1979 = vpow.pop %v1978
        %v1980 = vadd.f32 %v1973, 1.0
        %v1981 = vadd.f32 %v1975, 1.0
        %v1982 = vadd.f32 %v1977, 1.0
        %v1983 = vadd.f32 %v1979, 1.0
        %v1984 = vrcp.pop %v1980
        %v1985 = vmul.f32 1.0, %v1984
        %v1986 = vrcp.pop %v1981
        %v1987 = vmul.f32 1.0, %v1986
        %v1988 = vrcp.pop %v1982
        %v1989 = vmul.f32 1.0, %v1988
        %v1990 = vrcp.pop %v1983
        %v1991 = vmul.f32 1.0, %v1990
        %v1992 = vmul.f32 %v1985, %v1948
        %v1993 = vmul.f32 %v1987, %v1952
        %v1994 = vmul.f32 %v1989, %v1958
        %v1995 = vmul.f32 %v1991, %v1962
        %v1996 = vadd.f32 %v1890, %v1992
        %v1997 = vadd.f32 %v1892, %v1993
        %v1998 = vadd.f32 %v1894, %v1994
        %v1999 = vadd.f32 %v1896, %v1995
        %v2000 = vtanh.pop %v1996
        %v2001 = vtanh.pop %v1997
        %v2002 = vtanh.pop %v1998
        %v2003 = vtanh.pop %v1999
        %v2004 = vsub.f32 1.0, %v1985
        %v2005 = vsub.f32 1.0, %v1987
        %v2006 = vsub.f32 1.0, %v1989
        %v2007 = vsub.f32 1.0, %v1991
        %2012 = vrot.lane.b32.xlu0 %v2000, 64
        %v2013 = vpop.permute.xlu0 %2012
        %2014 = vrot.lane.b32.xlu0 %v2001, 64
        %v2015 = vpop.permute.xlu0 %2014
        %2016 = vrot.lane.b32.xlu0 %v2002, 64
        %v2017 = vpop.permute.xlu0 %2016
        %2018 = vrot.lane.b32.xlu0 %v2003, 64
        %v2019 = vpop.permute.xlu0 %2018
        %v2024 = vmul.f32 %v2004, %v2013
        %v2025 = vmul.f32 %v2005, %v2015
        %v2026 = vmul.f32 %v2006, %v2017
        %v2027 = vmul.f32 %v2007, %v2019
        %v2028 = vmul.f32 %v1985, %v1843
        %v2029 = vmul.f32 %v1987, %v1844
        %v2030 = vmul.f32 %v1989, %v1845
        %v2031 = vmul.f32 %v1991, %v1846
        %v2032 = vadd.f32 %v2024, %v2028
        %v2033 = vadd.f32 %v2025, %v2029
        %v2034 = vadd.f32 %v2026, %v2030
        %v2035 = vadd.f32 %v2027, %v2031
        %2040 = vrot.lane.b32.xlu0 %v2032, 64
        %v2041 = vpop.permute.xlu0 %2040
        %2042 = vrot.lane.b32.xlu0 %v2033, 64
        %v2043 = vpop.permute.xlu0 %2042
        %2044 = vrot.lane.b32.xlu0 %v2034, 64
        %v2045 = vpop.permute.xlu0 %2044
        %2046 = vrot.lane.b32.xlu0 %v2035, 64
        %v2047 = vpop.permute.xlu0 %2046
        %2052 = vst.msk [vmem:[%s1868] sm:$0xff] %vm740, %v2041
        %2053 = vst.msk [vmem:[%s1868 + $0x8] sm:$0xff] %vm740, %v2043
        %2054 = vst.msk [vmem:[%s1868 + $0x10] sm:$0xff] %vm740, %v2045
        %2055 = vst.msk [vmem:[%s1868 + $0x18] sm:$0xff] %vm740, %v2047
        %2056 = vst.msk [vmem:[%s1863] sm:$0xff] %vm1301, %v2041
        %2057 = vst.msk [vmem:[%s1863 + $0x8] sm:$0xff] %vm1301, %v2043
        %2058 = vst.msk [vmem:[%s1863 + $0x10] sm:$0xff] %vm1301, %v2045
        %2059 = vst.msk [vmem:[%s1863 + $0x18] sm:$0xff] %vm1301, %v2047
        %v2060 = vld [vmem:[#allocation2 + $0x140] sm:$0xff]
        %v2061 = vld [vmem:[#allocation2 + $0x148] sm:$0xff]
        %v2062 = vld [vmem:[#allocation2 + $0x150] sm:$0xff]
        %v2063 = vld [vmem:[#allocation2 + $0x158] sm:$0xff]
        %v2064 = vld [vmem:[#allocation2 + $0x160] sm:$0xff]
        %v2065 = vld [vmem:[#allocation2 + $0x168] sm:$0xff]
        %v2066 = vld [vmem:[#allocation2 + $0x170] sm:$0xff]
        %v2067 = vld [vmem:[#allocation2 + $0x178] sm:$0xff]
        %v2068 = vld [vmem:[#allocation2 + $0x80] sm:$0xff]
        %v2069 = vld [vmem:[#allocation2 + $0x88] sm:$0xff]
        %v2070 = vld [vmem:[#allocation2 + $0x90] sm:$0xff]
        %v2071 = vld [vmem:[#allocation2 + $0x98] sm:$0xff]
        %v2072 = vld [vmem:[#allocation2 + $0xa0] sm:$0xff]
        %v2073 = vld [vmem:[#allocation2 + $0xa8] sm:$0xff]
        %v2074 = vld [vmem:[#allocation2 + $0xb0] sm:$0xff]
        %v2075 = vld [vmem:[#allocation2 + $0xb8] sm:$0xff]
        %v2076 = vsel %vm1075, %v2060, %v2068
        %v2077 = vsel %vm1076, %v2061, %v2069
        %v2078 = vsel %vm1075, %v2062, %v2070
        %v2079 = vsel %vm1076, %v2063, %v2071
        %v2080 = vsel %vm1075, %v2064, %v2072
        %v2081 = vsel %vm1076, %v2065, %v2073
        %v2082 = vsel %vm1075, %v2066, %v2074
        %v2083 = vsel %vm1076, %v2067, %v2075
        %v2084 = vpack.c.bf16 %v2033, %v2032
        %v2085 = vpack.c.bf16 %v2035, %v2034
        %2088 = vrot.lane.b32.xlu0 %v2084, 64
        %v2089 = vpop.permute.xlu0 %2088
        %2090 = vrot.lane.b32.xlu0 %v2085, 64
        %v2091 = vpop.permute.xlu0 %2090
        %v2093 = vsel %vm983, %v2089, 0
        %v2096 = vsel %vm983, %v2091, 0
        %2098 = vmatprep.subr.bf16.mxu0 %v1137
        %2099 = vmatpush1.bf16.msra.mxu0 %v1136
        %2100 = vmatprep.subr.bf16.mxu0 %v1139
        %2101 = vmatpush1.bf16.msra.mxu0 %v1138
        %2102 = vmatprep.subr.bf16.mxu0 %v1141
        %2103 = vmatpush1.bf16.msra.mxu0 %v1140
        %2104 = vmatprep.subr.bf16.mxu0 %v1143
        %2105 = vmatpush1.bf16.msra.mxu0 %v1142
        %2106 = vmatprep.subr.bf16.mxu0 0
        %2107 = vmatpush1.bf16.msra.mxu0 0
        %2108 = vmatprep.subr.bf16.mxu0 0
        %2109 = vmatpush1.bf16.msra.mxu0 0
        %2110 = vmatprep.subr.bf16.mxu0 0
        %2111 = vmatpush1.bf16.msra.mxu0 0
        %2112 = vmatprep.subr.bf16.mxu0 0
        %2113 = vmatpush1.bf16.msra.mxu0 0
        %2114 = vmatprep.subr.bf16.mxu0 0
        %2115 = vmatpush1.bf16.msra.mxu0 0
        %2116 = vmatprep.subr.bf16.mxu0 0
        %2117 = vmatpush1.bf16.msra.mxu0 0
        %2118 = vmatprep.subr.bf16.mxu0 0
        %2119 = vmatpush1.bf16.msra.mxu0 0
        %2120 = vmatprep.subr.bf16.mxu0 0
        %2121 = vmatpush1.bf16.msra.mxu0 0
        %2122 = vmatprep.subr.bf16.mxu0 0
        %2123 = vmatpush1.bf16.msra.mxu0 0
        %2124 = vmatprep.subr.bf16.mxu0 0
        %2125 = vmatpush1.bf16.msra.mxu0 0
        %2126 = vmatprep.subr.bf16.mxu0 0
        %2127 = vmatpush1.bf16.msra.mxu0 0
        %2128 = vmatprep.subr.bf16.mxu0 0
        %2129 = vmatpush1.bf16.msra.mxu0 0
        %2130 = vmatprep.mubr.bf16.mxu0 0
        %2131 = vmatmul.mubr.bf16.gmra.mrb[0].mxu0 %v2093
        %v2132 = vpop.f32.mrb[0].mxu0
        %v2133 = vadd.f32 %v1105, %v2132
        %v2134 = vpop.f32.mrb[0].mxu0
        %v2135 = vadd.f32 %v1109, %v2134
        %v2136 = vpop.f32.mrb[0].mxu0
        %v2137 = vadd.f32 %v1105, %v2136
        %v2138 = vpop.f32.mrb[0].mxu0
        %v2139 = vadd.f32 %v1109, %v2138
        %2140 = vmatprep.mubr.bf16.mxu0 0
        %2141 = vmatmul.mubr.bf16.gmra.mrb[0].mxu0 %v2096
        %v2142 = vpop.f32.mrb[0].mxu0
        %v2143 = vadd.f32 %v1105, %v2142
        %v2144 = vpop.f32.mrb[0].mxu0
        %v2145 = vadd.f32 %v1109, %v2144
        %v2146 = vpop.f32.mrb[0].mxu0
        %v2147 = vadd.f32 %v1105, %v2146
        %v2148 = vpop.f32.mrb[0].mxu0
        %v2149 = vadd.f32 %v1109, %v2148
        %2150 = vdwg.mxu0
        %v2151 = vadd.f32 %v2076, %v2133
        %v2152 = vadd.f32 %v2078, %v2137
        %v2153 = vadd.f32 %v2080, %v2143
        %v2154 = vadd.f32 %v2082, %v2147
        %v2155 = vxor.u32 %v2151, 2147483648
        %v2156 = vxor.u32 %v2152, 2147483648
        %v2157 = vxor.u32 %v2153, 2147483648
        %v2158 = vxor.u32 %v2154, 2147483648
        %v2159 = vmul.f32 %v2155, 1.442695
        %v2160 = vpow.pop %v2159
        %v2161 = vmul.f32 %v2156, 1.442695
        %v2162 = vpow.pop %v2161
        %v2163 = vmul.f32 %v2157, 1.442695
        %v2164 = vpow.pop %v2163
        %v2165 = vmul.f32 %v2158, 1.442695
        %v2166 = vpow.pop %v2165
        %v2167 = vadd.f32 %v2160, 1.0
        %v2168 = vadd.f32 %v2162, 1.0
        %v2169 = vadd.f32 %v2164, 1.0
        %v2170 = vadd.f32 %v2166, 1.0
        %v2171 = vrcp.pop %v2167
        %v2172 = vmul.f32 1.0, %v2171
        %v2173 = vrcp.pop %v2168
        %v2174 = vmul.f32 1.0, %v2173
        %v2175 = vrcp.pop %v2169
        %v2176 = vmul.f32 1.0, %v2175
        %v2177 = vrcp.pop %v2170
        %v2178 = vmul.f32 1.0, %v2177
        %v2179 = vmul.f32 %v2172, %v2135
        %v2180 = vmul.f32 %v2174, %v2139
        %v2181 = vmul.f32 %v2176, %v2145
        %v2182 = vmul.f32 %v2178, %v2149
        %v2183 = vadd.f32 %v2077, %v2179
        %v2184 = vadd.f32 %v2079, %v2180
        %v2185 = vadd.f32 %v2081, %v2181
        %v2186 = vadd.f32 %v2083, %v2182
        %v2187 = vtanh.pop %v2183
        %v2188 = vtanh.pop %v2184
        %v2189 = vtanh.pop %v2185
        %v2190 = vtanh.pop %v2186
        %v2191 = vsub.f32 1.0, %v2172
        %v2192 = vsub.f32 1.0, %v2174
        %v2193 = vsub.f32 1.0, %v2176
        %v2194 = vsub.f32 1.0, %v2178
        %2199 = vrot.lane.b32.xlu0 %v2187, 64
        %v2200 = vpop.permute.xlu0 %2199
        %2201 = vrot.lane.b32.xlu0 %v2188, 64
        %v2202 = vpop.permute.xlu0 %2201
        %2203 = vrot.lane.b32.xlu0 %v2189, 64
        %v2204 = vpop.permute.xlu0 %2203
        %2205 = vrot.lane.b32.xlu0 %v2190, 64
        %v2206 = vpop.permute.xlu0 %2205
        %v2211 = vmul.f32 %v2191, %v2200
        %v2212 = vmul.f32 %v2192, %v2202
        %v2213 = vmul.f32 %v2193, %v2204
        %v2214 = vmul.f32 %v2194, %v2206
        %v2215 = vmul.f32 %v2172, %v2032
        %v2216 = vmul.f32 %v2174, %v2033
        %v2217 = vmul.f32 %v2176, %v2034
        %v2218 = vmul.f32 %v2178, %v2035
        %v2219 = vadd.f32 %v2211, %v2215
        %v2220 = vadd.f32 %v2212, %v2216
        %v2221 = vadd.f32 %v2213, %v2217
        %v2222 = vadd.f32 %v2214, %v2218
        %2227 = vrot.lane.b32.xlu0 %v2219, 64
        %v2228 = vpop.permute.xlu0 %2227
        %2229 = vrot.lane.b32.xlu0 %v2220, 64
        %v2230 = vpop.permute.xlu0 %2229
        %2231 = vrot.lane.b32.xlu0 %v2221, 64
        %v2232 = vpop.permute.xlu0 %2231
        %2233 = vrot.lane.b32.xlu0 %v2222, 64
        %v2234 = vpop.permute.xlu0 %2233
        %2239 = vst.msk [vmem:[%s1679] sm:$0xff] %vm740, %v2228
        %2240 = vst.msk [vmem:[%s1679 + $0x8] sm:$0xff] %vm740, %v2230
        %2241 = vst.msk [vmem:[%s1679 + $0x10] sm:$0xff] %vm740, %v2232
        %2242 = vst.msk [vmem:[%s1679 + $0x18] sm:$0xff] %vm740, %v2234
        %2243 = vst.msk [vmem:[%s1674] sm:$0xff] %vm1301, %v2228
        %2244 = vst.msk [vmem:[%s1674 + $0x8] sm:$0xff] %vm1301, %v2230
        %2245 = vst.msk [vmem:[%s1674 + $0x10] sm:$0xff] %vm1301, %v2232
        %2246 = vst.msk [vmem:[%s1674 + $0x18] sm:$0xff] %vm1301, %v2234
        %v2247 = vld [vmem:[#allocation2 + $0x180] sm:$0xff]
        %v2248 = vld [vmem:[#allocation2 + $0x188] sm:$0xff]
        %v2249 = vld [vmem:[#allocation2 + $0x190] sm:$0xff]
        %v2250 = vld [vmem:[#allocation2 + $0x198] sm:$0xff]
        %v2251 = vld [vmem:[#allocation2 + $0x1a0] sm:$0xff]
        %v2252 = vld [vmem:[#allocation2 + $0x1a8] sm:$0xff]
        %v2253 = vld [vmem:[#allocation2 + $0x1b0] sm:$0xff]
        %v2254 = vld [vmem:[#allocation2 + $0x1b8] sm:$0xff]
        %v2255 = vld [vmem:[#allocation2 + $0x40] sm:$0xff]
        %v2256 = vld [vmem:[#allocation2 + $0x48] sm:$0xff]
        %v2257 = vld [vmem:[#allocation2 + $0x50] sm:$0xff]
        %v2258 = vld [vmem:[#allocation2 + $0x58] sm:$0xff]
        %v2259 = vld [vmem:[#allocation2 + $0x60] sm:$0xff]
        %v2260 = vld [vmem:[#allocation2 + $0x68] sm:$0xff]
        %v2261 = vld [vmem:[#allocation2 + $0x70] sm:$0xff]
        %v2262 = vld [vmem:[#allocation2 + $0x78] sm:$0xff]
        %v2263 = vsel %vm1075, %v2247, %v2255
        %v2264 = vsel %vm1076, %v2248, %v2256
        %v2265 = vsel %vm1075, %v2249, %v2257
        %v2266 = vsel %vm1076, %v2250, %v2258
        %v2267 = vsel %vm1075, %v2251, %v2259
        %v2268 = vsel %vm1076, %v2252, %v2260
        %v2269 = vsel %vm1075, %v2253, %v2261
        %v2270 = vsel %vm1076, %v2254, %v2262
        %v2271 = vpack.c.bf16 %v2220, %v2219
        %v2272 = vpack.c.bf16 %v2222, %v2221
        %2275 = vrot.lane.b32.xlu0 %v2271, 64
        %v2276 = vpop.permute.xlu0 %2275
        %2277 = vrot.lane.b32.xlu0 %v2272, 64
        %v2278 = vpop.permute.xlu0 %2277
        %v2280 = vsel %vm983, %v2276, 0
        %v2283 = vsel %vm983, %v2278, 0
        %2285 = vmatprep.subr.bf16.mxu0 %v1137
        %2286 = vmatpush1.bf16.msra.mxu0 %v1136
        %2287 = vmatprep.subr.bf16.mxu0 %v1139
        %2288 = vmatpush1.bf16.msra.mxu0 %v1138
        %2289 = vmatprep.subr.bf16.mxu0 %v1141
        %2290 = vmatpush1.bf16.msra.mxu0 %v1140
        %2291 = vmatprep.subr.bf16.mxu0 %v1143
        %2292 = vmatpush1.bf16.msra.mxu0 %v1142
        %2293 = vmatprep.subr.bf16.mxu0 0
        %2294 = vmatpush1.bf16.msra.mxu0 0
        %2295 = vmatprep.subr.bf16.mxu0 0
        %2296 = vmatpush1.bf16.msra.mxu0 0
        %2297 = vmatprep.subr.bf16.mxu0 0
        %2298 = vmatpush1.bf16.msra.mxu0 0
        %2299 = vmatprep.subr.bf16.mxu0 0
        %2300 = vmatpush1.bf16.msra.mxu0 0
        %2301 = vmatprep.subr.bf16.mxu0 0
        %2302 = vmatpush1.bf16.msra.mxu0 0
        %2303 = vmatprep.subr.bf16.mxu0 0
        %2304 = vmatpush1.bf16.msra.mxu0 0
        %2305 = vmatprep.subr.bf16.mxu0 0
        %2306 = vmatpush1.bf16.msra.mxu0 0
        %2307 = vmatprep.subr.bf16.mxu0 0
        %2308 = vmatpush1.bf16.msra.mxu0 0
        %2309 = vmatprep.subr.bf16.mxu0 0
        %2310 = vmatpush1.bf16.msra.mxu0 0
        %2311 = vmatprep.subr.bf16.mxu0 0
        %2312 = vmatpush1.bf16.msra.mxu0 0
        %2313 = vmatprep.subr.bf16.mxu0 0
        %2314 = vmatpush1.bf16.msra.mxu0 0
        %2315 = vmatprep.subr.bf16.mxu0 0
        %2316 = vmatpush1.bf16.msra.mxu0 0
        %2317 = vmatprep.mubr.bf16.mxu0 0
        %2318 = vmatmul.mubr.bf16.gmra.mrb[0].mxu0 %v2280
        %v2319 = vpop.f32.mrb[0].mxu0
        %v2320 = vadd.f32 %v1105, %v2319
        %v2321 = vpop.f32.mrb[0].mxu0
        %v2322 = vadd.f32 %v1109, %v2321
        %v2323 = vpop.f32.mrb[0].mxu0
        %v2324 = vadd.f32 %v1105, %v2323
        %v2325 = vpop.f32.mrb[0].mxu0
        %v2326 = vadd.f32 %v1109, %v2325
        %2327 = vmatprep.mubr.bf16.mxu0 0
        %2328 = vmatmul.mubr.bf16.gmra.mrb[0].mxu0 %v2283
        %v2329 = vpop.f32.mrb[0].mxu0
        %v2330 = vadd.f32 %v1105, %v2329
        %v2331 = vpop.f32.mrb[0].mxu0
        %v2332 = vadd.f32 %v1109, %v2331
        %v2333 = vpop.f32.mrb[0].mxu0
        %v2334 = vadd.f32 %v1105, %v2333
        %v2335 = vpop.f32.mrb[0].mxu0
        %v2336 = vadd.f32 %v1109, %v2335
        %2337 = vdwg.mxu0
        %v2338 = vadd.f32 %v2263, %v2320
        %v2339 = vadd.f32 %v2265, %v2324
        %v2340 = vadd.f32 %v2267, %v2330
        %v2341 = vadd.f32 %v2269, %v2334
        %v2342 = vxor.u32 %v2338, 2147483648
        %v2343 = vxor.u32 %v2339, 2147483648
        %v2344 = vxor.u32 %v2340, 2147483648
        %v2345 = vxor.u32 %v2341, 2147483648
        %v2346 = vmul.f32 %v2342, 1.442695
        %v2347 = vpow.pop %v2346
        %v2348 = vmul.f32 %v2343, 1.442695
        %v2349 = vpow.pop %v2348
        %v2350 = vmul.f32 %v2344, 1.442695
        %v2351 = vpow.pop %v2350
        %v2352 = vmul.f32 %v2345, 1.442695
        %v2353 = vpow.pop %v2352
        %v2354 = vadd.f32 %v2347, 1.0
        %v2355 = vadd.f32 %v2349, 1.0
        %v2356 = vadd.f32 %v2351, 1.0
        %v2357 = vadd.f32 %v2353, 1.0
        %v2358 = vrcp.pop %v2354
        %v2359 = vmul.f32 1.0, %v2358
        %v2360 = vrcp.pop %v2355
        %v2361 = vmul.f32 1.0, %v2360
        %v2362 = vrcp.pop %v2356
        %v2363 = vmul.f32 1.0, %v2362
        %v2364 = vrcp.pop %v2357
        %v2365 = vmul.f32 1.0, %v2364
        %v2366 = vmul.f32 %v2359, %v2322
        %v2367 = vmul.f32 %v2361, %v2326
        %v2368 = vmul.f32 %v2363, %v2332
        %v2369 = vmul.f32 %v2365, %v2336
        %v2370 = vadd.f32 %v2264, %v2366
        %v2371 = vadd.f32 %v2266, %v2367
        %v2372 = vadd.f32 %v2268, %v2368
        %v2373 = vadd.f32 %v2270, %v2369
        %v2374 = vtanh.pop %v2370
        %v2375 = vtanh.pop %v2371
        %v2376 = vtanh.pop %v2372
        %v2377 = vtanh.pop %v2373
        %v2378 = vsub.f32 1.0, %v2359
        %v2379 = vsub.f32 1.0, %v2361
        %v2380 = vsub.f32 1.0, %v2363
        %v2381 = vsub.f32 1.0, %v2365
        %2386 = vrot.lane.b32.xlu0 %v2374, 64
        %v2387 = vpop.permute.xlu0 %2386
        %2388 = vrot.lane.b32.xlu0 %v2375, 64
        %v2389 = vpop.permute.xlu0 %2388
        %2390 = vrot.lane.b32.xlu0 %v2376, 64
        %v2391 = vpop.permute.xlu0 %2390
        %2392 = vrot.lane.b32.xlu0 %v2377, 64
        %v2393 = vpop.permute.xlu0 %2392
        %v2398 = vmul.f32 %v2378, %v2387
        %v2399 = vmul.f32 %v2379, %v2389
        %v2400 = vmul.f32 %v2380, %v2391
        %v2401 = vmul.f32 %v2381, %v2393
        %v2402 = vmul.f32 %v2359, %v2219
        %v2403 = vmul.f32 %v2361, %v2220
        %v2404 = vmul.f32 %v2363, %v2221
        %v2405 = vmul.f32 %v2365, %v2222
        %v2406 = vadd.f32 %v2398, %v2402
        %v2407 = vadd.f32 %v2399, %v2403
        %v2408 = vadd.f32 %v2400, %v2404
        %v2409 = vadd.f32 %v2401, %v2405
        %2414 = vrot.lane.b32.xlu0 %v2406, 64
        %v2415 = vpop.permute.xlu0 %2414
        %2416 = vrot.lane.b32.xlu0 %v2407, 64
        %v2417 = vpop.permute.xlu0 %2416
        %2418 = vrot.lane.b32.xlu0 %v2408, 64
        %v2419 = vpop.permute.xlu0 %2418
        %2420 = vrot.lane.b32.xlu0 %v2409, 64
        %v2421 = vpop.permute.xlu0 %2420
        %2426 = vst.msk [vmem:[%s1490] sm:$0xff] %vm740, %v2415
        %2427 = vst.msk [vmem:[%s1490 + $0x8] sm:$0xff] %vm740, %v2417
        %2428 = vst.msk [vmem:[%s1490 + $0x10] sm:$0xff] %vm740, %v2419
        %2429 = vst.msk [vmem:[%s1490 + $0x18] sm:$0xff] %vm740, %v2421
        %2430 = vst.msk [vmem:[%s1485] sm:$0xff] %vm1301, %v2415
        %2431 = vst.msk [vmem:[%s1485 + $0x8] sm:$0xff] %vm1301, %v2417
        %2432 = vst.msk [vmem:[%s1485 + $0x10] sm:$0xff] %vm1301, %v2419
        %2433 = vst.msk [vmem:[%s1485 + $0x18] sm:$0xff] %vm1301, %v2421
        %v2434 = vld [vmem:[#allocation2 + $0x1c0] sm:$0xff]
        %v2435 = vld [vmem:[#allocation2 + $0x1c8] sm:$0xff]
        %v2436 = vld [vmem:[#allocation2 + $0x1d0] sm:$0xff]
        %v2437 = vld [vmem:[#allocation2 + $0x1d8] sm:$0xff]
        %v2438 = vld [vmem:[#allocation2 + $0x1e0] sm:$0xff]
        %v2439 = vld [vmem:[#allocation2 + $0x1e8] sm:$0xff]
        %v2440 = vld [vmem:[#allocation2 + $0x1f0] sm:$0xff]
        %v2441 = vld [vmem:[#allocation2 + $0x1f8] sm:$0xff]
        %v2442 = vld [vmem:[#allocation2] sm:$0xff]
        %v2443 = vld [vmem:[#allocation2 + $0x8] sm:$0xff]
        %v2444 = vld [vmem:[#allocation2 + $0x10] sm:$0xff]
        %v2445 = vld [vmem:[#allocation2 + $0x18] sm:$0xff]
        %v2446 = vld [vmem:[#allocation2 + $0x20] sm:$0xff]
        %v2447 = vld [vmem:[#allocation2 + $0x28] sm:$0xff]
        %v2448 = vld [vmem:[#allocation2 + $0x30] sm:$0xff]
        %v2449 = vld [vmem:[#allocation2 + $0x38] sm:$0xff]
        %v2450 = vsel %vm1075, %v2434, %v2442
        %v2451 = vsel %vm1076, %v2435, %v2443
        %v2452 = vsel %vm1075, %v2436, %v2444
        %v2453 = vsel %vm1076, %v2437, %v2445
        %v2454 = vsel %vm1075, %v2438, %v2446
        %v2455 = vsel %vm1076, %v2439, %v2447
        %v2456 = vsel %vm1075, %v2440, %v2448
        %v2457 = vsel %vm1076, %v2441, %v2449
        %v2458 = vpack.c.bf16 %v2407, %v2406
        %v2459 = vpack.c.bf16 %v2409, %v2408
        %2462 = vrot.lane.b32.xlu0 %v2458, 64
        %v2463 = vpop.permute.xlu0 %2462
        %2464 = vrot.lane.b32.xlu0 %v2459, 64
        %v2465 = vpop.permute.xlu0 %2464
        %v2467 = vsel %vm983, %v2463, 0
        %v2470 = vsel %vm983, %v2465, 0
        %2472 = vmatprep.subr.bf16.mxu0 %v1137
        %2473 = vmatpush1.bf16.msra.mxu0 %v1136
        %2474 = vmatprep.subr.bf16.mxu0 %v1139
        %2475 = vmatpush1.bf16.msra.mxu0 %v1138
        %2476 = vmatprep.subr.bf16.mxu0 %v1141
        %2477 = vmatpush1.bf16.msra.mxu0 %v1140
        %2478 = vmatprep.subr.bf16.mxu0 %v1143
        %2479 = vmatpush1.bf16.msra.mxu0 %v1142
        %2480 = vmatprep.subr.bf16.mxu0 0
        %2481 = vmatpush1.bf16.msra.mxu0 0
        %2482 = vmatprep.subr.bf16.mxu0 0
        %2483 = vmatpush1.bf16.msra.mxu0 0
        %2484 = vmatprep.subr.bf16.mxu0 0
        %2485 = vmatpush1.bf16.msra.mxu0 0
        %2486 = vmatprep.subr.bf16.mxu0 0
        %2487 = vmatpush1.bf16.msra.mxu0 0
        %2488 = vmatprep.subr.bf16.mxu0 0
        %2489 = vmatpush1.bf16.msra.mxu0 0
        %2490 = vmatprep.subr.bf16.mxu0 0
        %2491 = vmatpush1.bf16.msra.mxu0 0
        %2492 = vmatprep.subr.bf16.mxu0 0
        %2493 = vmatpush1.bf16.msra.mxu0 0
        %2494 = vmatprep.subr.bf16.mxu0 0
        %2495 = vmatpush1.bf16.msra.mxu0 0
        %2496 = vmatprep.subr.bf16.mxu0 0
        %2497 = vmatpush1.bf16.msra.mxu0 0
        %2498 = vmatprep.subr.bf16.mxu0 0
        %2499 = vmatpush1.bf16.msra.mxu0 0
        %2500 = vmatprep.subr.bf16.mxu0 0
        %2501 = vmatpush1.bf16.msra.mxu0 0
        %2502 = vmatprep.subr.bf16.mxu0 0
        %2503 = vmatpush1.bf16.msra.mxu0 0
        %2504 = vmatprep.mubr.bf16.mxu0 0
        %2505 = vmatmul.mubr.bf16.gmra.mrb[0].mxu0 %v2467
        %v2506 = vpop.f32.mrb[0].mxu0
        %v2507 = vadd.f32 %v1105, %v2506
        %v2508 = vpop.f32.mrb[0].mxu0
        %v2509 = vadd.f32 %v1109, %v2508
        %v2510 = vpop.f32.mrb[0].mxu0
        %v2511 = vadd.f32 %v1105, %v2510
        %v2512 = vpop.f32.mrb[0].mxu0
        %v2513 = vadd.f32 %v1109, %v2512
        %2514 = vmatprep.mubr.bf16.mxu0 0
        %2515 = vmatmul.mubr.bf16.gmra.mrb[0].mxu0 %v2470
        %v2516 = vpop.f32.mrb[0].mxu0
        %v2517 = vadd.f32 %v1105, %v2516
        %v2518 = vpop.f32.mrb[0].mxu0
        %v2519 = vadd.f32 %v1109, %v2518
        %v2520 = vpop.f32.mrb[0].mxu0
        %v2521 = vadd.f32 %v1105, %v2520
        %v2522 = vpop.f32.mrb[0].mxu0
        %v2523 = vadd.f32 %v1109, %v2522
        %2524 = vdwg.mxu0
        %v2525 = vadd.f32 %v2450, %v2507
        %v2526 = vadd.f32 %v2452, %v2511
        %v2527 = vadd.f32 %v2454, %v2517
        %v2528 = vadd.f32 %v2456, %v2521
        %v2529 = vxor.u32 %v2525, 2147483648
        %v2530 = vxor.u32 %v2526, 2147483648
        %v2531 = vxor.u32 %v2527, 2147483648
        %v2532 = vxor.u32 %v2528, 2147483648
        %v2533 = vmul.f32 %v2529, 1.442695
        %v2534 = vpow.pop %v2533
        %v2535 = vmul.f32 %v2530, 1.442695
        %v2536 = vpow.pop %v2535
        %v2537 = vmul.f32 %v2531, 1.442695
        %v2538 = vpow.pop %v2537
        %v2539 = vmul.f32 %v2532, 1.442695
        %v2540 = vpow.pop %v2539
        %v2541 = vadd.f32 %v2534, 1.0
        %v2542 = vadd.f32 %v2536, 1.0
        %v2543 = vadd.f32 %v2538, 1.0
        %v2544 = vadd.f32 %v2540, 1.0
        %v2545 = vrcp.pop %v2541
        %v2546 = vmul.f32 1.0, %v2545
        %v2547 = vrcp.pop %v2542
        %v2548 = vmul.f32 1.0, %v2547
        %v2549 = vrcp.pop %v2543
        %v2550 = vmul.f32 1.0, %v2549
        %v2551 = vrcp.pop %v2544
        %v2552 = vmul.f32 1.0, %v2551
        %v2553 = vmul.f32 %v2546, %v2509
        %v2554 = vmul.f32 %v2548, %v2513
        %v2555 = vmul.f32 %v2550, %v2519
        %v2556 = vmul.f32 %v2552, %v2523
        %v2557 = vadd.f32 %v2451, %v2553
        %v2558 = vadd.f32 %v2453, %v2554
        %v2559 = vadd.f32 %v2455, %v2555
        %v2560 = vadd.f32 %v2457, %v2556
        %v2561 = vtanh.pop %v2557
        %v2562 = vtanh.pop %v2558
        %v2563 = vtanh.pop %v2559
        %v2564 = vtanh.pop %v2560
        %v2565 = vsub.f32 1.0, %v2546
        %v2566 = vsub.f32 1.0, %v2548
        %v2567 = vsub.f32 1.0, %v2550
        %v2568 = vsub.f32 1.0, %v2552
        %2573 = vrot.lane.b32.xlu0 %v2561, 64
        %v2574 = vpop.permute.xlu0 %2573
        %2575 = vrot.lane.b32.xlu0 %v2562, 64
        %v2576 = vpop.permute.xlu0 %2575
        %2577 = vrot.lane.b32.xlu0 %v2563, 64
        %v2578 = vpop.permute.xlu0 %2577
        %2579 = vrot.lane.b32.xlu0 %v2564, 64
        %v2580 = vpop.permute.xlu0 %2579
        %v2585 = vmul.f32 %v2565, %v2574
        %v2586 = vmul.f32 %v2566, %v2576
        %v2587 = vmul.f32 %v2567, %v2578
        %v2588 = vmul.f32 %v2568, %v2580
        %v2589 = vmul.f32 %v2546, %v2406
        %v2590 = vmul.f32 %v2548, %v2407
        %v2591 = vmul.f32 %v2550, %v2408
        %v2592 = vmul.f32 %v2552, %v2409
        %v2593 = vadd.f32 %v2585, %v2589
        %v2594 = vadd.f32 %v2586, %v2590
        %v2595 = vadd.f32 %v2587, %v2591
        %v2596 = vadd.f32 %v2588, %v2592
        %2601 = vrot.lane.b32.xlu0 %v2593, 64
        %v2602 = vpop.permute.xlu0 %2601
        %2603 = vrot.lane.b32.xlu0 %v2594, 64
        %v2604 = vpop.permute.xlu0 %2603
        %2605 = vrot.lane.b32.xlu0 %v2595, 64
        %v2606 = vpop.permute.xlu0 %2605
        %2607 = vrot.lane.b32.xlu0 %v2596, 64
        %v2608 = vpop.permute.xlu0 %2607
        %2613 = vst.msk [vmem:[%s1300] sm:$0xff] %vm740, %v2602
        %2614 = vst.msk [vmem:[%s1300 + $0x8] sm:$0xff] %vm740, %v2604
        %2615 = vst.msk [vmem:[%s1300 + $0x10] sm:$0xff] %vm740, %v2606
        %2616 = vst.msk [vmem:[%s1300 + $0x18] sm:$0xff] %vm740, %v2608
        %2617 = vst.msk [vmem:[#allocation3] sm:$0xff] %vm1301, %v2602
        %2618 = vst.msk [vmem:[#allocation3 + $0x8] sm:$0xff] %vm1301, %v2604
        %2619 = vst.msk [vmem:[#allocation3 + $0x10] sm:$0xff] %vm1301, %v2606
        %2620 = vst.msk [vmem:[#allocation3 + $0x18] sm:$0xff] %vm1301, %v2608
        %v2621 = vld [vmem:[#allocation3] sm:$0xff]
        %v2622 = vld [vmem:[#allocation3 + $0x8] sm:$0xff]
        %v2623 = vld [vmem:[#allocation3 + $0x10] sm:$0xff]
        %v2624 = vld [vmem:[#allocation3 + $0x18] sm:$0xff]
        %v2625 = vld [vmem:[#allocation3 + $0x20] sm:$0xff]
        %v2626 = vld [vmem:[#allocation3 + $0x28] sm:$0xff]
        %v2627 = vld [vmem:[#allocation3 + $0x30] sm:$0xff]
        %v2628 = vld [vmem:[#allocation3 + $0x38] sm:$0xff]
        %v2629 = vld [vmem:[#allocation3 + $0x40] sm:$0xff]
        %v2630 = vld [vmem:[#allocation3 + $0x48] sm:$0xff]
        %v2631 = vld [vmem:[#allocation3 + $0x50] sm:$0xff]
        %v2632 = vld [vmem:[#allocation3 + $0x58] sm:$0xff]
        %v2633 = vld [vmem:[#allocation3 + $0x60] sm:$0xff]
        %v2634 = vld [vmem:[#allocation3 + $0x68] sm:$0xff]
        %v2635 = vld [vmem:[#allocation3 + $0x70] sm:$0xff]
        %v2636 = vld [vmem:[#allocation3 + $0x78] sm:$0xff]
        %v2637 = vld [vmem:[#allocation3 + $0x80] sm:$0xff]
        %v2638 = vld [vmem:[#allocation3 + $0x88] sm:$0xff]
        %v2639 = vld [vmem:[#allocation3 + $0x90] sm:$0xff]
        %v2640 = vld [vmem:[#allocation3 + $0x98] sm:$0xff]
        %v2641 = vld [vmem:[#allocation3 + $0xa0] sm:$0xff]
        %v2642 = vld [vmem:[#allocation3 + $0xa8] sm:$0xff]
        %v2643 = vld [vmem:[#allocation3 + $0xb0] sm:$0xff]
        %v2644 = vld [vmem:[#allocation3 + $0xb8] sm:$0xff]
        %v2645 = vld [vmem:[#allocation3 + $0xc0] sm:$0xff]
        %v2646 = vld [vmem:[#allocation3 + $0xc8] sm:$0xff]
        %v2647 = vld [vmem:[#allocation3 + $0xd0] sm:$0xff]
        %v2648 = vld [vmem:[#allocation3 + $0xd8] sm:$0xff]
        %v2649 = vld [vmem:[#allocation3 + $0xe0] sm:$0xff]
        %v2650 = vld [vmem:[#allocation3 + $0xe8] sm:$0xff]
        %v2651 = vld [vmem:[#allocation3 + $0xf0] sm:$0xff]
        %v2652 = vld [vmem:[#allocation3 + $0xf8] sm:$0xff]
        %v2653 = vsel %vm983, %v2621, 0.0
        %2654 = vadd.xlane.f32.xlu0 %v2653
        %v2655 = vpop.xlane.xlu0 %2654
        %v2656 = vsel %vm983, %v2622, 0.0
        %2657 = vadd.xlane.f32.xlu0 %v2656
        %v2658 = vpop.xlane.xlu0 %2657
        %v2659 = vsel %vm983, %v2623, 0.0
        %2660 = vadd.xlane.f32.xlu0 %v2659
        %v2661 = vpop.xlane.xlu0 %2660
        %v2662 = vsel %vm983, %v2624, 0.0
        %2663 = vadd.xlane.f32.xlu0 %v2662
        %v2664 = vpop.xlane.xlu0 %2663
        %v2665 = vsel %vm983, %v2625, 0.0
        %2666 = vadd.xlane.f32.xlu0 %v2665
        %v2667 = vpop.xlane.xlu0 %2666
        %v2668 = vsel %vm983, %v2626, 0.0
        %2669 = vadd.xlane.f32.xlu0 %v2668
        %v2670 = vpop.xlane.xlu0 %2669
        %v2671 = vsel %vm983, %v2627, 0.0
        %2672 = vadd.xlane.f32.xlu0 %v2671
        %v2673 = vpop.xlane.xlu0 %2672
        %v2674 = vsel %vm983, %v2628, 0.0
        %2675 = vadd.xlane.f32.xlu0 %v2674
        %v2676 = vpop.xlane.xlu0 %2675
        %v2677 = vsel %vm983, %v2629, 0.0
        %2678 = vadd.xlane.f32.xlu0 %v2677
        %v2679 = vpop.xlane.xlu0 %2678
        %v2680 = vsel %vm983, %v2630, 0.0
        %2681 = vadd.xlane.f32.xlu0 %v2680
        %v2682 = vpop.xlane.xlu0 %2681
        %v2683 = vsel %vm983, %v2631, 0.0
        %2684 = vadd.xlane.f32.xlu0 %v2683
        %v2685 = vpop.xlane.xlu0 %2684
        %v2686 = vsel %vm983, %v2632, 0.0
        %2687 = vadd.xlane.f32.xlu0 %v2686
        %v2688 = vpop.xlane.xlu0 %2687
        %v2689 = vsel %vm983, %v2633, 0.0
        %2690 = vadd.xlane.f32.xlu0 %v2689
        %v2691 = vpop.xlane.xlu0 %2690
        %v2692 = vsel %vm983, %v2634, 0.0
        %2693 = vadd.xlane.f32.xlu0 %v2692
        %v2694 = vpop.xlane.xlu0 %2693
        %v2695 = vsel %vm983, %v2635, 0.0
        %2696 = vadd.xlane.f32.xlu0 %v2695
        %v2697 = vpop.xlane.xlu0 %2696
        %v2698 = vsel %vm983, %v2636, 0.0
        %2699 = vadd.xlane.f32.xlu0 %v2698
        %v2700 = vpop.xlane.xlu0 %2699
        %v2701 = vsel %vm983, %v2637, 0.0
        %2702 = vadd.xlane.f32.xlu0 %v2701
        %v2703 = vpop.xlane.xlu0 %2702
        %v2704 = vsel %vm983, %v2638, 0.0
        %2705 = vadd.xlane.f32.xlu0 %v2704
        %v2706 = vpop.xlane.xlu0 %2705
        %v2707 = vsel %vm983, %v2639, 0.0
        %2708 = vadd.xlane.f32.xlu0 %v2707
        %v2709 = vpop.xlane.xlu0 %2708
        %v2710 = vsel %vm983, %v2640, 0.0
        %2711 = vadd.xlane.f32.xlu0 %v2710
        %v2712 = vpop.xlane.xlu0 %2711
        %v2713 = vsel %vm983, %v2641, 0.0
        %2714 = vadd.xlane.f32.xlu0 %v2713
        %v2715 = vpop.xlane.xlu0 %2714
        %v2716 = vsel %vm983, %v2642, 0.0
        %2717 = vadd.xlane.f32.xlu0 %v2716
        %v2718 = vpop.xlane.xlu0 %2717
        %v2719 = vsel %vm983, %v2643, 0.0
        %2720 = vadd.xlane.f32.xlu0 %v2719
        %v2721 = vpop.xlane.xlu0 %2720
        %v2722 = vsel %vm983, %v2644, 0.0
        %2723 = vadd.xlane.f32.xlu0 %v2722
        %v2724 = vpop.xlane.xlu0 %2723
        %v2725 = vsel %vm983, %v2645, 0.0
        %2726 = vadd.xlane.f32.xlu0 %v2725
        %v2727 = vpop.xlane.xlu0 %2726
        %v2728 = vsel %vm983, %v2646, 0.0
        %2729 = vadd.xlane.f32.xlu0 %v2728
        %v2730 = vpop.xlane.xlu0 %2729
        %v2731 = vsel %vm983, %v2647, 0.0
        %2732 = vadd.xlane.f32.xlu0 %v2731
        %v2733 = vpop.xlane.xlu0 %2732
        %v2734 = vsel %vm983, %v2648, 0.0
        %2735 = vadd.xlane.f32.xlu0 %v2734
        %v2736 = vpop.xlane.xlu0 %2735
        %v2737 = vsel %vm983, %v2649, 0.0
        %2738 = vadd.xlane.f32.xlu0 %v2737
        %v2739 = vpop.xlane.xlu0 %2738
        %v2740 = vsel %vm983, %v2650, 0.0
        %2741 = vadd.xlane.f32.xlu0 %v2740
        %v2742 = vpop.xlane.xlu0 %2741
        %v2743 = vsel %vm983, %v2651, 0.0
        %2744 = vadd.xlane.f32.xlu0 %v2743
        %v2745 = vpop.xlane.xlu0 %2744
        %v2746 = vsel %vm983, %v2652, 0.0
        %2747 = vadd.xlane.f32.xlu0 %v2746
        %v2748 = vpop.xlane.xlu0 %2747
        %v2749 = vrcp.pop 64.0
        %v2750 = vmul.f32 %v2655, %v2749
        %v2751 = vmul.f32 %v2658, %v2749
        %v2752 = vmul.f32 %v2661, %v2749
        %v2753 = vmul.f32 %v2664, %v2749
        %v2754 = vmul.f32 %v2667, %v2749
        %v2755 = vmul.f32 %v2670, %v2749
        %v2756 = vmul.f32 %v2673, %v2749
        %v2757 = vmul.f32 %v2676, %v2749
        %v2758 = vmul.f32 %v2679, %v2749
        %v2759 = vmul.f32 %v2682, %v2749
        %v2760 = vmul.f32 %v2685, %v2749
        %v2761 = vmul.f32 %v2688, %v2749
        %v2762 = vmul.f32 %v2691, %v2749
        %v2763 = vmul.f32 %v2694, %v2749
        %v2764 = vmul.f32 %v2697, %v2749
        %v2765 = vmul.f32 %v2700, %v2749
        %v2766 = vmul.f32 %v2703, %v2749
        %v2767 = vmul.f32 %v2706, %v2749
        %v2768 = vmul.f32 %v2709, %v2749
        %v2769 = vmul.f32 %v2712, %v2749
        %v2770 = vmul.f32 %v2715, %v2749
        %v2771 = vmul.f32 %v2718, %v2749
        %v2772 = vmul.f32 %v2721, %v2749
        %v2773 = vmul.f32 %v2724, %v2749
        %v2774 = vmul.f32 %v2727, %v2749
        %v2775 = vmul.f32 %v2730, %v2749
        %v2776 = vmul.f32 %v2733, %v2749
        %v2777 = vmul.f32 %v2736, %v2749
        %v2778 = vmul.f32 %v2739, %v2749
        %v2779 = vmul.f32 %v2742, %v2749
        %v2780 = vmul.f32 %v2745, %v2749
        %v2781 = vmul.f32 %v2748, %v2749
        %v2782 = vsub.f32 %v2621, %v2750
        %v2783 = vsub.f32 %v2622, %v2751
        %v2784 = vsub.f32 %v2623, %v2752
        %v2785 = vsub.f32 %v2624, %v2753
        %v2786 = vsub.f32 %v2625, %v2754
        %v2787 = vsub.f32 %v2626, %v2755
        %v2788 = vsub.f32 %v2627, %v2756
        %v2789 = vsub.f32 %v2628, %v2757
        %v2790 = vsub.f32 %v2629, %v2758
        %v2791 = vsub.f32 %v2630, %v2759
        %v2792 = vsub.f32 %v2631, %v2760
        %v2793 = vsub.f32 %v2632, %v2761
        %v2794 = vsub.f32 %v2633, %v2762
        %v2795 = vsub.f32 %v2634, %v2763
        %v2796 = vsub.f32 %v2635, %v2764
        %v2797 = vsub.f32 %v2636, %v2765
        %v2798 = vsub.f32 %v2637, %v2766
        %v2799 = vsub.f32 %v2638, %v2767
        %v2800 = vsub.f32 %v2639, %v2768
        %v2801 = vsub.f32 %v2640, %v2769
        %v2802 = vsub.f32 %v2641, %v2770
        %v2803 = vsub.f32 %v2642, %v2771
        %v2804 = vsub.f32 %v2643, %v2772
        %v2805 = vsub.f32 %v2644, %v2773
        %v2806 = vsub.f32 %v2645, %v2774
        %v2807 = vsub.f32 %v2646, %v2775
        %v2808 = vsub.f32 %v2647, %v2776
        %v2809 = vsub.f32 %v2648, %v2777
        %v2810 = vsub.f32 %v2649, %v2778
        %v2811 = vsub.f32 %v2650, %v2779
        %v2812 = vsub.f32 %v2651, %v2780
        %v2813 = vsub.f32 %v2652, %v2781
        %v2814 = vmul.f32 %v2782, %v2782
        %v2815 = vmul.f32 %v2783, %v2783
        %v2816 = vmul.f32 %v2784, %v2784
        %v2817 = vmul.f32 %v2785, %v2785
        %v2818 = vmul.f32 %v2786, %v2786
        %v2819 = vmul.f32 %v2787, %v2787
        %v2820 = vmul.f32 %v2788, %v2788
        %v2821 = vmul.f32 %v2789, %v2789
        %v2822 = vmul.f32 %v2790, %v2790
        %v2823 = vmul.f32 %v2791, %v2791
        %v2824 = vmul.f32 %v2792, %v2792
        %v2825 = vmul.f32 %v2793, %v2793
        %v2826 = vmul.f32 %v2794, %v2794
        %v2827 = vmul.f32 %v2795, %v2795
        %v2828 = vmul.f32 %v2796, %v2796
        %v2829 = vmul.f32 %v2797, %v2797
        %v2830 = vmul.f32 %v2798, %v2798
        %v2831 = vmul.f32 %v2799, %v2799
        %v2832 = vmul.f32 %v2800, %v2800
        %v2833 = vmul.f32 %v2801, %v2801
        %v2834 = vmul.f32 %v2802, %v2802
        %v2835 = vmul.f32 %v2803, %v2803
        %v2836 = vmul.f32 %v2804, %v2804
        %v2837 = vmul.f32 %v2805, %v2805
        %v2838 = vmul.f32 %v2806, %v2806
        %v2839 = vmul.f32 %v2807, %v2807
        %v2840 = vmul.f32 %v2808, %v2808
        %v2841 = vmul.f32 %v2809, %v2809
        %v2842 = vmul.f32 %v2810, %v2810
        %v2843 = vmul.f32 %v2811, %v2811
        %v2844 = vmul.f32 %v2812, %v2812
        %v2845 = vmul.f32 %v2813, %v2813
        %v2846 = vsel %vm983, %v2814, 0.0
        %2847 = vadd.xlane.f32.xlu0 %v2846
        %v2848 = vpop.xlane.xlu0 %2847
        %v2849 = vsel %vm983, %v2815, 0.0
        %2850 = vadd.xlane.f32.xlu0 %v2849
        %v2851 = vpop.xlane.xlu0 %2850
        %v2852 = vsel %vm983, %v2816, 0.0
        %2853 = vadd.xlane.f32.xlu0 %v2852
        %v2854 = vpop.xlane.xlu0 %2853
        %v2855 = vsel %vm983, %v2817, 0.0
        %2856 = vadd.xlane.f32.xlu0 %v2855
        %v2857 = vpop.xlane.xlu0 %2856
        %v2858 = vsel %vm983, %v2818, 0.0
        %2859 = vadd.xlane.f32.xlu0 %v2858
        %v2860 = vpop.xlane.xlu0 %2859
        %v2861 = vsel %vm983, %v2819, 0.0
        %2862 = vadd.xlane.f32.xlu0 %v2861
        %v2863 = vpop.xlane.xlu0 %2862
        %v2864 = vsel %vm983, %v2820, 0.0
        %2865 = vadd.xlane.f32.xlu0 %v2864
        %v2866 = vpop.xlane.xlu0 %2865
        %v2867 = vsel %vm983, %v2821, 0.0
        %2868 = vadd.xlane.f32.xlu0 %v2867
        %v2869 = vpop.xlane.xlu0 %2868
        %v2870 = vsel %vm983, %v2822, 0.0
        %2871 = vadd.xlane.f32.xlu0 %v2870
        %v2872 = vpop.xlane.xlu0 %2871
        %v2873 = vsel %vm983, %v2823, 0.0
        %2874 = vadd.xlane.f32.xlu0 %v2873
        %v2875 = vpop.xlane.xlu0 %2874
        %v2876 = vsel %vm983, %v2824, 0.0
        %2877 = vadd.xlane.f32.xlu0 %v2876
        %v2878 = vpop.xlane.xlu0 %2877
        %v2879 = vsel %vm983, %v2825, 0.0
        %2880 = vadd.xlane.f32.xlu0 %v2879
        %v2881 = vpop.xlane.xlu0 %2880
        %v2882 = vsel %vm983, %v2826, 0.0
        %2883 = vadd.xlane.f32.xlu0 %v2882
        %v2884 = vpop.xlane.xlu0 %2883
        %v2885 = vsel %vm983, %v2827, 0.0
        %2886 = vadd.xlane.f32.xlu0 %v2885
        %v2887 = vpop.xlane.xlu0 %2886
        %v2888 = vsel %vm983, %v2828, 0.0
        %2889 = vadd.xlane.f32.xlu0 %v2888
        %v2890 = vpop.xlane.xlu0 %2889
        %v2891 = vsel %vm983, %v2829, 0.0
        %2892 = vadd.xlane.f32.xlu0 %v2891
        %v2893 = vpop.xlane.xlu0 %2892
        %v2894 = vsel %vm983, %v2830, 0.0
        %2895 = vadd.xlane.f32.xlu0 %v2894
        %v2896 = vpop.xlane.xlu0 %2895
        %v2897 = vsel %vm983, %v2831, 0.0
        %2898 = vadd.xlane.f32.xlu0 %v2897
        %v2899 = vpop.xlane.xlu0 %2898
        %v2900 = vsel %vm983, %v2832, 0.0
        %2901 = vadd.xlane.f32.xlu0 %v2900
        %v2902 = vpop.xlane.xlu0 %2901
        %v2903 = vsel %vm983, %v2833, 0.0
        %2904 = vadd.xlane.f32.xlu0 %v2903
        %v2905 = vpop.xlane.xlu0 %2904
        %v2906 = vsel %vm983, %v2834, 0.0
        %2907 = vadd.xlane.f32.xlu0 %v2906
        %v2908 = vpop.xlane.xlu0 %2907
        %v2909 = vsel %vm983, %v2835, 0.0
        %2910 = vadd.xlane.f32.xlu0 %v2909
        %v2911 = vpop.xlane.xlu0 %2910
        %v2912 = vsel %vm983, %v2836, 0.0
        %2913 = vadd.xlane.f32.xlu0 %v2912
        %v2914 = vpop.xlane.xlu0 %2913
        %v2915 = vsel %vm983, %v2837, 0.0
        %2916 = vadd.xlane.f32.xlu0 %v2915
        %v2917 = vpop.xlane.xlu0 %2916
        %v2918 = vsel %vm983, %v2838, 0.0
        %2919 = vadd.xlane.f32.xlu0 %v2918
        %v2920 = vpop.xlane.xlu0 %2919
        %v2921 = vsel %vm983, %v2839, 0.0
        %2922 = vadd.xlane.f32.xlu0 %v2921
        %v2923 = vpop.xlane.xlu0 %2922
        %v2924 = vsel %vm983, %v2840, 0.0
        %2925 = vadd.xlane.f32.xlu0 %v2924
        %v2926 = vpop.xlane.xlu0 %2925
        %v2927 = vsel %vm983, %v2841, 0.0
        %2928 = vadd.xlane.f32.xlu0 %v2927
        %v2929 = vpop.xlane.xlu0 %2928
        %v2930 = vsel %vm983, %v2842, 0.0
        %2931 = vadd.xlane.f32.xlu0 %v2930
        %v2932 = vpop.xlane.xlu0 %2931
        %v2933 = vsel %vm983, %v2843, 0.0
        %2934 = vadd.xlane.f32.xlu0 %v2933
        %v2935 = vpop.xlane.xlu0 %2934
        %v2936 = vsel %vm983, %v2844, 0.0
        %2937 = vadd.xlane.f32.xlu0 %v2936
        %v2938 = vpop.xlane.xlu0 %2937
        %v2939 = vsel %vm983, %v2845, 0.0
        %2940 = vadd.xlane.f32.xlu0 %v2939
        %v2941 = vpop.xlane.xlu0 %2940
        %v2942 = vmul.f32 %v2848, %v2749
        %v2943 = vmul.f32 %v2851, %v2749
        %v2944 = vmul.f32 %v2854, %v2749
        %v2945 = vmul.f32 %v2857, %v2749
        %v2946 = vmul.f32 %v2860, %v2749
        %v2947 = vmul.f32 %v2863, %v2749
        %v2948 = vmul.f32 %v2866, %v2749
        %v2949 = vmul.f32 %v2869, %v2749
        %v2950 = vmul.f32 %v2872, %v2749
        %v2951 = vmul.f32 %v2875, %v2749
        %v2952 = vmul.f32 %v2878, %v2749
        %v2953 = vmul.f32 %v2881, %v2749
        %v2954 = vmul.f32 %v2884, %v2749
        %v2955 = vmul.f32 %v2887, %v2749
        %v2956 = vmul.f32 %v2890, %v2749
        %v2957 = vmul.f32 %v2893, %v2749
        %v2958 = vmul.f32 %v2896, %v2749
        %v2959 = vmul.f32 %v2899, %v2749
        %v2960 = vmul.f32 %v2902, %v2749
        %v2961 = vmul.f32 %v2905, %v2749
        %v2962 = vmul.f32 %v2908, %v2749
        %v2963 = vmul.f32 %v2911, %v2749
        %v2964 = vmul.f32 %v2914, %v2749
        %v2965 = vmul.f32 %v2917, %v2749
        %v2966 = vmul.f32 %v2920, %v2749
        %v2967 = vmul.f32 %v2923, %v2749
        %v2968 = vmul.f32 %v2926, %v2749
        %v2969 = vmul.f32 %v2929, %v2749
        %v2970 = vmul.f32 %v2932, %v2749
        %v2971 = vmul.f32 %v2935, %v2749
        %v2972 = vmul.f32 %v2938, %v2749
        %v2973 = vmul.f32 %v2941, %v2749
        %v2974 = vadd.f32 %v2942, 1e-05
        %v2975 = vadd.f32 %v2943, 1e-05
        %v2976 = vadd.f32 %v2944, 1e-05
        %v2977 = vadd.f32 %v2945, 1e-05
        %v2978 = vadd.f32 %v2946, 1e-05
        %v2979 = vadd.f32 %v2947, 1e-05
        %v2980 = vadd.f32 %v2948, 1e-05
        %v2981 = vadd.f32 %v2949, 1e-05
        %v2982 = vadd.f32 %v2950, 1e-05
        %v2983 = vadd.f32 %v2951, 1e-05
        %v2984 = vadd.f32 %v2952, 1e-05
        %v2985 = vadd.f32 %v2953, 1e-05
        %v2986 = vadd.f32 %v2954, 1e-05
        %v2987 = vadd.f32 %v2955, 1e-05
        %v2988 = vadd.f32 %v2956, 1e-05
        %v2989 = vadd.f32 %v2957, 1e-05
        %v2990 = vadd.f32 %v2958, 1e-05
        %v2991 = vadd.f32 %v2959, 1e-05
        %v2992 = vadd.f32 %v2960, 1e-05
        %v2993 = vadd.f32 %v2961, 1e-05
        %v2994 = vadd.f32 %v2962, 1e-05
        %v2995 = vadd.f32 %v2963, 1e-05
        %v2996 = vadd.f32 %v2964, 1e-05
        %v2997 = vadd.f32 %v2965, 1e-05
        %v2998 = vadd.f32 %v2966, 1e-05
        %v2999 = vadd.f32 %v2967, 1e-05
        %v3000 = vadd.f32 %v2968, 1e-05
        %v3001 = vadd.f32 %v2969, 1e-05
        %v3002 = vadd.f32 %v2970, 1e-05
        %v3003 = vadd.f32 %v2971, 1e-05
        %v3004 = vadd.f32 %v2972, 1e-05
        %v3005 = vadd.f32 %v2973, 1e-05
        %v3006 = vrsqrt.pop %v2974
        %v3007 = vrsqrt.pop %v2975
        %v3008 = vrsqrt.pop %v2976
        %v3009 = vrsqrt.pop %v2977
        %v3010 = vrsqrt.pop %v2978
        %v3011 = vrsqrt.pop %v2979
        %v3012 = vrsqrt.pop %v2980
        %v3013 = vrsqrt.pop %v2981
        %v3014 = vrsqrt.pop %v2982
        %v3015 = vrsqrt.pop %v2983
        %v3016 = vrsqrt.pop %v2984
        %v3017 = vrsqrt.pop %v2985
        %v3018 = vrsqrt.pop %v2986
        %v3019 = vrsqrt.pop %v2987
        %v3020 = vrsqrt.pop %v2988
        %v3021 = vrsqrt.pop %v2989
        %v3022 = vrsqrt.pop %v2990
        %v3023 = vrsqrt.pop %v2991
        %v3024 = vrsqrt.pop %v2992
        %v3025 = vrsqrt.pop %v2993
        %v3026 = vrsqrt.pop %v2994
        %v3027 = vrsqrt.pop %v2995
        %v3028 = vrsqrt.pop %v2996
        %v3029 = vrsqrt.pop %v2997
        %v3030 = vrsqrt.pop %v2998
        %v3031 = vrsqrt.pop %v2999
        %v3032 = vrsqrt.pop %v3000
        %v3033 = vrsqrt.pop %v3001
        %v3034 = vrsqrt.pop %v3002
        %v3035 = vrsqrt.pop %v3003
        %v3036 = vrsqrt.pop %v3004
        %v3037 = vrsqrt.pop %v3005
        %v3038 = vmul.f32 %v2782, %v3006
        %v3039 = vmul.f32 %v2783, %v3007
        %v3040 = vmul.f32 %v2784, %v3008
        %v3041 = vmul.f32 %v2785, %v3009
        %v3042 = vmul.f32 %v2786, %v3010
        %v3043 = vmul.f32 %v2787, %v3011
        %v3044 = vmul.f32 %v2788, %v3012
        %v3045 = vmul.f32 %v2789, %v3013
        %v3046 = vmul.f32 %v2790, %v3014
        %v3047 = vmul.f32 %v2791, %v3015
        %v3048 = vmul.f32 %v2792, %v3016
        %v3049 = vmul.f32 %v2793, %v3017
        %v3050 = vmul.f32 %v2794, %v3018
        %v3051 = vmul.f32 %v2795, %v3019
        %v3052 = vmul.f32 %v2796, %v3020
        %v3053 = vmul.f32 %v2797, %v3021
        %v3054 = vmul.f32 %v2798, %v3022
        %v3055 = vmul.f32 %v2799, %v3023
        %v3056 = vmul.f32 %v2800, %v3024
        %v3057 = vmul.f32 %v2801, %v3025
        %v3058 = vmul.f32 %v2802, %v3026
        %v3059 = vmul.f32 %v2803, %v3027
        %v3060 = vmul.f32 %v2804, %v3028
        %v3061 = vmul.f32 %v2805, %v3029
        %v3062 = vmul.f32 %v2806, %v3030
        %v3063 = vmul.f32 %v2807, %v3031
        %v3064 = vmul.f32 %v2808, %v3032
        %v3065 = vmul.f32 %v2809, %v3033
        %v3066 = vmul.f32 %v2810, %v3034
        %v3067 = vmul.f32 %v2811, %v3035
        %v3068 = vmul.f32 %v2812, %v3036
        %v3069 = vmul.f32 %v2813, %v3037
        %v3070 = vld [vmem:[%s5] sm:$0x1]
        %v3072 = vlaneseq
        %v3073 = vshrl.u32 %v3072, 7
        %v3074 = vsub.s32 0, %v3073
        %v3075 = vrot.slane %v3070, %v3074
        %v3077 = vmul.f32 %v3038, %v3075
        %v3078 = vmul.f32 %v3039, %v3075
        %v3079 = vmul.f32 %v3040, %v3075
        %v3080 = vmul.f32 %v3041, %v3075
        %v3081 = vmul.f32 %v3042, %v3075
        %v3082 = vmul.f32 %v3043, %v3075
        %v3083 = vmul.f32 %v3044, %v3075
        %v3084 = vmul.f32 %v3045, %v3075
        %v3085 = vmul.f32 %v3046, %v3075
        %v3086 = vmul.f32 %v3047, %v3075
        %v3087 = vmul.f32 %v3048, %v3075
        %v3088 = vmul.f32 %v3049, %v3075
        %v3089 = vmul.f32 %v3050, %v3075
        %v3090 = vmul.f32 %v3051, %v3075
        %v3091 = vmul.f32 %v3052, %v3075
        %v3092 = vmul.f32 %v3053, %v3075
        %v3093 = vmul.f32 %v3054, %v3075
        %v3094 = vmul.f32 %v3055, %v3075
        %v3095 = vmul.f32 %v3056, %v3075
        %v3096 = vmul.f32 %v3057, %v3075
        %v3097 = vmul.f32 %v3058, %v3075
        %v3098 = vmul.f32 %v3059, %v3075
        %v3099 = vmul.f32 %v3060, %v3075
        %v3100 = vmul.f32 %v3061, %v3075
        %v3101 = vmul.f32 %v3062, %v3075
        %v3102 = vmul.f32 %v3063, %v3075
        %v3103 = vmul.f32 %v3064, %v3075
        %v3104 = vmul.f32 %v3065, %v3075
        %v3105 = vmul.f32 %v3066, %v3075
        %v3106 = vmul.f32 %v3067, %v3075
        %v3107 = vmul.f32 %v3068, %v3075
        %v3108 = vmul.f32 %v3069, %v3075
        %v3109 = vld [vmem:[%s6] sm:$0x1]
        %v3111 = vlaneseq
        %v3112 = vshrl.u32 %v3111, 7
        %v3113 = vsub.s32 0, %v3112
        %v3114 = vrot.slane %v3109, %v3113
        %v3116 = vadd.f32 %v3077, %v3114
        %v3117 = vadd.f32 %v3078, %v3114
        %v3118 = vadd.f32 %v3079, %v3114
        %v3119 = vadd.f32 %v3080, %v3114
        %v3120 = vadd.f32 %v3081, %v3114
        %v3121 = vadd.f32 %v3082, %v3114
        %v3122 = vadd.f32 %v3083, %v3114
        %v3123 = vadd.f32 %v3084, %v3114
        %v3124 = vadd.f32 %v3085, %v3114
        %v3125 = vadd.f32 %v3086, %v3114
        %v3126 = vadd.f32 %v3087, %v3114
        %v3127 = vadd.f32 %v3088, %v3114
        %v3128 = vadd.f32 %v3089, %v3114
        %v3129 = vadd.f32 %v3090, %v3114
        %v3130 = vadd.f32 %v3091, %v3114
        %v3131 = vadd.f32 %v3092, %v3114
        %v3132 = vadd.f32 %v3093, %v3114
        %v3133 = vadd.f32 %v3094, %v3114
        %v3134 = vadd.f32 %v3095, %v3114
        %v3135 = vadd.f32 %v3096, %v3114
        %v3136 = vadd.f32 %v3097, %v3114
        %v3137 = vadd.f32 %v3098, %v3114
        %v3138 = vadd.f32 %v3099, %v3114
        %v3139 = vadd.f32 %v3100, %v3114
        %v3140 = vadd.f32 %v3101, %v3114
        %v3141 = vadd.f32 %v3102, %v3114
        %v3142 = vadd.f32 %v3103, %v3114
        %v3143 = vadd.f32 %v3104, %v3114
        %v3144 = vadd.f32 %v3105, %v3114
        %v3145 = vadd.f32 %v3106, %v3114
        %v3146 = vadd.f32 %v3107, %v3114
        %v3147 = vadd.f32 %v3108, %v3114
        %v3148 = vpack.c.bf16 %v3117, %v3116
        %v3149 = vpack.c.bf16 %v3119, %v3118
        %v3150 = vpack.c.bf16 %v3121, %v3120
        %v3151 = vpack.c.bf16 %v3123, %v3122
        %v3152 = vpack.c.bf16 %v3125, %v3124
        %v3153 = vpack.c.bf16 %v3127, %v3126
        %v3154 = vpack.c.bf16 %v3129, %v3128
        %v3155 = vpack.c.bf16 %v3131, %v3130
        %v3156 = vpack.c.bf16 %v3133, %v3132
        %v3157 = vpack.c.bf16 %v3135, %v3134
        %v3158 = vpack.c.bf16 %v3137, %v3136
        %v3159 = vpack.c.bf16 %v3139, %v3138
        %v3160 = vpack.c.bf16 %v3141, %v3140
        %v3161 = vpack.c.bf16 %v3143, %v3142
        %v3162 = vpack.c.bf16 %v3145, %v3144
        %v3163 = vpack.c.bf16 %v3147, %v3146
        %v3164 = vld [vmem:[%s7] sm:$0xf]
        %v3165 = vld [vmem:[%s7 + $0x4] sm:$0xf]
        %v3166 = vld [vmem:[%s7 + $0x8] sm:$0xf]
        %v3167 = vld [vmem:[%s7 + $0xc] sm:$0xf]
        %v3168 = vld [vmem:[%s7 + $0x10] sm:$0xf]
        %v3169 = vld [vmem:[%s7 + $0x14] sm:$0xf]
        %v3170 = vld [vmem:[%s7 + $0x18] sm:$0xf]
        %v3171 = vld [vmem:[%s7 + $0x1c] sm:$0xf]
        %v3172 = vld [vmem:[%s8] sm:$0x1]
        %v3174 = vlaneseq
        %v3175 = vshrl.u32 %v3174, 7
        %v3176 = vsub.s32 0, %v3175
        %v3177 = vrot.slane %v3172, %v3176
        %v3187 = vunpack.c.l.b16 %v3164
        %v3188 = vunpack.c.l.b16 %v3165
        %v3189 = vunpack.c.l.b16 %v3166
        %v3190 = vunpack.c.l.b16 %v3167
        %v3191 = vunpack.c.l.b16 %v3168
        %v3192 = vunpack.c.l.b16 %v3169
        %v3193 = vunpack.c.l.b16 %v3170
        %v3194 = vunpack.c.l.b16 %v3171
        %v3195 = vpack.c.b16 %v3188, %v3187
        %v3196 = vpack.c.b16 %v3190, %v3189
        %v3197 = vpack.c.b16 %v3192, %v3191
        %v3198 = vpack.c.b16 %v3194, %v3193
        %v3204 = vsel %vm983, %v3148, 0
        %v3207 = vsel %vm983, %v3149, 0
        %v3210 = vsel %vm983, %v3150, 0
        %v3213 = vsel %vm983, %v3151, 0
        %v3216 = vsel %vm983, %v3152, 0
        %v3219 = vsel %vm983, %v3153, 0
        %v3222 = vsel %vm983, %v3154, 0
        %v3225 = vsel %vm983, %v3155, 0
        %v3228 = vsel %vm983, %v3156, 0
        %v3231 = vsel %vm983, %v3157, 0
        %v3234 = vsel %vm983, %v3158, 0
        %v3237 = vsel %vm983, %v3159, 0
        %v3240 = vsel %vm983, %v3160, 0
        %v3243 = vsel %vm983, %v3161, 0
        %v3246 = vsel %vm983, %v3162, 0
        %v3249 = vsel %vm983, %v3163, 0
        %3251 = vmatprep.subr.bf16.mxu0 0
        %3252 = vmatpush1.bf16.msra.mxu0 %v3195
        %3253 = vmatprep.subr.bf16.mxu0 0
        %3254 = vmatpush1.bf16.msra.mxu0 %v3196
        %3255 = vmatprep.subr.bf16.mxu0 0
        %3256 = vmatpush1.bf16.msra.mxu0 %v3197
        %3257 = vmatprep.subr.bf16.mxu0 0
        %3258 = vmatpush1.bf16.msra.mxu0 %v3198
        %3259 = vmatprep.subr.bf16.mxu0 0
        %3260 = vmatpush1.bf16.msra.mxu0 0
        %3261 = vmatprep.subr.bf16.mxu0 0
        %3262 = vmatpush1.bf16.msra.mxu0 0
        %3263 = vmatprep.subr.bf16.mxu0 0
        %3264 = vmatpush1.bf16.msra.mxu0 0
        %3265 = vmatprep.subr.bf16.mxu0 0
        %3266 = vmatpush1.bf16.msra.mxu0 0
        %3267 = vmatprep.subr.bf16.mxu0 0
        %3268 = vmatpush1.bf16.msra.mxu0 0
        %3269 = vmatprep.subr.bf16.mxu0 0
        %3270 = vmatpush1.bf16.msra.mxu0 0
        %3271 = vmatprep.subr.bf16.mxu0 0
        %3272 = vmatpush1.bf16.msra.mxu0 0
        %3273 = vmatprep.subr.bf16.mxu0 0
        %3274 = vmatpush1.bf16.msra.mxu0 0
        %3275 = vmatprep.subr.bf16.mxu0 0
        %3276 = vmatpush1.bf16.msra.mxu0 0
        %3277 = vmatprep.subr.bf16.mxu0 0
        %3278 = vmatpush1.bf16.msra.mxu0 0
        %3279 = vmatprep.subr.bf16.mxu0 0
        %3280 = vmatpush1.bf16.msra.mxu0 0
        %3281 = vmatprep.subr.bf16.mxu0 0
        %3282 = vmatpush1.bf16.msra.mxu0 0
        %3283 = vmatprep.mubr.bf16.mxu0 0
        %3284 = vmatmul.mubr.bf16.gmra.mrb[0].mxu0 %v3204
        %v3285 = vpop.f32.mrb[0].mxu0
        %v3286 = vadd.f32 %v3177, %v3285
        %v3287 = vpop.f32.mrb[0].mxu0
        %v3288 = vpop.f32.mrb[0].mxu0
        %v3289 = vadd.f32 %v3177, %v3288
        %v3290 = vpop.f32.mrb[0].mxu0
        %3291 = vmatprep.mubr.bf16.mxu0 0
        %3292 = vmatmul.mubr.bf16.gmra.mrb[0].mxu0 %v3207
        %v3293 = vpop.f32.mrb[0].mxu0
        %v3294 = vadd.f32 %v3177, %v3293
        %v3295 = vpop.f32.mrb[0].mxu0
        %v3296 = vpop.f32.mrb[0].mxu0
        %v3297 = vadd.f32 %v3177, %v3296
        %v3298 = vpop.f32.mrb[0].mxu0
        %3299 = vmatprep.mubr.bf16.mxu0 0
        %3300 = vmatmul.mubr.bf16.gmra.mrb[0].mxu0 %v3210
        %v3301 = vpop.f32.mrb[0].mxu0
        %v3302 = vadd.f32 %v3177, %v3301
        %v3303 = vpop.f32.mrb[0].mxu0
        %v3304 = vpop.f32.mrb[0].mxu0
        %v3305 = vadd.f32 %v3177, %v3304
        %v3306 = vpop.f32.mrb[0].mxu0
        %3307 = vmatprep.mubr.bf16.mxu0 0
        %3308 = vmatmul.mubr.bf16.gmra.mrb[0].mxu0 %v3213
        %v3309 = vpop.f32.mrb[0].mxu0
        %v3310 = vadd.f32 %v3177, %v3309
        %v3311 = vpop.f32.mrb[0].mxu0
        %v3312 = vpop.f32.mrb[0].mxu0
        %v3313 = vadd.f32 %v3177, %v3312
        %v3314 = vpop.f32.mrb[0].mxu0
        %3315 = vmatprep.mubr.bf16.mxu0 0
        %3316 = vmatmul.mubr.bf16.gmra.mrb[0].mxu0 %v3216
        %v3317 = vpop.f32.mrb[0].mxu0
        %v3318 = vadd.f32 %v3177, %v3317
        %v3319 = vpop.f32.mrb[0].mxu0
        %v3320 = vpop.f32.mrb[0].mxu0
        %v3321 = vadd.f32 %v3177, %v3320
        %v3322 = vpop.f32.mrb[0].mxu0
        %3323 = vmatprep.mubr.bf16.mxu0 0
        %3324 = vmatmul.mubr.bf16.gmra.mrb[0].mxu0 %v3219
        %v3325 = vpop.f32.mrb[0].mxu0
        %v3326 = vadd.f32 %v3177, %v3325
        %v3327 = vpop.f32.mrb[0].mxu0
        %v3328 = vpop.f32.mrb[0].mxu0
        %v3329 = vadd.f32 %v3177, %v3328
        %v3330 = vpop.f32.mrb[0].mxu0
        %3331 = vmatprep.mubr.bf16.mxu0 0
        %3332 = vmatmul.mubr.bf16.gmra.mrb[0].mxu0 %v3222
        %v3333 = vpop.f32.mrb[0].mxu0
        %v3334 = vadd.f32 %v3177, %v3333
        %v3335 = vpop.f32.mrb[0].mxu0
        %v3336 = vpop.f32.mrb[0].mxu0
        %v3337 = vadd.f32 %v3177, %v3336
        %v3338 = vpop.f32.mrb[0].mxu0
        %3339 = vmatprep.mubr.bf16.mxu0 0
        %3340 = vmatmul.mubr.bf16.gmra.mrb[0].mxu0 %v3225
        %v3341 = vpop.f32.mrb[0].mxu0
        %v3342 = vadd.f32 %v3177, %v3341
        %v3343 = vpop.f32.mrb[0].mxu0
        %v3344 = vpop.f32.mrb[0].mxu0
        %v3345 = vadd.f32 %v3177, %v3344
        %v3346 = vpop.f32.mrb[0].mxu0
        %3347 = vmatprep.mubr.bf16.mxu0 0
        %3348 = vmatmul.mubr.bf16.gmra.mrb[0].mxu0 %v3228
        %v3349 = vpop.f32.mrb[0].mxu0
        %v3350 = vadd.f32 %v3177, %v3349
        %v3351 = vpop.f32.mrb[0].mxu0
        %v3352 = vpop.f32.mrb[0].mxu0
        %v3353 = vadd.f32 %v3177, %v3352
        %v3354 = vpop.f32.mrb[0].mxu0
        %3355 = vmatprep.mubr.bf16.mxu0 0
        %3356 = vmatmul.mubr.bf16.gmra.mrb[0].mxu0 %v3231
        %v3357 = vpop.f32.mrb[0].mxu0
        %v3358 = vadd.f32 %v3177, %v3357
        %v3359 = vpop.f32.mrb[0].mxu0
        %v3360 = vpop.f32.mrb[0].mxu0
        %v3361 = vadd.f32 %v3177, %v3360
        %v3362 = vpop.f32.mrb[0].mxu0
        %3363 = vmatprep.mubr.bf16.mxu0 0
        %3364 = vmatmul.mubr.bf16.gmra.mrb[0].mxu0 %v3234
        %v3365 = vpop.f32.mrb[0].mxu0
        %v3366 = vadd.f32 %v3177, %v3365
        %v3367 = vpop.f32.mrb[0].mxu0
        %v3368 = vpop.f32.mrb[0].mxu0
        %v3369 = vadd.f32 %v3177, %v3368
        %v3370 = vpop.f32.mrb[0].mxu0
        %3371 = vmatprep.mubr.bf16.mxu0 0
        %3372 = vmatmul.mubr.bf16.gmra.mrb[0].mxu0 %v3237
        %v3373 = vpop.f32.mrb[0].mxu0
        %v3374 = vadd.f32 %v3177, %v3373
        %v3375 = vpop.f32.mrb[0].mxu0
        %v3376 = vpop.f32.mrb[0].mxu0
        %v3377 = vadd.f32 %v3177, %v3376
        %v3378 = vpop.f32.mrb[0].mxu0
        %3379 = vmatprep.mubr.bf16.mxu0 0
        %3380 = vmatmul.mubr.bf16.gmra.mrb[0].mxu0 %v3240
        %v3381 = vpop.f32.mrb[0].mxu0
        %v3382 = vadd.f32 %v3177, %v3381
        %v3383 = vpop.f32.mrb[0].mxu0
        %v3384 = vpop.f32.mrb[0].mxu0
        %v3385 = vadd.f32 %v3177, %v3384
        %v3386 = vpop.f32.mrb[0].mxu0
        %3387 = vmatprep.mubr.bf16.mxu0 0
        %3388 = vmatmul.mubr.bf16.gmra.mrb[0].mxu0 %v3243
        %v3389 = vpop.f32.mrb[0].mxu0
        %v3390 = vadd.f32 %v3177, %v3389
        %v3391 = vpop.f32.mrb[0].mxu0
        %v3392 = vpop.f32.mrb[0].mxu0
        %v3393 = vadd.f32 %v3177, %v3392
        %v3394 = vpop.f32.mrb[0].mxu0
        %3395 = vmatprep.mubr.bf16.mxu0 0
        %3396 = vmatmul.mubr.bf16.gmra.mrb[0].mxu0 %v3246
        %v3397 = vpop.f32.mrb[0].mxu0
        %v3398 = vadd.f32 %v3177, %v3397
        %v3399 = vpop.f32.mrb[0].mxu0
        %v3400 = vpop.f32.mrb[0].mxu0
        %v3401 = vadd.f32 %v3177, %v3400
        %v3402 = vpop.f32.mrb[0].mxu0
        %3403 = vmatprep.mubr.bf16.mxu0 0
        %3404 = vmatmul.mubr.bf16.gmra.mrb[0].mxu0 %v3249
        %v3405 = vpop.f32.mrb[0].mxu0
        %v3406 = vadd.f32 %v3177, %v3405
        %v3407 = vpop.f32.mrb[0].mxu0
        %v3408 = vpop.f32.mrb[0].mxu0
        %v3409 = vadd.f32 %v3177, %v3408
        %v3410 = vpop.f32.mrb[0].mxu0
        %3411 = vdwg.mxu0
        %v3412 = vtanh.pop %v3286
        %v3413 = vtanh.pop %v3289
        %v3414 = vtanh.pop %v3294
        %v3415 = vtanh.pop %v3297
        %v3416 = vtanh.pop %v3302
        %v3417 = vtanh.pop %v3305
        %v3418 = vtanh.pop %v3310
        %v3419 = vtanh.pop %v3313
        %v3420 = vtanh.pop %v3318
        %v3421 = vtanh.pop %v3321
        %v3422 = vtanh.pop %v3326
        %v3423 = vtanh.pop %v3329
        %v3424 = vtanh.pop %v3334
        %v3425 = vtanh.pop %v3337
        %v3426 = vtanh.pop %v3342
        %v3427 = vtanh.pop %v3345
        %v3428 = vtanh.pop %v3350
        %v3429 = vtanh.pop %v3353
        %v3430 = vtanh.pop %v3358
        %v3431 = vtanh.pop %v3361
        %v3432 = vtanh.pop %v3366
        %v3433 = vtanh.pop %v3369
        %v3434 = vtanh.pop %v3374
        %v3435 = vtanh.pop %v3377
        %v3436 = vtanh.pop %v3382
        %v3437 = vtanh.pop %v3385
        %v3438 = vtanh.pop %v3390
        %v3439 = vtanh.pop %v3393
        %v3440 = vtanh.pop %v3398
        %v3441 = vtanh.pop %v3401
        %v3442 = vtanh.pop %v3406
        %v3443 = vtanh.pop %v3409
        %v3444 = vld [vmem:[%s9] sm:$0x1]
        %v3446 = vlaneseq
        %v3447 = vshrl.u32 %v3446, 7
        %v3448 = vsub.s32 0, %v3447
        %v3449 = vrot.slane %v3444, %v3448
        %v3451 = vmul.f32 %v3412, %v3449
        %v3452 = vmul.f32 %v3413, %v3449
        %v3453 = vmul.f32 %v3414, %v3449
        %v3454 = vmul.f32 %v3415, %v3449
        %v3455 = vmul.f32 %v3416, %v3449
        %v3456 = vmul.f32 %v3417, %v3449
        %v3457 = vmul.f32 %v3418, %v3449
        %v3458 = vmul.f32 %v3419, %v3449
        %v3459 = vmul.f32 %v3420, %v3449
        %v3460 = vmul.f32 %v3421, %v3449
        %v3461 = vmul.f32 %v3422, %v3449
        %v3462 = vmul.f32 %v3423, %v3449
        %v3463 = vmul.f32 %v3424, %v3449
        %v3464 = vmul.f32 %v3425, %v3449
        %v3465 = vmul.f32 %v3426, %v3449
        %v3466 = vmul.f32 %v3427, %v3449
        %v3467 = vmul.f32 %v3428, %v3449
        %v3468 = vmul.f32 %v3429, %v3449
        %v3469 = vmul.f32 %v3430, %v3449
        %v3470 = vmul.f32 %v3431, %v3449
        %v3471 = vmul.f32 %v3432, %v3449
        %v3472 = vmul.f32 %v3433, %v3449
        %v3473 = vmul.f32 %v3434, %v3449
        %v3474 = vmul.f32 %v3435, %v3449
        %v3475 = vmul.f32 %v3436, %v3449
        %v3476 = vmul.f32 %v3437, %v3449
        %v3477 = vmul.f32 %v3438, %v3449
        %v3478 = vmul.f32 %v3439, %v3449
        %v3479 = vmul.f32 %v3440, %v3449
        %v3480 = vmul.f32 %v3441, %v3449
        %v3481 = vmul.f32 %v3442, %v3449
        %v3482 = vmul.f32 %v3443, %v3449
        %v3483 = vsel %vm740, %v3451, 0.0
        %3484 = vadd.xlane.f32.xlu0 %v3483
        %v3485 = vpop.xlane.xlu0 %3484
        %v3486 = vsel %vm740, %v3452, 0.0
        %3487 = vadd.xlane.f32.xlu0 %v3486
        %v3488 = vpop.xlane.xlu0 %3487
        %v3489 = vsel %vm740, %v3453, 0.0
        %3490 = vadd.xlane.f32.xlu0 %v3489
        %v3491 = vpop.xlane.xlu0 %3490
        %v3492 = vsel %vm740, %v3454, 0.0
        %3493 = vadd.xlane.f32.xlu0 %v3492
        %v3494 = vpop.xlane.xlu0 %3493
        %v3495 = vsel %vm740, %v3455, 0.0
        %3496 = vadd.xlane.f32.xlu0 %v3495
        %v3497 = vpop.xlane.xlu0 %3496
        %v3498 = vsel %vm740, %v3456, 0.0
        %3499 = vadd.xlane.f32.xlu0 %v3498
        %v3500 = vpop.xlane.xlu0 %3499
        %v3501 = vsel %vm740, %v3457, 0.0
        %3502 = vadd.xlane.f32.xlu0 %v3501
        %v3503 = vpop.xlane.xlu0 %3502
        %v3504 = vsel %vm740, %v3458, 0.0
        %3505 = vadd.xlane.f32.xlu0 %v3504
        %v3506 = vpop.xlane.xlu0 %3505
        %v3507 = vsel %vm740, %v3459, 0.0
        %3508 = vadd.xlane.f32.xlu0 %v3507
        %v3509 = vpop.xlane.xlu0 %3508
        %v3510 = vsel %vm740, %v3460, 0.0
        %3511 = vadd.xlane.f32.xlu0 %v3510
        %v3512 = vpop.xlane.xlu0 %3511
        %v3513 = vsel %vm740, %v3461, 0.0
        %3514 = vadd.xlane.f32.xlu0 %v3513
        %v3515 = vpop.xlane.xlu0 %3514
        %v3516 = vsel %vm740, %v3462, 0.0
        %3517 = vadd.xlane.f32.xlu0 %v3516
        %v3518 = vpop.xlane.xlu0 %3517
        %v3519 = vsel %vm740, %v3463, 0.0
        %3520 = vadd.xlane.f32.xlu0 %v3519
        %v3521 = vpop.xlane.xlu0 %3520
        %v3522 = vsel %vm740, %v3464, 0.0
        %3523 = vadd.xlane.f32.xlu0 %v3522
        %v3524 = vpop.xlane.xlu0 %3523
        %v3525 = vsel %vm740, %v3465, 0.0
        %3526 = vadd.xlane.f32.xlu0 %v3525
        %v3527 = vpop.xlane.xlu0 %3526
        %v3528 = vsel %vm740, %v3466, 0.0
        %3529 = vadd.xlane.f32.xlu0 %v3528
        %v3530 = vpop.xlane.xlu0 %3529
        %v3531 = vsel %vm740, %v3467, 0.0
        %3532 = vadd.xlane.f32.xlu0 %v3531
        %v3533 = vpop.xlane.xlu0 %3532
        %v3534 = vsel %vm740, %v3468, 0.0
        %3535 = vadd.xlane.f32.xlu0 %v3534
        %v3536 = vpop.xlane.xlu0 %3535
        %v3537 = vsel %vm740, %v3469, 0.0
        %3538 = vadd.xlane.f32.xlu0 %v3537
        %v3539 = vpop.xlane.xlu0 %3538
        %v3540 = vsel %vm740, %v3470, 0.0
        %3541 = vadd.xlane.f32.xlu0 %v3540
        %v3542 = vpop.xlane.xlu0 %3541
        %v3543 = vsel %vm740, %v3471, 0.0
        %3544 = vadd.xlane.f32.xlu0 %v3543
        %v3545 = vpop.xlane.xlu0 %3544
        %v3546 = vsel %vm740, %v3472, 0.0
        %3547 = vadd.xlane.f32.xlu0 %v3546
        %v3548 = vpop.xlane.xlu0 %3547
        %v3549 = vsel %vm740, %v3473, 0.0
        %3550 = vadd.xlane.f32.xlu0 %v3549
        %v3551 = vpop.xlane.xlu0 %3550
        %v3552 = vsel %vm740, %v3474, 0.0
        %3553 = vadd.xlane.f32.xlu0 %v3552
        %v3554 = vpop.xlane.xlu0 %3553
        %v3555 = vsel %vm740, %v3475, 0.0
        %3556 = vadd.xlane.f32.xlu0 %v3555
        %v3557 = vpop.xlane.xlu0 %3556
        %v3558 = vsel %vm740, %v3476, 0.0
        %3559 = vadd.xlane.f32.xlu0 %v3558
        %v3560 = vpop.xlane.xlu0 %3559
        %v3561 = vsel %vm740, %v3477, 0.0
        %3562 = vadd.xlane.f32.xlu0 %v3561
        %v3563 = vpop.xlane.xlu0 %3562
        %v3564 = vsel %vm740, %v3478, 0.0
        %3565 = vadd.xlane.f32.xlu0 %v3564
        %v3566 = vpop.xlane.xlu0 %3565
        %v3567 = vsel %vm740, %v3479, 0.0
        %3568 = vadd.xlane.f32.xlu0 %v3567
        %v3569 = vpop.xlane.xlu0 %3568
        %v3570 = vsel %vm740, %v3480, 0.0
        %3571 = vadd.xlane.f32.xlu0 %v3570
        %v3572 = vpop.xlane.xlu0 %3571
        %v3573 = vsel %vm740, %v3481, 0.0
        %3574 = vadd.xlane.f32.xlu0 %v3573
        %v3575 = vpop.xlane.xlu0 %3574
        %v3576 = vsel %vm740, %v3482, 0.0
        %3577 = vadd.xlane.f32.xlu0 %v3576
        %v3578 = vpop.xlane.xlu0 %3577
        %v3579 = vld [vmem:[#allocation4] sm:$0x1]
        %v3581 = vlaneseq
        %v3582 = vshrl.u32 %v3581, 7
        %v3583 = vsub.s32 0, %v3582
        %v3584 = vrot.slane %v3579, %v3583
        %3585 = vset.pattern.permute.xlu0 0
        %3586 = vperm.xlu0 %3585, %v3584
        %v3587 = vpop.permute.xlu0 %3586
        %v3589 = vadd.f32 %v3485, %v3587
        %v3590 = vadd.f32 %v3488, %v3587
        %v3591 = vadd.f32 %v3491, %v3587
        %v3592 = vadd.f32 %v3494, %v3587
        %v3593 = vadd.f32 %v3497, %v3587
        %v3594 = vadd.f32 %v3500, %v3587
        %v3595 = vadd.f32 %v3503, %v3587
        %v3596 = vadd.f32 %v3506, %v3587
        %v3597 = vadd.f32 %v3509, %v3587
        %v3598 = vadd.f32 %v3512, %v3587
        %v3599 = vadd.f32 %v3515, %v3587
        %v3600 = vadd.f32 %v3518, %v3587
        %v3601 = vadd.f32 %v3521, %v3587
        %v3602 = vadd.f32 %v3524, %v3587
        %v3603 = vadd.f32 %v3527, %v3587
        %v3604 = vadd.f32 %v3530, %v3587
        %v3605 = vadd.f32 %v3533, %v3587
        %v3606 = vadd.f32 %v3536, %v3587
        %v3607 = vadd.f32 %v3539, %v3587
        %v3608 = vadd.f32 %v3542, %v3587
        %v3609 = vadd.f32 %v3545, %v3587
        %v3610 = vadd.f32 %v3548, %v3587
        %v3611 = vadd.f32 %v3551, %v3587
        %v3612 = vadd.f32 %v3554, %v3587
        %v3613 = vadd.f32 %v3557, %v3587
        %v3614 = vadd.f32 %v3560, %v3587
        %v3615 = vadd.f32 %v3563, %v3587
        %v3616 = vadd.f32 %v3566, %v3587
        %v3617 = vadd.f32 %v3569, %v3587
        %v3618 = vadd.f32 %v3572, %v3587
        %v3619 = vadd.f32 %v3575, %v3587
        %v3620 = vadd.f32 %v3578, %v3587
        %v3621 = vlaneseq
        %v3622 = vshrl.u32 %v3621, 7
        %v3623 = vadd.s32 %v3622, 8
        %v3624 = vadd.s32 %v3622, 16
        %v3625 = vadd.s32 %v3622, 24
        %v3626 = vmul.u32 %v1057, 4
        %vm3627 = vcmp.ge.s32.totalorder %v3622, %v3626
        %vm3628 = vcmp.ge.s32.totalorder %v3623, %v3626
        %vm3629 = vcmp.ge.s32.totalorder %v3624, %v3626
        %vm3630 = vcmp.ge.s32.totalorder %v3625, %v3626
        %v3631 = vadd.s32 %v3626, 4
        %vm3632 = vcmp.lt.s32.totalorder %v3622, %v3631
        %vm3633 = vcmp.lt.s32.totalorder %v3623, %v3631
        %vm3634 = vcmp.lt.s32.totalorder %v3624, %v3631
        %vm3635 = vcmp.lt.s32.totalorder %v3625, %v3631
        %vm3636 = vmand %vm3627, %vm3632
        %vm3637 = vmand %vm3628, %vm3633
        %vm3638 = vmand %vm3629, %vm3634
        %vm3639 = vmand %vm3630, %vm3635
        %v3640 = vsel %vm3636, 1, 0
        %v3641 = vsel %vm3637, 1, 0
        %v3642 = vsel %vm3638, 1, 0
        %v3643 = vsel %vm3639, 1, 0
        %v3644 = vcvt.s32.f32 %v3640
        %v3645 = vcvt.s32.f32 %v3641
        %v3646 = vcvt.s32.f32 %v3642
        %v3647 = vcvt.s32.f32 %v3643
        %v3648 = vmul.u32 %v3622, 4
        %vm3649 = vcmp.ge.s32.totalorder %v1057, %v3648
        %v3650 = vadd.s32 %v3648, 4
        %vm3651 = vcmp.lt.s32.totalorder %v1057, %v3650
        %vm3652 = vmand %vm3649, %vm3651
        %v3653 = vsel %vm3652, 1, 0
        %v3654 = vcvt.s32.f32 %v3653
        %v3687 = vlaneseq
        %v3688 = vshrl.u32 %v3687, 7
        %v3689 = vsub.s32 %v1057, %v3688
        %v3690 = vrot.slane %v3589, %v3689
        %v3691 = vadd.s32 %v1057, 4294967288
        %v3692 = vlaneseq
        %v3693 = vshrl.u32 %v3692, 7
        %v3694 = vsub.s32 %v3691, %v3693
        %v3695 = vrot.slane %v3590, %v3694
        %vm3696 = vcmask 130112
        %v3697 = vsel %vm3696, %v3695, %v3690
        %v3698 = vadd.s32 %v1057, 4294967280
        %v3699 = vlaneseq
        %v3700 = vshrl.u32 %v3699, 7
        %v3701 = vsub.s32 %v3698, %v3700
        %v3702 = vrot.slane %v3591, %v3701
        %vm3703 = vcmask 195712
        %v3704 = vsel %vm3703, %v3702, %v3697
        %v3705 = vadd.s32 %v1057, 4294967272
        %v3706 = vlaneseq
        %v3707 = vshrl.u32 %v3706, 7
        %v3708 = vsub.s32 %v3705, %v3707
        %v3709 = vrot.slane %v3592, %v3708
        %vm3710 = vcmask 261312
        %v3711 = vsel %vm3710, %v3709, %v3704
        %v3712 = vlaneseq
        %v3713 = vshrl.u32 %v3712, 7
        %v3714 = vsub.s32 %v1057, %v3713
        %v3715 = vrot.slane %v3593, %v3714
        %v3716 = vlaneseq
        %v3717 = vshrl.u32 %v3716, 7
        %v3718 = vsub.s32 %v3691, %v3717
        %v3719 = vrot.slane %v3594, %v3718
        %v3720 = vsel %vm3696, %v3719, %v3715
        %v3721 = vlaneseq
        %v3722 = vshrl.u32 %v3721, 7
        %v3723 = vsub.s32 %v3698, %v3722
        %v3724 = vrot.slane %v3595, %v3723
        %v3725 = vsel %vm3703, %v3724, %v3720
        %v3726 = vlaneseq
        %v3727 = vshrl.u32 %v3726, 7
        %v3728 = vsub.s32 %v3705, %v3727
        %v3729 = vrot.slane %v3596, %v3728
        %v3730 = vsel %vm3710, %v3729, %v3725
        %v3731 = vlaneseq
        %v3732 = vshrl.u32 %v3731, 7
        %v3733 = vsub.s32 %v1057, %v3732
        %v3734 = vrot.slane %v3597, %v3733
        %v3735 = vlaneseq
        %v3736 = vshrl.u32 %v3735, 7
        %v3737 = vsub.s32 %v3691, %v3736
        %v3738 = vrot.slane %v3598, %v3737
        %v3739 = vsel %vm3696, %v3738, %v3734
        %v3740 = vlaneseq
        %v3741 = vshrl.u32 %v3740, 7
        %v3742 = vsub.s32 %v3698, %v3741
        %v3743 = vrot.slane %v3599, %v3742
        %v3744 = vsel %vm3703, %v3743, %v3739
        %v3745 = vlaneseq
        %v3746 = vshrl.u32 %v3745, 7
        %v3747 = vsub.s32 %v3705, %v3746
        %v3748 = vrot.slane %v3600, %v3747
        %v3749 = vsel %vm3710, %v3748, %v3744
        %v3750 = vlaneseq
        %v3751 = vshrl.u32 %v3750, 7
        %v3752 = vsub.s32 %v1057, %v3751
        %v3753 = vrot.slane %v3601, %v3752
        %v3754 = vlaneseq
        %v3755 = vshrl.u32 %v3754, 7
        %v3756 = vsub.s32 %v3691, %v3755
        %v3757 = vrot.slane %v3602, %v3756
        %v3758 = vsel %vm3696, %v3757, %v3753
        %v3759 = vlaneseq
        %v3760 = vshrl.u32 %v3759, 7
        %v3761 = vsub.s32 %v3698, %v3760
        %v3762 = vrot.slane %v3603, %v3761
        %v3763 = vsel %vm3703, %v3762, %v3758
        %v3764 = vlaneseq
        %v3765 = vshrl.u32 %v3764, 7
        %v3766 = vsub.s32 %v3705, %v3765
        %v3767 = vrot.slane %v3604, %v3766
        %v3768 = vsel %vm3710, %v3767, %v3763
        %v3769 = vlaneseq
        %v3770 = vshrl.u32 %v3769, 7
        %v3771 = vsub.s32 %v1057, %v3770
        %v3772 = vrot.slane %v3605, %v3771
        %v3773 = vlaneseq
        %v3774 = vshrl.u32 %v3773, 7
        %v3775 = vsub.s32 %v3691, %v3774
        %v3776 = vrot.slane %v3606, %v3775
        %v3777 = vsel %vm3696, %v3776, %v3772
        %v3778 = vlaneseq
        %v3779 = vshrl.u32 %v3778, 7
        %v3780 = vsub.s32 %v3698, %v3779
        %v3781 = vrot.slane %v3607, %v3780
        %v3782 = vsel %vm3703, %v3781, %v3777
        %v3783 = vlaneseq
        %v3784 = vshrl.u32 %v3783, 7
        %v3785 = vsub.s32 %v3705, %v3784
        %v3786 = vrot.slane %v3608, %v3785
        %v3787 = vsel %vm3710, %v3786, %v3782
        %v3788 = vlaneseq
        %v3789 = vshrl.u32 %v3788, 7
        %v3790 = vsub.s32 %v1057, %v3789
        %v3791 = vrot.slane %v3609, %v3790
        %v3792 = vlaneseq
        %v3793 = vshrl.u32 %v3792, 7
        %v3794 = vsub.s32 %v3691, %v3793
        %v3795 = vrot.slane %v3610, %v3794
        %v3796 = vsel %vm3696, %v3795, %v3791
        %v3797 = vlaneseq
        %v3798 = vshrl.u32 %v3797, 7
        %v3799 = vsub.s32 %v3698, %v3798
        %v3800 = vrot.slane %v3611, %v3799
        %v3801 = vsel %vm3703, %v3800, %v3796
        %v3802 = vlaneseq
        %v3803 = vshrl.u32 %v3802, 7
        %v3804 = vsub.s32 %v3705, %v3803
        %v3805 = vrot.slane %v3612, %v3804
        %v3806 = vsel %vm3710, %v3805, %v3801
        %v3807 = vlaneseq
        %v3808 = vshrl.u32 %v3807, 7
        %v3809 = vsub.s32 %v1057, %v3808
        %v3810 = vrot.slane %v3613, %v3809
        %v3811 = vlaneseq
        %v3812 = vshrl.u32 %v3811, 7
        %v3813 = vsub.s32 %v3691, %v3812
        %v3814 = vrot.slane %v3614, %v3813
        %v3815 = vsel %vm3696, %v3814, %v3810
        %v3816 = vlaneseq
        %v3817 = vshrl.u32 %v3816, 7
        %v3818 = vsub.s32 %v3698, %v3817
        %v3819 = vrot.slane %v3615, %v3818
        %v3820 = vsel %vm3703, %v3819, %v3815
        %v3821 = vlaneseq
        %v3822 = vshrl.u32 %v3821, 7
        %v3823 = vsub.s32 %v3705, %v3822
        %v3824 = vrot.slane %v3616, %v3823
        %v3825 = vsel %vm3710, %v3824, %v3820
        %v3826 = vlaneseq
        %v3827 = vshrl.u32 %v3826, 7
        %v3828 = vsub.s32 %v1057, %v3827
        %v3829 = vrot.slane %v3617, %v3828
        %v3830 = vlaneseq
        %v3831 = vshrl.u32 %v3830, 7
        %v3832 = vsub.s32 %v3691, %v3831
        %v3833 = vrot.slane %v3618, %v3832
        %v3834 = vsel %vm3696, %v3833, %v3829
        %v3835 = vlaneseq
        %v3836 = vshrl.u32 %v3835, 7
        %v3837 = vsub.s32 %v3698, %v3836
        %v3838 = vrot.slane %v3619, %v3837
        %v3839 = vsel %vm3703, %v3838, %v3834
        %v3840 = vlaneseq
        %v3841 = vshrl.u32 %v3840, 7
        %v3842 = vsub.s32 %v3705, %v3841
        %v3843 = vrot.slane %v3620, %v3842
        %v3844 = vsel %vm3710, %v3843, %v3839
        %vm3845 = vcmask 1041409
        %v3846 = vsel %vm3845, %v3730, %v3711
        %vm3847 = vcmask 1042434
        %v3848 = vsel %vm3847, %v3749, %v3846
        %vm3849 = vcmask 1043459
        %v3850 = vsel %vm3849, %v3768, %v3848
        %vm3851 = vcmask 1044484
        %v3852 = vsel %vm3851, %v3787, %v3850
        %vm3853 = vcmask 1045509
        %v3854 = vsel %vm3853, %v3806, %v3852
        %vm3855 = vcmask 1046534
        %v3856 = vsel %vm3855, %v3825, %v3854
        %vm3857 = vcmask 1047559
        %v3858 = vsel %vm3857, %v3844, %v3856
        %v3860 = vsel %vm740, %v3858, -inf
        %3861 = vmax.xlane.f32.xlu0 %v3860
        %v3862 = vpop.xlane.xlu0 %3861
        %v3864 = vlaneseq
        %v3865 = vshrl.u32 %v3864, 7
        %v3866 = vsub.s32 0, %v3865
        %v3867 = vrot.slane %v3862, %v3866
        %v3868 = vlaneseq
        %v3869 = vshrl.u32 %v3868, 7
        %v3870 = vsub.s32 1, %v3869
        %v3871 = vrot.slane %v3862, %v3870
        %v3872 = vlaneseq
        %v3873 = vshrl.u32 %v3872, 7
        %v3874 = vsub.s32 2, %v3873
        %v3875 = vrot.slane %v3862, %v3874
        %v3876 = vlaneseq
        %v3877 = vshrl.u32 %v3876, 7
        %v3878 = vsub.s32 3, %v3877
        %v3879 = vrot.slane %v3862, %v3878
        %v3880 = vlaneseq
        %v3881 = vshrl.u32 %v3880, 7
        %v3882 = vsub.s32 4, %v3881
        %v3883 = vrot.slane %v3862, %v3882
        %v3884 = vlaneseq
        %v3885 = vshrl.u32 %v3884, 7
        %v3886 = vsub.s32 5, %v3885
        %v3887 = vrot.slane %v3862, %v3886
        %v3888 = vlaneseq
        %v3889 = vshrl.u32 %v3888, 7
        %v3890 = vsub.s32 6, %v3889
        %v3891 = vrot.slane %v3862, %v3890
        %v3892 = vlaneseq
        %v3893 = vshrl.u32 %v3892, 7
        %v3894 = vsub.s32 7, %v3893
        %v3895 = vrot.slane %v3862, %v3894
        %v3904 = vsub.f32 %v3589, %v3867
        %v3905 = vsub.f32 %v3590, %v3867
        %v3906 = vsub.f32 %v3591, %v3867
        %v3907 = vsub.f32 %v3592, %v3867
        %v3908 = vsub.f32 %v3593, %v3871
        %v3909 = vsub.f32 %v3594, %v3871
        %v3910 = vsub.f32 %v3595, %v3871
        %v3911 = vsub.f32 %v3596, %v3871
        %v3912 = vsub.f32 %v3597, %v3875
        %v3913 = vsub.f32 %v3598, %v3875
        %v3914 = vsub.f32 %v3599, %v3875
        %v3915 = vsub.f32 %v3600, %v3875
        %v3916 = vsub.f32 %v3601, %v3879
        %v3917 = vsub.f32 %v3602, %v3879
        %v3918 = vsub.f32 %v3603, %v3879
        %v3919 = vsub.f32 %v3604, %v3879
        %v3920 = vsub.f32 %v3605, %v3883
        %v3921 = vsub.f32 %v3606, %v3883
        %v3922 = vsub.f32 %v3607, %v3883
        %v3923 = vsub.f32 %v3608, %v3883
        %v3924 = vsub.f32 %v3609, %v3887
        %v3925 = vsub.f32 %v3610, %v3887
        %v3926 = vsub.f32 %v3611, %v3887
        %v3927 = vsub.f32 %v3612, %v3887
        %v3928 = vsub.f32 %v3613, %v3891
        %v3929 = vsub.f32 %v3614, %v3891
        %v3930 = vsub.f32 %v3615, %v3891
        %v3931 = vsub.f32 %v3616, %v3891
        %v3932 = vsub.f32 %v3617, %v3895
        %v3933 = vsub.f32 %v3618, %v3895
        %v3934 = vsub.f32 %v3619, %v3895
        %v3935 = vsub.f32 %v3620, %v3895
        %v3936 = vmul.f32 %v3904, 1.442695
        %v3937 = vpow.pop %v3936
        %v3938 = vmul.f32 %v3905, 1.442695
        %v3939 = vpow.pop %v3938
        %v3940 = vmul.f32 %v3906, 1.442695
        %v3941 = vpow.pop %v3940
        %v3942 = vmul.f32 %v3907, 1.442695
        %v3943 = vpow.pop %v3942
        %v3944 = vmul.f32 %v3908, 1.442695
        %v3945 = vpow.pop %v3944
        %v3946 = vmul.f32 %v3909, 1.442695
        %v3947 = vpow.pop %v3946
        %v3948 = vmul.f32 %v3910, 1.442695
        %v3949 = vpow.pop %v3948
        %v3950 = vmul.f32 %v3911, 1.442695
        %v3951 = vpow.pop %v3950
        %v3952 = vmul.f32 %v3912, 1.442695
        %v3953 = vpow.pop %v3952
        %v3954 = vmul.f32 %v3913, 1.442695
        %v3955 = vpow.pop %v3954
        %v3956 = vmul.f32 %v3914, 1.442695
        %v3957 = vpow.pop %v3956
        %v3958 = vmul.f32 %v3915, 1.442695
        %v3959 = vpow.pop %v3958
        %v3960 = vmul.f32 %v3916, 1.442695
        %v3961 = vpow.pop %v3960
        %v3962 = vmul.f32 %v3917, 1.442695
        %v3963 = vpow.pop %v3962
        %v3964 = vmul.f32 %v3918, 1.442695
        %v3965 = vpow.pop %v3964
        %v3966 = vmul.f32 %v3919, 1.442695
        %v3967 = vpow.pop %v3966
        %v3968 = vmul.f32 %v3920, 1.442695
        %v3969 = vpow.pop %v3968
        %v3970 = vmul.f32 %v3921, 1.442695
        %v3971 = vpow.pop %v3970
        %v3972 = vmul.f32 %v3922, 1.442695
        %v3973 = vpow.pop %v3972
        %v3974 = vmul.f32 %v3923, 1.442695
        %v3975 = vpow.pop %v3974
        %v3976 = vmul.f32 %v3924, 1.442695
        %v3977 = vpow.pop %v3976
        %v3978 = vmul.f32 %v3925, 1.442695
        %v3979 = vpow.pop %v3978
        %v3980 = vmul.f32 %v3926, 1.442695
        %v3981 = vpow.pop %v3980
        %v3982 = vmul.f32 %v3927, 1.442695
        %v3983 = vpow.pop %v3982
        %v3984 = vmul.f32 %v3928, 1.442695
        %v3985 = vpow.pop %v3984
        %v3986 = vmul.f32 %v3929, 1.442695
        %v3987 = vpow.pop %v3986
        %v3988 = vmul.f32 %v3930, 1.442695
        %v3989 = vpow.pop %v3988
        %v3990 = vmul.f32 %v3931, 1.442695
        %v3991 = vpow.pop %v3990
        %v3992 = vmul.f32 %v3932, 1.442695
        %v3993 = vpow.pop %v3992
        %v3994 = vmul.f32 %v3933, 1.442695
        %v3995 = vpow.pop %v3994
        %v3996 = vmul.f32 %v3934, 1.442695
        %v3997 = vpow.pop %v3996
        %v3998 = vmul.f32 %v3935, 1.442695
        %v3999 = vpow.pop %v3998
        %4032 = vset.pattern.permute.xlu0 0
        %4033 = vperm.xlu0 %4032, %v3937
        %v4034 = vpop.permute.xlu0 %4033
        %4035 = vset.pattern.permute.xlu0 0
        %4036 = vperm.xlu0 %4035, %v3939
        %v4037 = vpop.permute.xlu0 %4036
        %4038 = vset.pattern.permute.xlu0 0
        %4039 = vperm.xlu0 %4038, %v3941
        %v4040 = vpop.permute.xlu0 %4039
        %4041 = vset.pattern.permute.xlu0 0
        %4042 = vperm.xlu0 %4041, %v3943
        %v4043 = vpop.permute.xlu0 %4042
        %4044 = vset.pattern.permute.xlu0 0
        %4045 = vperm.xlu0 %4044, %v3945
        %v4046 = vpop.permute.xlu0 %4045
        %4047 = vset.pattern.permute.xlu0 0
        %4048 = vperm.xlu0 %4047, %v3947
        %v4049 = vpop.permute.xlu0 %4048
        %4050 = vset.pattern.permute.xlu0 0
        %4051 = vperm.xlu0 %4050, %v3949
        %v4052 = vpop.permute.xlu0 %4051
        %4053 = vset.pattern.permute.xlu0 0
        %4054 = vperm.xlu0 %4053, %v3951
        %v4055 = vpop.permute.xlu0 %4054
        %4056 = vset.pattern.permute.xlu0 0
        %4057 = vperm.xlu0 %4056, %v3953
        %v4058 = vpop.permute.xlu0 %4057
        %4059 = vset.pattern.permute.xlu0 0
        %4060 = vperm.xlu0 %4059, %v3955
        %v4061 = vpop.permute.xlu0 %4060
        %4062 = vset.pattern.permute.xlu0 0
        %4063 = vperm.xlu0 %4062, %v3957
        %v4064 = vpop.permute.xlu0 %4063
        %4065 = vset.pattern.permute.xlu0 0
        %4066 = vperm.xlu0 %4065, %v3959
        %v4067 = vpop.permute.xlu0 %4066
        %4068 = vset.pattern.permute.xlu0 0
        %4069 = vperm.xlu0 %4068, %v3961
        %v4070 = vpop.permute.xlu0 %4069
        %4071 = vset.pattern.permute.xlu0 0
        %4072 = vperm.xlu0 %4071, %v3963
        %v4073 = vpop.permute.xlu0 %4072
        %4074 = vset.pattern.permute.xlu0 0
        %4075 = vperm.xlu0 %4074, %v3965
        %v4076 = vpop.permute.xlu0 %4075
        %4077 = vset.pattern.permute.xlu0 0
        %4078 = vperm.xlu0 %4077, %v3967
        %v4079 = vpop.permute.xlu0 %4078
        %4080 = vset.pattern.permute.xlu0 0
        %4081 = vperm.xlu0 %4080, %v3969
        %v4082 = vpop.permute.xlu0 %4081
        %4083 = vset.pattern.permute.xlu0 0
        %4084 = vperm.xlu0 %4083, %v3971
        %v4085 = vpop.permute.xlu0 %4084
        %4086 = vset.pattern.permute.xlu0 0
        %4087 = vperm.xlu0 %4086, %v3973
        %v4088 = vpop.permute.xlu0 %4087
        %4089 = vset.pattern.permute.xlu0 0
        %4090 = vperm.xlu0 %4089, %v3975
        %v4091 = vpop.permute.xlu0 %4090
        %4092 = vset.pattern.permute.xlu0 0
        %4093 = vperm.xlu0 %4092, %v3977
        %v4094 = vpop.permute.xlu0 %4093
        %4095 = vset.pattern.permute.xlu0 0
        %4096 = vperm.xlu0 %4095, %v3979
        %v4097 = vpop.permute.xlu0 %4096
        %4098 = vset.pattern.permute.xlu0 0
        %4099 = vperm.xlu0 %4098, %v3981
        %v4100 = vpop.permute.xlu0 %4099
        %4101 = vset.pattern.permute.xlu0 0
        %4102 = vperm.xlu0 %4101, %v3983
        %v4103 = vpop.permute.xlu0 %4102
        %4104 = vset.pattern.permute.xlu0 0
        %4105 = vperm.xlu0 %4104, %v3985
        %v4106 = vpop.permute.xlu0 %4105
        %4107 = vset.pattern.permute.xlu0 0
        %4108 = vperm.xlu0 %4107, %v3987
        %v4109 = vpop.permute.xlu0 %4108
        %4110 = vset.pattern.permute.xlu0 0
        %4111 = vperm.xlu0 %4110, %v3989
        %v4112 = vpop.permute.xlu0 %4111
        %4113 = vset.pattern.permute.xlu0 0
        %4114 = vperm.xlu0 %4113, %v3991
        %v4115 = vpop.permute.xlu0 %4114
        %4116 = vset.pattern.permute.xlu0 0
        %4117 = vperm.xlu0 %4116, %v3993
        %v4118 = vpop.permute.xlu0 %4117
        %4119 = vset.pattern.permute.xlu0 0
        %4120 = vperm.xlu0 %4119, %v3995
        %v4121 = vpop.permute.xlu0 %4120
        %4122 = vset.pattern.permute.xlu0 0
        %4123 = vperm.xlu0 %4122, %v3997
        %v4124 = vpop.permute.xlu0 %4123
        %4125 = vset.pattern.permute.xlu0 0
        %4126 = vperm.xlu0 %4125, %v3999
        %v4127 = vpop.permute.xlu0 %4126
        %v4128 = vlaneseq
        %v4129 = vshrl.u32 %v4128, 7
        %v4130 = vsub.s32 %v1057, %v4129
        %v4131 = vrot.slane %v4034, %v4130
        %v4132 = vlaneseq
        %v4133 = vshrl.u32 %v4132, 7
        %v4134 = vsub.s32 %v3691, %v4133
        %v4135 = vrot.slane %v4037, %v4134
        %v4136 = vsel %vm3696, %v4135, %v4131
        %v4137 = vlaneseq
        %v4138 = vshrl.u32 %v4137, 7
        %v4139 = vsub.s32 %v3698, %v4138
        %v4140 = vrot.slane %v4040, %v4139
        %v4141 = vsel %vm3703, %v4140, %v4136
        %v4142 = vlaneseq
        %v4143 = vshrl.u32 %v4142, 7
        %v4144 = vsub.s32 %v3705, %v4143
        %v4145 = vrot.slane %v4043, %v4144
        %v4146 = vsel %vm3710, %v4145, %v4141
        %v4147 = vlaneseq
        %v4148 = vshrl.u32 %v4147, 7
        %v4149 = vsub.s32 %v1057, %v4148
        %v4150 = vrot.slane %v4046, %v4149
        %v4151 = vlaneseq
        %v4152 = vshrl.u32 %v4151, 7
        %v4153 = vsub.s32 %v3691, %v4152
        %v4154 = vrot.slane %v4049, %v4153
        %v4155 = vsel %vm3696, %v4154, %v4150
        %v4156 = vlaneseq
        %v4157 = vshrl.u32 %v4156, 7
        %v4158 = vsub.s32 %v3698, %v4157
        %v4159 = vrot.slane %v4052, %v4158
        %v4160 = vsel %vm3703, %v4159, %v4155
        %v4161 = vlaneseq
        %v4162 = vshrl.u32 %v4161, 7
        %v4163 = vsub.s32 %v3705, %v4162
        %v4164 = vrot.slane %v4055, %v4163
        %v4165 = vsel %vm3710, %v4164, %v4160
        %v4166 = vlaneseq
        %v4167 = vshrl.u32 %v4166, 7
        %v4168 = vsub.s32 %v1057, %v4167
        %v4169 = vrot.slane %v4058, %v4168
        %v4170 = vlaneseq
        %v4171 = vshrl.u32 %v4170, 7
        %v4172 = vsub.s32 %v3691, %v4171
        %v4173 = vrot.slane %v4061, %v4172
        %v4174 = vsel %vm3696, %v4173, %v4169
        %v4175 = vlaneseq
        %v4176 = vshrl.u32 %v4175, 7
        %v4177 = vsub.s32 %v3698, %v4176
        %v4178 = vrot.slane %v4064, %v4177
        %v4179 = vsel %vm3703, %v4178, %v4174
        %v4180 = vlaneseq
        %v4181 = vshrl.u32 %v4180, 7
        %v4182 = vsub.s32 %v3705, %v4181
        %v4183 = vrot.slane %v4067, %v4182
        %v4184 = vsel %vm3710, %v4183, %v4179
        %v4185 = vlaneseq
        %v4186 = vshrl.u32 %v4185, 7
        %v4187 = vsub.s32 %v1057, %v4186
        %v4188 = vrot.slane %v4070, %v4187
        %v4189 = vlaneseq
        %v4190 = vshrl.u32 %v4189, 7
        %v4191 = vsub.s32 %v3691, %v4190
        %v4192 = vrot.slane %v4073, %v4191
        %v4193 = vsel %vm3696, %v4192, %v4188
        %v4194 = vlaneseq
        %v4195 = vshrl.u32 %v4194, 7
        %v4196 = vsub.s32 %v3698, %v4195
        %v4197 = vrot.slane %v4076, %v4196
        %v4198 = vsel %vm3703, %v4197, %v4193
        %v4199 = vlaneseq
        %v4200 = vshrl.u32 %v4199, 7
        %v4201 = vsub.s32 %v3705, %v4200
        %v4202 = vrot.slane %v4079, %v4201
        %v4203 = vsel %vm3710, %v4202, %v4198
        %v4204 = vlaneseq
        %v4205 = vshrl.u32 %v4204, 7
        %v4206 = vsub.s32 %v1057, %v4205
        %v4207 = vrot.slane %v4082, %v4206
        %v4208 = vlaneseq
        %v4209 = vshrl.u32 %v4208, 7
        %v4210 = vsub.s32 %v3691, %v4209
        %v4211 = vrot.slane %v4085, %v4210
        %v4212 = vsel %vm3696, %v4211, %v4207
        %v4213 = vlaneseq
        %v4214 = vshrl.u32 %v4213, 7
        %v4215 = vsub.s32 %v3698, %v4214
        %v4216 = vrot.slane %v4088, %v4215
        %v4217 = vsel %vm3703, %v4216, %v4212
        %v4218 = vlaneseq
        %v4219 = vshrl.u32 %v4218, 7
        %v4220 = vsub.s32 %v3705, %v4219
        %v4221 = vrot.slane %v4091, %v4220
        %v4222 = vsel %vm3710, %v4221, %v4217
        %v4223 = vlaneseq
        %v4224 = vshrl.u32 %v4223, 7
        %v4225 = vsub.s32 %v1057, %v4224
        %v4226 = vrot.slane %v4094, %v4225
        %v4227 = vlaneseq
        %v4228 = vshrl.u32 %v4227, 7
        %v4229 = vsub.s32 %v3691, %v4228
        %v4230 = vrot.slane %v4097, %v4229
        %v4231 = vsel %vm3696, %v4230, %v4226
        %v4232 = vlaneseq
        %v4233 = vshrl.u32 %v4232, 7
        %v4234 = vsub.s32 %v3698, %v4233
        %v4235 = vrot.slane %v4100, %v4234
        %v4236 = vsel %vm3703, %v4235, %v4231
        %v4237 = vlaneseq
        %v4238 = vshrl.u32 %v4237, 7
        %v4239 = vsub.s32 %v3705, %v4238
        %v4240 = vrot.slane %v4103, %v4239
        %v4241 = vsel %vm3710, %v4240, %v4236
        %v4242 = vlaneseq
        %v4243 = vshrl.u32 %v4242, 7
        %v4244 = vsub.s32 %v1057, %v4243
        %v4245 = vrot.slane %v4106, %v4244
        %v4246 = vlaneseq
        %v4247 = vshrl.u32 %v4246, 7
        %v4248 = vsub.s32 %v3691, %v4247
        %v4249 = vrot.slane %v4109, %v4248
        %v4250 = vsel %vm3696, %v4249, %v4245
        %v4251 = vlaneseq
        %v4252 = vshrl.u32 %v4251, 7
        %v4253 = vsub.s32 %v3698, %v4252
        %v4254 = vrot.slane %v4112, %v4253
        %v4255 = vsel %vm3703, %v4254, %v4250
        %v4256 = vlaneseq
        %v4257 = vshrl.u32 %v4256, 7
        %v4258 = vsub.s32 %v3705, %v4257
        %v4259 = vrot.slane %v4115, %v4258
        %v4260 = vsel %vm3710, %v4259, %v4255
        %v4261 = vlaneseq
        %v4262 = vshrl.u32 %v4261, 7
        %v4263 = vsub.s32 %v1057, %v4262
        %v4264 = vrot.slane %v4118, %v4263
        %v4265 = vlaneseq
        %v4266 = vshrl.u32 %v4265, 7
        %v4267 = vsub.s32 %v3691, %v4266
        %v4268 = vrot.slane %v4121, %v4267
        %v4269 = vsel %vm3696, %v4268, %v4264
        %v4270 = vlaneseq
        %v4271 = vshrl.u32 %v4270, 7
        %v4272 = vsub.s32 %v3698, %v4271
        %v4273 = vrot.slane %v4124, %v4272
        %v4274 = vsel %vm3703, %v4273, %v4269
        %v4275 = vlaneseq
        %v4276 = vshrl.u32 %v4275, 7
        %v4277 = vsub.s32 %v3705, %v4276
        %v4278 = vrot.slane %v4127, %v4277
        %v4279 = vsel %vm3710, %v4278, %v4274
        %v4280 = vsel %vm3845, %v4165, %v4146
        %v4281 = vsel %vm3847, %v4184, %v4280
        %v4282 = vsel %vm3849, %v4203, %v4281
        %v4283 = vsel %vm3851, %v4222, %v4282
        %v4284 = vsel %vm3853, %v4241, %v4283
        %v4285 = vsel %vm3855, %v4260, %v4284
        %v4286 = vsel %vm3857, %v4279, %v4285
        %v4287 = vsel %vm740, %v4286, 0
        %4289 = vmatprep.subr.mxu0 0.0
        %4290 = vmatpush1.msra.mxu0 %v3644
        %4291 = vmatprep.subr.mxu0 0.0
        %4292 = vmatpush1.msra.mxu0 %v3645
        %4293 = vmatprep.subr.mxu0 0.0
        %4294 = vmatpush1.msra.mxu0 %v3646
        %4295 = vmatprep.subr.mxu0 0.0
        %4296 = vmatpush1.msra.mxu0 %v3647
        %4297 = vmatprep.subr.mxu0 0.0
        %4298 = vmatpush1.msra.mxu0 0.0
        %4299 = vmatprep.subr.mxu0 0.0
        %4300 = vmatpush1.msra.mxu0 0.0
        %4301 = vmatprep.subr.mxu0 0.0
        %4302 = vmatpush1.msra.mxu0 0.0
        %4303 = vmatprep.subr.mxu0 0.0
        %4304 = vmatpush1.msra.mxu0 0.0
        %4305 = vmatprep.subr.mxu0 0.0
        %4306 = vmatpush1.msra.mxu0 0.0
        %4307 = vmatprep.subr.mxu0 0.0
        %4308 = vmatpush1.msra.mxu0 0.0
        %4309 = vmatprep.subr.mxu0 0.0
        %4310 = vmatpush1.msra.mxu0 0.0
        %4311 = vmatprep.subr.mxu0 0.0
        %4312 = vmatpush1.msra.mxu0 0.0
        %4313 = vmatprep.subr.mxu0 0.0
        %4314 = vmatpush1.msra.mxu0 0.0
        %4315 = vmatprep.subr.mxu0 0.0
        %4316 = vmatpush1.msra.mxu0 0.0
        %4317 = vmatprep.subr.mxu0 0.0
        %4318 = vmatpush1.msra.mxu0 0.0
        %4319 = vmatprep.subr.mxu0 0.0
        %4320 = vmatpush1.msra.mxu0 0.0
        %4321 = vmatprep.subr.mxu0 0.0
        %4322 = vmatpush1.msra.mxu0 0.0
        %4323 = vmatprep.subr.mxu0 0.0
        %4324 = vmatpush1.msra.mxu0 0.0
        %4325 = vmatprep.subr.mxu0 0.0
        %4326 = vmatpush1.msra.mxu0 0.0
        %4327 = vmatprep.subr.mxu0 0.0
        %4328 = vmatpush1.msra.mxu0 0.0
        %4329 = vmatprep.subr.mxu0 0.0
        %4330 = vmatpush1.msra.mxu0 0.0
        %4331 = vmatprep.subr.mxu0 0.0
        %4332 = vmatpush1.msra.mxu0 0.0
        %4333 = vmatprep.subr.mxu0 0.0
        %4334 = vmatpush1.msra.mxu0 0.0
        %4335 = vmatprep.subr.mxu0 0.0
        %4336 = vmatpush1.msra.mxu0 0.0
        %4337 = vmatprep.subr.mxu0 0.0
        %4338 = vmatpush1.msra.mxu0 0.0
        %4339 = vmatprep.subr.mxu0 0.0
        %4340 = vmatpush1.msra.mxu0 0.0
        %4341 = vmatprep.subr.mxu0 0.0
        %4342 = vmatpush1.msra.mxu0 0.0
        %4343 = vmatprep.subr.mxu0 0.0
        %4344 = vmatpush1.msra.mxu0 0.0
        %4345 = vmatprep.subr.mxu0 0.0
        %4346 = vmatpush1.msra.mxu0 0.0
        %4347 = vmatprep.subr.mxu0 0.0
        %4348 = vmatpush1.msra.mxu0 0.0
        %4349 = vmatprep.subr.mxu0 0.0
        %4350 = vmatpush1.msra.mxu0 0.0
        %4351 = vmatprep.subr.mxu0 0.0
        %4352 = vmatpush1.msra.mxu0 0.0
        %4353 = vmatprep.mubr.f32.mxu0 0.0
        %4354 = vmatmul.mubr.f32.gmra.mrb[0].mxu0 %v4287
        %v4355 = vpop.f32.mrb[0].mxu0
        %v4356 = vadd.f32 0.0, %v4355
        %v4357 = vpop.f32.mrb[0].mxu0
        %4358 = vdwg.mxu0
        %vm4359 = vcmask 64512
        %v4361 = vsel %vm4359, %v4356, 0
        %4363 = vmatprep.subr.mxu0 0.0
        %4364 = vmatpush1.msra.mxu0 %v3654
        %4365 = vmatprep.subr.mxu0 0.0
        %4366 = vmatpush1.msra.mxu0 0.0
        %4367 = vmatprep.subr.mxu0 0.0
        %4368 = vmatpush1.msra.mxu0 0.0
        %4369 = vmatprep.subr.mxu0 0.0
        %4370 = vmatpush1.msra.mxu0 0.0
        %4371 = vmatprep.subr.mxu0 0.0
        %4372 = vmatpush1.msra.mxu0 0.0
        %4373 = vmatprep.subr.mxu0 0.0
        %4374 = vmatpush1.msra.mxu0 0.0
        %4375 = vmatprep.subr.mxu0 0.0
        %4376 = vmatpush1.msra.mxu0 0.0
        %4377 = vmatprep.subr.mxu0 0.0
        %4378 = vmatpush1.msra.mxu0 0.0
        %4379 = vmatprep.subr.mxu0 0.0
        %4380 = vmatpush1.msra.mxu0 0.0
        %4381 = vmatprep.subr.mxu0 0.0
        %4382 = vmatpush1.msra.mxu0 0.0
        %4383 = vmatprep.subr.mxu0 0.0
        %4384 = vmatpush1.msra.mxu0 0.0
        %4385 = vmatprep.subr.mxu0 0.0
        %4386 = vmatpush1.msra.mxu0 0.0
        %4387 = vmatprep.subr.mxu0 0.0
        %4388 = vmatpush1.msra.mxu0 0.0
        %4389 = vmatprep.subr.mxu0 0.0
        %4390 = vmatpush1.msra.mxu0 0.0
        %4391 = vmatprep.subr.mxu0 0.0
        %4392 = vmatpush1.msra.mxu0 0.0
        %4393 = vmatprep.subr.mxu0 0.0
        %4394 = vmatpush1.msra.mxu0 0.0
        %4395 = vmatprep.subr.mxu0 0.0
        %4396 = vmatpush1.msra.mxu0 0.0
        %4397 = vmatprep.subr.mxu0 0.0
        %4398 = vmatpush1.msra.mxu0 0.0
        %4399 = vmatprep.subr.mxu0 0.0
        %4400 = vmatpush1.msra.mxu0 0.0
        %4401 = vmatprep.subr.mxu0 0.0
        %4402 = vmatpush1.msra.mxu0 0.0
        %4403 = vmatprep.subr.mxu0 0.0
        %4404 = vmatpush1.msra.mxu0 0.0
        %4405 = vmatprep.subr.mxu0 0.0
        %4406 = vmatpush1.msra.mxu0 0.0
        %4407 = vmatprep.subr.mxu0 0.0
        %4408 = vmatpush1.msra.mxu0 0.0
        %4409 = vmatprep.subr.mxu0 0.0
        %4410 = vmatpush1.msra.mxu0 0.0
        %4411 = vmatprep.subr.mxu0 0.0
        %4412 = vmatpush1.msra.mxu0 0.0
        %4413 = vmatprep.subr.mxu0 0.0
        %4414 = vmatpush1.msra.mxu0 0.0
        %4415 = vmatprep.subr.mxu0 0.0
        %4416 = vmatpush1.msra.mxu0 0.0
        %4417 = vmatprep.subr.mxu0 0.0
        %4418 = vmatpush1.msra.mxu0 0.0
        %4419 = vmatprep.subr.mxu0 0.0
        %4420 = vmatpush1.msra.mxu0 0.0
        %4421 = vmatprep.subr.mxu0 0.0
        %4422 = vmatpush1.msra.mxu0 0.0
        %4423 = vmatprep.subr.mxu0 0.0
        %4424 = vmatpush1.msra.mxu0 0.0
        %4425 = vmatprep.subr.mxu0 0.0
        %4426 = vmatpush1.msra.mxu0 0.0
        %4427 = vmatprep.mubr.f32.mxu0 0.0
        %4428 = vmatmul.mubr.f32.gmra.mrb[0].mxu0 %v4361
        %v4429 = vpop.f32.mrb[0].mxu0
        %v4430 = vadd.f32 0.0, %v4429
        %v4431 = vpop.f32.mrb[0].mxu0
        %4432 = vdwg.mxu0
        %v4433 = vrcp.pop %v4430
        %v4435 = vlaneseq
        %v4436 = vshrl.u32 %v4435, 7
        %v4437 = vsub.s32 0, %v4436
        %v4438 = vrot.slane %v4433, %v4437
        %4440 = vbcast.lane.b32.xlu0 %v4438, 256
        %v4441 = vpop.permute.xlu0 %4440
        %s4443 = sor.u32 256, 8
        %4444 = vbcast.lane.b32.xlu0 %v4438, %s4443
        %v4445 = vpop.permute.xlu0 %4444
        %s4447 = sor.u32 256, 16
        %4448 = vbcast.lane.b32.xlu0 %v4438, %s4447
        %v4449 = vpop.permute.xlu0 %4448
        %s4451 = sor.u32 256, 24
        %4452 = vbcast.lane.b32.xlu0 %v4438, %s4451
        %v4453 = vpop.permute.xlu0 %4452
        %v4454 = vlaneseq
        %v4455 = vshrl.u32 %v4454, 7
        %v4456 = vsub.s32 1, %v4455
        %v4457 = vrot.slane %v4433, %v4456
        %4459 = vbcast.lane.b32.xlu0 %v4457, 256
        %v4460 = vpop.permute.xlu0 %4459
        %s4462 = sor.u32 256, 8
        %4463 = vbcast.lane.b32.xlu0 %v4457, %s4462
        %v4464 = vpop.permute.xlu0 %4463
        %s4466 = sor.u32 256, 16
        %4467 = vbcast.lane.b32.xlu0 %v4457, %s4466
        %v4468 = vpop.permute.xlu0 %4467
        %s4470 = sor.u32 256, 24
        %4471 = vbcast.lane.b32.xlu0 %v4457, %s4470
        %v4472 = vpop.permute.xlu0 %4471
        %v4473 = vlaneseq
        %v4474 = vshrl.u32 %v4473, 7
        %v4475 = vsub.s32 2, %v4474
        %v4476 = vrot.slane %v4433, %v4475
        %4478 = vbcast.lane.b32.xlu0 %v4476, 256
        %v4479 = vpop.permute.xlu0 %4478
        %s4481 = sor.u32 256, 8
        %4482 = vbcast.lane.b32.xlu0 %v4476, %s4481
        %v4483 = vpop.permute.xlu0 %4482
        %s4485 = sor.u32 256, 16
        %4486 = vbcast.lane.b32.xlu0 %v4476, %s4485
        %v4487 = vpop.permute.xlu0 %4486
        %s4489 = sor.u32 256, 24
        %4490 = vbcast.lane.b32.xlu0 %v4476, %s4489
        %v4491 = vpop.permute.xlu0 %4490
        %v4492 = vlaneseq
        %v4493 = vshrl.u32 %v4492, 7
        %v4494 = vsub.s32 3, %v4493
        %v4495 = vrot.slane %v4433, %v4494
        %4497 = vbcast.lane.b32.xlu0 %v4495, 256
        %v4498 = vpop.permute.xlu0 %4497
        %s4500 = sor.u32 256, 8
        %4501 = vbcast.lane.b32.xlu0 %v4495, %s4500
        %v4502 = vpop.permute.xlu0 %4501
        %s4504 = sor.u32 256, 16
        %4505 = vbcast.lane.b32.xlu0 %v4495, %s4504
        %v4506 = vpop.permute.xlu0 %4505
        %s4508 = sor.u32 256, 24
        %4509 = vbcast.lane.b32.xlu0 %v4495, %s4508
        %v4510 = vpop.permute.xlu0 %4509
        %v4511 = vlaneseq
        %v4512 = vshrl.u32 %v4511, 7
        %v4513 = vsub.s32 4, %v4512
        %v4514 = vrot.slane %v4433, %v4513
        %4516 = vbcast.lane.b32.xlu0 %v4514, 256
        %v4517 = vpop.permute.xlu0 %4516
        %s4519 = sor.u32 256, 8
        %4520 = vbcast.lane.b32.xlu0 %v4514, %s4519
        %v4521 = vpop.permute.xlu0 %4520
        %s4523 = sor.u32 256, 16
        %4524 = vbcast.lane.b32.xlu0 %v4514, %s4523
        %v4525 = vpop.permute.xlu0 %4524
        %s4527 = sor.u32 256, 24
        %4528 = vbcast.lane.b32.xlu0 %v4514, %s4527
        %v4529 = vpop.permute.xlu0 %4528
        %v4530 = vlaneseq
        %v4531 = vshrl.u32 %v4530, 7
        %v4532 = vsub.s32 5, %v4531
        %v4533 = vrot.slane %v4433, %v4532
        %4535 = vbcast.lane.b32.xlu0 %v4533, 256
        %v4536 = vpop.permute.xlu0 %4535
        %s4538 = sor.u32 256, 8
        %4539 = vbcast.lane.b32.xlu0 %v4533, %s4538
        %v4540 = vpop.permute.xlu0 %4539
        %s4542 = sor.u32 256, 16
        %4543 = vbcast.lane.b32.xlu0 %v4533, %s4542
        %v4544 = vpop.permute.xlu0 %4543
        %s4546 = sor.u32 256, 24
        %4547 = vbcast.lane.b32.xlu0 %v4533, %s4546
        %v4548 = vpop.permute.xlu0 %4547
        %v4549 = vlaneseq
        %v4550 = vshrl.u32 %v4549, 7
        %v4551 = vsub.s32 6, %v4550
        %v4552 = vrot.slane %v4433, %v4551
        %4554 = vbcast.lane.b32.xlu0 %v4552, 256
        %v4555 = vpop.permute.xlu0 %4554
        %s4557 = sor.u32 256, 8
        %4558 = vbcast.lane.b32.xlu0 %v4552, %s4557
        %v4559 = vpop.permute.xlu0 %4558
        %s4561 = sor.u32 256, 16
        %4562 = vbcast.lane.b32.xlu0 %v4552, %s4561
        %v4563 = vpop.permute.xlu0 %4562
        %s4565 = sor.u32 256, 24
        %4566 = vbcast.lane.b32.xlu0 %v4552, %s4565
        %v4567 = vpop.permute.xlu0 %4566
        %v4568 = vlaneseq
        %v4569 = vshrl.u32 %v4568, 7
        %v4570 = vsub.s32 7, %v4569
        %v4571 = vrot.slane %v4433, %v4570
        %4573 = vbcast.lane.b32.xlu0 %v4571, 256
        %v4574 = vpop.permute.xlu0 %4573
        %s4576 = sor.u32 256, 8
        %4577 = vbcast.lane.b32.xlu0 %v4571, %s4576
        %v4578 = vpop.permute.xlu0 %4577
        %s4580 = sor.u32 256, 16
        %4581 = vbcast.lane.b32.xlu0 %v4571, %s4580
        %v4582 = vpop.permute.xlu0 %4581
        %s4584 = sor.u32 256, 24
        %4585 = vbcast.lane.b32.xlu0 %v4571, %s4584
        %v4586 = vpop.permute.xlu0 %4585
        %v4619 = vmul.f32 %v3937, %v4441
        %v4620 = vmul.f32 %v3939, %v4445
        %v4621 = vmul.f32 %v3941, %v4449
        %v4622 = vmul.f32 %v3943, %v4453
        %v4623 = vmul.f32 %v3945, %v4460
        %v4624 = vmul.f32 %v3947, %v4464
        %v4625 = vmul.f32 %v3949, %v4468
        %v4626 = vmul.f32 %v3951, %v4472
        %v4627 = vmul.f32 %v3953, %v4479
        %v4628 = vmul.f32 %v3955, %v4483
        %v4629 = vmul.f32 %v3957, %v4487
        %v4630 = vmul.f32 %v3959, %v4491
        %v4631 = vmul.f32 %v3961, %v4498
        %v4632 = vmul.f32 %v3963, %v4502
        %v4633 = vmul.f32 %v3965, %v4506
        %v4634 = vmul.f32 %v3967, %v4510
        %v4635 = vmul.f32 %v3969, %v4517
        %v4636 = vmul.f32 %v3971, %v4521
        %v4637 = vmul.f32 %v3973, %v4525
        %v4638 = vmul.f32 %v3975, %v4529
        %v4639 = vmul.f32 %v3977, %v4536
        %v4640 = vmul.f32 %v3979, %v4540
        %v4641 = vmul.f32 %v3981, %v4544
        %v4642 = vmul.f32 %v3983, %v4548
        %v4643 = vmul.f32 %v3985, %v4555
        %v4644 = vmul.f32 %v3987, %v4559
        %v4645 = vmul.f32 %v3989, %v4563
        %v4646 = vmul.f32 %v3991, %v4567
        %v4647 = vmul.f32 %v3993, %v4574
        %v4648 = vmul.f32 %v3995, %v4578
        %v4649 = vmul.f32 %v3997, %v4582
        %v4650 = vmul.f32 %v3999, %v4586
        %4683 = vset.pattern.permute.xlu0 0
        %4684 = vperm.xlu0 %4683, %v4619
        %v4685 = vpop.permute.xlu0 %4684
        %4686 = vset.pattern.permute.xlu0 0
        %4687 = vperm.xlu0 %4686, %v4620
        %v4688 = vpop.permute.xlu0 %4687
        %4689 = vset.pattern.permute.xlu0 0
        %4690 = vperm.xlu0 %4689, %v4621
        %v4691 = vpop.permute.xlu0 %4690
        %4692 = vset.pattern.permute.xlu0 0
        %4693 = vperm.xlu0 %4692, %v4622
        %v4694 = vpop.permute.xlu0 %4693
        %4695 = vset.pattern.permute.xlu0 0
        %4696 = vperm.xlu0 %4695, %v4623
        %v4697 = vpop.permute.xlu0 %4696
        %4698 = vset.pattern.permute.xlu0 0
        %4699 = vperm.xlu0 %4698, %v4624
        %v4700 = vpop.permute.xlu0 %4699
        %4701 = vset.pattern.permute.xlu0 0
        %4702 = vperm.xlu0 %4701, %v4625
        %v4703 = vpop.permute.xlu0 %4702
        %4704 = vset.pattern.permute.xlu0 0
        %4705 = vperm.xlu0 %4704, %v4626
        %v4706 = vpop.permute.xlu0 %4705
        %4707 = vset.pattern.permute.xlu0 0
        %4708 = vperm.xlu0 %4707, %v4627
        %v4709 = vpop.permute.xlu0 %4708
        %4710 = vset.pattern.permute.xlu0 0
        %4711 = vperm.xlu0 %4710, %v4628
        %v4712 = vpop.permute.xlu0 %4711
        %4713 = vset.pattern.permute.xlu0 0
        %4714 = vperm.xlu0 %4713, %v4629
        %v4715 = vpop.permute.xlu0 %4714
        %4716 = vset.pattern.permute.xlu0 0
        %4717 = vperm.xlu0 %4716, %v4630
        %v4718 = vpop.permute.xlu0 %4717
        %4719 = vset.pattern.permute.xlu0 0
        %4720 = vperm.xlu0 %4719, %v4631
        %v4721 = vpop.permute.xlu0 %4720
        %4722 = vset.pattern.permute.xlu0 0
        %4723 = vperm.xlu0 %4722, %v4632
        %v4724 = vpop.permute.xlu0 %4723
        %4725 = vset.pattern.permute.xlu0 0
        %4726 = vperm.xlu0 %4725, %v4633
        %v4727 = vpop.permute.xlu0 %4726
        %4728 = vset.pattern.permute.xlu0 0
        %4729 = vperm.xlu0 %4728, %v4634
        %v4730 = vpop.permute.xlu0 %4729
        %4731 = vset.pattern.permute.xlu0 0
        %4732 = vperm.xlu0 %4731, %v4635
        %v4733 = vpop.permute.xlu0 %4732
        %4734 = vset.pattern.permute.xlu0 0
        %4735 = vperm.xlu0 %4734, %v4636
        %v4736 = vpop.permute.xlu0 %4735
        %4737 = vset.pattern.permute.xlu0 0
        %4738 = vperm.xlu0 %4737, %v4637
        %v4739 = vpop.permute.xlu0 %4738
        %4740 = vset.pattern.permute.xlu0 0
        %4741 = vperm.xlu0 %4740, %v4638
        %v4742 = vpop.permute.xlu0 %4741
        %4743 = vset.pattern.permute.xlu0 0
        %4744 = vperm.xlu0 %4743, %v4639
        %v4745 = vpop.permute.xlu0 %4744
        %4746 = vset.pattern.permute.xlu0 0
        %4747 = vperm.xlu0 %4746, %v4640
        %v4748 = vpop.permute.xlu0 %4747
        %4749 = vset.pattern.permute.xlu0 0
        %4750 = vperm.xlu0 %4749, %v4641
        %v4751 = vpop.permute.xlu0 %4750
        %4752 = vset.pattern.permute.xlu0 0
        %4753 = vperm.xlu0 %4752, %v4642
        %v4754 = vpop.permute.xlu0 %4753
        %4755 = vset.pattern.permute.xlu0 0
        %4756 = vperm.xlu0 %4755, %v4643
        %v4757 = vpop.permute.xlu0 %4756
        %4758 = vset.pattern.permute.xlu0 0
        %4759 = vperm.xlu0 %4758, %v4644
        %v4760 = vpop.permute.xlu0 %4759
        %4761 = vset.pattern.permute.xlu0 0
        %4762 = vperm.xlu0 %4761, %v4645
        %v4763 = vpop.permute.xlu0 %4762
        %4764 = vset.pattern.permute.xlu0 0
        %4765 = vperm.xlu0 %4764, %v4646
        %v4766 = vpop.permute.xlu0 %4765
        %4767 = vset.pattern.permute.xlu0 0
        %4768 = vperm.xlu0 %4767, %v4647
        %v4769 = vpop.permute.xlu0 %4768
        %4770 = vset.pattern.permute.xlu0 0
        %4771 = vperm.xlu0 %4770, %v4648
        %v4772 = vpop.permute.xlu0 %4771
        %4773 = vset.pattern.permute.xlu0 0
        %4774 = vperm.xlu0 %4773, %v4649
        %v4775 = vpop.permute.xlu0 %4774
        %4776 = vset.pattern.permute.xlu0 0
        %4777 = vperm.xlu0 %4776, %v4650
        %v4778 = vpop.permute.xlu0 %4777
        %v4779 = vlaneseq
        %v4780 = vshrl.u32 %v4779, 7
        %v4781 = vsub.s32 %v1057, %v4780
        %v4782 = vrot.slane %v4685, %v4781
        %v4783 = vlaneseq
        %v4784 = vshrl.u32 %v4783, 7
        %v4785 = vsub.s32 %v3691, %v4784
        %v4786 = vrot.slane %v4688, %v4785
        %v4787 = vsel %vm3696, %v4786, %v4782
        %v4788 = vlaneseq
        %v4789 = vshrl.u32 %v4788, 7
        %v4790 = vsub.s32 %v3698, %v4789
        %v4791 = vrot.slane %v4691, %v4790
        %v4792 = vsel %vm3703, %v4791, %v4787
        %v4793 = vlaneseq
        %v4794 = vshrl.u32 %v4793, 7
        %v4795 = vsub.s32 %v3705, %v4794
        %v4796 = vrot.slane %v4694, %v4795
        %v4797 = vsel %vm3710, %v4796, %v4792
        %v4798 = vlaneseq
        %v4799 = vshrl.u32 %v4798, 7
        %v4800 = vsub.s32 %v1057, %v4799
        %v4801 = vrot.slane %v4697, %v4800
        %v4802 = vlaneseq
        %v4803 = vshrl.u32 %v4802, 7
        %v4804 = vsub.s32 %v3691, %v4803
        %v4805 = vrot.slane %v4700, %v4804
        %v4806 = vsel %vm3696, %v4805, %v4801
        %v4807 = vlaneseq
        %v4808 = vshrl.u32 %v4807, 7
        %v4809 = vsub.s32 %v3698, %v4808
        %v4810 = vrot.slane %v4703, %v4809
        %v4811 = vsel %vm3703, %v4810, %v4806
        %v4812 = vlaneseq
        %v4813 = vshrl.u32 %v4812, 7
        %v4814 = vsub.s32 %v3705, %v4813
        %v4815 = vrot.slane %v4706, %v4814
        %v4816 = vsel %vm3710, %v4815, %v4811
        %v4817 = vlaneseq
        %v4818 = vshrl.u32 %v4817, 7
        %v4819 = vsub.s32 %v1057, %v4818
        %v4820 = vrot.slane %v4709, %v4819
        %v4821 = vlaneseq
        %v4822 = vshrl.u32 %v4821, 7
        %v4823 = vsub.s32 %v3691, %v4822
        %v4824 = vrot.slane %v4712, %v4823
        %v4825 = vsel %vm3696, %v4824, %v4820
        %v4826 = vlaneseq
        %v4827 = vshrl.u32 %v4826, 7
        %v4828 = vsub.s32 %v3698, %v4827
        %v4829 = vrot.slane %v4715, %v4828
        %v4830 = vsel %vm3703, %v4829, %v4825
        %v4831 = vlaneseq
        %v4832 = vshrl.u32 %v4831, 7
        %v4833 = vsub.s32 %v3705, %v4832
        %v4834 = vrot.slane %v4718, %v4833
        %v4835 = vsel %vm3710, %v4834, %v4830
        %v4836 = vlaneseq
        %v4837 = vshrl.u32 %v4836, 7
        %v4838 = vsub.s32 %v1057, %v4837
        %v4839 = vrot.slane %v4721, %v4838
        %v4840 = vlaneseq
        %v4841 = vshrl.u32 %v4840, 7
        %v4842 = vsub.s32 %v3691, %v4841
        %v4843 = vrot.slane %v4724, %v4842
        %v4844 = vsel %vm3696, %v4843, %v4839
        %v4845 = vlaneseq
        %v4846 = vshrl.u32 %v4845, 7
        %v4847 = vsub.s32 %v3698, %v4846
        %v4848 = vrot.slane %v4727, %v4847
        %v4849 = vsel %vm3703, %v4848, %v4844
        %v4850 = vlaneseq
        %v4851 = vshrl.u32 %v4850, 7
        %v4852 = vsub.s32 %v3705, %v4851
        %v4853 = vrot.slane %v4730, %v4852
        %v4854 = vsel %vm3710, %v4853, %v4849
        %v4855 = vlaneseq
        %v4856 = vshrl.u32 %v4855, 7
        %v4857 = vsub.s32 %v1057, %v4856
        %v4858 = vrot.slane %v4733, %v4857
        %v4859 = vlaneseq
        %v4860 = vshrl.u32 %v4859, 7
        %v4861 = vsub.s32 %v3691, %v4860
        %v4862 = vrot.slane %v4736, %v4861
        %v4863 = vsel %vm3696, %v4862, %v4858
        %v4864 = vlaneseq
        %v4865 = vshrl.u32 %v4864, 7
        %v4866 = vsub.s32 %v3698, %v4865
        %v4867 = vrot.slane %v4739, %v4866
        %v4868 = vsel %vm3703, %v4867, %v4863
        %v4869 = vlaneseq
        %v4870 = vshrl.u32 %v4869, 7
        %v4871 = vsub.s32 %v3705, %v4870
        %v4872 = vrot.slane %v4742, %v4871
        %v4873 = vsel %vm3710, %v4872, %v4868
        %v4874 = vlaneseq
        %v4875 = vshrl.u32 %v4874, 7
        %v4876 = vsub.s32 %v1057, %v4875
        %v4877 = vrot.slane %v4745, %v4876
        %v4878 = vlaneseq
        %v4879 = vshrl.u32 %v4878, 7
        %v4880 = vsub.s32 %v3691, %v4879
        %v4881 = vrot.slane %v4748, %v4880
        %v4882 = vsel %vm3696, %v4881, %v4877
        %v4883 = vlaneseq
        %v4884 = vshrl.u32 %v4883, 7
        %v4885 = vsub.s32 %v3698, %v4884
        %v4886 = vrot.slane %v4751, %v4885
        %v4887 = vsel %vm3703, %v4886, %v4882
        %v4888 = vlaneseq
        %v4889 = vshrl.u32 %v4888, 7
        %v4890 = vsub.s32 %v3705, %v4889
        %v4891 = vrot.slane %v4754, %v4890
        %v4892 = vsel %vm3710, %v4891, %v4887
        %v4893 = vlaneseq
        %v4894 = vshrl.u32 %v4893, 7
        %v4895 = vsub.s32 %v1057, %v4894
        %v4896 = vrot.slane %v4757, %v4895
        %v4897 = vlaneseq
        %v4898 = vshrl.u32 %v4897, 7
        %v4899 = vsub.s32 %v3691, %v4898
        %v4900 = vrot.slane %v4760, %v4899
        %v4901 = vsel %vm3696, %v4900, %v4896
        %v4902 = vlaneseq
        %v4903 = vshrl.u32 %v4902, 7
        %v4904 = vsub.s32 %v3698, %v4903
        %v4905 = vrot.slane %v4763, %v4904
        %v4906 = vsel %vm3703, %v4905, %v4901
        %v4907 = vlaneseq
        %v4908 = vshrl.u32 %v4907, 7
        %v4909 = vsub.s32 %v3705, %v4908
        %v4910 = vrot.slane %v4766, %v4909
        %v4911 = vsel %vm3710, %v4910, %v4906
        %v4912 = vlaneseq
        %v4913 = vshrl.u32 %v4912, 7
        %v4914 = vsub.s32 %v1057, %v4913
        %v4915 = vrot.slane %v4769, %v4914
        %v4916 = vlaneseq
        %v4917 = vshrl.u32 %v4916, 7
        %v4918 = vsub.s32 %v3691, %v4917
        %v4919 = vrot.slane %v4772, %v4918
        %v4920 = vsel %vm3696, %v4919, %v4915
        %v4921 = vlaneseq
        %v4922 = vshrl.u32 %v4921, 7
        %v4923 = vsub.s32 %v3698, %v4922
        %v4924 = vrot.slane %v4775, %v4923
        %v4925 = vsel %vm3703, %v4924, %v4920
        %v4926 = vlaneseq
        %v4927 = vshrl.u32 %v4926, 7
        %v4928 = vsub.s32 %v3705, %v4927
        %v4929 = vrot.slane %v4778, %v4928
        %v4930 = vsel %vm3710, %v4929, %v4925
        %v4931 = vsel %vm3845, %v4816, %v4797
        %v4932 = vsel %vm3847, %v4835, %v4931
        %v4933 = vsel %vm3849, %v4854, %v4932
        %v4934 = vsel %vm3851, %v4873, %v4933
        %v4935 = vsel %vm3853, %v4892, %v4934
        %v4936 = vsel %vm3855, %v4911, %v4935
        %v4937 = vsel %vm3857, %v4930, %v4936
        %4939 = vxpose.xlu0.b32.start [1/16] %v4937, 128
        %4940 = vxpose.xlu0.b32.cont [2/16] 0.0, 128
        %4941 = vxpose.xlu0.b32.cont [3/16] 0.0, 128
        %4942 = vxpose.xlu0.b32.cont [4/16] 0.0, 128
        %4943 = vxpose.xlu0.b32.cont [5/16] 0.0, 128
        %4944 = vxpose.xlu0.b32.cont [6/16] 0.0, 128
        %4945 = vxpose.xlu0.b32.cont [7/16] 0.0, 128
        %4946 = vxpose.xlu0.b32.cont [8/16] 0.0, 128
        %4947 = vxpose.xlu0.b32.cont [9/16] 0.0, 128
        %4948 = vxpose.xlu0.b32.cont [10/16] 0.0, 128
        %4949 = vxpose.xlu0.b32.cont [11/16] 0.0, 128
        %4950 = vxpose.xlu0.b32.cont [12/16] 0.0, 128
        %4951 = vxpose.xlu0.b32.cont [13/16] 0.0, 128
        %4952 = vxpose.xlu0.b32.cont [14/16] 0.0, 128
        %4953 = vxpose.xlu0.b32.cont [15/16] 0.0, 128
        %4954 = vxpose.xlu0.b32.end [16/16] 0.0, 128
        %v4955 = vpop.trf.xlu0
        %v4956 = vpop.trf.xlu0
        %v4957 = vpop.trf.xlu0
        %v4958 = vpop.trf.xlu0
        %v4959 = vpop.trf.xlu0
        %v4960 = vpop.trf.xlu0
        %v4961 = vpop.trf.xlu0
        %v4962 = vpop.trf.xlu0
        %v4963 = vpop.trf.xlu0
        %v4964 = vpop.trf.xlu0
        %v4965 = vpop.trf.xlu0
        %v4966 = vpop.trf.xlu0
        %v4967 = vpop.trf.xlu0
        %v4968 = vpop.trf.xlu0
        %v4969 = vpop.trf.xlu0
        %v4970 = vpop.trf.xlu0
        %4971 = vst.msk [vmem:[%s589] sm:$0xff] %vm4359, %v4955
        %4972 = vst.msk [vmem:[%s589 + $0x8] sm:$0xff] %vm4359, %v4956
        %4973 = vst.msk [vmem:[%s589 + $0x10] sm:$0xff] %vm4359, %v4957
        %4974 = vst.msk [vmem:[%s589 + $0x18] sm:$0xff] %vm4359, %v4958
        %v4975 = vsel %vm3847, %v4797, %v4797
        %v4976 = vsel %vm3849, %v4797, %v4975
        %v4977 = vsel %vm3851, %v4797, %v4976
        %v4978 = vsel %vm3853, %v4797, %v4977
        %v4979 = vsel %vm3855, %v4797, %v4978
        %v4980 = vsel %vm3857, %v4797, %v4979
        %v4981 = vsel %vm3847, %v4816, %v4816
        %v4982 = vsel %vm3849, %v4816, %v4981
        %v4983 = vsel %vm3851, %v4816, %v4982
        %v4984 = vsel %vm3853, %v4816, %v4983
        %v4985 = vsel %vm3855, %v4816, %v4984
        %v4986 = vsel %vm3857, %v4816, %v4985
        %v4987 = vsel %vm3847, %v4835, %v4835
        %v4988 = vsel %vm3849, %v4835, %v4987
        %v4989 = vsel %vm3851, %v4835, %v4988
        %v4990 = vsel %vm3853, %v4835, %v4989
        %v4991 = vsel %vm3855, %v4835, %v4990
        %v4992 = vsel %vm3857, %v4835, %v4991
        %v4993 = vsel %vm3847, %v4854, %v4854
        %v4994 = vsel %vm3849, %v4854, %v4993
        %v4995 = vsel %vm3851, %v4854, %v4994
        %v4996 = vsel %vm3853, %v4854, %v4995
        %v4997 = vsel %vm3855, %v4854, %v4996
        %v4998 = vsel %vm3857, %v4854, %v4997
        %v4999 = vsel %vm3847, %v4873, %v4873
        %v5000 = vsel %vm3849, %v4873, %v4999
        %v5001 = vsel %vm3851, %v4873, %v5000
        %v5002 = vsel %vm3853, %v4873, %v5001
        %v5003 = vsel %vm3855, %v4873, %v5002
        %v5004 = vsel %vm3857, %v4873, %v5003
        %v5005 = vsel %vm3847, %v4892, %v4892
        %v5006 = vsel %vm3849, %v4892, %v5005
        %v5007 = vsel %vm3851, %v4892, %v5006
        %v5008 = vsel %vm3853, %v4892, %v5007
        %v5009 = vsel %vm3855, %v4892, %v5008
        %v5010 = vsel %vm3857, %v4892, %v5009
        %v5011 = vsel %vm3847, %v4911, %v4911
        %v5012 = vsel %vm3849, %v4911, %v5011
        %v5013 = vsel %vm3851, %v4911, %v5012
        %v5014 = vsel %vm3853, %v4911, %v5013
        %v5015 = vsel %vm3855, %v4911, %v5014
        %v5016 = vsel %vm3857, %v4911, %v5015
        %v5017 = vsel %vm3847, %v4930, %v4930
        %v5018 = vsel %vm3849, %v4930, %v5017
        %v5019 = vsel %vm3851, %v4930, %v5018
        %v5020 = vsel %vm3853, %v4930, %v5019
        %v5021 = vsel %vm3855, %v4930, %v5020
        %v5022 = vsel %vm3857, %v4930, %v5021
        %v5031 = vmul.f32 %v3654, %v4980
        %v5032 = vmul.f32 %v3654, %v4986
        %v5033 = vmul.f32 %v3654, %v4992
        %v5034 = vmul.f32 %v3654, %v4998
        %v5035 = vmul.f32 %v3654, %v5004
        %v5036 = vmul.f32 %v3654, %v5010
        %v5037 = vmul.f32 %v3654, %v5016
        %v5038 = vmul.f32 %v3654, %v5022
        %v5040 = vsel %vm740, %v5031, 0
        %5042 = vmatprep.subr.mxu0 0.0
        %5043 = vmatpush1.msra.mxu0 %v3116
        %5044 = vmatprep.subr.mxu0 0.0
        %5045 = vmatpush1.msra.mxu0 %v3117
        %5046 = vmatprep.subr.mxu0 0.0
        %5047 = vmatpush1.msra.mxu0 %v3118
        %5048 = vmatprep.subr.mxu0 0.0
        %5049 = vmatpush1.msra.mxu0 %v3119
        %5050 = vmatprep.subr.mxu0 0.0
        %5051 = vmatpush1.msra.mxu0 0.0
        %5052 = vmatprep.subr.mxu0 0.0
        %5053 = vmatpush1.msra.mxu0 0.0
        %5054 = vmatprep.subr.mxu0 0.0
        %5055 = vmatpush1.msra.mxu0 0.0
        %5056 = vmatprep.subr.mxu0 0.0
        %5057 = vmatpush1.msra.mxu0 0.0
        %5058 = vmatprep.subr.mxu0 0.0
        %5059 = vmatpush1.msra.mxu0 0.0
        %5060 = vmatprep.subr.mxu0 0.0
        %5061 = vmatpush1.msra.mxu0 0.0
        %5062 = vmatprep.subr.mxu0 0.0
        %5063 = vmatpush1.msra.mxu0 0.0
        %5064 = vmatprep.subr.mxu0 0.0
        %5065 = vmatpush1.msra.mxu0 0.0
        %5066 = vmatprep.subr.mxu0 0.0
        %5067 = vmatpush1.msra.mxu0 0.0
        %5068 = vmatprep.subr.mxu0 0.0
        %5069 = vmatpush1.msra.mxu0 0.0
        %5070 = vmatprep.subr.mxu0 0.0
        %5071 = vmatpush1.msra.mxu0 0.0
        %5072 = vmatprep.subr.mxu0 0.0
        %5073 = vmatpush1.msra.mxu0 0.0
        %5074 = vmatprep.subr.mxu0 0.0
        %5075 = vmatpush1.msra.mxu0 0.0
        %5076 = vmatprep.subr.mxu0 0.0
        %5077 = vmatpush1.msra.mxu0 0.0
        %5078 = vmatprep.subr.mxu0 0.0
        %5079 = vmatpush1.msra.mxu0 0.0
        %5080 = vmatprep.subr.mxu0 0.0
        %5081 = vmatpush1.msra.mxu0 0.0
        %5082 = vmatprep.subr.mxu0 0.0
        %5083 = vmatpush1.msra.mxu0 0.0
        %5084 = vmatprep.subr.mxu0 0.0
        %5085 = vmatpush1.msra.mxu0 0.0
        %5086 = vmatprep.subr.mxu0 0.0
        %5087 = vmatpush1.msra.mxu0 0.0
        %5088 = vmatprep.subr.mxu0 0.0
        %5089 = vmatpush1.msra.mxu0 0.0
        %5090 = vmatprep.subr.mxu0 0.0
        %5091 = vmatpush1.msra.mxu0 0.0
        %5092 = vmatprep.subr.mxu0 0.0
        %5093 = vmatpush1.msra.mxu0 0.0
        %5094 = vmatprep.subr.mxu0 0.0
        %5095 = vmatpush1.msra.mxu0 0.0
        %5096 = vmatprep.subr.mxu0 0.0
        %5097 = vmatpush1.msra.mxu0 0.0
        %5098 = vmatprep.subr.mxu0 0.0
        %5099 = vmatpush1.msra.mxu0 0.0
        %5100 = vmatprep.subr.mxu0 0.0
        %5101 = vmatpush1.msra.mxu0 0.0
        %5102 = vmatprep.subr.mxu0 0.0
        %5103 = vmatpush1.msra.mxu0 0.0
        %5104 = vmatprep.subr.mxu0 0.0
        %5105 = vmatpush1.msra.mxu0 0.0
        %5106 = vmatprep.mubr.f32.mxu0 0.0
        %5107 = vmatmul.mubr.f32.gmra.mrb[0].mxu0 %v5040
        %v5108 = vpop.f32.mrb[0].mxu0
        %v5109 = vadd.f32 0.0, %v5108
        %v5110 = vpop.f32.mrb[0].mxu0
        %5111 = vdwg.mxu0
        %v5113 = vsel %vm740, %v5032, 0
        %5115 = vmatprep.subr.mxu0 0.0
        %5116 = vmatpush1.msra.mxu0 %v3120
        %5117 = vmatprep.subr.mxu0 0.0
        %5118 = vmatpush1.msra.mxu0 %v3121
        %5119 = vmatprep.subr.mxu0 0.0
        %5120 = vmatpush1.msra.mxu0 %v3122
        %5121 = vmatprep.subr.mxu0 0.0
        %5122 = vmatpush1.msra.mxu0 %v3123
        %5123 = vmatprep.subr.mxu0 0.0
        %5124 = vmatpush1.msra.mxu0 0.0
        %5125 = vmatprep.subr.mxu0 0.0
        %5126 = vmatpush1.msra.mxu0 0.0
        %5127 = vmatprep.subr.mxu0 0.0
        %5128 = vmatpush1.msra.mxu0 0.0
        %5129 = vmatprep.subr.mxu0 0.0
        %5130 = vmatpush1.msra.mxu0 0.0
        %5131 = vmatprep.subr.mxu0 0.0
        %5132 = vmatpush1.msra.mxu0 0.0
        %5133 = vmatprep.subr.mxu0 0.0
        %5134 = vmatpush1.msra.mxu0 0.0
        %5135 = vmatprep.subr.mxu0 0.0
        %5136 = vmatpush1.msra.mxu0 0.0
        %5137 = vmatprep.subr.mxu0 0.0
        %5138 = vmatpush1.msra.mxu0 0.0
        %5139 = vmatprep.subr.mxu0 0.0
        %5140 = vmatpush1.msra.mxu0 0.0
        %5141 = vmatprep.subr.mxu0 0.0
        %5142 = vmatpush1.msra.mxu0 0.0
        %5143 = vmatprep.subr.mxu0 0.0
        %5144 = vmatpush1.msra.mxu0 0.0
        %5145 = vmatprep.subr.mxu0 0.0
        %5146 = vmatpush1.msra.mxu0 0.0
        %5147 = vmatprep.subr.mxu0 0.0
        %5148 = vmatpush1.msra.mxu0 0.0
        %5149 = vmatprep.subr.mxu0 0.0
        %5150 = vmatpush1.msra.mxu0 0.0
        %5151 = vmatprep.subr.mxu0 0.0
        %5152 = vmatpush1.msra.mxu0 0.0
        %5153 = vmatprep.subr.mxu0 0.0
        %5154 = vmatpush1.msra.mxu0 0.0
        %5155 = vmatprep.subr.mxu0 0.0
        %5156 = vmatpush1.msra.mxu0 0.0
        %5157 = vmatprep.subr.mxu0 0.0
        %5158 = vmatpush1.msra.mxu0 0.0
        %5159 = vmatprep.subr.mxu0 0.0
        %5160 = vmatpush1.msra.mxu0 0.0
        %5161 = vmatprep.subr.mxu0 0.0
        %5162 = vmatpush1.msra.mxu0 0.0
        %5163 = vmatprep.subr.mxu0 0.0
        %5164 = vmatpush1.msra.mxu0 0.0
        %5165 = vmatprep.subr.mxu0 0.0
        %5166 = vmatpush1.msra.mxu0 0.0
        %5167 = vmatprep.subr.mxu0 0.0
        %5168 = vmatpush1.msra.mxu0 0.0
        %5169 = vmatprep.subr.mxu0 0.0
        %5170 = vmatpush1.msra.mxu0 0.0
        %5171 = vmatprep.subr.mxu0 0.0
        %5172 = vmatpush1.msra.mxu0 0.0
        %5173 = vmatprep.subr.mxu0 0.0
        %5174 = vmatpush1.msra.mxu0 0.0
        %5175 = vmatprep.subr.mxu0 0.0
        %5176 = vmatpush1.msra.mxu0 0.0
        %5177 = vmatprep.subr.mxu0 0.0
        %5178 = vmatpush1.msra.mxu0 0.0
        %5179 = vmatprep.mubr.f32.mxu0 0.0
        %5180 = vmatmul.mubr.f32.gmra.mrb[0].mxu0 %v5113
        %v5181 = vpop.f32.mrb[0].mxu0
        %v5182 = vadd.f32 0.0, %v5181
        %v5183 = vpop.f32.mrb[0].mxu0
        %5184 = vdwg.mxu0
        %v5186 = vsel %vm740, %v5033, 0
        %5188 = vmatprep.subr.mxu0 0.0
        %5189 = vmatpush1.msra.mxu0 %v3124
        %5190 = vmatprep.subr.mxu0 0.0
        %5191 = vmatpush1.msra.mxu0 %v3125
        %5192 = vmatprep.subr.mxu0 0.0
        %5193 = vmatpush1.msra.mxu0 %v3126
        %5194 = vmatprep.subr.mxu0 0.0
        %5195 = vmatpush1.msra.mxu0 %v3127
        %5196 = vmatprep.subr.mxu0 0.0
        %5197 = vmatpush1.msra.mxu0 0.0
        %5198 = vmatprep.subr.mxu0 0.0
        %5199 = vmatpush1.msra.mxu0 0.0
        %5200 = vmatprep.subr.mxu0 0.0
        %5201 = vmatpush1.msra.mxu0 0.0
        %5202 = vmatprep.subr.mxu0 0.0
        %5203 = vmatpush1.msra.mxu0 0.0
        %5204 = vmatprep.subr.mxu0 0.0
        %5205 = vmatpush1.msra.mxu0 0.0
        %5206 = vmatprep.subr.mxu0 0.0
        %5207 = vmatpush1.msra.mxu0 0.0
        %5208 = vmatprep.subr.mxu0 0.0
        %5209 = vmatpush1.msra.mxu0 0.0
        %5210 = vmatprep.subr.mxu0 0.0
        %5211 = vmatpush1.msra.mxu0 0.0
        %5212 = vmatprep.subr.mxu0 0.0
        %5213 = vmatpush1.msra.mxu0 0.0
        %5214 = vmatprep.subr.mxu0 0.0
        %5215 = vmatpush1.msra.mxu0 0.0
        %5216 = vmatprep.subr.mxu0 0.0
        %5217 = vmatpush1.msra.mxu0 0.0
        %5218 = vmatprep.subr.mxu0 0.0
        %5219 = vmatpush1.msra.mxu0 0.0
        %5220 = vmatprep.subr.mxu0 0.0
        %5221 = vmatpush1.msra.mxu0 0.0
        %5222 = vmatprep.subr.mxu0 0.0
        %5223 = vmatpush1.msra.mxu0 0.0
        %5224 = vmatprep.subr.mxu0 0.0
        %5225 = vmatpush1.msra.mxu0 0.0
        %5226 = vmatprep.subr.mxu0 0.0
        %5227 = vmatpush1.msra.mxu0 0.0
        %5228 = vmatprep.subr.mxu0 0.0
        %5229 = vmatpush1.msra.mxu0 0.0
        %5230 = vmatprep.subr.mxu0 0.0
        %5231 = vmatpush1.msra.mxu0 0.0
        %5232 = vmatprep.subr.mxu0 0.0
        %5233 = vmatpush1.msra.mxu0 0.0
        %5234 = vmatprep.subr.mxu0 0.0
        %5235 = vmatpush1.msra.mxu0 0.0
        %5236 = vmatprep.subr.mxu0 0.0
        %5237 = vmatpush1.msra.mxu0 0.0
        %5238 = vmatprep.subr.mxu0 0.0
        %5239 = vmatpush1.msra.mxu0 0.0
        %5240 = vmatprep.subr.mxu0 0.0
        %5241 = vmatpush1.msra.mxu0 0.0
        %5242 = vmatprep.subr.mxu0 0.0
        %5243 = vmatpush1.msra.mxu0 0.0
        %5244 = vmatprep.subr.mxu0 0.0
        %5245 = vmatpush1.msra.mxu0 0.0
        %5246 = vmatprep.subr.mxu0 0.0
        %5247 = vmatpush1.msra.mxu0 0.0
        %5248 = vmatprep.subr.mxu0 0.0
        %5249 = vmatpush1.msra.mxu0 0.0
        %5250 = vmatprep.subr.mxu0 0.0
        %5251 = vmatpush1.msra.mxu0 0.0
        %5252 = vmatprep.mubr.f32.mxu0 0.0
        %5253 = vmatmul.mubr.f32.gmra.mrb[0].mxu0 %v5186
        %v5254 = vpop.f32.mrb[0].mxu0
        %v5255 = vadd.f32 0.0, %v5254
        %v5256 = vpop.f32.mrb[0].mxu0
        %5257 = vdwg.mxu0
        %v5259 = vsel %vm740, %v5034, 0
        %5261 = vmatprep.subr.mxu0 0.0
        %5262 = vmatpush1.msra.mxu0 %v3128
        %5263 = vmatprep.subr.mxu0 0.0
        %5264 = vmatpush1.msra.mxu0 %v3129
        %5265 = vmatprep.subr.mxu0 0.0
        %5266 = vmatpush1.msra.mxu0 %v3130
        %5267 = vmatprep.subr.mxu0 0.0
        %5268 = vmatpush1.msra.mxu0 %v3131
        %5269 = vmatprep.subr.mxu0 0.0
        %5270 = vmatpush1.msra.mxu0 0.0
        %5271 = vmatprep.subr.mxu0 0.0
        %5272 = vmatpush1.msra.mxu0 0.0
        %5273 = vmatprep.subr.mxu0 0.0
        %5274 = vmatpush1.msra.mxu0 0.0
        %5275 = vmatprep.subr.mxu0 0.0
        %5276 = vmatpush1.msra.mxu0 0.0
        %5277 = vmatprep.subr.mxu0 0.0
        %5278 = vmatpush1.msra.mxu0 0.0
        %5279 = vmatprep.subr.mxu0 0.0
        %5280 = vmatpush1.msra.mxu0 0.0
        %5281 = vmatprep.subr.mxu0 0.0
        %5282 = vmatpush1.msra.mxu0 0.0
        %5283 = vmatprep.subr.mxu0 0.0
        %5284 = vmatpush1.msra.mxu0 0.0
        %5285 = vmatprep.subr.mxu0 0.0
        %5286 = vmatpush1.msra.mxu0 0.0
        %5287 = vmatprep.subr.mxu0 0.0
        %5288 = vmatpush1.msra.mxu0 0.0
        %5289 = vmatprep.subr.mxu0 0.0
        %5290 = vmatpush1.msra.mxu0 0.0
        %5291 = vmatprep.subr.mxu0 0.0
        %5292 = vmatpush1.msra.mxu0 0.0
        %5293 = vmatprep.subr.mxu0 0.0
        %5294 = vmatpush1.msra.mxu0 0.0
        %5295 = vmatprep.subr.mxu0 0.0
        %5296 = vmatpush1.msra.mxu0 0.0
        %5297 = vmatprep.subr.mxu0 0.0
        %5298 = vmatpush1.msra.mxu0 0.0
        %5299 = vmatprep.subr.mxu0 0.0
        %5300 = vmatpush1.msra.mxu0 0.0
        %5301 = vmatprep.subr.mxu0 0.0
        %5302 = vmatpush1.msra.mxu0 0.0
        %5303 = vmatprep.subr.mxu0 0.0
        %5304 = vmatpush1.msra.mxu0 0.0
        %5305 = vmatprep.subr.mxu0 0.0
        %5306 = vmatpush1.msra.mxu0 0.0
        %5307 = vmatprep.subr.mxu0 0.0
        %5308 = vmatpush1.msra.mxu0 0.0
        %5309 = vmatprep.subr.mxu0 0.0
        %5310 = vmatpush1.msra.mxu0 0.0
        %5311 = vmatprep.subr.mxu0 0.0
        %5312 = vmatpush1.msra.mxu0 0.0
        %5313 = vmatprep.subr.mxu0 0.0
        %5314 = vmatpush1.msra.mxu0 0.0
        %5315 = vmatprep.subr.mxu0 0.0
        %5316 = vmatpush1.msra.mxu0 0.0
        %5317 = vmatprep.subr.mxu0 0.0
        %5318 = vmatpush1.msra.mxu0 0.0
        %5319 = vmatprep.subr.mxu0 0.0
        %5320 = vmatpush1.msra.mxu0 0.0
        %5321 = vmatprep.subr.mxu0 0.0
        %5322 = vmatpush1.msra.mxu0 0.0
        %5323 = vmatprep.subr.mxu0 0.0
        %5324 = vmatpush1.msra.mxu0 0.0
        %5325 = vmatprep.mubr.f32.mxu0 0.0
        %5326 = vmatmul.mubr.f32.gmra.mrb[0].mxu0 %v5259
        %v5327 = vpop.f32.mrb[0].mxu0
        %v5328 = vadd.f32 0.0, %v5327
        %v5329 = vpop.f32.mrb[0].mxu0
        %5330 = vdwg.mxu0
        %v5332 = vsel %vm740, %v5035, 0
        %5334 = vmatprep.subr.mxu0 0.0
        %5335 = vmatpush1.msra.mxu0 %v3132
        %5336 = vmatprep.subr.mxu0 0.0
        %5337 = vmatpush1.msra.mxu0 %v3133
        %5338 = vmatprep.subr.mxu0 0.0
        %5339 = vmatpush1.msra.mxu0 %v3134
        %5340 = vmatprep.subr.mxu0 0.0
        %5341 = vmatpush1.msra.mxu0 %v3135
        %5342 = vmatprep.subr.mxu0 0.0
        %5343 = vmatpush1.msra.mxu0 0.0
        %5344 = vmatprep.subr.mxu0 0.0
        %5345 = vmatpush1.msra.mxu0 0.0
        %5346 = vmatprep.subr.mxu0 0.0
        %5347 = vmatpush1.msra.mxu0 0.0
        %5348 = vmatprep.subr.mxu0 0.0
        %5349 = vmatpush1.msra.mxu0 0.0
        %5350 = vmatprep.subr.mxu0 0.0
        %5351 = vmatpush1.msra.mxu0 0.0
        %5352 = vmatprep.subr.mxu0 0.0
        %5353 = vmatpush1.msra.mxu0 0.0
        %5354 = vmatprep.subr.mxu0 0.0
        %5355 = vmatpush1.msra.mxu0 0.0
        %5356 = vmatprep.subr.mxu0 0.0
        %5357 = vmatpush1.msra.mxu0 0.0
        %5358 = vmatprep.subr.mxu0 0.0
        %5359 = vmatpush1.msra.mxu0 0.0
        %5360 = vmatprep.subr.mxu0 0.0
        %5361 = vmatpush1.msra.mxu0 0.0
        %5362 = vmatprep.subr.mxu0 0.0
        %5363 = vmatpush1.msra.mxu0 0.0
        %5364 = vmatprep.subr.mxu0 0.0
        %5365 = vmatpush1.msra.mxu0 0.0
        %5366 = vmatprep.subr.mxu0 0.0
        %5367 = vmatpush1.msra.mxu0 0.0
        %5368 = vmatprep.subr.mxu0 0.0
        %5369 = vmatpush1.msra.mxu0 0.0
        %5370 = vmatprep.subr.mxu0 0.0
        %5371 = vmatpush1.msra.mxu0 0.0
        %5372 = vmatprep.subr.mxu0 0.0
        %5373 = vmatpush1.msra.mxu0 0.0
        %5374 = vmatprep.subr.mxu0 0.0
        %5375 = vmatpush1.msra.mxu0 0.0
        %5376 = vmatprep.subr.mxu0 0.0
        %5377 = vmatpush1.msra.mxu0 0.0
        %5378 = vmatprep.subr.mxu0 0.0
        %5379 = vmatpush1.msra.mxu0 0.0
        %5380 = vmatprep.subr.mxu0 0.0
        %5381 = vmatpush1.msra.mxu0 0.0
        %5382 = vmatprep.subr.mxu0 0.0
        %5383 = vmatpush1.msra.mxu0 0.0
        %5384 = vmatprep.subr.mxu0 0.0
        %5385 = vmatpush1.msra.mxu0 0.0
        %5386 = vmatprep.subr.mxu0 0.0
        %5387 = vmatpush1.msra.mxu0 0.0
        %5388 = vmatprep.subr.mxu0 0.0
        %5389 = vmatpush1.msra.mxu0 0.0
        %5390 = vmatprep.subr.mxu0 0.0
        %5391 = vmatpush1.msra.mxu0 0.0
        %5392 = vmatprep.subr.mxu0 0.0
        %5393 = vmatpush1.msra.mxu0 0.0
        %5394 = vmatprep.subr.mxu0 0.0
        %5395 = vmatpush1.msra.mxu0 0.0
        %5396 = vmatprep.subr.mxu0 0.0
        %5397 = vmatpush1.msra.mxu0 0.0
        %5398 = vmatprep.mubr.f32.mxu0 0.0
        %5399 = vmatmul.mubr.f32.gmra.mrb[0].mxu0 %v5332
        %v5400 = vpop.f32.mrb[0].mxu0
        %v5401 = vadd.f32 0.0, %v5400
        %v5402 = vpop.f32.mrb[0].mxu0
        %5403 = vdwg.mxu0
        %v5405 = vsel %vm740, %v5036, 0
        %5407 = vmatprep.subr.mxu0 0.0
        %5408 = vmatpush1.msra.mxu0 %v3136
        %5409 = vmatprep.subr.mxu0 0.0
        %5410 = vmatpush1.msra.mxu0 %v3137
        %5411 = vmatprep.subr.mxu0 0.0
        %5412 = vmatpush1.msra.mxu0 %v3138
        %5413 = vmatprep.subr.mxu0 0.0
        %5414 = vmatpush1.msra.mxu0 %v3139
        %5415 = vmatprep.subr.mxu0 0.0
        %5416 = vmatpush1.msra.mxu0 0.0
        %5417 = vmatprep.subr.mxu0 0.0
        %5418 = vmatpush1.msra.mxu0 0.0
        %5419 = vmatprep.subr.mxu0 0.0
        %5420 = vmatpush1.msra.mxu0 0.0
        %5421 = vmatprep.subr.mxu0 0.0
        %5422 = vmatpush1.msra.mxu0 0.0
        %5423 = vmatprep.subr.mxu0 0.0
        %5424 = vmatpush1.msra.mxu0 0.0
        %5425 = vmatprep.subr.mxu0 0.0
        %5426 = vmatpush1.msra.mxu0 0.0
        %5427 = vmatprep.subr.mxu0 0.0
        %5428 = vmatpush1.msra.mxu0 0.0
        %5429 = vmatprep.subr.mxu0 0.0
        %5430 = vmatpush1.msra.mxu0 0.0
        %5431 = vmatprep.subr.mxu0 0.0
        %5432 = vmatpush1.msra.mxu0 0.0
        %5433 = vmatprep.subr.mxu0 0.0
        %5434 = vmatpush1.msra.mxu0 0.0
        %5435 = vmatprep.subr.mxu0 0.0
        %5436 = vmatpush1.msra.mxu0 0.0
        %5437 = vmatprep.subr.mxu0 0.0
        %5438 = vmatpush1.msra.mxu0 0.0
        %5439 = vmatprep.subr.mxu0 0.0
        %5440 = vmatpush1.msra.mxu0 0.0
        %5441 = vmatprep.subr.mxu0 0.0
        %5442 = vmatpush1.msra.mxu0 0.0
        %5443 = vmatprep.subr.mxu0 0.0
        %5444 = vmatpush1.msra.mxu0 0.0
        %5445 = vmatprep.subr.mxu0 0.0
        %5446 = vmatpush1.msra.mxu0 0.0
        %5447 = vmatprep.subr.mxu0 0.0
        %5448 = vmatpush1.msra.mxu0 0.0
        %5449 = vmatprep.subr.mxu0 0.0
        %5450 = vmatpush1.msra.mxu0 0.0
        %5451 = vmatprep.subr.mxu0 0.0
        %5452 = vmatpush1.msra.mxu0 0.0
        %5453 = vmatprep.subr.mxu0 0.0
        %5454 = vmatpush1.msra.mxu0 0.0
        %5455 = vmatprep.subr.mxu0 0.0
        %5456 = vmatpush1.msra.mxu0 0.0
        %5457 = vmatprep.subr.mxu0 0.0
        %5458 = vmatpush1.msra.mxu0 0.0
        %5459 = vmatprep.subr.mxu0 0.0
        %5460 = vmatpush1.msra.mxu0 0.0
        %5461 = vmatprep.subr.mxu0 0.0
        %5462 = vmatpush1.msra.mxu0 0.0
        %5463 = vmatprep.subr.mxu0 0.0
        %5464 = vmatpush1.msra.mxu0 0.0
        %5465 = vmatprep.subr.mxu0 0.0
        %5466 = vmatpush1.msra.mxu0 0.0
        %5467 = vmatprep.subr.mxu0 0.0
        %5468 = vmatpush1.msra.mxu0 0.0
        %5469 = vmatprep.subr.mxu0 0.0
        %5470 = vmatpush1.msra.mxu0 0.0
        %5471 = vmatprep.mubr.f32.mxu0 0.0
        %5472 = vmatmul.mubr.f32.gmra.mrb[0].mxu0 %v5405
        %v5473 = vpop.f32.mrb[0].mxu0
        %v5474 = vadd.f32 0.0, %v5473
        %v5475 = vpop.f32.mrb[0].mxu0
        %5476 = vdwg.mxu0
        %v5478 = vsel %vm740, %v5037, 0
        %5480 = vmatprep.subr.mxu0 0.0
        %5481 = vmatpush1.msra.mxu0 %v3140
        %5482 = vmatprep.subr.mxu0 0.0
        %5483 = vmatpush1.msra.mxu0 %v3141
        %5484 = vmatprep.subr.mxu0 0.0
        %5485 = vmatpush1.msra.mxu0 %v3142
        %5486 = vmatprep.subr.mxu0 0.0
        %5487 = vmatpush1.msra.mxu0 %v3143
        %5488 = vmatprep.subr.mxu0 0.0
        %5489 = vmatpush1.msra.mxu0 0.0
        %5490 = vmatprep.subr.mxu0 0.0
        %5491 = vmatpush1.msra.mxu0 0.0
        %5492 = vmatprep.subr.mxu0 0.0
        %5493 = vmatpush1.msra.mxu0 0.0
        %5494 = vmatprep.subr.mxu0 0.0
        %5495 = vmatpush1.msra.mxu0 0.0
        %5496 = vmatprep.subr.mxu0 0.0
        %5497 = vmatpush1.msra.mxu0 0.0
        %5498 = vmatprep.subr.mxu0 0.0
        %5499 = vmatpush1.msra.mxu0 0.0
        %5500 = vmatprep.subr.mxu0 0.0
        %5501 = vmatpush1.msra.mxu0 0.0
        %5502 = vmatprep.subr.mxu0 0.0
        %5503 = vmatpush1.msra.mxu0 0.0
        %5504 = vmatprep.subr.mxu0 0.0
        %5505 = vmatpush1.msra.mxu0 0.0
        %5506 = vmatprep.subr.mxu0 0.0
        %5507 = vmatpush1.msra.mxu0 0.0
        %5508 = vmatprep.subr.mxu0 0.0
        %5509 = vmatpush1.msra.mxu0 0.0
        %5510 = vmatprep.subr.mxu0 0.0
        %5511 = vmatpush1.msra.mxu0 0.0
        %5512 = vmatprep.subr.mxu0 0.0
        %5513 = vmatpush1.msra.mxu0 0.0
        %5514 = vmatprep.subr.mxu0 0.0
        %5515 = vmatpush1.msra.mxu0 0.0
        %5516 = vmatprep.subr.mxu0 0.0
        %5517 = vmatpush1.msra.mxu0 0.0
        %5518 = vmatprep.subr.mxu0 0.0
        %5519 = vmatpush1.msra.mxu0 0.0
        %5520 = vmatprep.subr.mxu0 0.0
        %5521 = vmatpush1.msra.mxu0 0.0
        %5522 = vmatprep.subr.mxu0 0.0
        %5523 = vmatpush1.msra.mxu0 0.0
        %5524 = vmatprep.subr.mxu0 0.0
        %5525 = vmatpush1.msra.mxu0 0.0
        %5526 = vmatprep.subr.mxu0 0.0
        %5527 = vmatpush1.msra.mxu0 0.0
        %5528 = vmatprep.subr.mxu0 0.0
        %5529 = vmatpush1.msra.mxu0 0.0
        %5530 = vmatprep.subr.mxu0 0.0
        %5531 = vmatpush1.msra.mxu0 0.0
        %5532 = vmatprep.subr.mxu0 0.0
        %5533 = vmatpush1.msra.mxu0 0.0
        %5534 = vmatprep.subr.mxu0 0.0
        %5535 = vmatpush1.msra.mxu0 0.0
        %5536 = vmatprep.subr.mxu0 0.0
        %5537 = vmatpush1.msra.mxu0 0.0
        %5538 = vmatprep.subr.mxu0 0.0
        %5539 = vmatpush1.msra.mxu0 0.0
        %5540 = vmatprep.subr.mxu0 0.0
        %5541 = vmatpush1.msra.mxu0 0.0
        %5542 = vmatprep.subr.mxu0 0.0
        %5543 = vmatpush1.msra.mxu0 0.0
        %5544 = vmatprep.mubr.f32.mxu0 0.0
        %5545 = vmatmul.mubr.f32.gmra.mrb[0].mxu0 %v5478
        %v5546 = vpop.f32.mrb[0].mxu0
        %v5547 = vadd.f32 0.0, %v5546
        %v5548 = vpop.f32.mrb[0].mxu0
        %5549 = vdwg.mxu0
        %v5551 = vsel %vm740, %v5038, 0
        %5553 = vmatprep.subr.mxu0 0.0
        %5554 = vmatpush1.msra.mxu0 %v3144
        %5555 = vmatprep.subr.mxu0 0.0
        %5556 = vmatpush1.msra.mxu0 %v3145
        %5557 = vmatprep.subr.mxu0 0.0
        %5558 = vmatpush1.msra.mxu0 %v3146
        %5559 = vmatprep.subr.mxu0 0.0
        %5560 = vmatpush1.msra.mxu0 %v3147
        %5561 = vmatprep.subr.mxu0 0.0
        %5562 = vmatpush1.msra.mxu0 0.0
        %5563 = vmatprep.subr.mxu0 0.0
        %5564 = vmatpush1.msra.mxu0 0.0
        %5565 = vmatprep.subr.mxu0 0.0
        %5566 = vmatpush1.msra.mxu0 0.0
        %5567 = vmatprep.subr.mxu0 0.0
        %5568 = vmatpush1.msra.mxu0 0.0
        %5569 = vmatprep.subr.mxu0 0.0
        %5570 = vmatpush1.msra.mxu0 0.0
        %5571 = vmatprep.subr.mxu0 0.0
        %5572 = vmatpush1.msra.mxu0 0.0
        %5573 = vmatprep.subr.mxu0 0.0
        %5574 = vmatpush1.msra.mxu0 0.0
        %5575 = vmatprep.subr.mxu0 0.0
        %5576 = vmatpush1.msra.mxu0 0.0
        %5577 = vmatprep.subr.mxu0 0.0
        %5578 = vmatpush1.msra.mxu0 0.0
        %5579 = vmatprep.subr.mxu0 0.0
        %5580 = vmatpush1.msra.mxu0 0.0
        %5581 = vmatprep.subr.mxu0 0.0
        %5582 = vmatpush1.msra.mxu0 0.0
        %5583 = vmatprep.subr.mxu0 0.0
        %5584 = vmatpush1.msra.mxu0 0.0
        %5585 = vmatprep.subr.mxu0 0.0
        %5586 = vmatpush1.msra.mxu0 0.0
        %5587 = vmatprep.subr.mxu0 0.0
        %5588 = vmatpush1.msra.mxu0 0.0
        %5589 = vmatprep.subr.mxu0 0.0
        %5590 = vmatpush1.msra.mxu0 0.0
        %5591 = vmatprep.subr.mxu0 0.0
        %5592 = vmatpush1.msra.mxu0 0.0
        %5593 = vmatprep.subr.mxu0 0.0
        %5594 = vmatpush1.msra.mxu0 0.0
        %5595 = vmatprep.subr.mxu0 0.0
        %5596 = vmatpush1.msra.mxu0 0.0
        %5597 = vmatprep.subr.mxu0 0.0
        %5598 = vmatpush1.msra.mxu0 0.0
        %5599 = vmatprep.subr.mxu0 0.0
        %5600 = vmatpush1.msra.mxu0 0.0
        %5601 = vmatprep.subr.mxu0 0.0
        %5602 = vmatpush1.msra.mxu0 0.0
        %5603 = vmatprep.subr.mxu0 0.0
        %5604 = vmatpush1.msra.mxu0 0.0
        %5605 = vmatprep.subr.mxu0 0.0
        %5606 = vmatpush1.msra.mxu0 0.0
        %5607 = vmatprep.subr.mxu0 0.0
        %5608 = vmatpush1.msra.mxu0 0.0
        %5609 = vmatprep.subr.mxu0 0.0
        %5610 = vmatpush1.msra.mxu0 0.0
        %5611 = vmatprep.subr.mxu0 0.0
        %5612 = vmatpush1.msra.mxu0 0.0
        %5613 = vmatprep.subr.mxu0 0.0
        %5614 = vmatpush1.msra.mxu0 0.0
        %5615 = vmatprep.subr.mxu0 0.0
        %5616 = vmatpush1.msra.mxu0 0.0
        %5617 = vmatprep.mubr.f32.mxu0 0.0
        %5618 = vmatmul.mubr.f32.gmra.mrb[0].mxu0 %v5551
        %v5619 = vpop.f32.mrb[0].mxu0
        %v5620 = vadd.f32 0.0, %v5619
        %v5621 = vpop.f32.mrb[0].mxu0
        %5622 = vdwg.mxu0
        %5623 = vst.msk [vmem:[%s576] sm:$0xff] %vm983, %v5109
        %5624 = vst.msk [vmem:[%s576 + $0x8] sm:$0xff] %vm983, %v5182
        %5625 = vst.msk [vmem:[%s576 + $0x10] sm:$0xff] %vm983, %v5255
        %5626 = vst.msk [vmem:[%s576 + $0x18] sm:$0xff] %vm983, %v5328
        %5627 = vst.msk [vmem:[%s576 + $0x20] sm:$0xff] %vm983, %v5401
        %5628 = vst.msk [vmem:[%s576 + $0x28] sm:$0xff] %vm983, %v5474
        %5629 = vst.msk [vmem:[%s576 + $0x30] sm:$0xff] %vm983, %v5547
        %5630 = vst.msk [vmem:[%s576 + $0x38] sm:$0xff] %vm983, %v5620
        %s5631 = sand.u32 %s270, 1
        %s5632 = sand.u32 %s270, 1
        %s5633 = smul.addr %s5632, 64
        %s5634 = scalar_lea.vmem [#allocation6], %s5633
        %s5635 = smul.u32 4, %s26
        %p5636 = scmp.lt.s32.totalorder %s5635, 7
        %s5637 = scalar_select %p5636, %s5635, 7
        %s5638 = smul.addr %s5637, 8
        %s5639 = scalar_lea.vmem %s12, %s5638
        // Predicated region
        $region106: #{sent_attn_net_forward_batched.1} parent=100 // pred_check
          %p5640 = pneg %p280
        $region107: #{sent_attn_net_forward_batched.1} parent=100 // pred_check_branch
          %5642 = sbr.rel (%p5640) target = $region109
        $region108: #{sent_attn_net_forward_batched.1} parent=100 // pred_region
          %s5643 = smul.addr %s26, 8
          %s5644 = scalar_lea.vmem %s11, %s5643
          // Predicated region
          $region110: #{sent_attn_net_forward_batched.1} parent=108 // pred_check
            _
          $region111: #{sent_attn_net_forward_batched.1} parent=108 // pred_check_branch
            %5646 = sbr.rel (0) target = $region113
          $region112: #{sent_attn_net_forward_batched.1} parent=108 // pred_region
            // Predicated region
            $region114: #{sent_attn_net_forward_batched.1} parent=112 // pred_check
              _
            $region115: #{sent_attn_net_forward_batched.1} parent=112 // pred_check_branch
              %5648 = sbr.rel (0) target = $region117
            $region116: #{sent_attn_net_forward_batched.1} parent=112 // pred_region
              // Predicated region
              $region129: #{sent_attn_net_forward_batched.1} parent=116 // pred_check
                _
              $region130: #{sent_attn_net_forward_batched.1} parent=116 // pred_check_branch
                %5677 = sbr.rel (0) target = $region132
              $region131: #{sent_attn_net_forward_batched.1} parent=116 // pred_region
                loop: start=0, step=1, limit=1
                $region133: #{sent_attn_net_forward_batched.1} parent=131 // loop_pre_header
                  _
                $region134: #{sent_attn_net_forward_batched.1} parent=131 // loop_header
                  %s5679 = sphi 0, %s5683
                  %p5680 = scmp.ge.s32.totalorder %s5679, 1
                  %s5684 = sphi %s5634, %s5634
                  %s5685 = sphi %s5644, %s5644
                $region135: #{sent_attn_net_forward_batched.1} parent=131 // loop_header_branch
                  %5682 = sbr.rel (%p5680) target = $region139
                $region136: #{sent_attn_net_forward_batched.1} parent=131 // loop_body
                  %v5686 = vld [vmem:[%s5684] sm:$0xff]
                  %5687 = vst [vmem:[%s5685] sm:$0xff] %v5686
                  %v5688 = vld [vmem:[%s5684 + $0x8] sm:$0xff]
                  %5689 = vst [vmem:[%s5685 + $0x10] sm:$0xff] %v5688
                  %v5690 = vld [vmem:[%s5684 + $0x10] sm:$0xff]
                  %5691 = vst [vmem:[%s5685 + $0x20] sm:$0xff] %v5690
                  %v5692 = vld [vmem:[%s5684 + $0x18] sm:$0xff]
                  %5693 = vst [vmem:[%s5685 + $0x30] sm:$0xff] %v5692
                  %v5694 = vld [vmem:[%s5684 + $0x20] sm:$0xff]
                  %5695 = vst [vmem:[%s5685 + $0x40] sm:$0xff] %v5694
                  %v5696 = vld [vmem:[%s5684 + $0x28] sm:$0xff]
                  %5697 = vst [vmem:[%s5685 + $0x50] sm:$0xff] %v5696
                  %v5698 = vld [vmem:[%s5684 + $0x30] sm:$0xff]
                  %5699 = vst [vmem:[%s5685 + $0x60] sm:$0xff] %v5698
                  %v5700 = vld [vmem:[%s5684 + $0x38] sm:$0xff]
                  %5701 = vst [vmem:[%s5685 + $0x70] sm:$0xff] %v5700
                $region137: #{sent_attn_net_forward_batched.1} parent=131 // loop_footer
                  %s5683 = sadd.s32 1, %s5679
                $region138: #{sent_attn_net_forward_batched.1} parent=131 // loop_footer_branch
                  %5678 = sbr.rel target = $region134
                $region139: #{sent_attn_net_forward_batched.1} parent=131 // loop_exit
                  _
              $region132: #{sent_attn_net_forward_batched.1} parent=116 // pred_fallthru
                _
              // Predicated region
              $region140: #{sent_attn_net_forward_batched.1} parent=116 // pred_check
                _
              $region141: #{sent_attn_net_forward_batched.1} parent=116 // pred_check_branch
                %5703 = sbr.rel target = $region143
              $region142: #{sent_attn_net_forward_batched.1} parent=116 // pred_region
                _
              $region143: #{sent_attn_net_forward_batched.1} parent=116 // pred_fallthru
                _
            $region117: #{sent_attn_net_forward_batched.1} parent=112 // pred_fallthru
              _
            // Predicated region
            $region118: #{sent_attn_net_forward_batched.1} parent=112 // pred_check
              _
            $region119: #{sent_attn_net_forward_batched.1} parent=112 // pred_check_branch
              %5650 = sbr.rel target = $region121
            $region120: #{sent_attn_net_forward_batched.1} parent=112 // pred_region
              loop: start=0, step=1, limit=1
              $region122: #{sent_attn_net_forward_batched.1} parent=120 // loop_pre_header
                _
              $region123: #{sent_attn_net_forward_batched.1} parent=120 // loop_header
                %s5653 = sphi 0, %s5657
                %p5654 = scmp.ge.s32.totalorder %s5653, 1
                %s5658 = sphi %s5634, %s5634
                %s5659 = sphi %s5644, %s5644
              $region124: #{sent_attn_net_forward_batched.1} parent=120 // loop_header_branch
                %5656 = sbr.rel (%p5654) target = $region128
              $region125: #{sent_attn_net_forward_batched.1} parent=120 // loop_body
                %v5660 = vld [vmem:[%s5658] sm:$0xff]
                %5661 = vst [vmem:[%s5659] sm:$0xff] %v5660
                %v5662 = vld [vmem:[%s5658 + $0x8] sm:$0xff]
                %5663 = vst [vmem:[%s5659 + $0x10] sm:$0xff] %v5662
                %v5664 = vld [vmem:[%s5658 + $0x10] sm:$0xff]
                %5665 = vst [vmem:[%s5659 + $0x20] sm:$0xff] %v5664
                %v5666 = vld [vmem:[%s5658 + $0x18] sm:$0xff]
                %5667 = vst [vmem:[%s5659 + $0x30] sm:$0xff] %v5666
                %v5668 = vld [vmem:[%s5658 + $0x20] sm:$0xff]
                %5669 = vst [vmem:[%s5659 + $0x40] sm:$0xff] %v5668
                %v5670 = vld [vmem:[%s5658 + $0x28] sm:$0xff]
                %5671 = vst [vmem:[%s5659 + $0x50] sm:$0xff] %v5670
                %v5672 = vld [vmem:[%s5658 + $0x30] sm:$0xff]
                %5673 = vst [vmem:[%s5659 + $0x60] sm:$0xff] %v5672
                %v5674 = vld [vmem:[%s5658 + $0x38] sm:$0xff]
                %5675 = vst [vmem:[%s5659 + $0x70] sm:$0xff] %v5674
              $region126: #{sent_attn_net_forward_batched.1} parent=120 // loop_footer
                %s5657 = sadd.s32 1, %s5653
              $region127: #{sent_attn_net_forward_batched.1} parent=120 // loop_footer_branch
                %5652 = sbr.rel target = $region123
              $region128: #{sent_attn_net_forward_batched.1} parent=120 // loop_exit
                _
            $region121: #{sent_attn_net_forward_batched.1} parent=112 // pred_fallthru
              _
          $region113: #{sent_attn_net_forward_batched.1} parent=108 // pred_fallthru
            _
          %5704 = vnop
        $region109: #{sent_attn_net_forward_batched.1} parent=100 // pred_fallthru
          _
        // Predicated region
        $region144: #{sent_attn_net_forward_batched.1} parent=100 // pred_check
          %p5705 = pneg %p306
        $region145: #{sent_attn_net_forward_batched.1} parent=100 // pred_check_branch
          %5707 = sbr.rel (%p5705) target = $region147
        $region146: #{sent_attn_net_forward_batched.1} parent=100 // pred_region
          %s5708 = smul.u32 4, %s26
        $region147: #{sent_attn_net_forward_batched.1} parent=100 // pred_fallthru
          _
      $region101: #{sent_attn_net_forward_batched.1} parent=5 // pred_fallthru
        _
      %p5709 = scmp.le.s32.totalorder 2, %s21
      // Predicated region
      $region148: #{sent_attn_net_forward_batched.1} parent=5 // pred_check
        %p5710 = pneg %p5709
      $region149: #{sent_attn_net_forward_batched.1} parent=5 // pred_check_branch
        %5712 = sbr.rel (%p5710) target = $region151
      $region150: #{sent_attn_net_forward_batched.1} parent=5 // pred_region
        %s5713 = ssub.s32 %s21, 2
        // Predicated region
        $region152: #{sent_attn_net_forward_batched.1} parent=150 // pred_check
          %p5714 = pneg %p286
        $region153: #{sent_attn_net_forward_batched.1} parent=150 // pred_check_branch
          %5716 = sbr.rel (%p5714) target = $region155
        $region154: #{sent_attn_net_forward_batched.1} parent=150 // pred_region
          %s5717 = sand.u32 %s271, 1
          %s5718 = sand.u32 %s271, 1
          %s5719 = smul.addr %s5718, 64
          %s5720 = scalar_lea.vmem [#allocation6], %s5719
        $region155: #{sent_attn_net_forward_batched.1} parent=150 // pred_fallthru
          _
        // Predicated region
        $region156: #{sent_attn_net_forward_batched.1} parent=150 // pred_check
          %p5721 = pneg %p312
        $region157: #{sent_attn_net_forward_batched.1} parent=150 // pred_check_branch
          %5723 = sbr.rel (%p5721) target = $region159
        $region158: #{sent_attn_net_forward_batched.1} parent=150 // pred_region
          %s5724 = smul.u32 4, %s27
          %p5725 = scmp.lt.s32.totalorder %s5724, 7
          %s5726 = scalar_select %p5725, %s5724, 7
          %s5727 = smul.addr %s5726, 8
          %s5728 = scalar_lea.vmem %s12, %s5727
        $region159: #{sent_attn_net_forward_batched.1} parent=150 // pred_fallthru
          _
      $region151: #{sent_attn_net_forward_batched.1} parent=5 // pred_fallthru
        _
    $region6: #{sent_attn_net_forward_batched.1} parent=1 // loop_footer
      %s25 = sadd.s32 1, %s21
    $region7: #{sent_attn_net_forward_batched.1} parent=1 // loop_footer_branch
      %20 = sbr.rel target = $region3
    $region8: #{sent_attn_net_forward_batched.1} parent=1 // loop_exit
      _

</llo_original>
